<compile_context>
chip_gen: v7x
topology: tpu7x:2x2x1
jax: 0.10.0
libtpu: 0.0.40
codegen_flags: <defaults>
</compile_context>

<pallas_src>
import jax
import jax.numpy as jnp
from jax.experimental import pallas as pl
from jax.experimental.pallas import tpu as pltpu


# ------------------------------ fused kernel --------------------------------

def gyro_fused_kernel(patches_ref, w1_ref, b1_ref, w2_ref, b2_ref, w3_ref,
                      b3_ref, wih0_ref, whh0_ref, bih0_ref, bhh0n_ref,
                      wih1_ref, whh1_ref, bih1_ref, bhh1n_ref,
                      out_ref, gi0_scr):
    # patches_ref: (B, 4, SP)   conv weights (Cout, K) / biases (Cout, 1)
    # wih0 (SP, 3*HP); whh*/wih1 (HP, 3*HP); bih* (1, 3*HP) with the r/z
    # slices of b_hh pre-folded in; bhh*n (1, HP) = n-gate slice of b_hh only.
    # Gates r|z|n sit at 128-aligned lane offsets; all pad lanes/rows are 0.
    # out_ref: (B, T*HP) -- one lane-aligned 128-wide block per timestep.
    # gi0_scr: (B, T, 3*HP) VMEM scratch for the hoisted layer-1 projections.
    f32 = jnp.float32
    B = patches_ref.shape[0]
    HP = whh0_ref.shape[0]               # 128 (padded hidden)
    G = 3 * HP
    T = out_ref.shape[1] // HP           # 16

    w1 = w1_ref[...]; b1 = b1_ref[...]
    w2 = w2_ref[...]; b2 = b2_ref[...]
    w3 = w3_ref[...]; b3 = b3_ref[...]
    wih0 = wih0_ref[...]; bih0 = bih0_ref[...]
    whh0 = whh0_ref[...]
    wih1 = wih1_ref[...]
    whh1 = whh1_ref[...]

    # Hoisted broadcasts (JAX does not CSE broadcast_in_dim inside the loop).
    bhh0n = jnp.broadcast_to(bhh0n_ref[...], (B, HP))
    bhh1n = jnp.broadcast_to(bhh1n_ref[...], (B, HP))
    bih1_b = jnp.broadcast_to(bih1_ref[...], (B, G))

    # --- feature MLP + layer-1 input projection (all off the serial chain).
    # Channel-major (C, SP): rows = 16 output channels = GRU timesteps.
    for b in range(B):
        p = patches_ref[b]                                              # (4, SP)
        f = jnp.maximum(jnp.dot(w1, p, preferred_element_type=f32) + b1, 0.0)
        f = jnp.maximum(jnp.dot(w2, f, preferred_element_type=f32) + b2, 0.0)
        f = jnp.maximum(jnp.dot(w3, f, preferred_element_type=f32) + b3, 0.0)
        # One (16, SP) x (SP, 3*HP) matmul per sample; pad columns of f hit
        # zero rows of wih0 so padding is exact.
        gi0_scr[b] = jnp.dot(f, wih0, preferred_element_type=f32) + bih0

    def gru_cell(gi, gh, h_prev, bhhn):
        # gi/gh: (B, 3*HP); every gate slice is a whole-vreg 128-lane select.
        r = jax.nn.sigmoid(gi[:, 0:HP] + gh[:, 0:HP])
        z = jax.nn.sigmoid(gi[:, HP:2 * HP] + gh[:, HP:2 * HP])
        n = jnp.tanh(gi[:, 2 * HP:3 * HP] + r * (gh[:, 2 * HP:3 * HP] + bhhn))
        return (1.0 - z) * n + z * h_prev

    # --- interleaved, batched recurrence: layer-1 step t and layer-2 step t-1
    # run in the same iteration, so the two serial chains overlap.
    # TODO(synk): optionally keep whh0/whh1 stationary in the MXU across the
    # unrolled steps via pltpu.matmul_push_rhs/matmul_acc_lhs if the bundle
    # dump shows per-step RHS re-pushes.
    h1 = jnp.zeros((B, HP), f32)
    h2 = jnp.zeros((B, HP), f32)
    gi1_lag = None
    for t in range(T):
        # layer-1 cell, step t (gi0 read is off the h-chain)
        gi0_t = jnp.concatenate(
            [gi0_scr[b, t:t + 1, :] for b in range(B)], axis=0)        # (B, G)
        gh1 = jnp.dot(h1, whh0, preferred_element_type=f32)
        h1 = gru_cell(gi0_t, gh1, h1, bhh0n)

        # layer-2 cell, step t-1 (uses gi1 produced from h1 of step t-1)
        if t > 0:
            gh2 = jnp.dot(h2, whh1, preferred_element_type=f32)
            h2 = gru_cell(gi1_lag, gh2, h2, bhh1n)
            out_ref[:, (t - 1) * HP:t * HP] = h2

        # layer-2 input projection for step t (transient, one step of lag)
        gi1_lag = jnp.dot(h1, wih1, preferred_element_type=f32) + bih1_b

    # final layer-2 step T-1
    gh2 = jnp.dot(h2, whh1, preferred_element_type=f32)
    h2 = gru_cell(gi1_lag, gh2, h2, bhh1n)
    out_ref[:, (T - 1) * HP:T * HP] = h2


# -------------------------------- wrapper ------------------------------------

def im2col_2x2(x):
    # x: (B, 1, H, W) -> (B, 4, (H-1)*(W-1)); tap order matches the PyTorch
    # conv weight flatten (kh, kw) = (0,0),(0,1),(1,0),(1,1).
    B = x.shape[0]
    p = jnp.stack([x[:, 0, :-1, :-1], x[:, 0, :-1, 1:],
                   x[:, 0, 1:, :-1], x[:, 0, 1:, 1:]], axis=1)
    return p.reshape(B, 4, -1)


@jax.jit
def gyro_encoder_forward(x, K):
    B = x.shape[0]
    T, H, HP, SP = 16, 120, 128, 256
    patches = im2col_2x2(x)                                   # (B, 4, 238)
    patches = jnp.pad(patches,
                      ((0, 0), (0, 0), (0, SP - patches.shape[-1])))
    vmem = pl.BlockSpec(memory_space=pltpu.MemorySpace.VMEM)
    out = pl.pallas_call(
        gyro_fused_kernel,
        out_shape=jax.ShapeDtypeStruct((B, T * HP), jnp.float32),
        in_specs=[vmem] * 15,
        out_specs=vmem,
        scratch_shapes=[pltpu.VMEM((B, T, 3 * HP), jnp.float32)],
    )(patches, K["w1"], K["b1"], K["w2"], K["b2"], K["w3"], K["b3"],
      K["wih0"], K["whh0"], K["bih0"], K["bhh0n"],
      K["wih1"], K["whh1"], K["bih1"], K["bhh1n"])
    # Drop the 8 zero pad lanes of each 128-wide step block -> (B, 16*120).
    return out.reshape(B, T, HP)[:, :, :H].reshape(B, T * H)


# ----------------------- pure-JAX reference (sanity) ------------------------

def ref_forward(x, P):
    hp = jax.lax.Precision.HIGHEST
    B = x.shape[0]
    patches = im2col_2x2(x)                                   # (B, 4, S)
    S = patches.shape[-1]
    rows = patches.transpose(0, 2, 1).reshape(B * S, 4)
    h = jnp.maximum(jnp.dot(rows, P["w1"].T, precision=hp) + P["b1"], 0.0)
    h = jnp.maximum(jnp.dot(h, P["w2"].T, precision=hp) + P["b2"], 0.0)
    h = jnp.maximum(jnp.dot(h, P["w3"].T, precision=hp) + P["b3"], 0.0)
    feat = h.reshape(B, S, 16).transpose(0, 2, 1)             # (B, 16, S)

    def gru_layer(xs, wih, whh, bih, bhh):
        T = xs.shape[1]
        Hh = whh.shape[0]
        hst = jnp.zeros((xs.shape[0], Hh), jnp.float32)
        outs = []
        for t in range(T):
            gi = jnp.dot(xs[:, t, :], wih, precision=hp) + bih
            gh = jnp.dot(hst, whh, precision=hp) + bhh
            r = jax.nn.sigmoid(gi[:, :Hh] + gh[:, :Hh])
            z = jax.nn.sigmoid(gi[:, Hh:2 * Hh] + gh[:, Hh:2 * Hh])
            n = jnp.tanh(gi[:, 2 * Hh:] + r * gh[:, 2 * Hh:])
            hst = (1.0 - z) * n + z * hst
            outs.append(hst)
        return jnp.stack(outs, axis=1)

    y = gru_layer(feat, P["wih0"], P["whh0"], P["bih0"], P["bhh0"])
    y = gru_layer(y, P["wih1"], P["whh1"], P["bih1"], P["bhh1"])
    return y.reshape(B, -1)


# --------------------------- parameter construction -------------------------

def fold_bn(w, b, gamma, beta, mean, var, eps=1e-5):
    # w: (Cout, K) flattened conv weight, b: (Cout,); eval-mode BN folding.
    scale = gamma / jnp.sqrt(var + eps)
    return (w * scale[:, None]).astype(jnp.float32), \
           (((b - mean) * scale) + beta).astype(jnp.float32)


def make_params(key):
    ks = jax.random.split(key, 26)
    f32 = jnp.float32
    H = 120

    def nrm(k, shape, s=0.1):
        return (s * jax.random.normal(k, shape)).astype(f32)

    # conv1: (64,1,2,2) -> (64,4); conv2: (32,64,1,1) -> (32,64); conv3 -> (16,32)
    w1 = nrm(ks[0], (64, 1, 2, 2)).reshape(64, 4)
    b1 = nrm(ks[1], (64,))
    w2 = nrm(ks[2], (32, 64, 1, 1)).reshape(32, 64)
    b2 = nrm(ks[3], (32,))
    w3 = nrm(ks[4], (16, 32, 1, 1)).reshape(16, 32)
    b3 = nrm(ks[5], (16,))

    def bn(kg, kb, km, kv, c):
        return (1.0 + nrm(kg, (c,))), nrm(kb, (c,)), nrm(km, (c,)), \
               jax.random.uniform(kv, (c,), minval=0.5, maxval=1.5).astype(f32)

    g1, be1, m1, v1 = bn(ks[6], ks[7], ks[8], ks[9], 64)
    g2, be2, m2, v2 = bn(ks[10], ks[11], ks[12], ks[13], 32)
    g3, be3, m3, v3 = bn(ks[14], ks[15], ks[16], ks[17], 16)

    w1f, b1f = fold_bn(w1, b1, g1, be1, m1, v1)
    w2f, b2f = fold_bn(w2, b2, g2, be2, m2, v2)
    w3f, b3f = fold_bn(w3, b3, g3, be3, m3, v3)

    # GRU weights stored transposed to (in_features, 3H), gate order r|z|n.
    return dict(
        w1=w1f, b1=b1f, w2=w2f, b2=b2f, w3=w3f, b3=b3f,
        wih0=nrm(ks[18], (238, 3 * H), 0.05),
        whh0=nrm(ks[19], (H, 3 * H), 0.05),
        bih0=nrm(ks[20], (3 * H,), 0.05),
        bhh0=nrm(ks[21], (3 * H,), 0.05),
        wih1=nrm(ks[22], (H, 3 * H), 0.05),
        whh1=nrm(ks[23], (H, 3 * H), 0.05),
        bih1=nrm(ks[24], (3 * H,), 0.05),
        bhh1=nrm(ks[25], (3 * H,), 0.05),
    )


def pack_kernel_params(P, HP=128, SP=256):
    """Repack canonical params into the lane-aligned, gate-padded kernel layout.

    Also folds the r/z slices of b_hh into b_ih (the n slice stays separate
    because PyTorch's GRU multiplies it by r inside tanh).
    """
    H = P["whh0"].shape[0]

    def pad_gate_cols(w):                       # (D, 3H) -> (D, 3*HP)
        out = jnp.zeros((w.shape[0], 3 * HP), jnp.float32)
        for g in range(3):
            out = out.at[:, g * HP:g * HP + H].set(w[:, g * H:(g + 1) * H])
        return out

    def pad_rows(w, rows):                      # (D, C) -> (rows, C), zero pad
        return jnp.zeros((rows, w.shape[1]), jnp.float32).at[:w.shape[0], :].set(w)

    def pack_bias_ih(bih, bhh):                 # fold r/z of bhh into bih
        fused = bih.astype(jnp.float32) + jnp.concatenate(
            [bhh[:2 * H].astype(jnp.float32), jnp.zeros((H,), jnp.float32)])
        out = jnp.zeros((1, 3 * HP), jnp.float32)
        for g in range(3):
            out = out.at[0, g * HP:g * HP + H].set(fused[g * H:(g + 1) * H])
        return out

    def pack_bias_hn(bhh):                      # n slice only, (1, HP)
        return jnp.zeros((1, HP), jnp.float32).at[0, :H].set(bhh[2 * H:])

    return dict(
        w1=P["w1"], b1=P["b1"][:, None],
        w2=P["w2"], b2=P["b2"][:, None],
        w3=P["w3"], b3=P["b3"][:, None],
        wih0=pad_rows(pad_gate_cols(P["wih0"]), SP),
        whh0=pad_rows(pad_gate_cols(P["whh0"]), HP),
        bih0=pack_bias_ih(P["bih0"], P["bhh0"]),
        bhh0n=pack_bias_hn(P["bhh0"]),
        wih1=pad_rows(pad_gate_cols(P["wih1"]), HP),
        whh1=pad_rows(pad_gate_cols(P["whh1"]), HP),
        bih1=pack_bias_ih(P["bih1"], P["bhh1"]),
        bhh1n=pack_bias_hn(P["bhh1"]),
    )


# ---------------------------------- main -------------------------------------

if __name__ == "__main__":
    key = jax.random.PRNGKey(0)
    kx, kp = jax.random.split(key)
    # (H-1)*(W-1) must equal 238 (the GRU input size) -> H=15, W=18.
    x = jax.random.normal(kx, (2, 1, 15, 18), dtype=jnp.float32)
    P = make_params(kp)
    K = pack_kernel_params(P)

    out = jax.block_until_ready(gyro_encoder_forward(x, K))
    assert out.shape == (2, 16 * 120), out.shape

    ref = jax.block_until_ready(ref_forward(x, P))
    max_err = float(jnp.max(jnp.abs(out - ref)))
    assert jnp.allclose(out, ref, rtol=1e-2, atol=1e-2), max_err

    print("KERNEL_OK")
</pallas_src>

<mosaic_0001>
module attributes {stable_mosaic.version = 11 : i64} {
  func.func @gyro_fused_kernel(%arg0: memref<2x4x256xf32, #tpu.memory_space<vmem>>, %arg1: memref<64x4xf32, #tpu.memory_space<vmem>>, %arg2: memref<64x1xf32, #tpu.memory_space<vmem>>, %arg3: memref<32x64xf32, #tpu.memory_space<vmem>>, %arg4: memref<32x1xf32, #tpu.memory_space<vmem>>, %arg5: memref<16x32xf32, #tpu.memory_space<vmem>>, %arg6: memref<16x1xf32, #tpu.memory_space<vmem>>, %arg7: memref<256x384xf32, #tpu.memory_space<vmem>>, %arg8: memref<128x384xf32, #tpu.memory_space<vmem>>, %arg9: memref<1x384xf32, #tpu.memory_space<vmem>>, %arg10: memref<1x128xf32, #tpu.memory_space<vmem>>, %arg11: memref<128x384xf32, #tpu.memory_space<vmem>>, %arg12: memref<128x384xf32, #tpu.memory_space<vmem>>, %arg13: memref<1x384xf32, #tpu.memory_space<vmem>>, %arg14: memref<1x128xf32, #tpu.memory_space<vmem>>, %arg15: memref<2x2048xf32, #tpu.memory_space<vmem>>, %arg16: memref<2x16x384xf32, #tpu.memory_space<vmem>>) attributes {dimension_semantics = [], scalar_prefetch = 0 : i64, scratch_operands = 1 : i64, tpu.core_type = #tpu.core_type<tc>} {
    %c0 = arith.constant 0 : index
    %c0_0 = arith.constant 0 : index
    %0 = vector.load %arg1[%c0, %c0_0] : memref<64x4xf32, #tpu.memory_space<vmem>>, vector<64x4xf32>
    %c0_1 = arith.constant 0 : index
    %c0_2 = arith.constant 0 : index
    %1 = vector.load %arg2[%c0_1, %c0_2] : memref<64x1xf32, #tpu.memory_space<vmem>>, vector<64x1xf32>
    %c0_3 = arith.constant 0 : index
    %c0_4 = arith.constant 0 : index
    %2 = vector.load %arg3[%c0_3, %c0_4] : memref<32x64xf32, #tpu.memory_space<vmem>>, vector<32x64xf32>
    %c0_5 = arith.constant 0 : index
    %c0_6 = arith.constant 0 : index
    %3 = vector.load %arg4[%c0_5, %c0_6] : memref<32x1xf32, #tpu.memory_space<vmem>>, vector<32x1xf32>
    %c0_7 = arith.constant 0 : index
    %c0_8 = arith.constant 0 : index
    %4 = vector.load %arg5[%c0_7, %c0_8] : memref<16x32xf32, #tpu.memory_space<vmem>>, vector<16x32xf32>
    %c0_9 = arith.constant 0 : index
    %c0_10 = arith.constant 0 : index
    %5 = vector.load %arg6[%c0_9, %c0_10] : memref<16x1xf32, #tpu.memory_space<vmem>>, vector<16x1xf32>
    %c0_11 = arith.constant 0 : index
    %c0_12 = arith.constant 0 : index
    %6 = vector.load %arg7[%c0_11, %c0_12] : memref<256x384xf32, #tpu.memory_space<vmem>>, vector<256x384xf32>
    %c0_13 = arith.constant 0 : index
    %c0_14 = arith.constant 0 : index
    %7 = vector.load %arg9[%c0_13, %c0_14] : memref<1x384xf32, #tpu.memory_space<vmem>>, vector<1x384xf32>
    %c0_15 = arith.constant 0 : index
    %c0_16 = arith.constant 0 : index
    %8 = vector.load %arg8[%c0_15, %c0_16] : memref<128x384xf32, #tpu.memory_space<vmem>>, vector<128x384xf32>
    %c0_17 = arith.constant 0 : index
    %c0_18 = arith.constant 0 : index
    %9 = vector.load %arg11[%c0_17, %c0_18] : memref<128x384xf32, #tpu.memory_space<vmem>>, vector<128x384xf32>
    %c0_19 = arith.constant 0 : index
    %c0_20 = arith.constant 0 : index
    %10 = vector.load %arg12[%c0_19, %c0_20] : memref<128x384xf32, #tpu.memory_space<vmem>>, vector<128x384xf32>
    %c0_21 = arith.constant 0 : index
    %c0_22 = arith.constant 0 : index
    %11 = vector.load %arg10[%c0_21, %c0_22] : memref<1x128xf32, #tpu.memory_space<vmem>>, vector<1x128xf32>
    %12 = vector.shape_cast %11 : vector<1x128xf32> to vector<1x128xf32>
    %13 = vector.broadcast %12 : vector<1x128xf32> to vector<2x128xf32>
    %c0_23 = arith.constant 0 : index
    %c0_24 = arith.constant 0 : index
    %14 = vector.load %arg14[%c0_23, %c0_24] : memref<1x128xf32, #tpu.memory_space<vmem>>, vector<1x128xf32>
    %15 = vector.shape_cast %14 : vector<1x128xf32> to vector<1x128xf32>
    %16 = vector.broadcast %15 : vector<1x128xf32> to vector<2x128xf32>
    %c0_25 = arith.constant 0 : index
    %c0_26 = arith.constant 0 : index
    %17 = vector.load %arg13[%c0_25, %c0_26] : memref<1x384xf32, #tpu.memory_space<vmem>>, vector<1x384xf32>
    %18 = vector.shape_cast %17 : vector<1x384xf32> to vector<1x384xf32>
    %19 = vector.broadcast %18 : vector<1x384xf32> to vector<2x384xf32>
    %c0_27 = arith.constant 0 : index
    %c0_28 = arith.constant 0 : index
    %c0_29 = arith.constant 0 : index
    %20 = vector.load %arg0[%c0_27, %c0_28, %c0_29] : memref<2x4x256xf32, #tpu.memory_space<vmem>>, vector<1x4x256xf32>
    %21 = vector.shape_cast %20 : vector<1x4x256xf32> to vector<4x256xf32>
    %cst = arith.constant dense<0.000000e+00> : vector<64x256xf32>
    %22 = tpu.matmul %0, %21, %cst {dimension_numbers = #tpu.dot_dimension_numbers<[1], [0], [0], [1], [0, 0, 1, 1], [], []>} : vector<64x4xf32>, vector<4x256xf32>, vector<64x256xf32> -> vector<64x256xf32>
    %23 = vector.broadcast %1 : vector<64x1xf32> to vector<64x256xf32>
    %24 = arith.addf %22, %23 : vector<64x256xf32>
    %cst_30 = arith.constant 0.000000e+00 : f32
    %25 = vector.broadcast %cst_30 : f32 to vector<64x256xf32>
    %26 = arith.maximumf %24, %25 : vector<64x256xf32>
    %cst_31 = arith.constant dense<0.000000e+00> : vector<32x256xf32>
    %27 = tpu.matmul %2, %26, %cst_31 {dimension_numbers = #tpu.dot_dimension_numbers<[1], [0], [0], [1], [0, 0, 1, 1], [], []>} : vector<32x64xf32>, vector<64x256xf32>, vector<32x256xf32> -> vector<32x256xf32>
    %28 = vector.broadcast %3 : vector<32x1xf32> to vector<32x256xf32>
    %29 = arith.addf %27, %28 : vector<32x256xf32>
    %cst_32 = arith.constant 0.000000e+00 : f32
    %30 = vector.broadcast %cst_32 : f32 to vector<32x256xf32>
    %31 = arith.maximumf %29, %30 : vector<32x256xf32>
    %cst_33 = arith.constant dense<0.000000e+00> : vector<16x256xf32>
    %32 = tpu.matmul %4, %31, %cst_33 {dimension_numbers = #tpu.dot_dimension_numbers<[1], [0], [0], [1], [0, 0, 1, 1], [], []>} : vector<16x32xf32>, vector<32x256xf32>, vector<16x256xf32> -> vector<16x256xf32>
    %33 = vector.broadcast %5 : vector<16x1xf32> to vector<16x256xf32>
    %34 = arith.addf %32, %33 : vector<16x256xf32>
    %cst_34 = arith.constant 0.000000e+00 : f32
    %35 = vector.broadcast %cst_34 : f32 to vector<16x256xf32>
    %36 = arith.maximumf %34, %35 : vector<16x256xf32>
    %cst_35 = arith.constant dense<0.000000e+00> : vector<16x384xf32>
    %37 = tpu.matmul %36, %6, %cst_35 {dimension_numbers = #tpu.dot_dimension_numbers<[1], [0], [0], [1], [0, 0, 1, 1], [], []>} : vector<16x256xf32>, vector<256x384xf32>, vector<16x384xf32> -> vector<16x384xf32>
    %38 = vector.broadcast %7 : vector<1x384xf32> to vector<16x384xf32>
    %39 = arith.addf %37, %38 : vector<16x384xf32>
    %c0_36 = arith.constant 0 : index
    %c0_37 = arith.constant 0 : index
    %c0_38 = arith.constant 0 : index
    %40 = vector.load %arg16[%c0_36, %c0_37, %c0_38] : memref<2x16x384xf32, #tpu.memory_space<vmem>>, vector<1x16x384xf32>
    %41 = vector.shape_cast %40 : vector<1x16x384xf32> to vector<16x384xf32>
    %42 = vector.shape_cast %39 : vector<16x384xf32> to vector<1x16x384xf32>
    tpu.vector_store %arg16[%c0_36, %c0_37, %c0_38], %42 {strides = array<i32>} : memref<2x16x384xf32, #tpu.memory_space<vmem>>, vector<1x16x384xf32>,
    %c1 = arith.constant 1 : index
    %c0_39 = arith.constant 0 : index
    %c0_40 = arith.constant 0 : index
    %43 = vector.load %arg0[%c1, %c0_39, %c0_40] : memref<2x4x256xf32, #tpu.memory_space<vmem>>, vector<1x4x256xf32>
    %44 = vector.shape_cast %43 : vector<1x4x256xf32> to vector<4x256xf32>
    %cst_41 = arith.constant dense<0.000000e+00> : vector<64x256xf32>
    %45 = tpu.matmul %0, %44, %cst_41 {dimension_numbers = #tpu.dot_dimension_numbers<[1], [0], [0], [1], [0, 0, 1, 1], [], []>} : vector<64x4xf32>, vector<4x256xf32>, vector<64x256xf32> -> vector<64x256xf32>
    %46 = vector.broadcast %1 : vector<64x1xf32> to vector<64x256xf32>
    %47 = arith.addf %45, %46 : vector<64x256xf32>
    %cst_42 = arith.constant 0.000000e+00 : f32
    %48 = vector.broadcast %cst_42 : f32 to vector<64x256xf32>
    %49 = arith.maximumf %47, %48 : vector<64x256xf32>
    %cst_43 = arith.constant dense<0.000000e+00> : vector<32x256xf32>
    %50 = tpu.matmul %2, %49, %cst_43 {dimension_numbers = #tpu.dot_dimension_numbers<[1], [0], [0], [1], [0, 0, 1, 1], [], []>} : vector<32x64xf32>, vector<64x256xf32>, vector<32x256xf32> -> vector<32x256xf32>
    %51 = vector.broadcast %3 : vector<32x1xf32> to vector<32x256xf32>
    %52 = arith.addf %50, %51 : vector<32x256xf32>
    %cst_44 = arith.constant 0.000000e+00 : f32
    %53 = vector.broadcast %cst_44 : f32 to vector<32x256xf32>
    %54 = arith.maximumf %52, %53 : vector<32x256xf32>
    %cst_45 = arith.constant dense<0.000000e+00> : vector<16x256xf32>
    %55 = tpu.matmul %4, %54, %cst_45 {dimension_numbers = #tpu.dot_dimension_numbers<[1], [0], [0], [1], [0, 0, 1, 1], [], []>} : vector<16x32xf32>, vector<32x256xf32>, vector<16x256xf32> -> vector<16x256xf32>
    %56 = vector.broadcast %5 : vector<16x1xf32> to vector<16x256xf32>
    %57 = arith.addf %55, %56 : vector<16x256xf32>
    %cst_46 = arith.constant 0.000000e+00 : f32
    %58 = vector.broadcast %cst_46 : f32 to vector<16x256xf32>
    %59 = arith.maximumf %57, %58 : vector<16x256xf32>
    %cst_47 = arith.constant dense<0.000000e+00> : vector<16x384xf32>
    %60 = tpu.matmul %59, %6, %cst_47 {dimension_numbers = #tpu.dot_dimension_numbers<[1], [0], [0], [1], [0, 0, 1, 1], [], []>} : vector<16x256xf32>, vector<256x384xf32>, vector<16x384xf32> -> vector<16x384xf32>
    %61 = vector.broadcast %7 : vector<1x384xf32> to vector<16x384xf32>
    %62 = arith.addf %60, %61 : vector<16x384xf32>
    %c1_48 = arith.constant 1 : index
    %c0_49 = arith.constant 0 : index
    %c0_50 = arith.constant 0 : index
    %63 = vector.load %arg16[%c1_48, %c0_49, %c0_50] : memref<2x16x384xf32, #tpu.memory_space<vmem>>, vector<1x16x384xf32>
    %64 = vector.shape_cast %63 : vector<1x16x384xf32> to vector<16x384xf32>
    %65 = vector.shape_cast %62 : vector<16x384xf32> to vector<1x16x384xf32>
    tpu.vector_store %arg16[%c1_48, %c0_49, %c0_50], %65 {strides = array<i32>} : memref<2x16x384xf32, #tpu.memory_space<vmem>>, vector<1x16x384xf32>,
    %cst_51 = arith.constant 0.000000e+00 : f32
    %66 = vector.broadcast %cst_51 : f32 to vector<2x128xf32>
    %cst_52 = arith.constant 0.000000e+00 : f32
    %67 = vector.broadcast %cst_52 : f32 to vector<2x128xf32>
    %c0_53 = arith.constant 0 : index
    %c0_54 = arith.constant 0 : index
    %c0_55 = arith.constant 0 : index
    %68 = vector.load %arg16[%c0_53, %c0_54, %c0_55] : memref<2x16x384xf32, #tpu.memory_space<vmem>>, vector<1x1x384xf32>
    %69 = vector.shape_cast %68 : vector<1x1x384xf32> to vector<1x384xf32>
    %c1_56 = arith.constant 1 : index
    %c0_57 = arith.constant 0 : index
    %c0_58 = arith.constant 0 : index
    %70 = vector.load %arg16[%c1_56, %c0_57, %c0_58] : memref<2x16x384xf32, #tpu.memory_space<vmem>>, vector<1x1x384xf32>
    %71 = vector.shape_cast %70 : vector<1x1x384xf32> to vector<1x384xf32>
    %72 = tpu.concatenate %69, %71 in 0 : vector<1x384xf32>, vector<1x384xf32> -> vector<2x384xf32>
    %cst_59 = arith.constant dense<0.000000e+00> : vector<2x384xf32>
    %73 = tpu.matmul %66, %8, %cst_59 {dimension_numbers = #tpu.dot_dimension_numbers<[1], [0], [0], [1], [0, 0, 1, 1], [], []>} : vector<2x128xf32>, vector<128x384xf32>, vector<2x384xf32> -> vector<2x384xf32>
    %74 = vector.extract_strided_slice %72 {offsets = [0, 0], sizes = [2, 128], strides = [1, 1]} : vector<2x384xf32> to vector<2x128xf32>
    %75 = vector.extract_strided_slice %73 {offsets = [0, 0], sizes = [2, 128], strides = [1, 1]} : vector<2x384xf32> to vector<2x128xf32>
    %76 = arith.addf %74, %75 : vector<2x128xf32>
    %77 = arith.negf %76 : vector<2x128xf32>
    %78 = math.exp %77 : vector<2x128xf32>
    %cst_60 = arith.constant 1.000000e+00 : f32
    %79 = vector.broadcast %cst_60 : f32 to vector<2x128xf32>
    %80 = arith.addf %79, %78 : vector<2x128xf32>
    %81 = arith.divf %79, %80 : vector<2x128xf32>
    %82 = vector.extract_strided_slice %72 {offsets = [0, 128], sizes = [2, 128], strides = [1, 1]} : vector<2x384xf32> to vector<2x128xf32>
    %83 = vector.extract_strided_slice %73 {offsets = [0, 128], sizes = [2, 128], strides = [1, 1]} : vector<2x384xf32> to vector<2x128xf32>
    %84 = arith.addf %82, %83 : vector<2x128xf32>
    %85 = arith.negf %84 : vector<2x128xf32>
    %86 = math.exp %85 : vector<2x128xf32>
    %cst_61 = arith.constant 1.000000e+00 : f32
    %87 = vector.broadcast %cst_61 : f32 to vector<2x128xf32>
    %88 = arith.addf %87, %86 : vector<2x128xf32>
    %89 = arith.divf %87, %88 : vector<2x128xf32>
    %90 = vector.extract_strided_slice %72 {offsets = [0, 256], sizes = [2, 128], strides = [1, 1]} : vector<2x384xf32> to vector<2x128xf32>
    %91 = vector.extract_strided_slice %73 {offsets = [0, 256], sizes = [2, 128], strides = [1, 1]} : vector<2x384xf32> to vector<2x128xf32>
    %92 = arith.addf %91, %13 : vector<2x128xf32>
    %93 = arith.mulf %81, %92 : vector<2x128xf32>
    %94 = arith.addf %90, %93 : vector<2x128xf32>
    %95 = math.tanh %94 : vector<2x128xf32>
    %cst_62 = arith.constant 1.000000e+00 : f32
    %96 = vector.broadcast %cst_62 : f32 to vector<2x128xf32>
    %97 = arith.subf %96, %89 : vector<2x128xf32>
    %98 = arith.mulf %97, %95 : vector<2x128xf32>
    %99 = arith.mulf %89, %66 : vector<2x128xf32>
    %100 = arith.addf %98, %99 : vector<2x128xf32>
    %cst_63 = arith.constant dense<0.000000e+00> : vector<2x384xf32>
    %101 = tpu.matmul %100, %9, %cst_63 {dimension_numbers = #tpu.dot_dimension_numbers<[1], [0], [0], [1], [0, 0, 1, 1], [], []>} : vector<2x128xf32>, vector<128x384xf32>, vector<2x384xf32> -> vector<2x384xf32>
    %102 = arith.addf %101, %19 : vector<2x384xf32>
    %c0_64 = arith.constant 0 : index
    %c1_65 = arith.constant 1 : index
    %c0_66 = arith.constant 0 : index
    %103 = vector.load %arg16[%c0_64, %c1_65, %c0_66] : memref<2x16x384xf32, #tpu.memory_space<vmem>>, vector<1x1x384xf32>
    %104 = vector.shape_cast %103 : vector<1x1x384xf32> to vector<1x384xf32>
    %c1_67 = arith.constant 1 : index
    %c1_68 = arith.constant 1 : index
    %c0_69 = arith.constant 0 : index
    %105 = vector.load %arg16[%c1_67, %c1_68, %c0_69] : memref<2x16x384xf32, #tpu.memory_space<vmem>>, vector<1x1x384xf32>
    %106 = vector.shape_cast %105 : vector<1x1x384xf32> to vector<1x384xf32>
    %107 = tpu.concatenate %104, %106 in 0 : vector<1x384xf32>, vector<1x384xf32> -> vector<2x384xf32>
    %cst_70 = arith.constant dense<0.000000e+00> : vector<2x384xf32>
    %108 = tpu.matmul %100, %8, %cst_70 {dimension_numbers = #tpu.dot_dimension_numbers<[1], [0], [0], [1], [0, 0, 1, 1], [], []>} : vector<2x128xf32>, vector<128x384xf32>, vector<2x384xf32> -> vector<2x384xf32>
    %109 = vector.extract_strided_slice %107 {offsets = [0, 0], sizes = [2, 128], strides = [1, 1]} : vector<2x384xf32> to vector<2x128xf32>
    %110 = vector.extract_strided_slice %108 {offsets = [0, 0], sizes = [2, 128], strides = [1, 1]} : vector<2x384xf32> to vector<2x128xf32>
    %111 = arith.addf %109, %110 : vector<2x128xf32>
    %112 = arith.negf %111 : vector<2x128xf32>
    %113 = math.exp %112 : vector<2x128xf32>
    %cst_71 = arith.constant 1.000000e+00 : f32
    %114 = vector.broadcast %cst_71 : f32 to vector<2x128xf32>
    %115 = arith.addf %114, %113 : vector<2x128xf32>
    %116 = arith.divf %114, %115 : vector<2x128xf32>
    %117 = vector.extract_strided_slice %107 {offsets = [0, 128], sizes = [2, 128], strides = [1, 1]} : vector<2x384xf32> to vector<2x128xf32>
    %118 = vector.extract_strided_slice %108 {offsets = [0, 128], sizes = [2, 128], strides = [1, 1]} : vector<2x384xf32> to vector<2x128xf32>
    %119 = arith.addf %117, %118 : vector<2x128xf32>
    %120 = arith.negf %119 : vector<2x128xf32>
    %121 = math.exp %120 : vector<2x128xf32>
    %cst_72 = arith.constant 1.000000e+00 : f32
    %122 = vector.broadcast %cst_72 : f32 to vector<2x128xf32>
    %123 = arith.addf %122, %121 : vector<2x128xf32>
    %124 = arith.divf %122, %123 : vector<2x128xf32>
    %125 = vector.extract_strided_slice %107 {offsets = [0, 256], sizes = [2, 128], strides = [1, 1]} : vector<2x384xf32> to vector<2x128xf32>
    %126 = vector.extract_strided_slice %108 {offsets = [0, 256], sizes = [2, 128], strides = [1, 1]} : vector<2x384xf32> to vector<2x128xf32>
    %127 = arith.addf %126, %13 : vector<2x128xf32>
    %128 = arith.mulf %116, %127 : vector<2x128xf32>
    %129 = arith.addf %125, %128 : vector<2x128xf32>
    %130 = math.tanh %129 : vector<2x128xf32>
    %cst_73 = arith.constant 1.000000e+00 : f32
    %131 = vector.broadcast %cst_73 : f32 to vector<2x128xf32>
    %132 = arith.subf %131, %124 : vector<2x128xf32>
    %133 = arith.mulf %132, %130 : vector<2x128xf32>
    %134 = arith.mulf %124, %100 : vector<2x128xf32>
    %135 = arith.addf %133, %134 : vector<2x128xf32>
    %cst_74 = arith.constant dense<0.000000e+00> : vector<2x384xf32>
    %136 = tpu.matmul %67, %10, %cst_74 {dimension_numbers = #tpu.dot_dimension_numbers<[1], [0], [0], [1], [0, 0, 1, 1], [], []>} : vector<2x128xf32>, vector<128x384xf32>, vector<2x384xf32> -> vector<2x384xf32>
    %137 = vector.extract_strided_slice %102 {offsets = [0, 0], sizes = [2, 128], strides = [1, 1]} : vector<2x384xf32> to vector<2x128xf32>
    %138 = vector.extract_strided_slice %136 {offsets = [0, 0], sizes = [2, 128], strides = [1, 1]} : vector<2x384xf32> to vector<2x128xf32>
    %139 = arith.addf %137, %138 : vector<2x128xf32>
    %140 = arith.negf %139 : vector<2x128xf32>
    %141 = math.exp %140 : vector<2x128xf32>
    %cst_75 = arith.constant 1.000000e+00 : f32
    %142 = vector.broadcast %cst_75 : f32 to vector<2x128xf32>
    %143 = arith.addf %142, %141 : vector<2x128xf32>
    %144 = arith.divf %142, %143 : vector<2x128xf32>
    %145 = vector.extract_strided_slice %102 {offsets = [0, 128], sizes = [2, 128], strides = [1, 1]} : vector<2x384xf32> to vector<2x128xf32>
    %146 = vector.extract_strided_slice %136 {offsets = [0, 128], sizes = [2, 128], strides = [1, 1]} : vector<2x384xf32> to vector<2x128xf32>
    %147 = arith.addf %145, %146 : vector<2x128xf32>
    %148 = arith.negf %147 : vector<2x128xf32>
    %149 = math.exp %148 : vector<2x128xf32>
    %cst_76 = arith.constant 1.000000e+00 : f32
    %150 = vector.broadcast %cst_76 : f32 to vector<2x128xf32>
    %151 = arith.addf %150, %149 : vector<2x128xf32>
    %152 = arith.divf %150, %151 : vector<2x128xf32>
    %153 = vector.extract_strided_slice %102 {offsets = [0, 256], sizes = [2, 128], strides = [1, 1]} : vector<2x384xf32> to vector<2x128xf32>
    %154 = vector.extract_strided_slice %136 {offsets = [0, 256], sizes = [2, 128], strides = [1, 1]} : vector<2x384xf32> to vector<2x128xf32>
    %155 = arith.addf %154, %16 : vector<2x128xf32>
    %156 = arith.mulf %144, %155 : vector<2x128xf32>
    %157 = arith.addf %153, %156 : vector<2x128xf32>
    %158 = math.tanh %157 : vector<2x128xf32>
    %cst_77 = arith.constant 1.000000e+00 : f32
    %159 = vector.broadcast %cst_77 : f32 to vector<2x128xf32>
    %160 = arith.subf %159, %152 : vector<2x128xf32>
    %161 = arith.mulf %160, %158 : vector<2x128xf32>
    %162 = arith.mulf %152, %67 : vector<2x128xf32>
    %163 = arith.addf %161, %162 : vector<2x128xf32>
    %c0_78 = arith.constant 0 : index
    %c0_79 = arith.constant 0 : index
    %164 = vector.load %arg15[%c0_78, %c0_79] : memref<2x2048xf32, #tpu.memory_space<vmem>>, vector<2x128xf32>
    tpu.vector_store %arg15[%c0_78, %c0_79], %163 {strides = array<i32>} : memref<2x2048xf32, #tpu.memory_space<vmem>>, vector<2x128xf32>,
    %cst_80 = arith.constant dense<0.000000e+00> : vector<2x384xf32>
    %165 = tpu.matmul %135, %9, %cst_80 {dimension_numbers = #tpu.dot_dimension_numbers<[1], [0], [0], [1], [0, 0, 1, 1], [], []>} : vector<2x128xf32>, vector<128x384xf32>, vector<2x384xf32> -> vector<2x384xf32>
    %166 = arith.addf %165, %19 : vector<2x384xf32>
    %c0_81 = arith.constant 0 : index
    %c2 = arith.constant 2 : index
    %c0_82 = arith.constant 0 : index
    %167 = vector.load %arg16[%c0_81, %c2, %c0_82] : memref<2x16x384xf32, #tpu.memory_space<vmem>>, vector<1x1x384xf32>
    %168 = vector.shape_cast %167 : vector<1x1x384xf32> to vector<1x384xf32>
    %c1_83 = arith.constant 1 : index
    %c2_84 = arith.constant 2 : index
    %c0_85 = arith.constant 0 : index
    %169 = vector.load %arg16[%c1_83, %c2_84, %c0_85] : memref<2x16x384xf32, #tpu.memory_space<vmem>>, vector<1x1x384xf32>
    %170 = vector.shape_cast %169 : vector<1x1x384xf32> to vector<1x384xf32>
    %171 = tpu.concatenate %168, %170 in 0 : vector<1x384xf32>, vector<1x384xf32> -> vector<2x384xf32>
    %cst_86 = arith.constant dense<0.000000e+00> : vector<2x384xf32>
    %172 = tpu.matmul %135, %8, %cst_86 {dimension_numbers = #tpu.dot_dimension_numbers<[1], [0], [0], [1], [0, 0, 1, 1], [], []>} : vector<2x128xf32>, vector<128x384xf32>, vector<2x384xf32> -> vector<2x384xf32>
    %173 = vector.extract_strided_slice %171 {offsets = [0, 0], sizes = [2, 128], strides = [1, 1]} : vector<2x384xf32> to vector<2x128xf32>
    %174 = vector.extract_strided_slice %172 {offsets = [0, 0], sizes = [2, 128], strides = [1, 1]} : vector<2x384xf32> to vector<2x128xf32>
    %175 = arith.addf %173, %174 : vector<2x128xf32>
    %176 = arith.negf %175 : vector<2x128xf32>
    %177 = math.exp %176 : vector<2x128xf32>
    %cst_87 = arith.constant 1.000000e+00 : f32
    %178 = vector.broadcast %cst_87 : f32 to vector<2x128xf32>
    %179 = arith.addf %178, %177 : vector<2x128xf32>
    %180 = arith.divf %178, %179 : vector<2x128xf32>
    %181 = vector.extract_strided_slice %171 {offsets = [0, 128], sizes = [2, 128], strides = [1, 1]} : vector<2x384xf32> to vector<2x128xf32>
    %182 = vector.extract_strided_slice %172 {offsets = [0, 128], sizes = [2, 128], strides = [1, 1]} : vector<2x384xf32> to vector<2x128xf32>
    %183 = arith.addf %181, %182 : vector<2x128xf32>
    %184 = arith.negf %183 : vector<2x128xf32>
    %185 = math.exp %184 : vector<2x128xf32>
    %cst_88 = arith.constant 1.000000e+00 : f32
    %186 = vector.broadcast %cst_88 : f32 to vector<2x128xf32>
    %187 = arith.addf %186, %185 : vector<2x128xf32>
    %188 = arith.divf %186, %187 : vector<2x128xf32>
    %189 = vector.extract_strided_slice %171 {offsets = [0, 256], sizes = [2, 128], strides = [1, 1]} : vector<2x384xf32> to vector<2x128xf32>
    %190 = vector.extract_strided_slice %172 {offsets = [0, 256], sizes = [2, 128], strides = [1, 1]} : vector<2x384xf32> to vector<2x128xf32>
    %191 = arith.addf %190, %13 : vector<2x128xf32>
    %192 = arith.mulf %180, %191 : vector<2x128xf32>
    %193 = arith.addf %189, %192 : vector<2x128xf32>
    %194 = math.tanh %193 : vector<2x128xf32>
    %cst_89 = arith.constant 1.000000e+00 : f32
    %195 = vector.broadcast %cst_89 : f32 to vector<2x128xf32>
    %196 = arith.subf %195, %188 : vector<2x128xf32>
    %197 = arith.mulf %196, %194 : vector<2x128xf32>
    %198 = arith.mulf %188, %135 : vector<2x128xf32>
    %199 = arith.addf %197, %198 : vector<2x128xf32>
    %cst_90 = arith.constant dense<0.000000e+00> : vector<2x384xf32>
    %200 = tpu.matmul %163, %10, %cst_90 {dimension_numbers = #tpu.dot_dimension_numbers<[1], [0], [0], [1], [0, 0, 1, 1], [], []>} : vector<2x128xf32>, vector<128x384xf32>, vector<2x384xf32> -> vector<2x384xf32>
    %201 = vector.extract_strided_slice %166 {offsets = [0, 0], sizes = [2, 128], strides = [1, 1]} : vector<2x384xf32> to vector<2x128xf32>
    %202 = vector.extract_strided_slice %200 {offsets = [0, 0], sizes = [2, 128], strides = [1, 1]} : vector<2x384xf32> to vector<2x128xf32>
    %203 = arith.addf %201, %202 : vector<2x128xf32>
    %204 = arith.negf %203 : vector<2x128xf32>
    %205 = math.exp %204 : vector<2x128xf32>
    %cst_91 = arith.constant 1.000000e+00 : f32
    %206 = vector.broadcast %cst_91 : f32 to vector<2x128xf32>
    %207 = arith.addf %206, %205 : vector<2x128xf32>
    %208 = arith.divf %206, %207 : vector<2x128xf32>
    %209 = vector.extract_strided_slice %166 {offsets = [0, 128], sizes = [2, 128], strides = [1, 1]} : vector<2x384xf32> to vector<2x128xf32>
    %210 = vector.extract_strided_slice %200 {offsets = [0, 128], sizes = [2, 128], strides = [1, 1]} : vector<2x384xf32> to vector<2x128xf32>
    %211 = arith.addf %209, %210 : vector<2x128xf32>
    %212 = arith.negf %211 : vector<2x128xf32>
    %213 = math.exp %212 : vector<2x128xf32>
    %cst_92 = arith.constant 1.000000e+00 : f32
    %214 = vector.broadcast %cst_92 : f32 to vector<2x128xf32>
    %215 = arith.addf %214, %213 : vector<2x128xf32>
    %216 = arith.divf %214, %215 : vector<2x128xf32>
    %217 = vector.extract_strided_slice %166 {offsets = [0, 256], sizes = [2, 128], strides = [1, 1]} : vector<2x384xf32> to vector<2x128xf32>
    %218 = vector.extract_strided_slice %200 {offsets = [0, 256], sizes = [2, 128], strides = [1, 1]} : vector<2x384xf32> to vector<2x128xf32>
    %219 = arith.addf %218, %16 : vector<2x128xf32>
    %220 = arith.mulf %208, %219 : vector<2x128xf32>
    %221 = arith.addf %217, %220 : vector<2x128xf32>
    %222 = math.tanh %221 : vector<2x128xf32>
    %cst_93 = arith.constant 1.000000e+00 : f32
    %223 = vector.broadcast %cst_93 : f32 to vector<2x128xf32>
    %224 = arith.subf %223, %216 : vector<2x128xf32>
    %225 = arith.mulf %224, %222 : vector<2x128xf32>
    %226 = arith.mulf %216, %163 : vector<2x128xf32>
    %227 = arith.addf %225, %226 : vector<2x128xf32>
    %c0_94 = arith.constant 0 : index
    %c128 = arith.constant 128 : index
    %228 = vector.load %arg15[%c0_94, %c128] : memref<2x2048xf32, #tpu.memory_space<vmem>>, vector<2x128xf32>
    tpu.vector_store %arg15[%c0_94, %c128], %227 {strides = array<i32>} : memref<2x2048xf32, #tpu.memory_space<vmem>>, vector<2x128xf32>,
    %cst_95 = arith.constant dense<0.000000e+00> : vector<2x384xf32>
    %229 = tpu.matmul %199, %9, %cst_95 {dimension_numbers = #tpu.dot_dimension_numbers<[1], [0], [0], [1], [0, 0, 1, 1], [], []>} : vector<2x128xf32>, vector<128x384xf32>, vector<2x384xf32> -> vector<2x384xf32>
    %230 = arith.addf %229, %19 : vector<2x384xf32>
    %c0_96 = arith.constant 0 : index
    %c3 = arith.constant 3 : index
    %c0_97 = arith.constant 0 : index
    %231 = vector.load %arg16[%c0_96, %c3, %c0_97] : memref<2x16x384xf32, #tpu.memory_space<vmem>>, vector<1x1x384xf32>
    %232 = vector.shape_cast %231 : vector<1x1x384xf32> to vector<1x384xf32>
    %c1_98 = arith.constant 1 : index
    %c3_99 = arith.constant 3 : index
    %c0_100 = arith.constant 0 : index
    %233 = vector.load %arg16[%c1_98, %c3_99, %c0_100] : memref<2x16x384xf32, #tpu.memory_space<vmem>>, vector<1x1x384xf32>
    %234 = vector.shape_cast %233 : vector<1x1x384xf32> to vector<1x384xf32>
    %235 = tpu.concatenate %232, %234 in 0 : vector<1x384xf32>, vector<1x384xf32> -> vector<2x384xf32>
    %cst_101 = arith.constant dense<0.000000e+00> : vector<2x384xf32>
    %236 = tpu.matmul %199, %8, %cst_101 {dimension_numbers = #tpu.dot_dimension_numbers<[1], [0], [0], [1], [0, 0, 1, 1], [], []>} : vector<2x128xf32>, vector<128x384xf32>, vector<2x384xf32> -> vector<2x384xf32>
    %237 = vector.extract_strided_slice %235 {offsets = [0, 0], sizes = [2, 128], strides = [1, 1]} : vector<2x384xf32> to vector<2x128xf32>
    %238 = vector.extract_strided_slice %236 {offsets = [0, 0], sizes = [2, 128], strides = [1, 1]} : vector<2x384xf32> to vector<2x128xf32>
    %239 = arith.addf %237, %238 : vector<2x128xf32>
    %240 = arith.negf %239 : vector<2x128xf32>
    %241 = math.exp %240 : vector<2x128xf32>
    %cst_102 = arith.constant 1.000000e+00 : f32
    %242 = vector.broadcast %cst_102 : f32 to vector<2x128xf32>
    %243 = arith.addf %242, %241 : vector<2x128xf32>
    %244 = arith.divf %242, %243 : vector<2x128xf32>
    %245 = vector.extract_strided_slice %235 {offsets = [0, 128], sizes = [2, 128], strides = [1, 1]} : vector<2x384xf32> to vector<2x128xf32>
    %246 = vector.extract_strided_slice %236 {offsets = [0, 128], sizes = [2, 128], strides = [1, 1]} : vector<2x384xf32> to vector<2x128xf32>
    %247 = arith.addf %245, %246 : vector<2x128xf32>
    %248 = arith.negf %247 : vector<2x128xf32>
    %249 = math.exp %248 : vector<2x128xf32>
    %cst_103 = arith.constant 1.000000e+00 : f32
    %250 = vector.broadcast %cst_103 : f32 to vector<2x128xf32>
    %251 = arith.addf %250, %249 : vector<2x128xf32>
    %252 = arith.divf %250, %251 : vector<2x128xf32>
    %253 = vector.extract_strided_slice %235 {offsets = [0, 256], sizes = [2, 128], strides = [1, 1]} : vector<2x384xf32> to vector<2x128xf32>
    %254 = vector.extract_strided_slice %236 {offsets = [0, 256], sizes = [2, 128], strides = [1, 1]} : vector<2x384xf32> to vector<2x128xf32>
    %255 = arith.addf %254, %13 : vector<2x128xf32>
    %256 = arith.mulf %244, %255 : vector<2x128xf32>
    %257 = arith.addf %253, %256 : vector<2x128xf32>
    %258 = math.tanh %257 : vector<2x128xf32>
    %cst_104 = arith.constant 1.000000e+00 : f32
    %259 = vector.broadcast %cst_104 : f32 to vector<2x128xf32>
    %260 = arith.subf %259, %252 : vector<2x128xf32>
    %261 = arith.mulf %260, %258 : vector<2x128xf32>
    %262 = arith.mulf %252, %199 : vector<2x128xf32>
    %263 = arith.addf %261, %262 : vector<2x128xf32>
    %cst_105 = arith.constant dense<0.000000e+00> : vector<2x384xf32>
    %264 = tpu.matmul %227, %10, %cst_105 {dimension_numbers = #tpu.dot_dimension_numbers<[1], [0], [0], [1], [0, 0, 1, 1], [], []>} : vector<2x128xf32>, vector<128x384xf32>, vector<2x384xf32> -> vector<2x384xf32>
    %265 = vector.extract_strided_slice %230 {offsets = [0, 0], sizes = [2, 128], strides = [1, 1]} : vector<2x384xf32> to vector<2x128xf32>
    %266 = vector.extract_strided_slice %264 {offsets = [0, 0], sizes = [2, 128], strides = [1, 1]} : vector<2x384xf32> to vector<2x128xf32>
    %267 = arith.addf %265, %266 : vector<2x128xf32>
    %268 = arith.negf %267 : vector<2x128xf32>
    %269 = math.exp %268 : vector<2x128xf32>
    %cst_106 = arith.constant 1.000000e+00 : f32
    %270 = vector.broadcast %cst_106 : f32 to vector<2x128xf32>
    %271 = arith.addf %270, %269 : vector<2x128xf32>
    %272 = arith.divf %270, %271 : vector<2x128xf32>
    %273 = vector.extract_strided_slice %230 {offsets = [0, 128], sizes = [2, 128], strides = [1, 1]} : vector<2x384xf32> to vector<2x128xf32>
    %274 = vector.extract_strided_slice %264 {offsets = [0, 128], sizes = [2, 128], strides = [1, 1]} : vector<2x384xf32> to vector<2x128xf32>
    %275 = arith.addf %273, %274 : vector<2x128xf32>
    %276 = arith.negf %275 : vector<2x128xf32>
    %277 = math.exp %276 : vector<2x128xf32>
    %cst_107 = arith.constant 1.000000e+00 : f32
    %278 = vector.broadcast %cst_107 : f32 to vector<2x128xf32>
    %279 = arith.addf %278, %277 : vector<2x128xf32>
    %280 = arith.divf %278, %279 : vector<2x128xf32>
    %281 = vector.extract_strided_slice %230 {offsets = [0, 256], sizes = [2, 128], strides = [1, 1]} : vector<2x384xf32> to vector<2x128xf32>
    %282 = vector.extract_strided_slice %264 {offsets = [0, 256], sizes = [2, 128], strides = [1, 1]} : vector<2x384xf32> to vector<2x128xf32>
    %283 = arith.addf %282, %16 : vector<2x128xf32>
    %284 = arith.mulf %272, %283 : vector<2x128xf32>
    %285 = arith.addf %281, %284 : vector<2x128xf32>
    %286 = math.tanh %285 : vector<2x128xf32>
    %cst_108 = arith.constant 1.000000e+00 : f32
    %287 = vector.broadcast %cst_108 : f32 to vector<2x128xf32>
    %288 = arith.subf %287, %280 : vector<2x128xf32>
    %289 = arith.mulf %288, %286 : vector<2x128xf32>
    %290 = arith.mulf %280, %227 : vector<2x128xf32>
    %291 = arith.addf %289, %290 : vector<2x128xf32>
    %c0_109 = arith.constant 0 : index
    %c256 = arith.constant 256 : index
    %292 = vector.load %arg15[%c0_109, %c256] : memref<2x2048xf32, #tpu.memory_space<vmem>>, vector<2x128xf32>
    tpu.vector_store %arg15[%c0_109, %c256], %291 {strides = array<i32>} : memref<2x2048xf32, #tpu.memory_space<vmem>>, vector<2x128xf32>,
    %cst_110 = arith.constant dense<0.000000e+00> : vector<2x384xf32>
    %293 = tpu.matmul %263, %9, %cst_110 {dimension_numbers = #tpu.dot_dimension_numbers<[1], [0], [0], [1], [0, 0, 1, 1], [], []>} : vector<2x128xf32>, vector<128x384xf32>, vector<2x384xf32> -> vector<2x384xf32>
    %294 = arith.addf %293, %19 : vector<2x384xf32>
    %c0_111 = arith.constant 0 : index
    %c4 = arith.constant 4 : index
    %c0_112 = arith.constant 0 : index
    %295 = vector.load %arg16[%c0_111, %c4, %c0_112] : memref<2x16x384xf32, #tpu.memory_space<vmem>>, vector<1x1x384xf32>
    %296 = vector.shape_cast %295 : vector<1x1x384xf32> to vector<1x384xf32>
    %c1_113 = arith.constant 1 : index
    %c4_114 = arith.constant 4 : index
    %c0_115 = arith.constant 0 : index
    %297 = vector.load %arg16[%c1_113, %c4_114, %c0_115] : memref<2x16x384xf32, #tpu.memory_space<vmem>>, vector<1x1x384xf32>
    %298 = vector.shape_cast %297 : vector<1x1x384xf32> to vector<1x384xf32>
    %299 = tpu.concatenate %296, %298 in 0 : vector<1x384xf32>, vector<1x384xf32> -> vector<2x384xf32>
    %cst_116 = arith.constant dense<0.000000e+00> : vector<2x384xf32>
    %300 = tpu.matmul %263, %8, %cst_116 {dimension_numbers = #tpu.dot_dimension_numbers<[1], [0], [0], [1], [0, 0, 1, 1], [], []>} : vector<2x128xf32>, vector<128x384xf32>, vector<2x384xf32> -> vector<2x384xf32>
    %301 = vector.extract_strided_slice %299 {offsets = [0, 0], sizes = [2, 128], strides = [1, 1]} : vector<2x384xf32> to vector<2x128xf32>
    %302 = vector.extract_strided_slice %300 {offsets = [0, 0], sizes = [2, 128], strides = [1, 1]} : vector<2x384xf32> to vector<2x128xf32>
    %303 = arith.addf %301, %302 : vector<2x128xf32>
    %304 = arith.negf %303 : vector<2x128xf32>
    %305 = math.exp %304 : vector<2x128xf32>
    %cst_117 = arith.constant 1.000000e+00 : f32
    %306 = vector.broadcast %cst_117 : f32 to vector<2x128xf32>
    %307 = arith.addf %306, %305 : vector<2x128xf32>
    %308 = arith.divf %306, %307 : vector<2x128xf32>
    %309 = vector.extract_strided_slice %299 {offsets = [0, 128], sizes = [2, 128], strides = [1, 1]} : vector<2x384xf32> to vector<2x128xf32>
    %310 = vector.extract_strided_slice %300 {offsets = [0, 128], sizes = [2, 128], strides = [1, 1]} : vector<2x384xf32> to vector<2x128xf32>
    %311 = arith.addf %309, %310 : vector<2x128xf32>
    %312 = arith.negf %311 : vector<2x128xf32>
    %313 = math.exp %312 : vector<2x128xf32>
    %cst_118 = arith.constant 1.000000e+00 : f32
    %314 = vector.broadcast %cst_118 : f32 to vector<2x128xf32>
    %315 = arith.addf %314, %313 : vector<2x128xf32>
    %316 = arith.divf %314, %315 : vector<2x128xf32>
    %317 = vector.extract_strided_slice %299 {offsets = [0, 256], sizes = [2, 128], strides = [1, 1]} : vector<2x384xf32> to vector<2x128xf32>
    %318 = vector.extract_strided_slice %300 {offsets = [0, 256], sizes = [2, 128], strides = [1, 1]} : vector<2x384xf32> to vector<2x128xf32>
    %319 = arith.addf %318, %13 : vector<2x128xf32>
    %320 = arith.mulf %308, %319 : vector<2x128xf32>
    %321 = arith.addf %317, %320 : vector<2x128xf32>
    %322 = math.tanh %321 : vector<2x128xf32>
    %cst_119 = arith.constant 1.000000e+00 : f32
    %323 = vector.broadcast %cst_119 : f32 to vector<2x128xf32>
    %324 = arith.subf %323, %316 : vector<2x128xf32>
    %325 = arith.mulf %324, %322 : vector<2x128xf32>
    %326 = arith.mulf %316, %263 : vector<2x128xf32>
    %327 = arith.addf %325, %326 : vector<2x128xf32>
    %cst_120 = arith.constant dense<0.000000e+00> : vector<2x384xf32>
    %328 = tpu.matmul %291, %10, %cst_120 {dimension_numbers = #tpu.dot_dimension_numbers<[1], [0], [0], [1], [0, 0, 1, 1], [], []>} : vector<2x128xf32>, vector<128x384xf32>, vector<2x384xf32> -> vector<2x384xf32>
    %329 = vector.extract_strided_slice %294 {offsets = [0, 0], sizes = [2, 128], strides = [1, 1]} : vector<2x384xf32> to vector<2x128xf32>
    %330 = vector.extract_strided_slice %328 {offsets = [0, 0], sizes = [2, 128], strides = [1, 1]} : vector<2x384xf32> to vector<2x128xf32>
    %331 = arith.addf %329, %330 : vector<2x128xf32>
    %332 = arith.negf %331 : vector<2x128xf32>
    %333 = math.exp %332 : vector<2x128xf32>
    %cst_121 = arith.constant 1.000000e+00 : f32
    %334 = vector.broadcast %cst_121 : f32 to vector<2x128xf32>
    %335 = arith.addf %334, %333 : vector<2x128xf32>
    %336 = arith.divf %334, %335 : vector<2x128xf32>
    %337 = vector.extract_strided_slice %294 {offsets = [0, 128], sizes = [2, 128], strides = [1, 1]} : vector<2x384xf32> to vector<2x128xf32>
    %338 = vector.extract_strided_slice %328 {offsets = [0, 128], sizes = [2, 128], strides = [1, 1]} : vector<2x384xf32> to vector<2x128xf32>
    %339 = arith.addf %337, %338 : vector<2x128xf32>
    %340 = arith.negf %339 : vector<2x128xf32>
    %341 = math.exp %340 : vector<2x128xf32>
    %cst_122 = arith.constant 1.000000e+00 : f32
    %342 = vector.broadcast %cst_122 : f32 to vector<2x128xf32>
    %343 = arith.addf %342, %341 : vector<2x128xf32>
    %344 = arith.divf %342, %343 : vector<2x128xf32>
    %345 = vector.extract_strided_slice %294 {offsets = [0, 256], sizes = [2, 128], strides = [1, 1]} : vector<2x384xf32> to vector<2x128xf32>
    %346 = vector.extract_strided_slice %328 {offsets = [0, 256], sizes = [2, 128], strides = [1, 1]} : vector<2x384xf32> to vector<2x128xf32>
    %347 = arith.addf %346, %16 : vector<2x128xf32>
    %348 = arith.mulf %336, %347 : vector<2x128xf32>
    %349 = arith.addf %345, %348 : vector<2x128xf32>
    %350 = math.tanh %349 : vector<2x128xf32>
    %cst_123 = arith.constant 1.000000e+00 : f32
    %351 = vector.broadcast %cst_123 : f32 to vector<2x128xf32>
    %352 = arith.subf %351, %344 : vector<2x128xf32>
    %353 = arith.mulf %352, %350 : vector<2x128xf32>
    %354 = arith.mulf %344, %291 : vector<2x128xf32>
    %355 = arith.addf %353, %354 : vector<2x128xf32>
    %c0_124 = arith.constant 0 : index
    %c384 = arith.constant 384 : index
    %356 = vector.load %arg15[%c0_124, %c384] : memref<2x2048xf32, #tpu.memory_space<vmem>>, vector<2x128xf32>
    tpu.vector_store %arg15[%c0_124, %c384], %355 {strides = array<i32>} : memref<2x2048xf32, #tpu.memory_space<vmem>>, vector<2x128xf32>,
    %cst_125 = arith.constant dense<0.000000e+00> : vector<2x384xf32>
    %357 = tpu.matmul %327, %9, %cst_125 {dimension_numbers = #tpu.dot_dimension_numbers<[1], [0], [0], [1], [0, 0, 1, 1], [], []>} : vector<2x128xf32>, vector<128x384xf32>, vector<2x384xf32> -> vector<2x384xf32>
    %358 = arith.addf %357, %19 : vector<2x384xf32>
    %c0_126 = arith.constant 0 : index
    %c5 = arith.constant 5 : index
    %c0_127 = arith.constant 0 : index
    %359 = vector.load %arg16[%c0_126, %c5, %c0_127] : memref<2x16x384xf32, #tpu.memory_space<vmem>>, vector<1x1x384xf32>
    %360 = vector.shape_cast %359 : vector<1x1x384xf32> to vector<1x384xf32>
    %c1_128 = arith.constant 1 : index
    %c5_129 = arith.constant 5 : index
    %c0_130 = arith.constant 0 : index
    %361 = vector.load %arg16[%c1_128, %c5_129, %c0_130] : memref<2x16x384xf32, #tpu.memory_space<vmem>>, vector<1x1x384xf32>
    %362 = vector.shape_cast %361 : vector<1x1x384xf32> to vector<1x384xf32>
    %363 = tpu.concatenate %360, %362 in 0 : vector<1x384xf32>, vector<1x384xf32> -> vector<2x384xf32>
    %cst_131 = arith.constant dense<0.000000e+00> : vector<2x384xf32>
    %364 = tpu.matmul %327, %8, %cst_131 {dimension_numbers = #tpu.dot_dimension_numbers<[1], [0], [0], [1], [0, 0, 1, 1], [], []>} : vector<2x128xf32>, vector<128x384xf32>, vector<2x384xf32> -> vector<2x384xf32>
    %365 = vector.extract_strided_slice %363 {offsets = [0, 0], sizes = [2, 128], strides = [1, 1]} : vector<2x384xf32> to vector<2x128xf32>
    %366 = vector.extract_strided_slice %364 {offsets = [0, 0], sizes = [2, 128], strides = [1, 1]} : vector<2x384xf32> to vector<2x128xf32>
    %367 = arith.addf %365, %366 : vector<2x128xf32>
    %368 = arith.negf %367 : vector<2x128xf32>
    %369 = math.exp %368 : vector<2x128xf32>
    %cst_132 = arith.constant 1.000000e+00 : f32
    %370 = vector.broadcast %cst_132 : f32 to vector<2x128xf32>
    %371 = arith.addf %370, %369 : vector<2x128xf32>
    %372 = arith.divf %370, %371 : vector<2x128xf32>
    %373 = vector.extract_strided_slice %363 {offsets = [0, 128], sizes = [2, 128], strides = [1, 1]} : vector<2x384xf32> to vector<2x128xf32>
    %374 = vector.extract_strided_slice %364 {offsets = [0, 128], sizes = [2, 128], strides = [1, 1]} : vector<2x384xf32> to vector<2x128xf32>
    %375 = arith.addf %373, %374 : vector<2x128xf32>
    %376 = arith.negf %375 : vector<2x128xf32>
    %377 = math.exp %376 : vector<2x128xf32>
    %cst_133 = arith.constant 1.000000e+00 : f32
    %378 = vector.broadcast %cst_133 : f32 to vector<2x128xf32>
    %379 = arith.addf %378, %377 : vector<2x128xf32>
    %380 = arith.divf %378, %379 : vector<2x128xf32>
    %381 = vector.extract_strided_slice %363 {offsets = [0, 256], sizes = [2, 128], strides = [1, 1]} : vector<2x384xf32> to vector<2x128xf32>
    %382 = vector.extract_strided_slice %364 {offsets = [0, 256], sizes = [2, 128], strides = [1, 1]} : vector<2x384xf32> to vector<2x128xf32>
    %383 = arith.addf %382, %13 : vector<2x128xf32>
    %384 = arith.mulf %372, %383 : vector<2x128xf32>
    %385 = arith.addf %381, %384 : vector<2x128xf32>
    %386 = math.tanh %385 : vector<2x128xf32>
    %cst_134 = arith.constant 1.000000e+00 : f32
    %387 = vector.broadcast %cst_134 : f32 to vector<2x128xf32>
    %388 = arith.subf %387, %380 : vector<2x128xf32>
    %389 = arith.mulf %388, %386 : vector<2x128xf32>
    %390 = arith.mulf %380, %327 : vector<2x128xf32>
    %391 = arith.addf %389, %390 : vector<2x128xf32>
    %cst_135 = arith.constant dense<0.000000e+00> : vector<2x384xf32>
    %392 = tpu.matmul %355, %10, %cst_135 {dimension_numbers = #tpu.dot_dimension_numbers<[1], [0], [0], [1], [0, 0, 1, 1], [], []>} : vector<2x128xf32>, vector<128x384xf32>, vector<2x384xf32> -> vector<2x384xf32>
    %393 = vector.extract_strided_slice %358 {offsets = [0, 0], sizes = [2, 128], strides = [1, 1]} : vector<2x384xf32> to vector<2x128xf32>
    %394 = vector.extract_strided_slice %392 {offsets = [0, 0], sizes = [2, 128], strides = [1, 1]} : vector<2x384xf32> to vector<2x128xf32>
    %395 = arith.addf %393, %394 : vector<2x128xf32>
    %396 = arith.negf %395 : vector<2x128xf32>
    %397 = math.exp %396 : vector<2x128xf32>
    %cst_136 = arith.constant 1.000000e+00 : f32
    %398 = vector.broadcast %cst_136 : f32 to vector<2x128xf32>
    %399 = arith.addf %398, %397 : vector<2x128xf32>
    %400 = arith.divf %398, %399 : vector<2x128xf32>
    %401 = vector.extract_strided_slice %358 {offsets = [0, 128], sizes = [2, 128], strides = [1, 1]} : vector<2x384xf32> to vector<2x128xf32>
    %402 = vector.extract_strided_slice %392 {offsets = [0, 128], sizes = [2, 128], strides = [1, 1]} : vector<2x384xf32> to vector<2x128xf32>
    %403 = arith.addf %401, %402 : vector<2x128xf32>
    %404 = arith.negf %403 : vector<2x128xf32>
    %405 = math.exp %404 : vector<2x128xf32>
    %cst_137 = arith.constant 1.000000e+00 : f32
    %406 = vector.broadcast %cst_137 : f32 to vector<2x128xf32>
    %407 = arith.addf %406, %405 : vector<2x128xf32>
    %408 = arith.divf %406, %407 : vector<2x128xf32>
    %409 = vector.extract_strided_slice %358 {offsets = [0, 256], sizes = [2, 128], strides = [1, 1]} : vector<2x384xf32> to vector<2x128xf32>
    %410 = vector.extract_strided_slice %392 {offsets = [0, 256], sizes = [2, 128], strides = [1, 1]} : vector<2x384xf32> to vector<2x128xf32>
    %411 = arith.addf %410, %16 : vector<2x128xf32>
    %412 = arith.mulf %400, %411 : vector<2x128xf32>
    %413 = arith.addf %409, %412 : vector<2x128xf32>
    %414 = math.tanh %413 : vector<2x128xf32>
    %cst_138 = arith.constant 1.000000e+00 : f32
    %415 = vector.broadcast %cst_138 : f32 to vector<2x128xf32>
    %416 = arith.subf %415, %408 : vector<2x128xf32>
    %417 = arith.mulf %416, %414 : vector<2x128xf32>
    %418 = arith.mulf %408, %355 : vector<2x128xf32>
    %419 = arith.addf %417, %418 : vector<2x128xf32>
    %c0_139 = arith.constant 0 : index
    %c512 = arith.constant 512 : index
    %420 = vector.load %arg15[%c0_139, %c512] : memref<2x2048xf32, #tpu.memory_space<vmem>>, vector<2x128xf32>
    tpu.vector_store %arg15[%c0_139, %c512], %419 {strides = array<i32>} : memref<2x2048xf32, #tpu.memory_space<vmem>>, vector<2x128xf32>,
    %cst_140 = arith.constant dense<0.000000e+00> : vector<2x384xf32>
    %421 = tpu.matmul %391, %9, %cst_140 {dimension_numbers = #tpu.dot_dimension_numbers<[1], [0], [0], [1], [0, 0, 1, 1], [], []>} : vector<2x128xf32>, vector<128x384xf32>, vector<2x384xf32> -> vector<2x384xf32>
    %422 = arith.addf %421, %19 : vector<2x384xf32>
    %c0_141 = arith.constant 0 : index
    %c6 = arith.constant 6 : index
    %c0_142 = arith.constant 0 : index
    %423 = vector.load %arg16[%c0_141, %c6, %c0_142] : memref<2x16x384xf32, #tpu.memory_space<vmem>>, vector<1x1x384xf32>
    %424 = vector.shape_cast %423 : vector<1x1x384xf32> to vector<1x384xf32>
    %c1_143 = arith.constant 1 : index
    %c6_144 = arith.constant 6 : index
    %c0_145 = arith.constant 0 : index
    %425 = vector.load %arg16[%c1_143, %c6_144, %c0_145] : memref<2x16x384xf32, #tpu.memory_space<vmem>>, vector<1x1x384xf32>
    %426 = vector.shape_cast %425 : vector<1x1x384xf32> to vector<1x384xf32>
    %427 = tpu.concatenate %424, %426 in 0 : vector<1x384xf32>, vector<1x384xf32> -> vector<2x384xf32>
    %cst_146 = arith.constant dense<0.000000e+00> : vector<2x384xf32>
    %428 = tpu.matmul %391, %8, %cst_146 {dimension_numbers = #tpu.dot_dimension_numbers<[1], [0], [0], [1], [0, 0, 1, 1], [], []>} : vector<2x128xf32>, vector<128x384xf32>, vector<2x384xf32> -> vector<2x384xf32>
    %429 = vector.extract_strided_slice %427 {offsets = [0, 0], sizes = [2, 128], strides = [1, 1]} : vector<2x384xf32> to vector<2x128xf32>
    %430 = vector.extract_strided_slice %428 {offsets = [0, 0], sizes = [2, 128], strides = [1, 1]} : vector<2x384xf32> to vector<2x128xf32>
    %431 = arith.addf %429, %430 : vector<2x128xf32>
    %432 = arith.negf %431 : vector<2x128xf32>
    %433 = math.exp %432 : vector<2x128xf32>
    %cst_147 = arith.constant 1.000000e+00 : f32
    %434 = vector.broadcast %cst_147 : f32 to vector<2x128xf32>
    %435 = arith.addf %434, %433 : vector<2x128xf32>
    %436 = arith.divf %434, %435 : vector<2x128xf32>
    %437 = vector.extract_strided_slice %427 {offsets = [0, 128], sizes = [2, 128], strides = [1, 1]} : vector<2x384xf32> to vector<2x128xf32>
    %438 = vector.extract_strided_slice %428 {offsets = [0, 128], sizes = [2, 128], strides = [1, 1]} : vector<2x384xf32> to vector<2x128xf32>
    %439 = arith.addf %437, %438 : vector<2x128xf32>
    %440 = arith.negf %439 : vector<2x128xf32>
    %441 = math.exp %440 : vector<2x128xf32>
    %cst_148 = arith.constant 1.000000e+00 : f32
    %442 = vector.broadcast %cst_148 : f32 to vector<2x128xf32>
    %443 = arith.addf %442, %441 : vector<2x128xf32>
    %444 = arith.divf %442, %443 : vector<2x128xf32>
    %445 = vector.extract_strided_slice %427 {offsets = [0, 256], sizes = [2, 128], strides = [1, 1]} : vector<2x384xf32> to vector<2x128xf32>
    %446 = vector.extract_strided_slice %428 {offsets = [0, 256], sizes = [2, 128], strides = [1, 1]} : vector<2x384xf32> to vector<2x128xf32>
    %447 = arith.addf %446, %13 : vector<2x128xf32>
    %448 = arith.mulf %436, %447 : vector<2x128xf32>
    %449 = arith.addf %445, %448 : vector<2x128xf32>
    %450 = math.tanh %449 : vector<2x128xf32>
    %cst_149 = arith.constant 1.000000e+00 : f32
    %451 = vector.broadcast %cst_149 : f32 to vector<2x128xf32>
    %452 = arith.subf %451, %444 : vector<2x128xf32>
    %453 = arith.mulf %452, %450 : vector<2x128xf32>
    %454 = arith.mulf %444, %391 : vector<2x128xf32>
    %455 = arith.addf %453, %454 : vector<2x128xf32>
    %cst_150 = arith.constant dense<0.000000e+00> : vector<2x384xf32>
    %456 = tpu.matmul %419, %10, %cst_150 {dimension_numbers = #tpu.dot_dimension_numbers<[1], [0], [0], [1], [0, 0, 1, 1], [], []>} : vector<2x128xf32>, vector<128x384xf32>, vector<2x384xf32> -> vector<2x384xf32>
    %457 = vector.extract_strided_slice %422 {offsets = [0, 0], sizes = [2, 128], strides = [1, 1]} : vector<2x384xf32> to vector<2x128xf32>
    %458 = vector.extract_strided_slice %456 {offsets = [0, 0], sizes = [2, 128], strides = [1, 1]} : vector<2x384xf32> to vector<2x128xf32>
    %459 = arith.addf %457, %458 : vector<2x128xf32>
    %460 = arith.negf %459 : vector<2x128xf32>
    %461 = math.exp %460 : vector<2x128xf32>
    %cst_151 = arith.constant 1.000000e+00 : f32
    %462 = vector.broadcast %cst_151 : f32 to vector<2x128xf32>
    %463 = arith.addf %462, %461 : vector<2x128xf32>
    %464 = arith.divf %462, %463 : vector<2x128xf32>
    %465 = vector.extract_strided_slice %422 {offsets = [0, 128], sizes = [2, 128], strides = [1, 1]} : vector<2x384xf32> to vector<2x128xf32>
    %466 = vector.extract_strided_slice %456 {offsets = [0, 128], sizes = [2, 128], strides = [1, 1]} : vector<2x384xf32> to vector<2x128xf32>
    %467 = arith.addf %465, %466 : vector<2x128xf32>
    %468 = arith.negf %467 : vector<2x128xf32>
    %469 = math.exp %468 : vector<2x128xf32>
    %cst_152 = arith.constant 1.000000e+00 : f32
    %470 = vector.broadcast %cst_152 : f32 to vector<2x128xf32>
    %471 = arith.addf %470, %469 : vector<2x128xf32>
    %472 = arith.divf %470, %471 : vector<2x128xf32>
    %473 = vector.extract_strided_slice %422 {offsets = [0, 256], sizes = [2, 128], strides = [1, 1]} : vector<2x384xf32> to vector<2x128xf32>
    %474 = vector.extract_strided_slice %456 {offsets = [0, 256], sizes = [2, 128], strides = [1, 1]} : vector<2x384xf32> to vector<2x128xf32>
    %475 = arith.addf %474, %16 : vector<2x128xf32>
    %476 = arith.mulf %464, %475 : vector<2x128xf32>
    %477 = arith.addf %473, %476 : vector<2x128xf32>
    %478 = math.tanh %477 : vector<2x128xf32>
    %cst_153 = arith.constant 1.000000e+00 : f32
    %479 = vector.broadcast %cst_153 : f32 to vector<2x128xf32>
    %480 = arith.subf %479, %472 : vector<2x128xf32>
    %481 = arith.mulf %480, %478 : vector<2x128xf32>
    %482 = arith.mulf %472, %419 : vector<2x128xf32>
    %483 = arith.addf %481, %482 : vector<2x128xf32>
    %c0_154 = arith.constant 0 : index
    %c640 = arith.constant 640 : index
    %484 = vector.load %arg15[%c0_154, %c640] : memref<2x2048xf32, #tpu.memory_space<vmem>>, vector<2x128xf32>
    tpu.vector_store %arg15[%c0_154, %c640], %483 {strides = array<i32>} : memref<2x2048xf32, #tpu.memory_space<vmem>>, vector<2x128xf32>,
    %cst_155 = arith.constant dense<0.000000e+00> : vector<2x384xf32>
    %485 = tpu.matmul %455, %9, %cst_155 {dimension_numbers = #tpu.dot_dimension_numbers<[1], [0], [0], [1], [0, 0, 1, 1], [], []>} : vector<2x128xf32>, vector<128x384xf32>, vector<2x384xf32> -> vector<2x384xf32>
    %486 = arith.addf %485, %19 : vector<2x384xf32>
    %c0_156 = arith.constant 0 : index
    %c7 = arith.constant 7 : index
    %c0_157 = arith.constant 0 : index
    %487 = vector.load %arg16[%c0_156, %c7, %c0_157] : memref<2x16x384xf32, #tpu.memory_space<vmem>>, vector<1x1x384xf32>
    %488 = vector.shape_cast %487 : vector<1x1x384xf32> to vector<1x384xf32>
    %c1_158 = arith.constant 1 : index
    %c7_159 = arith.constant 7 : index
    %c0_160 = arith.constant 0 : index
    %489 = vector.load %arg16[%c1_158, %c7_159, %c0_160] : memref<2x16x384xf32, #tpu.memory_space<vmem>>, vector<1x1x384xf32>
    %490 = vector.shape_cast %489 : vector<1x1x384xf32> to vector<1x384xf32>
    %491 = tpu.concatenate %488, %490 in 0 : vector<1x384xf32>, vector<1x384xf32> -> vector<2x384xf32>
    %cst_161 = arith.constant dense<0.000000e+00> : vector<2x384xf32>
    %492 = tpu.matmul %455, %8, %cst_161 {dimension_numbers = #tpu.dot_dimension_numbers<[1], [0], [0], [1], [0, 0, 1, 1], [], []>} : vector<2x128xf32>, vector<128x384xf32>, vector<2x384xf32> -> vector<2x384xf32>
    %493 = vector.extract_strided_slice %491 {offsets = [0, 0], sizes = [2, 128], strides = [1, 1]} : vector<2x384xf32> to vector<2x128xf32>
    %494 = vector.extract_strided_slice %492 {offsets = [0, 0], sizes = [2, 128], strides = [1, 1]} : vector<2x384xf32> to vector<2x128xf32>
    %495 = arith.addf %493, %494 : vector<2x128xf32>
    %496 = arith.negf %495 : vector<2x128xf32>
    %497 = math.exp %496 : vector<2x128xf32>
    %cst_162 = arith.constant 1.000000e+00 : f32
    %498 = vector.broadcast %cst_162 : f32 to vector<2x128xf32>
    %499 = arith.addf %498, %497 : vector<2x128xf32>
    %500 = arith.divf %498, %499 : vector<2x128xf32>
    %501 = vector.extract_strided_slice %491 {offsets = [0, 128], sizes = [2, 128], strides = [1, 1]} : vector<2x384xf32> to vector<2x128xf32>
    %502 = vector.extract_strided_slice %492 {offsets = [0, 128], sizes = [2, 128], strides = [1, 1]} : vector<2x384xf32> to vector<2x128xf32>
    %503 = arith.addf %501, %502 : vector<2x128xf32>
    %504 = arith.negf %503 : vector<2x128xf32>
    %505 = math.exp %504 : vector<2x128xf32>
    %cst_163 = arith.constant 1.000000e+00 : f32
    %506 = vector.broadcast %cst_163 : f32 to vector<2x128xf32>
    %507 = arith.addf %506, %505 : vector<2x128xf32>
    %508 = arith.divf %506, %507 : vector<2x128xf32>
    %509 = vector.extract_strided_slice %491 {offsets = [0, 256], sizes = [2, 128], strides = [1, 1]} : vector<2x384xf32> to vector<2x128xf32>
    %510 = vector.extract_strided_slice %492 {offsets = [0, 256], sizes = [2, 128], strides = [1, 1]} : vector<2x384xf32> to vector<2x128xf32>
    %511 = arith.addf %510, %13 : vector<2x128xf32>
    %512 = arith.mulf %500, %511 : vector<2x128xf32>
    %513 = arith.addf %509, %512 : vector<2x128xf32>
    %514 = math.tanh %513 : vector<2x128xf32>
    %cst_164 = arith.constant 1.000000e+00 : f32
    %515 = vector.broadcast %cst_164 : f32 to vector<2x128xf32>
    %516 = arith.subf %515, %508 : vector<2x128xf32>
    %517 = arith.mulf %516, %514 : vector<2x128xf32>
    %518 = arith.mulf %508, %455 : vector<2x128xf32>
    %519 = arith.addf %517, %518 : vector<2x128xf32>
    %cst_165 = arith.constant dense<0.000000e+00> : vector<2x384xf32>
    %520 = tpu.matmul %483, %10, %cst_165 {dimension_numbers = #tpu.dot_dimension_numbers<[1], [0], [0], [1], [0, 0, 1, 1], [], []>} : vector<2x128xf32>, vector<128x384xf32>, vector<2x384xf32> -> vector<2x384xf32>
    %521 = vector.extract_strided_slice %486 {offsets = [0, 0], sizes = [2, 128], strides = [1, 1]} : vector<2x384xf32> to vector<2x128xf32>
    %522 = vector.extract_strided_slice %520 {offsets = [0, 0], sizes = [2, 128], strides = [1, 1]} : vector<2x384xf32> to vector<2x128xf32>
    %523 = arith.addf %521, %522 : vector<2x128xf32>
    %524 = arith.negf %523 : vector<2x128xf32>
    %525 = math.exp %524 : vector<2x128xf32>
    %cst_166 = arith.constant 1.000000e+00 : f32
    %526 = vector.broadcast %cst_166 : f32 to vector<2x128xf32>
    %527 = arith.addf %526, %525 : vector<2x128xf32>
    %528 = arith.divf %526, %527 : vector<2x128xf32>
    %529 = vector.extract_strided_slice %486 {offsets = [0, 128], sizes = [2, 128], strides = [1, 1]} : vector<2x384xf32> to vector<2x128xf32>
    %530 = vector.extract_strided_slice %520 {offsets = [0, 128], sizes = [2, 128], strides = [1, 1]} : vector<2x384xf32> to vector<2x128xf32>
    %531 = arith.addf %529, %530 : vector<2x128xf32>
    %532 = arith.negf %531 : vector<2x128xf32>
    %533 = math.exp %532 : vector<2x128xf32>
    %cst_167 = arith.constant 1.000000e+00 : f32
    %534 = vector.broadcast %cst_167 : f32 to vector<2x128xf32>
    %535 = arith.addf %534, %533 : vector<2x128xf32>
    %536 = arith.divf %534, %535 : vector<2x128xf32>
    %537 = vector.extract_strided_slice %486 {offsets = [0, 256], sizes = [2, 128], strides = [1, 1]} : vector<2x384xf32> to vector<2x128xf32>
    %538 = vector.extract_strided_slice %520 {offsets = [0, 256], sizes = [2, 128], strides = [1, 1]} : vector<2x384xf32> to vector<2x128xf32>
    %539 = arith.addf %538, %16 : vector<2x128xf32>
    %540 = arith.mulf %528, %539 : vector<2x128xf32>
    %541 = arith.addf %537, %540 : vector<2x128xf32>
    %542 = math.tanh %541 : vector<2x128xf32>
    %cst_168 = arith.constant 1.000000e+00 : f32
    %543 = vector.broadcast %cst_168 : f32 to vector<2x128xf32>
    %544 = arith.subf %543, %536 : vector<2x128xf32>
    %545 = arith.mulf %544, %542 : vector<2x128xf32>
    %546 = arith.mulf %536, %483 : vector<2x128xf32>
    %547 = arith.addf %545, %546 : vector<2x128xf32>
    %c0_169 = arith.constant 0 : index
    %c768 = arith.constant 768 : index
    %548 = vector.load %arg15[%c0_169, %c768] : memref<2x2048xf32, #tpu.memory_space<vmem>>, vector<2x128xf32>
    tpu.vector_store %arg15[%c0_169, %c768], %547 {strides = array<i32>} : memref<2x2048xf32, #tpu.memory_space<vmem>>, vector<2x128xf32>,
    %cst_170 = arith.constant dense<0.000000e+00> : vector<2x384xf32>
    %549 = tpu.matmul %519, %9, %cst_170 {dimension_numbers = #tpu.dot_dimension_numbers<[1], [0], [0], [1], [0, 0, 1, 1], [], []>} : vector<2x128xf32>, vector<128x384xf32>, vector<2x384xf32> -> vector<2x384xf32>
    %550 = arith.addf %549, %19 : vector<2x384xf32>
    %c0_171 = arith.constant 0 : index
    %c8 = arith.constant 8 : index
    %c0_172 = arith.constant 0 : index
    %551 = vector.load %arg16[%c0_171, %c8, %c0_172] : memref<2x16x384xf32, #tpu.memory_space<vmem>>, vector<1x1x384xf32>
    %552 = vector.shape_cast %551 : vector<1x1x384xf32> to vector<1x384xf32>
    %c1_173 = arith.constant 1 : index
    %c8_174 = arith.constant 8 : index
    %c0_175 = arith.constant 0 : index
    %553 = vector.load %arg16[%c1_173, %c8_174, %c0_175] : memref<2x16x384xf32, #tpu.memory_space<vmem>>, vector<1x1x384xf32>
    %554 = vector.shape_cast %553 : vector<1x1x384xf32> to vector<1x384xf32>
    %555 = tpu.concatenate %552, %554 in 0 : vector<1x384xf32>, vector<1x384xf32> -> vector<2x384xf32>
    %cst_176 = arith.constant dense<0.000000e+00> : vector<2x384xf32>
    %556 = tpu.matmul %519, %8, %cst_176 {dimension_numbers = #tpu.dot_dimension_numbers<[1], [0], [0], [1], [0, 0, 1, 1], [], []>} : vector<2x128xf32>, vector<128x384xf32>, vector<2x384xf32> -> vector<2x384xf32>
    %557 = vector.extract_strided_slice %555 {offsets = [0, 0], sizes = [2, 128], strides = [1, 1]} : vector<2x384xf32> to vector<2x128xf32>
    %558 = vector.extract_strided_slice %556 {offsets = [0, 0], sizes = [2, 128], strides = [1, 1]} : vector<2x384xf32> to vector<2x128xf32>
    %559 = arith.addf %557, %558 : vector<2x128xf32>
    %560 = arith.negf %559 : vector<2x128xf32>
    %561 = math.exp %560 : vector<2x128xf32>
    %cst_177 = arith.constant 1.000000e+00 : f32
    %562 = vector.broadcast %cst_177 : f32 to vector<2x128xf32>
    %563 = arith.addf %562, %561 : vector<2x128xf32>
    %564 = arith.divf %562, %563 : vector<2x128xf32>
    %565 = vector.extract_strided_slice %555 {offsets = [0, 128], sizes = [2, 128], strides = [1, 1]} : vector<2x384xf32> to vector<2x128xf32>
    %566 = vector.extract_strided_slice %556 {offsets = [0, 128], sizes = [2, 128], strides = [1, 1]} : vector<2x384xf32> to vector<2x128xf32>
    %567 = arith.addf %565, %566 : vector<2x128xf32>
    %568 = arith.negf %567 : vector<2x128xf32>
    %569 = math.exp %568 : vector<2x128xf32>
    %cst_178 = arith.constant 1.000000e+00 : f32
    %570 = vector.broadcast %cst_178 : f32 to vector<2x128xf32>
    %571 = arith.addf %570, %569 : vector<2x128xf32>
    %572 = arith.divf %570, %571 : vector<2x128xf32>
    %573 = vector.extract_strided_slice %555 {offsets = [0, 256], sizes = [2, 128], strides = [1, 1]} : vector<2x384xf32> to vector<2x128xf32>
    %574 = vector.extract_strided_slice %556 {offsets = [0, 256], sizes = [2, 128], strides = [1, 1]} : vector<2x384xf32> to vector<2x128xf32>
    %575 = arith.addf %574, %13 : vector<2x128xf32>
    %576 = arith.mulf %564, %575 : vector<2x128xf32>
    %577 = arith.addf %573, %576 : vector<2x128xf32>
    %578 = math.tanh %577 : vector<2x128xf32>
    %cst_179 = arith.constant 1.000000e+00 : f32
    %579 = vector.broadcast %cst_179 : f32 to vector<2x128xf32>
    %580 = arith.subf %579, %572 : vector<2x128xf32>
    %581 = arith.mulf %580, %578 : vector<2x128xf32>
    %582 = arith.mulf %572, %519 : vector<2x128xf32>
    %583 = arith.addf %581, %582 : vector<2x128xf32>
    %cst_180 = arith.constant dense<0.000000e+00> : vector<2x384xf32>
    %584 = tpu.matmul %547, %10, %cst_180 {dimension_numbers = #tpu.dot_dimension_numbers<[1], [0], [0], [1], [0, 0, 1, 1], [], []>} : vector<2x128xf32>, vector<128x384xf32>, vector<2x384xf32> -> vector<2x384xf32>
    %585 = vector.extract_strided_slice %550 {offsets = [0, 0], sizes = [2, 128], strides = [1, 1]} : vector<2x384xf32> to vector<2x128xf32>
    %586 = vector.extract_strided_slice %584 {offsets = [0, 0], sizes = [2, 128], strides = [1, 1]} : vector<2x384xf32> to vector<2x128xf32>
    %587 = arith.addf %585, %586 : vector<2x128xf32>
    %588 = arith.negf %587 : vector<2x128xf32>
    %589 = math.exp %588 : vector<2x128xf32>
    %cst_181 = arith.constant 1.000000e+00 : f32
    %590 = vector.broadcast %cst_181 : f32 to vector<2x128xf32>
    %591 = arith.addf %590, %589 : vector<2x128xf32>
    %592 = arith.divf %590, %591 : vector<2x128xf32>
    %593 = vector.extract_strided_slice %550 {offsets = [0, 128], sizes = [2, 128], strides = [1, 1]} : vector<2x384xf32> to vector<2x128xf32>
    %594 = vector.extract_strided_slice %584 {offsets = [0, 128], sizes = [2, 128], strides = [1, 1]} : vector<2x384xf32> to vector<2x128xf32>
    %595 = arith.addf %593, %594 : vector<2x128xf32>
    %596 = arith.negf %595 : vector<2x128xf32>
    %597 = math.exp %596 : vector<2x128xf32>
    %cst_182 = arith.constant 1.000000e+00 : f32
    %598 = vector.broadcast %cst_182 : f32 to vector<2x128xf32>
    %599 = arith.addf %598, %597 : vector<2x128xf32>
    %600 = arith.divf %598, %599 : vector<2x128xf32>
    %601 = vector.extract_strided_slice %550 {offsets = [0, 256], sizes = [2, 128], strides = [1, 1]} : vector<2x384xf32> to vector<2x128xf32>
    %602 = vector.extract_strided_slice %584 {offsets = [0, 256], sizes = [2, 128], strides = [1, 1]} : vector<2x384xf32> to vector<2x128xf32>
    %603 = arith.addf %602, %16 : vector<2x128xf32>
    %604 = arith.mulf %592, %603 : vector<2x128xf32>
    %605 = arith.addf %601, %604 : vector<2x128xf32>
    %606 = math.tanh %605 : vector<2x128xf32>
    %cst_183 = arith.constant 1.000000e+00 : f32
    %607 = vector.broadcast %cst_183 : f32 to vector<2x128xf32>
    %608 = arith.subf %607, %600 : vector<2x128xf32>
    %609 = arith.mulf %608, %606 : vector<2x128xf32>
    %610 = arith.mulf %600, %547 : vector<2x128xf32>
    %611 = arith.addf %609, %610 : vector<2x128xf32>
    %c0_184 = arith.constant 0 : index
    %c896 = arith.constant 896 : index
    %612 = vector.load %arg15[%c0_184, %c896] : memref<2x2048xf32, #tpu.memory_space<vmem>>, vector<2x128xf32>
    tpu.vector_store %arg15[%c0_184, %c896], %611 {strides = array<i32>} : memref<2x2048xf32, #tpu.memory_space<vmem>>, vector<2x128xf32>,
    %cst_185 = arith.constant dense<0.000000e+00> : vector<2x384xf32>
    %613 = tpu.matmul %583, %9, %cst_185 {dimension_numbers = #tpu.dot_dimension_numbers<[1], [0], [0], [1], [0, 0, 1, 1], [], []>} : vector<2x128xf32>, vector<128x384xf32>, vector<2x384xf32> -> vector<2x384xf32>
    %614 = arith.addf %613, %19 : vector<2x384xf32>
    %c0_186 = arith.constant 0 : index
    %c9 = arith.constant 9 : index
    %c0_187 = arith.constant 0 : index
    %615 = vector.load %arg16[%c0_186, %c9, %c0_187] : memref<2x16x384xf32, #tpu.memory_space<vmem>>, vector<1x1x384xf32>
    %616 = vector.shape_cast %615 : vector<1x1x384xf32> to vector<1x384xf32>
    %c1_188 = arith.constant 1 : index
    %c9_189 = arith.constant 9 : index
    %c0_190 = arith.constant 0 : index
    %617 = vector.load %arg16[%c1_188, %c9_189, %c0_190] : memref<2x16x384xf32, #tpu.memory_space<vmem>>, vector<1x1x384xf32>
    %618 = vector.shape_cast %617 : vector<1x1x384xf32> to vector<1x384xf32>
    %619 = tpu.concatenate %616, %618 in 0 : vector<1x384xf32>, vector<1x384xf32> -> vector<2x384xf32>
    %cst_191 = arith.constant dense<0.000000e+00> : vector<2x384xf32>
    %620 = tpu.matmul %583, %8, %cst_191 {dimension_numbers = #tpu.dot_dimension_numbers<[1], [0], [0], [1], [0, 0, 1, 1], [], []>} : vector<2x128xf32>, vector<128x384xf32>, vector<2x384xf32> -> vector<2x384xf32>
    %621 = vector.extract_strided_slice %619 {offsets = [0, 0], sizes = [2, 128], strides = [1, 1]} : vector<2x384xf32> to vector<2x128xf32>
    %622 = vector.extract_strided_slice %620 {offsets = [0, 0], sizes = [2, 128], strides = [1, 1]} : vector<2x384xf32> to vector<2x128xf32>
    %623 = arith.addf %621, %622 : vector<2x128xf32>
    %624 = arith.negf %623 : vector<2x128xf32>
    %625 = math.exp %624 : vector<2x128xf32>
    %cst_192 = arith.constant 1.000000e+00 : f32
    %626 = vector.broadcast %cst_192 : f32 to vector<2x128xf32>
    %627 = arith.addf %626, %625 : vector<2x128xf32>
    %628 = arith.divf %626, %627 : vector<2x128xf32>
    %629 = vector.extract_strided_slice %619 {offsets = [0, 128], sizes = [2, 128], strides = [1, 1]} : vector<2x384xf32> to vector<2x128xf32>
    %630 = vector.extract_strided_slice %620 {offsets = [0, 128], sizes = [2, 128], strides = [1, 1]} : vector<2x384xf32> to vector<2x128xf32>
    %631 = arith.addf %629, %630 : vector<2x128xf32>
    %632 = arith.negf %631 : vector<2x128xf32>
    %633 = math.exp %632 : vector<2x128xf32>
    %cst_193 = arith.constant 1.000000e+00 : f32
    %634 = vector.broadcast %cst_193 : f32 to vector<2x128xf32>
    %635 = arith.addf %634, %633 : vector<2x128xf32>
    %636 = arith.divf %634, %635 : vector<2x128xf32>
    %637 = vector.extract_strided_slice %619 {offsets = [0, 256], sizes = [2, 128], strides = [1, 1]} : vector<2x384xf32> to vector<2x128xf32>
    %638 = vector.extract_strided_slice %620 {offsets = [0, 256], sizes = [2, 128], strides = [1, 1]} : vector<2x384xf32> to vector<2x128xf32>
    %639 = arith.addf %638, %13 : vector<2x128xf32>
    %640 = arith.mulf %628, %639 : vector<2x128xf32>
    %641 = arith.addf %637, %640 : vector<2x128xf32>
    %642 = math.tanh %641 : vector<2x128xf32>
    %cst_194 = arith.constant 1.000000e+00 : f32
    %643 = vector.broadcast %cst_194 : f32 to vector<2x128xf32>
    %644 = arith.subf %643, %636 : vector<2x128xf32>
    %645 = arith.mulf %644, %642 : vector<2x128xf32>
    %646 = arith.mulf %636, %583 : vector<2x128xf32>
    %647 = arith.addf %645, %646 : vector<2x128xf32>
    %cst_195 = arith.constant dense<0.000000e+00> : vector<2x384xf32>
    %648 = tpu.matmul %611, %10, %cst_195 {dimension_numbers = #tpu.dot_dimension_numbers<[1], [0], [0], [1], [0, 0, 1, 1], [], []>} : vector<2x128xf32>, vector<128x384xf32>, vector<2x384xf32> -> vector<2x384xf32>
    %649 = vector.extract_strided_slice %614 {offsets = [0, 0], sizes = [2, 128], strides = [1, 1]} : vector<2x384xf32> to vector<2x128xf32>
    %650 = vector.extract_strided_slice %648 {offsets = [0, 0], sizes = [2, 128], strides = [1, 1]} : vector<2x384xf32> to vector<2x128xf32>
    %651 = arith.addf %649, %650 : vector<2x128xf32>
    %652 = arith.negf %651 : vector<2x128xf32>
    %653 = math.exp %652 : vector<2x128xf32>
    %cst_196 = arith.constant 1.000000e+00 : f32
    %654 = vector.broadcast %cst_196 : f32 to vector<2x128xf32>
    %655 = arith.addf %654, %653 : vector<2x128xf32>
    %656 = arith.divf %654, %655 : vector<2x128xf32>
    %657 = vector.extract_strided_slice %614 {offsets = [0, 128], sizes = [2, 128], strides = [1, 1]} : vector<2x384xf32> to vector<2x128xf32>
    %658 = vector.extract_strided_slice %648 {offsets = [0, 128], sizes = [2, 128], strides = [1, 1]} : vector<2x384xf32> to vector<2x128xf32>
    %659 = arith.addf %657, %658 : vector<2x128xf32>
    %660 = arith.negf %659 : vector<2x128xf32>
    %661 = math.exp %660 : vector<2x128xf32>
    %cst_197 = arith.constant 1.000000e+00 : f32
    %662 = vector.broadcast %cst_197 : f32 to vector<2x128xf32>
    %663 = arith.addf %662, %661 : vector<2x128xf32>
    %664 = arith.divf %662, %663 : vector<2x128xf32>
    %665 = vector.extract_strided_slice %614 {offsets = [0, 256], sizes = [2, 128], strides = [1, 1]} : vector<2x384xf32> to vector<2x128xf32>
    %666 = vector.extract_strided_slice %648 {offsets = [0, 256], sizes = [2, 128], strides = [1, 1]} : vector<2x384xf32> to vector<2x128xf32>
    %667 = arith.addf %666, %16 : vector<2x128xf32>
    %668 = arith.mulf %656, %667 : vector<2x128xf32>
    %669 = arith.addf %665, %668 : vector<2x128xf32>
    %670 = math.tanh %669 : vector<2x128xf32>
    %cst_198 = arith.constant 1.000000e+00 : f32
    %671 = vector.broadcast %cst_198 : f32 to vector<2x128xf32>
    %672 = arith.subf %671, %664 : vector<2x128xf32>
    %673 = arith.mulf %672, %670 : vector<2x128xf32>
    %674 = arith.mulf %664, %611 : vector<2x128xf32>
    %675 = arith.addf %673, %674 : vector<2x128xf32>
    %c0_199 = arith.constant 0 : index
    %c1024 = arith.constant 1024 : index
    %676 = vector.load %arg15[%c0_199, %c1024] : memref<2x2048xf32, #tpu.memory_space<vmem>>, vector<2x128xf32>
    tpu.vector_store %arg15[%c0_199, %c1024], %675 {strides = array<i32>} : memref<2x2048xf32, #tpu.memory_space<vmem>>, vector<2x128xf32>,
    %cst_200 = arith.constant dense<0.000000e+00> : vector<2x384xf32>
    %677 = tpu.matmul %647, %9, %cst_200 {dimension_numbers = #tpu.dot_dimension_numbers<[1], [0], [0], [1], [0, 0, 1, 1], [], []>} : vector<2x128xf32>, vector<128x384xf32>, vector<2x384xf32> -> vector<2x384xf32>
    %678 = arith.addf %677, %19 : vector<2x384xf32>
    %c0_201 = arith.constant 0 : index
    %c10 = arith.constant 10 : index
    %c0_202 = arith.constant 0 : index
    %679 = vector.load %arg16[%c0_201, %c10, %c0_202] : memref<2x16x384xf32, #tpu.memory_space<vmem>>, vector<1x1x384xf32>
    %680 = vector.shape_cast %679 : vector<1x1x384xf32> to vector<1x384xf32>
    %c1_203 = arith.constant 1 : index
    %c10_204 = arith.constant 10 : index
    %c0_205 = arith.constant 0 : index
    %681 = vector.load %arg16[%c1_203, %c10_204, %c0_205] : memref<2x16x384xf32, #tpu.memory_space<vmem>>, vector<1x1x384xf32>
    %682 = vector.shape_cast %681 : vector<1x1x384xf32> to vector<1x384xf32>
    %683 = tpu.concatenate %680, %682 in 0 : vector<1x384xf32>, vector<1x384xf32> -> vector<2x384xf32>
    %cst_206 = arith.constant dense<0.000000e+00> : vector<2x384xf32>
    %684 = tpu.matmul %647, %8, %cst_206 {dimension_numbers = #tpu.dot_dimension_numbers<[1], [0], [0], [1], [0, 0, 1, 1], [], []>} : vector<2x128xf32>, vector<128x384xf32>, vector<2x384xf32> -> vector<2x384xf32>
    %685 = vector.extract_strided_slice %683 {offsets = [0, 0], sizes = [2, 128], strides = [1, 1]} : vector<2x384xf32> to vector<2x128xf32>
    %686 = vector.extract_strided_slice %684 {offsets = [0, 0], sizes = [2, 128], strides = [1, 1]} : vector<2x384xf32> to vector<2x128xf32>
    %687 = arith.addf %685, %686 : vector<2x128xf32>
    %688 = arith.negf %687 : vector<2x128xf32>
    %689 = math.exp %688 : vector<2x128xf32>
    %cst_207 = arith.constant 1.000000e+00 : f32
    %690 = vector.broadcast %cst_207 : f32 to vector<2x128xf32>
    %691 = arith.addf %690, %689 : vector<2x128xf32>
    %692 = arith.divf %690, %691 : vector<2x128xf32>
    %693 = vector.extract_strided_slice %683 {offsets = [0, 128], sizes = [2, 128], strides = [1, 1]} : vector<2x384xf32> to vector<2x128xf32>
    %694 = vector.extract_strided_slice %684 {offsets = [0, 128], sizes = [2, 128], strides = [1, 1]} : vector<2x384xf32> to vector<2x128xf32>
    %695 = arith.addf %693, %694 : vector<2x128xf32>
    %696 = arith.negf %695 : vector<2x128xf32>
    %697 = math.exp %696 : vector<2x128xf32>
    %cst_208 = arith.constant 1.000000e+00 : f32
    %698 = vector.broadcast %cst_208 : f32 to vector<2x128xf32>
    %699 = arith.addf %698, %697 : vector<2x128xf32>
    %700 = arith.divf %698, %699 : vector<2x128xf32>
    %701 = vector.extract_strided_slice %683 {offsets = [0, 256], sizes = [2, 128], strides = [1, 1]} : vector<2x384xf32> to vector<2x128xf32>
    %702 = vector.extract_strided_slice %684 {offsets = [0, 256], sizes = [2, 128], strides = [1, 1]} : vector<2x384xf32> to vector<2x128xf32>
    %703 = arith.addf %702, %13 : vector<2x128xf32>
    %704 = arith.mulf %692, %703 : vector<2x128xf32>
    %705 = arith.addf %701, %704 : vector<2x128xf32>
    %706 = math.tanh %705 : vector<2x128xf32>
    %cst_209 = arith.constant 1.000000e+00 : f32
    %707 = vector.broadcast %cst_209 : f32 to vector<2x128xf32>
    %708 = arith.subf %707, %700 : vector<2x128xf32>
    %709 = arith.mulf %708, %706 : vector<2x128xf32>
    %710 = arith.mulf %700, %647 : vector<2x128xf32>
    %711 = arith.addf %709, %710 : vector<2x128xf32>
    %cst_210 = arith.constant dense<0.000000e+00> : vector<2x384xf32>
    %712 = tpu.matmul %675, %10, %cst_210 {dimension_numbers = #tpu.dot_dimension_numbers<[1], [0], [0], [1], [0, 0, 1, 1], [], []>} : vector<2x128xf32>, vector<128x384xf32>, vector<2x384xf32> -> vector<2x384xf32>
    %713 = vector.extract_strided_slice %678 {offsets = [0, 0], sizes = [2, 128], strides = [1, 1]} : vector<2x384xf32> to vector<2x128xf32>
    %714 = vector.extract_strided_slice %712 {offsets = [0, 0], sizes = [2, 128], strides = [1, 1]} : vector<2x384xf32> to vector<2x128xf32>
    %715 = arith.addf %713, %714 : vector<2x128xf32>
    %716 = arith.negf %715 : vector<2x128xf32>
    %717 = math.exp %716 : vector<2x128xf32>
    %cst_211 = arith.constant 1.000000e+00 : f32
    %718 = vector.broadcast %cst_211 : f32 to vector<2x128xf32>
    %719 = arith.addf %718, %717 : vector<2x128xf32>
    %720 = arith.divf %718, %719 : vector<2x128xf32>
    %721 = vector.extract_strided_slice %678 {offsets = [0, 128], sizes = [2, 128], strides = [1, 1]} : vector<2x384xf32> to vector<2x128xf32>
    %722 = vector.extract_strided_slice %712 {offsets = [0, 128], sizes = [2, 128], strides = [1, 1]} : vector<2x384xf32> to vector<2x128xf32>
    %723 = arith.addf %721, %722 : vector<2x128xf32>
    %724 = arith.negf %723 : vector<2x128xf32>
    %725 = math.exp %724 : vector<2x128xf32>
    %cst_212 = arith.constant 1.000000e+00 : f32
    %726 = vector.broadcast %cst_212 : f32 to vector<2x128xf32>
    %727 = arith.addf %726, %725 : vector<2x128xf32>
    %728 = arith.divf %726, %727 : vector<2x128xf32>
    %729 = vector.extract_strided_slice %678 {offsets = [0, 256], sizes = [2, 128], strides = [1, 1]} : vector<2x384xf32> to vector<2x128xf32>
    %730 = vector.extract_strided_slice %712 {offsets = [0, 256], sizes = [2, 128], strides = [1, 1]} : vector<2x384xf32> to vector<2x128xf32>
    %731 = arith.addf %730, %16 : vector<2x128xf32>
    %732 = arith.mulf %720, %731 : vector<2x128xf32>
    %733 = arith.addf %729, %732 : vector<2x128xf32>
    %734 = math.tanh %733 : vector<2x128xf32>
    %cst_213 = arith.constant 1.000000e+00 : f32
    %735 = vector.broadcast %cst_213 : f32 to vector<2x128xf32>
    %736 = arith.subf %735, %728 : vector<2x128xf32>
    %737 = arith.mulf %736, %734 : vector<2x128xf32>
    %738 = arith.mulf %728, %675 : vector<2x128xf32>
    %739 = arith.addf %737, %738 : vector<2x128xf32>
    %c0_214 = arith.constant 0 : index
    %c1152 = arith.constant 1152 : index
    %740 = vector.load %arg15[%c0_214, %c1152] : memref<2x2048xf32, #tpu.memory_space<vmem>>, vector<2x128xf32>
    tpu.vector_store %arg15[%c0_214, %c1152], %739 {strides = array<i32>} : memref<2x2048xf32, #tpu.memory_space<vmem>>, vector<2x128xf32>,
    %cst_215 = arith.constant dense<0.000000e+00> : vector<2x384xf32>
    %741 = tpu.matmul %711, %9, %cst_215 {dimension_numbers = #tpu.dot_dimension_numbers<[1], [0], [0], [1], [0, 0, 1, 1], [], []>} : vector<2x128xf32>, vector<128x384xf32>, vector<2x384xf32> -> vector<2x384xf32>
    %742 = arith.addf %741, %19 : vector<2x384xf32>
    %c0_216 = arith.constant 0 : index
    %c11 = arith.constant 11 : index
    %c0_217 = arith.constant 0 : index
    %743 = vector.load %arg16[%c0_216, %c11, %c0_217] : memref<2x16x384xf32, #tpu.memory_space<vmem>>, vector<1x1x384xf32>
    %744 = vector.shape_cast %743 : vector<1x1x384xf32> to vector<1x384xf32>
    %c1_218 = arith.constant 1 : index
    %c11_219 = arith.constant 11 : index
    %c0_220 = arith.constant 0 : index
    %745 = vector.load %arg16[%c1_218, %c11_219, %c0_220] : memref<2x16x384xf32, #tpu.memory_space<vmem>>, vector<1x1x384xf32>
    %746 = vector.shape_cast %745 : vector<1x1x384xf32> to vector<1x384xf32>
    %747 = tpu.concatenate %744, %746 in 0 : vector<1x384xf32>, vector<1x384xf32> -> vector<2x384xf32>
    %cst_221 = arith.constant dense<0.000000e+00> : vector<2x384xf32>
    %748 = tpu.matmul %711, %8, %cst_221 {dimension_numbers = #tpu.dot_dimension_numbers<[1], [0], [0], [1], [0, 0, 1, 1], [], []>} : vector<2x128xf32>, vector<128x384xf32>, vector<2x384xf32> -> vector<2x384xf32>
    %749 = vector.extract_strided_slice %747 {offsets = [0, 0], sizes = [2, 128], strides = [1, 1]} : vector<2x384xf32> to vector<2x128xf32>
    %750 = vector.extract_strided_slice %748 {offsets = [0, 0], sizes = [2, 128], strides = [1, 1]} : vector<2x384xf32> to vector<2x128xf32>
    %751 = arith.addf %749, %750 : vector<2x128xf32>
    %752 = arith.negf %751 : vector<2x128xf32>
    %753 = math.exp %752 : vector<2x128xf32>
    %cst_222 = arith.constant 1.000000e+00 : f32
    %754 = vector.broadcast %cst_222 : f32 to vector<2x128xf32>
    %755 = arith.addf %754, %753 : vector<2x128xf32>
    %756 = arith.divf %754, %755 : vector<2x128xf32>
    %757 = vector.extract_strided_slice %747 {offsets = [0, 128], sizes = [2, 128], strides = [1, 1]} : vector<2x384xf32> to vector<2x128xf32>
    %758 = vector.extract_strided_slice %748 {offsets = [0, 128], sizes = [2, 128], strides = [1, 1]} : vector<2x384xf32> to vector<2x128xf32>
    %759 = arith.addf %757, %758 : vector<2x128xf32>
    %760 = arith.negf %759 : vector<2x128xf32>
    %761 = math.exp %760 : vector<2x128xf32>
    %cst_223 = arith.constant 1.000000e+00 : f32
    %762 = vector.broadcast %cst_223 : f32 to vector<2x128xf32>
    %763 = arith.addf %762, %761 : vector<2x128xf32>
    %764 = arith.divf %762, %763 : vector<2x128xf32>
    %765 = vector.extract_strided_slice %747 {offsets = [0, 256], sizes = [2, 128], strides = [1, 1]} : vector<2x384xf32> to vector<2x128xf32>
    %766 = vector.extract_strided_slice %748 {offsets = [0, 256], sizes = [2, 128], strides = [1, 1]} : vector<2x384xf32> to vector<2x128xf32>
    %767 = arith.addf %766, %13 : vector<2x128xf32>
    %768 = arith.mulf %756, %767 : vector<2x128xf32>
    %769 = arith.addf %765, %768 : vector<2x128xf32>
    %770 = math.tanh %769 : vector<2x128xf32>
    %cst_224 = arith.constant 1.000000e+00 : f32
    %771 = vector.broadcast %cst_224 : f32 to vector<2x128xf32>
    %772 = arith.subf %771, %764 : vector<2x128xf32>
    %773 = arith.mulf %772, %770 : vector<2x128xf32>
    %774 = arith.mulf %764, %711 : vector<2x128xf32>
    %775 = arith.addf %773, %774 : vector<2x128xf32>
    %cst_225 = arith.constant dense<0.000000e+00> : vector<2x384xf32>
    %776 = tpu.matmul %739, %10, %cst_225 {dimension_numbers = #tpu.dot_dimension_numbers<[1], [0], [0], [1], [0, 0, 1, 1], [], []>} : vector<2x128xf32>, vector<128x384xf32>, vector<2x384xf32> -> vector<2x384xf32>
    %777 = vector.extract_strided_slice %742 {offsets = [0, 0], sizes = [2, 128], strides = [1, 1]} : vector<2x384xf32> to vector<2x128xf32>
    %778 = vector.extract_strided_slice %776 {offsets = [0, 0], sizes = [2, 128], strides = [1, 1]} : vector<2x384xf32> to vector<2x128xf32>
    %779 = arith.addf %777, %778 : vector<2x128xf32>
    %780 = arith.negf %779 : vector<2x128xf32>
    %781 = math.exp %780 : vector<2x128xf32>
    %cst_226 = arith.constant 1.000000e+00 : f32
    %782 = vector.broadcast %cst_226 : f32 to vector<2x128xf32>
    %783 = arith.addf %782, %781 : vector<2x128xf32>
    %784 = arith.divf %782, %783 : vector<2x128xf32>
    %785 = vector.extract_strided_slice %742 {offsets = [0, 128], sizes = [2, 128], strides = [1, 1]} : vector<2x384xf32> to vector<2x128xf32>
    %786 = vector.extract_strided_slice %776 {offsets = [0, 128], sizes = [2, 128], strides = [1, 1]} : vector<2x384xf32> to vector<2x128xf32>
    %787 = arith.addf %785, %786 : vector<2x128xf32>
    %788 = arith.negf %787 : vector<2x128xf32>
    %789 = math.exp %788 : vector<2x128xf32>
    %cst_227 = arith.constant 1.000000e+00 : f32
    %790 = vector.broadcast %cst_227 : f32 to vector<2x128xf32>
    %791 = arith.addf %790, %789 : vector<2x128xf32>
    %792 = arith.divf %790, %791 : vector<2x128xf32>
    %793 = vector.extract_strided_slice %742 {offsets = [0, 256], sizes = [2, 128], strides = [1, 1]} : vector<2x384xf32> to vector<2x128xf32>
    %794 = vector.extract_strided_slice %776 {offsets = [0, 256], sizes = [2, 128], strides = [1, 1]} : vector<2x384xf32> to vector<2x128xf32>
    %795 = arith.addf %794, %16 : vector<2x128xf32>
    %796 = arith.mulf %784, %795 : vector<2x128xf32>
    %797 = arith.addf %793, %796 : vector<2x128xf32>
    %798 = math.tanh %797 : vector<2x128xf32>
    %cst_228 = arith.constant 1.000000e+00 : f32
    %799 = vector.broadcast %cst_228 : f32 to vector<2x128xf32>
    %800 = arith.subf %799, %792 : vector<2x128xf32>
    %801 = arith.mulf %800, %798 : vector<2x128xf32>
    %802 = arith.mulf %792, %739 : vector<2x128xf32>
    %803 = arith.addf %801, %802 : vector<2x128xf32>
    %c0_229 = arith.constant 0 : index
    %c1280 = arith.constant 1280 : index
    %804 = vector.load %arg15[%c0_229, %c1280] : memref<2x2048xf32, #tpu.memory_space<vmem>>, vector<2x128xf32>
    tpu.vector_store %arg15[%c0_229, %c1280], %803 {strides = array<i32>} : memref<2x2048xf32, #tpu.memory_space<vmem>>, vector<2x128xf32>,
    %cst_230 = arith.constant dense<0.000000e+00> : vector<2x384xf32>
    %805 = tpu.matmul %775, %9, %cst_230 {dimension_numbers = #tpu.dot_dimension_numbers<[1], [0], [0], [1], [0, 0, 1, 1], [], []>} : vector<2x128xf32>, vector<128x384xf32>, vector<2x384xf32> -> vector<2x384xf32>
    %806 = arith.addf %805, %19 : vector<2x384xf32>
    %c0_231 = arith.constant 0 : index
    %c12 = arith.constant 12 : index
    %c0_232 = arith.constant 0 : index
    %807 = vector.load %arg16[%c0_231, %c12, %c0_232] : memref<2x16x384xf32, #tpu.memory_space<vmem>>, vector<1x1x384xf32>
    %808 = vector.shape_cast %807 : vector<1x1x384xf32> to vector<1x384xf32>
    %c1_233 = arith.constant 1 : index
    %c12_234 = arith.constant 12 : index
    %c0_235 = arith.constant 0 : index
    %809 = vector.load %arg16[%c1_233, %c12_234, %c0_235] : memref<2x16x384xf32, #tpu.memory_space<vmem>>, vector<1x1x384xf32>
    %810 = vector.shape_cast %809 : vector<1x1x384xf32> to vector<1x384xf32>
    %811 = tpu.concatenate %808, %810 in 0 : vector<1x384xf32>, vector<1x384xf32> -> vector<2x384xf32>
    %cst_236 = arith.constant dense<0.000000e+00> : vector<2x384xf32>
    %812 = tpu.matmul %775, %8, %cst_236 {dimension_numbers = #tpu.dot_dimension_numbers<[1], [0], [0], [1], [0, 0, 1, 1], [], []>} : vector<2x128xf32>, vector<128x384xf32>, vector<2x384xf32> -> vector<2x384xf32>
    %813 = vector.extract_strided_slice %811 {offsets = [0, 0], sizes = [2, 128], strides = [1, 1]} : vector<2x384xf32> to vector<2x128xf32>
    %814 = vector.extract_strided_slice %812 {offsets = [0, 0], sizes = [2, 128], strides = [1, 1]} : vector<2x384xf32> to vector<2x128xf32>
    %815 = arith.addf %813, %814 : vector<2x128xf32>
    %816 = arith.negf %815 : vector<2x128xf32>
    %817 = math.exp %816 : vector<2x128xf32>
    %cst_237 = arith.constant 1.000000e+00 : f32
    %818 = vector.broadcast %cst_237 : f32 to vector<2x128xf32>
    %819 = arith.addf %818, %817 : vector<2x128xf32>
    %820 = arith.divf %818, %819 : vector<2x128xf32>
    %821 = vector.extract_strided_slice %811 {offsets = [0, 128], sizes = [2, 128], strides = [1, 1]} : vector<2x384xf32> to vector<2x128xf32>
    %822 = vector.extract_strided_slice %812 {offsets = [0, 128], sizes = [2, 128], strides = [1, 1]} : vector<2x384xf32> to vector<2x128xf32>
    %823 = arith.addf %821, %822 : vector<2x128xf32>
    %824 = arith.negf %823 : vector<2x128xf32>
    %825 = math.exp %824 : vector<2x128xf32>
    %cst_238 = arith.constant 1.000000e+00 : f32
    %826 = vector.broadcast %cst_238 : f32 to vector<2x128xf32>
    %827 = arith.addf %826, %825 : vector<2x128xf32>
    %828 = arith.divf %826, %827 : vector<2x128xf32>
    %829 = vector.extract_strided_slice %811 {offsets = [0, 256], sizes = [2, 128], strides = [1, 1]} : vector<2x384xf32> to vector<2x128xf32>
    %830 = vector.extract_strided_slice %812 {offsets = [0, 256], sizes = [2, 128], strides = [1, 1]} : vector<2x384xf32> to vector<2x128xf32>
    %831 = arith.addf %830, %13 : vector<2x128xf32>
    %832 = arith.mulf %820, %831 : vector<2x128xf32>
    %833 = arith.addf %829, %832 : vector<2x128xf32>
    %834 = math.tanh %833 : vector<2x128xf32>
    %cst_239 = arith.constant 1.000000e+00 : f32
    %835 = vector.broadcast %cst_239 : f32 to vector<2x128xf32>
    %836 = arith.subf %835, %828 : vector<2x128xf32>
    %837 = arith.mulf %836, %834 : vector<2x128xf32>
    %838 = arith.mulf %828, %775 : vector<2x128xf32>
    %839 = arith.addf %837, %838 : vector<2x128xf32>
    %cst_240 = arith.constant dense<0.000000e+00> : vector<2x384xf32>
    %840 = tpu.matmul %803, %10, %cst_240 {dimension_numbers = #tpu.dot_dimension_numbers<[1], [0], [0], [1], [0, 0, 1, 1], [], []>} : vector<2x128xf32>, vector<128x384xf32>, vector<2x384xf32> -> vector<2x384xf32>
    %841 = vector.extract_strided_slice %806 {offsets = [0, 0], sizes = [2, 128], strides = [1, 1]} : vector<2x384xf32> to vector<2x128xf32>
    %842 = vector.extract_strided_slice %840 {offsets = [0, 0], sizes = [2, 128], strides = [1, 1]} : vector<2x384xf32> to vector<2x128xf32>
    %843 = arith.addf %841, %842 : vector<2x128xf32>
    %844 = arith.negf %843 : vector<2x128xf32>
    %845 = math.exp %844 : vector<2x128xf32>
    %cst_241 = arith.constant 1.000000e+00 : f32
    %846 = vector.broadcast %cst_241 : f32 to vector<2x128xf32>
    %847 = arith.addf %846, %845 : vector<2x128xf32>
    %848 = arith.divf %846, %847 : vector<2x128xf32>
    %849 = vector.extract_strided_slice %806 {offsets = [0, 128], sizes = [2, 128], strides = [1, 1]} : vector<2x384xf32> to vector<2x128xf32>
    %850 = vector.extract_strided_slice %840 {offsets = [0, 128], sizes = [2, 128], strides = [1, 1]} : vector<2x384xf32> to vector<2x128xf32>
    %851 = arith.addf %849, %850 : vector<2x128xf32>
    %852 = arith.negf %851 : vector<2x128xf32>
    %853 = math.exp %852 : vector<2x128xf32>
    %cst_242 = arith.constant 1.000000e+00 : f32
    %854 = vector.broadcast %cst_242 : f32 to vector<2x128xf32>
    %855 = arith.addf %854, %853 : vector<2x128xf32>
    %856 = arith.divf %854, %855 : vector<2x128xf32>
    %857 = vector.extract_strided_slice %806 {offsets = [0, 256], sizes = [2, 128], strides = [1, 1]} : vector<2x384xf32> to vector<2x128xf32>
    %858 = vector.extract_strided_slice %840 {offsets = [0, 256], sizes = [2, 128], strides = [1, 1]} : vector<2x384xf32> to vector<2x128xf32>
    %859 = arith.addf %858, %16 : vector<2x128xf32>
    %860 = arith.mulf %848, %859 : vector<2x128xf32>
    %861 = arith.addf %857, %860 : vector<2x128xf32>
    %862 = math.tanh %861 : vector<2x128xf32>
    %cst_243 = arith.constant 1.000000e+00 : f32
    %863 = vector.broadcast %cst_243 : f32 to vector<2x128xf32>
    %864 = arith.subf %863, %856 : vector<2x128xf32>
    %865 = arith.mulf %864, %862 : vector<2x128xf32>
    %866 = arith.mulf %856, %803 : vector<2x128xf32>
    %867 = arith.addf %865, %866 : vector<2x128xf32>
    %c0_244 = arith.constant 0 : index
    %c1408 = arith.constant 1408 : index
    %868 = vector.load %arg15[%c0_244, %c1408] : memref<2x2048xf32, #tpu.memory_space<vmem>>, vector<2x128xf32>
    tpu.vector_store %arg15[%c0_244, %c1408], %867 {strides = array<i32>} : memref<2x2048xf32, #tpu.memory_space<vmem>>, vector<2x128xf32>,
    %cst_245 = arith.constant dense<0.000000e+00> : vector<2x384xf32>
    %869 = tpu.matmul %839, %9, %cst_245 {dimension_numbers = #tpu.dot_dimension_numbers<[1], [0], [0], [1], [0, 0, 1, 1], [], []>} : vector<2x128xf32>, vector<128x384xf32>, vector<2x384xf32> -> vector<2x384xf32>
    %870 = arith.addf %869, %19 : vector<2x384xf32>
    %c0_246 = arith.constant 0 : index
    %c13 = arith.constant 13 : index
    %c0_247 = arith.constant 0 : index
    %871 = vector.load %arg16[%c0_246, %c13, %c0_247] : memref<2x16x384xf32, #tpu.memory_space<vmem>>, vector<1x1x384xf32>
    %872 = vector.shape_cast %871 : vector<1x1x384xf32> to vector<1x384xf32>
    %c1_248 = arith.constant 1 : index
    %c13_249 = arith.constant 13 : index
    %c0_250 = arith.constant 0 : index
    %873 = vector.load %arg16[%c1_248, %c13_249, %c0_250] : memref<2x16x384xf32, #tpu.memory_space<vmem>>, vector<1x1x384xf32>
    %874 = vector.shape_cast %873 : vector<1x1x384xf32> to vector<1x384xf32>
    %875 = tpu.concatenate %872, %874 in 0 : vector<1x384xf32>, vector<1x384xf32> -> vector<2x384xf32>
    %cst_251 = arith.constant dense<0.000000e+00> : vector<2x384xf32>
    %876 = tpu.matmul %839, %8, %cst_251 {dimension_numbers = #tpu.dot_dimension_numbers<[1], [0], [0], [1], [0, 0, 1, 1], [], []>} : vector<2x128xf32>, vector<128x384xf32>, vector<2x384xf32> -> vector<2x384xf32>
    %877 = vector.extract_strided_slice %875 {offsets = [0, 0], sizes = [2, 128], strides = [1, 1]} : vector<2x384xf32> to vector<2x128xf32>
    %878 = vector.extract_strided_slice %876 {offsets = [0, 0], sizes = [2, 128], strides = [1, 1]} : vector<2x384xf32> to vector<2x128xf32>
    %879 = arith.addf %877, %878 : vector<2x128xf32>
    %880 = arith.negf %879 : vector<2x128xf32>
    %881 = math.exp %880 : vector<2x128xf32>
    %cst_252 = arith.constant 1.000000e+00 : f32
    %882 = vector.broadcast %cst_252 : f32 to vector<2x128xf32>
    %883 = arith.addf %882, %881 : vector<2x128xf32>
    %884 = arith.divf %882, %883 : vector<2x128xf32>
    %885 = vector.extract_strided_slice %875 {offsets = [0, 128], sizes = [2, 128], strides = [1, 1]} : vector<2x384xf32> to vector<2x128xf32>
    %886 = vector.extract_strided_slice %876 {offsets = [0, 128], sizes = [2, 128], strides = [1, 1]} : vector<2x384xf32> to vector<2x128xf32>
    %887 = arith.addf %885, %886 : vector<2x128xf32>
    %888 = arith.negf %887 : vector<2x128xf32>
    %889 = math.exp %888 : vector<2x128xf32>
    %cst_253 = arith.constant 1.000000e+00 : f32
    %890 = vector.broadcast %cst_253 : f32 to vector<2x128xf32>
    %891 = arith.addf %890, %889 : vector<2x128xf32>
    %892 = arith.divf %890, %891 : vector<2x128xf32>
    %893 = vector.extract_strided_slice %875 {offsets = [0, 256], sizes = [2, 128], strides = [1, 1]} : vector<2x384xf32> to vector<2x128xf32>
    %894 = vector.extract_strided_slice %876 {offsets = [0, 256], sizes = [2, 128], strides = [1, 1]} : vector<2x384xf32> to vector<2x128xf32>
    %895 = arith.addf %894, %13 : vector<2x128xf32>
    %896 = arith.mulf %884, %895 : vector<2x128xf32>
    %897 = arith.addf %893, %896 : vector<2x128xf32>
    %898 = math.tanh %897 : vector<2x128xf32>
    %cst_254 = arith.constant 1.000000e+00 : f32
    %899 = vector.broadcast %cst_254 : f32 to vector<2x128xf32>
    %900 = arith.subf %899, %892 : vector<2x128xf32>
    %901 = arith.mulf %900, %898 : vector<2x128xf32>
    %902 = arith.mulf %892, %839 : vector<2x128xf32>
    %903 = arith.addf %901, %902 : vector<2x128xf32>
    %cst_255 = arith.constant dense<0.000000e+00> : vector<2x384xf32>
    %904 = tpu.matmul %867, %10, %cst_255 {dimension_numbers = #tpu.dot_dimension_numbers<[1], [0], [0], [1], [0, 0, 1, 1], [], []>} : vector<2x128xf32>, vector<128x384xf32>, vector<2x384xf32> -> vector<2x384xf32>
    %905 = vector.extract_strided_slice %870 {offsets = [0, 0], sizes = [2, 128], strides = [1, 1]} : vector<2x384xf32> to vector<2x128xf32>
    %906 = vector.extract_strided_slice %904 {offsets = [0, 0], sizes = [2, 128], strides = [1, 1]} : vector<2x384xf32> to vector<2x128xf32>
    %907 = arith.addf %905, %906 : vector<2x128xf32>
    %908 = arith.negf %907 : vector<2x128xf32>
    %909 = math.exp %908 : vector<2x128xf32>
    %cst_256 = arith.constant 1.000000e+00 : f32
    %910 = vector.broadcast %cst_256 : f32 to vector<2x128xf32>
    %911 = arith.addf %910, %909 : vector<2x128xf32>
    %912 = arith.divf %910, %911 : vector<2x128xf32>
    %913 = vector.extract_strided_slice %870 {offsets = [0, 128], sizes = [2, 128], strides = [1, 1]} : vector<2x384xf32> to vector<2x128xf32>
    %914 = vector.extract_strided_slice %904 {offsets = [0, 128], sizes = [2, 128], strides = [1, 1]} : vector<2x384xf32> to vector<2x128xf32>
    %915 = arith.addf %913, %914 : vector<2x128xf32>
    %916 = arith.negf %915 : vector<2x128xf32>
    %917 = math.exp %916 : vector<2x128xf32>
    %cst_257 = arith.constant 1.000000e+00 : f32
    %918 = vector.broadcast %cst_257 : f32 to vector<2x128xf32>
    %919 = arith.addf %918, %917 : vector<2x128xf32>
    %920 = arith.divf %918, %919 : vector<2x128xf32>
    %921 = vector.extract_strided_slice %870 {offsets = [0, 256], sizes = [2, 128], strides = [1, 1]} : vector<2x384xf32> to vector<2x128xf32>
    %922 = vector.extract_strided_slice %904 {offsets = [0, 256], sizes = [2, 128], strides = [1, 1]} : vector<2x384xf32> to vector<2x128xf32>
    %923 = arith.addf %922, %16 : vector<2x128xf32>
    %924 = arith.mulf %912, %923 : vector<2x128xf32>
    %925 = arith.addf %921, %924 : vector<2x128xf32>
    %926 = math.tanh %925 : vector<2x128xf32>
    %cst_258 = arith.constant 1.000000e+00 : f32
    %927 = vector.broadcast %cst_258 : f32 to vector<2x128xf32>
    %928 = arith.subf %927, %920 : vector<2x128xf32>
    %929 = arith.mulf %928, %926 : vector<2x128xf32>
    %930 = arith.mulf %920, %867 : vector<2x128xf32>
    %931 = arith.addf %929, %930 : vector<2x128xf32>
    %c0_259 = arith.constant 0 : index
    %c1536 = arith.constant 1536 : index
    %932 = vector.load %arg15[%c0_259, %c1536] : memref<2x2048xf32, #tpu.memory_space<vmem>>, vector<2x128xf32>
    tpu.vector_store %arg15[%c0_259, %c1536], %931 {strides = array<i32>} : memref<2x2048xf32, #tpu.memory_space<vmem>>, vector<2x128xf32>,
    %cst_260 = arith.constant dense<0.000000e+00> : vector<2x384xf32>
    %933 = tpu.matmul %903, %9, %cst_260 {dimension_numbers = #tpu.dot_dimension_numbers<[1], [0], [0], [1], [0, 0, 1, 1], [], []>} : vector<2x128xf32>, vector<128x384xf32>, vector<2x384xf32> -> vector<2x384xf32>
    %934 = arith.addf %933, %19 : vector<2x384xf32>
    %c0_261 = arith.constant 0 : index
    %c14 = arith.constant 14 : index
    %c0_262 = arith.constant 0 : index
    %935 = vector.load %arg16[%c0_261, %c14, %c0_262] : memref<2x16x384xf32, #tpu.memory_space<vmem>>, vector<1x1x384xf32>
    %936 = vector.shape_cast %935 : vector<1x1x384xf32> to vector<1x384xf32>
    %c1_263 = arith.constant 1 : index
    %c14_264 = arith.constant 14 : index
    %c0_265 = arith.constant 0 : index
    %937 = vector.load %arg16[%c1_263, %c14_264, %c0_265] : memref<2x16x384xf32, #tpu.memory_space<vmem>>, vector<1x1x384xf32>
    %938 = vector.shape_cast %937 : vector<1x1x384xf32> to vector<1x384xf32>
    %939 = tpu.concatenate %936, %938 in 0 : vector<1x384xf32>, vector<1x384xf32> -> vector<2x384xf32>
    %cst_266 = arith.constant dense<0.000000e+00> : vector<2x384xf32>
    %940 = tpu.matmul %903, %8, %cst_266 {dimension_numbers = #tpu.dot_dimension_numbers<[1], [0], [0], [1], [0, 0, 1, 1], [], []>} : vector<2x128xf32>, vector<128x384xf32>, vector<2x384xf32> -> vector<2x384xf32>
    %941 = vector.extract_strided_slice %939 {offsets = [0, 0], sizes = [2, 128], strides = [1, 1]} : vector<2x384xf32> to vector<2x128xf32>
    %942 = vector.extract_strided_slice %940 {offsets = [0, 0], sizes = [2, 128], strides = [1, 1]} : vector<2x384xf32> to vector<2x128xf32>
    %943 = arith.addf %941, %942 : vector<2x128xf32>
    %944 = arith.negf %943 : vector<2x128xf32>
    %945 = math.exp %944 : vector<2x128xf32>
    %cst_267 = arith.constant 1.000000e+00 : f32
    %946 = vector.broadcast %cst_267 : f32 to vector<2x128xf32>
    %947 = arith.addf %946, %945 : vector<2x128xf32>
    %948 = arith.divf %946, %947 : vector<2x128xf32>
    %949 = vector.extract_strided_slice %939 {offsets = [0, 128], sizes = [2, 128], strides = [1, 1]} : vector<2x384xf32> to vector<2x128xf32>
    %950 = vector.extract_strided_slice %940 {offsets = [0, 128], sizes = [2, 128], strides = [1, 1]} : vector<2x384xf32> to vector<2x128xf32>
    %951 = arith.addf %949, %950 : vector<2x128xf32>
    %952 = arith.negf %951 : vector<2x128xf32>
    %953 = math.exp %952 : vector<2x128xf32>
    %cst_268 = arith.constant 1.000000e+00 : f32
    %954 = vector.broadcast %cst_268 : f32 to vector<2x128xf32>
    %955 = arith.addf %954, %953 : vector<2x128xf32>
    %956 = arith.divf %954, %955 : vector<2x128xf32>
    %957 = vector.extract_strided_slice %939 {offsets = [0, 256], sizes = [2, 128], strides = [1, 1]} : vector<2x384xf32> to vector<2x128xf32>
    %958 = vector.extract_strided_slice %940 {offsets = [0, 256], sizes = [2, 128], strides = [1, 1]} : vector<2x384xf32> to vector<2x128xf32>
    %959 = arith.addf %958, %13 : vector<2x128xf32>
    %960 = arith.mulf %948, %959 : vector<2x128xf32>
    %961 = arith.addf %957, %960 : vector<2x128xf32>
    %962 = math.tanh %961 : vector<2x128xf32>
    %cst_269 = arith.constant 1.000000e+00 : f32
    %963 = vector.broadcast %cst_269 : f32 to vector<2x128xf32>
    %964 = arith.subf %963, %956 : vector<2x128xf32>
    %965 = arith.mulf %964, %962 : vector<2x128xf32>
    %966 = arith.mulf %956, %903 : vector<2x128xf32>
    %967 = arith.addf %965, %966 : vector<2x128xf32>
    %cst_270 = arith.constant dense<0.000000e+00> : vector<2x384xf32>
    %968 = tpu.matmul %931, %10, %cst_270 {dimension_numbers = #tpu.dot_dimension_numbers<[1], [0], [0], [1], [0, 0, 1, 1], [], []>} : vector<2x128xf32>, vector<128x384xf32>, vector<2x384xf32> -> vector<2x384xf32>
    %969 = vector.extract_strided_slice %934 {offsets = [0, 0], sizes = [2, 128], strides = [1, 1]} : vector<2x384xf32> to vector<2x128xf32>
    %970 = vector.extract_strided_slice %968 {offsets = [0, 0], sizes = [2, 128], strides = [1, 1]} : vector<2x384xf32> to vector<2x128xf32>
    %971 = arith.addf %969, %970 : vector<2x128xf32>
    %972 = arith.negf %971 : vector<2x128xf32>
    %973 = math.exp %972 : vector<2x128xf32>
    %cst_271 = arith.constant 1.000000e+00 : f32
    %974 = vector.broadcast %cst_271 : f32 to vector<2x128xf32>
    %975 = arith.addf %974, %973 : vector<2x128xf32>
    %976 = arith.divf %974, %975 : vector<2x128xf32>
    %977 = vector.extract_strided_slice %934 {offsets = [0, 128], sizes = [2, 128], strides = [1, 1]} : vector<2x384xf32> to vector<2x128xf32>
    %978 = vector.extract_strided_slice %968 {offsets = [0, 128], sizes = [2, 128], strides = [1, 1]} : vector<2x384xf32> to vector<2x128xf32>
    %979 = arith.addf %977, %978 : vector<2x128xf32>
    %980 = arith.negf %979 : vector<2x128xf32>
    %981 = math.exp %980 : vector<2x128xf32>
    %cst_272 = arith.constant 1.000000e+00 : f32
    %982 = vector.broadcast %cst_272 : f32 to vector<2x128xf32>
    %983 = arith.addf %982, %981 : vector<2x128xf32>
    %984 = arith.divf %982, %983 : vector<2x128xf32>
    %985 = vector.extract_strided_slice %934 {offsets = [0, 256], sizes = [2, 128], strides = [1, 1]} : vector<2x384xf32> to vector<2x128xf32>
    %986 = vector.extract_strided_slice %968 {offsets = [0, 256], sizes = [2, 128], strides = [1, 1]} : vector<2x384xf32> to vector<2x128xf32>
    %987 = arith.addf %986, %16 : vector<2x128xf32>
    %988 = arith.mulf %976, %987 : vector<2x128xf32>
    %989 = arith.addf %985, %988 : vector<2x128xf32>
    %990 = math.tanh %989 : vector<2x128xf32>
    %cst_273 = arith.constant 1.000000e+00 : f32
    %991 = vector.broadcast %cst_273 : f32 to vector<2x128xf32>
    %992 = arith.subf %991, %984 : vector<2x128xf32>
    %993 = arith.mulf %992, %990 : vector<2x128xf32>
    %994 = arith.mulf %984, %931 : vector<2x128xf32>
    %995 = arith.addf %993, %994 : vector<2x128xf32>
    %c0_274 = arith.constant 0 : index
    %c1664 = arith.constant 1664 : index
    %996 = vector.load %arg15[%c0_274, %c1664] : memref<2x2048xf32, #tpu.memory_space<vmem>>, vector<2x128xf32>
    tpu.vector_store %arg15[%c0_274, %c1664], %995 {strides = array<i32>} : memref<2x2048xf32, #tpu.memory_space<vmem>>, vector<2x128xf32>,
    %cst_275 = arith.constant dense<0.000000e+00> : vector<2x384xf32>
    %997 = tpu.matmul %967, %9, %cst_275 {dimension_numbers = #tpu.dot_dimension_numbers<[1], [0], [0], [1], [0, 0, 1, 1], [], []>} : vector<2x128xf32>, vector<128x384xf32>, vector<2x384xf32> -> vector<2x384xf32>
    %998 = arith.addf %997, %19 : vector<2x384xf32>
    %c0_276 = arith.constant 0 : index
    %c15 = arith.constant 15 : index
    %c0_277 = arith.constant 0 : index
    %999 = vector.load %arg16[%c0_276, %c15, %c0_277] : memref<2x16x384xf32, #tpu.memory_space<vmem>>, vector<1x1x384xf32>
    %1000 = vector.shape_cast %999 : vector<1x1x384xf32> to vector<1x384xf32>
    %c1_278 = arith.constant 1 : index
    %c15_279 = arith.constant 15 : index
    %c0_280 = arith.constant 0 : index
    %1001 = vector.load %arg16[%c1_278, %c15_279, %c0_280] : memref<2x16x384xf32, #tpu.memory_space<vmem>>, vector<1x1x384xf32>
    %1002 = vector.shape_cast %1001 : vector<1x1x384xf32> to vector<1x384xf32>
    %1003 = tpu.concatenate %1000, %1002 in 0 : vector<1x384xf32>, vector<1x384xf32> -> vector<2x384xf32>
    %cst_281 = arith.constant dense<0.000000e+00> : vector<2x384xf32>
    %1004 = tpu.matmul %967, %8, %cst_281 {dimension_numbers = #tpu.dot_dimension_numbers<[1], [0], [0], [1], [0, 0, 1, 1], [], []>} : vector<2x128xf32>, vector<128x384xf32>, vector<2x384xf32> -> vector<2x384xf32>
    %1005 = vector.extract_strided_slice %1003 {offsets = [0, 0], sizes = [2, 128], strides = [1, 1]} : vector<2x384xf32> to vector<2x128xf32>
    %1006 = vector.extract_strided_slice %1004 {offsets = [0, 0], sizes = [2, 128], strides = [1, 1]} : vector<2x384xf32> to vector<2x128xf32>
    %1007 = arith.addf %1005, %1006 : vector<2x128xf32>
    %1008 = arith.negf %1007 : vector<2x128xf32>
    %1009 = math.exp %1008 : vector<2x128xf32>
    %cst_282 = arith.constant 1.000000e+00 : f32
    %1010 = vector.broadcast %cst_282 : f32 to vector<2x128xf32>
    %1011 = arith.addf %1010, %1009 : vector<2x128xf32>
    %1012 = arith.divf %1010, %1011 : vector<2x128xf32>
    %1013 = vector.extract_strided_slice %1003 {offsets = [0, 128], sizes = [2, 128], strides = [1, 1]} : vector<2x384xf32> to vector<2x128xf32>
    %1014 = vector.extract_strided_slice %1004 {offsets = [0, 128], sizes = [2, 128], strides = [1, 1]} : vector<2x384xf32> to vector<2x128xf32>
    %1015 = arith.addf %1013, %1014 : vector<2x128xf32>
    %1016 = arith.negf %1015 : vector<2x128xf32>
    %1017 = math.exp %1016 : vector<2x128xf32>
    %cst_283 = arith.constant 1.000000e+00 : f32
    %1018 = vector.broadcast %cst_283 : f32 to vector<2x128xf32>
    %1019 = arith.addf %1018, %1017 : vector<2x128xf32>
    %1020 = arith.divf %1018, %1019 : vector<2x128xf32>
    %1021 = vector.extract_strided_slice %1003 {offsets = [0, 256], sizes = [2, 128], strides = [1, 1]} : vector<2x384xf32> to vector<2x128xf32>
    %1022 = vector.extract_strided_slice %1004 {offsets = [0, 256], sizes = [2, 128], strides = [1, 1]} : vector<2x384xf32> to vector<2x128xf32>
    %1023 = arith.addf %1022, %13 : vector<2x128xf32>
    %1024 = arith.mulf %1012, %1023 : vector<2x128xf32>
    %1025 = arith.addf %1021, %1024 : vector<2x128xf32>
    %1026 = math.tanh %1025 : vector<2x128xf32>
    %cst_284 = arith.constant 1.000000e+00 : f32
    %1027 = vector.broadcast %cst_284 : f32 to vector<2x128xf32>
    %1028 = arith.subf %1027, %1020 : vector<2x128xf32>
    %1029 = arith.mulf %1028, %1026 : vector<2x128xf32>
    %1030 = arith.mulf %1020, %967 : vector<2x128xf32>
    %1031 = arith.addf %1029, %1030 : vector<2x128xf32>
    %cst_285 = arith.constant dense<0.000000e+00> : vector<2x384xf32>
    %1032 = tpu.matmul %995, %10, %cst_285 {dimension_numbers = #tpu.dot_dimension_numbers<[1], [0], [0], [1], [0, 0, 1, 1], [], []>} : vector<2x128xf32>, vector<128x384xf32>, vector<2x384xf32> -> vector<2x384xf32>
    %1033 = vector.extract_strided_slice %998 {offsets = [0, 0], sizes = [2, 128], strides = [1, 1]} : vector<2x384xf32> to vector<2x128xf32>
    %1034 = vector.extract_strided_slice %1032 {offsets = [0, 0], sizes = [2, 128], strides = [1, 1]} : vector<2x384xf32> to vector<2x128xf32>
    %1035 = arith.addf %1033, %1034 : vector<2x128xf32>
    %1036 = arith.negf %1035 : vector<2x128xf32>
    %1037 = math.exp %1036 : vector<2x128xf32>
    %cst_286 = arith.constant 1.000000e+00 : f32
    %1038 = vector.broadcast %cst_286 : f32 to vector<2x128xf32>
    %1039 = arith.addf %1038, %1037 : vector<2x128xf32>
    %1040 = arith.divf %1038, %1039 : vector<2x128xf32>
    %1041 = vector.extract_strided_slice %998 {offsets = [0, 128], sizes = [2, 128], strides = [1, 1]} : vector<2x384xf32> to vector<2x128xf32>
    %1042 = vector.extract_strided_slice %1032 {offsets = [0, 128], sizes = [2, 128], strides = [1, 1]} : vector<2x384xf32> to vector<2x128xf32>
    %1043 = arith.addf %1041, %1042 : vector<2x128xf32>
    %1044 = arith.negf %1043 : vector<2x128xf32>
    %1045 = math.exp %1044 : vector<2x128xf32>
    %cst_287 = arith.constant 1.000000e+00 : f32
    %1046 = vector.broadcast %cst_287 : f32 to vector<2x128xf32>
    %1047 = arith.addf %1046, %1045 : vector<2x128xf32>
    %1048 = arith.divf %1046, %1047 : vector<2x128xf32>
    %1049 = vector.extract_strided_slice %998 {offsets = [0, 256], sizes = [2, 128], strides = [1, 1]} : vector<2x384xf32> to vector<2x128xf32>
    %1050 = vector.extract_strided_slice %1032 {offsets = [0, 256], sizes = [2, 128], strides = [1, 1]} : vector<2x384xf32> to vector<2x128xf32>
    %1051 = arith.addf %1050, %16 : vector<2x128xf32>
    %1052 = arith.mulf %1040, %1051 : vector<2x128xf32>
    %1053 = arith.addf %1049, %1052 : vector<2x128xf32>
    %1054 = math.tanh %1053 : vector<2x128xf32>
    %cst_288 = arith.constant 1.000000e+00 : f32
    %1055 = vector.broadcast %cst_288 : f32 to vector<2x128xf32>
    %1056 = arith.subf %1055, %1048 : vector<2x128xf32>
    %1057 = arith.mulf %1056, %1054 : vector<2x128xf32>
    %1058 = arith.mulf %1048, %995 : vector<2x128xf32>
    %1059 = arith.addf %1057, %1058 : vector<2x128xf32>
    %c0_289 = arith.constant 0 : index
    %c1792 = arith.constant 1792 : index
    %1060 = vector.load %arg15[%c0_289, %c1792] : memref<2x2048xf32, #tpu.memory_space<vmem>>, vector<2x128xf32>
    tpu.vector_store %arg15[%c0_289, %c1792], %1059 {strides = array<i32>} : memref<2x2048xf32, #tpu.memory_space<vmem>>, vector<2x128xf32>,
    %cst_290 = arith.constant dense<0.000000e+00> : vector<2x384xf32>
    %1061 = tpu.matmul %1031, %9, %cst_290 {dimension_numbers = #tpu.dot_dimension_numbers<[1], [0], [0], [1], [0, 0, 1, 1], [], []>} : vector<2x128xf32>, vector<128x384xf32>, vector<2x384xf32> -> vector<2x384xf32>
    %1062 = arith.addf %1061, %19 : vector<2x384xf32>
    %cst_291 = arith.constant dense<0.000000e+00> : vector<2x384xf32>
    %1063 = tpu.matmul %1059, %10, %cst_291 {dimension_numbers = #tpu.dot_dimension_numbers<[1], [0], [0], [1], [0, 0, 1, 1], [], []>} : vector<2x128xf32>, vector<128x384xf32>, vector<2x384xf32> -> vector<2x384xf32>
    %1064 = vector.extract_strided_slice %1062 {offsets = [0, 0], sizes = [2, 128], strides = [1, 1]} : vector<2x384xf32> to vector<2x128xf32>
    %1065 = vector.extract_strided_slice %1063 {offsets = [0, 0], sizes = [2, 128], strides = [1, 1]} : vector<2x384xf32> to vector<2x128xf32>
    %1066 = arith.addf %1064, %1065 : vector<2x128xf32>
    %1067 = arith.negf %1066 : vector<2x128xf32>
    %1068 = math.exp %1067 : vector<2x128xf32>
    %cst_292 = arith.constant 1.000000e+00 : f32
    %1069 = vector.broadcast %cst_292 : f32 to vector<2x128xf32>
    %1070 = arith.addf %1069, %1068 : vector<2x128xf32>
    %1071 = arith.divf %1069, %1070 : vector<2x128xf32>
    %1072 = vector.extract_strided_slice %1062 {offsets = [0, 128], sizes = [2, 128], strides = [1, 1]} : vector<2x384xf32> to vector<2x128xf32>
    %1073 = vector.extract_strided_slice %1063 {offsets = [0, 128], sizes = [2, 128], strides = [1, 1]} : vector<2x384xf32> to vector<2x128xf32>
    %1074 = arith.addf %1072, %1073 : vector<2x128xf32>
    %1075 = arith.negf %1074 : vector<2x128xf32>
    %1076 = math.exp %1075 : vector<2x128xf32>
    %cst_293 = arith.constant 1.000000e+00 : f32
    %1077 = vector.broadcast %cst_293 : f32 to vector<2x128xf32>
    %1078 = arith.addf %1077, %1076 : vector<2x128xf32>
    %1079 = arith.divf %1077, %1078 : vector<2x128xf32>
    %1080 = vector.extract_strided_slice %1062 {offsets = [0, 256], sizes = [2, 128], strides = [1, 1]} : vector<2x384xf32> to vector<2x128xf32>
    %1081 = vector.extract_strided_slice %1063 {offsets = [0, 256], sizes = [2, 128], strides = [1, 1]} : vector<2x384xf32> to vector<2x128xf32>
    %1082 = arith.addf %1081, %16 : vector<2x128xf32>
    %1083 = arith.mulf %1071, %1082 : vector<2x128xf32>
    %1084 = arith.addf %1080, %1083 : vector<2x128xf32>
    %1085 = math.tanh %1084 : vector<2x128xf32>
    %cst_294 = arith.constant 1.000000e+00 : f32
    %1086 = vector.broadcast %cst_294 : f32 to vector<2x128xf32>
    %1087 = arith.subf %1086, %1079 : vector<2x128xf32>
    %1088 = arith.mulf %1087, %1085 : vector<2x128xf32>
    %1089 = arith.mulf %1079, %1059 : vector<2x128xf32>
    %1090 = arith.addf %1088, %1089 : vector<2x128xf32>
    %c0_295 = arith.constant 0 : index
    %c1920 = arith.constant 1920 : index
    %1091 = vector.load %arg15[%c0_295, %c1920] : memref<2x2048xf32, #tpu.memory_space<vmem>>, vector<2x128xf32>
    tpu.vector_store %arg15[%c0_295, %c1920], %1090 {strides = array<i32>} : memref<2x2048xf32, #tpu.memory_space<vmem>>, vector<2x128xf32>,
    return
  }
}

</mosaic_0001>

<llo_original>
// kernel: gyro_encoder_forward.1
$region0: #{gyro_encoder_forward.1}
  #allocation0 [shape = 'u32[]', space=smem, size = 0x4, offset = 0x4, fixed_abs, tag = 'smem constant byte address 0x4 - core index']
  #allocation1 [shape = 'u32[144,128]{1,0:T(1,128)}', space=vmem, size = 0x12000, scoped, tag = 'internal scratch']
  #allocation2 [shape = 'f32[2,16,384]{2,1,0:T(8,128)}', space=vmem, size = 0xc000, scoped, tag = 'scratch operand']
  %s0 = inlined_call_operand.vmem [shape: f32[2,4,256], index: 0, kind: input, shape index: {}]
  %s1 = inlined_call_operand.vmem [shape: f32[64,4], index: 1, kind: input, shape index: {}]
  %s2 = inlined_call_operand.vmem [shape: f32[64,1], index: 2, kind: input, shape index: {}]
  %s3 = inlined_call_operand.vmem [shape: f32[32,64], index: 3, kind: input, shape index: {}]
  %s4 = inlined_call_operand.vmem [shape: f32[32,1], index: 4, kind: input, shape index: {}]
  %s5 = inlined_call_operand.vmem [shape: f32[16,32], index: 5, kind: input, shape index: {}]
  %s6 = inlined_call_operand.vmem [shape: f32[16,1], index: 6, kind: input, shape index: {}]
  %s7 = inlined_call_operand.vmem [shape: f32[256,384], index: 7, kind: input, shape index: {}]
  %s8 = inlined_call_operand.hbm [shape: f32[128,384], index: 8, kind: input, shape index: {}]
  %s9 = inlined_call_operand.vmem [shape: f32[1,384], index: 9, kind: input, shape index: {}]
  %s10 = inlined_call_operand.vmem [shape: f32[1,128], index: 10, kind: input, shape index: {}]
  %s11 = inlined_call_operand.hbm [shape: f32[128,384], index: 11, kind: input, shape index: {}]
  %s12 = inlined_call_operand.hbm [shape: f32[128,384], index: 12, kind: input, shape index: {}]
  %s13 = inlined_call_operand.vmem [shape: f32[1,384], index: 13, kind: input, shape index: {}]
  %s14 = inlined_call_operand.vmem [shape: f32[1,128], index: 14, kind: input, shape index: {}]
  %s15 = inlined_call_operand.vmem [shape: f32[2,2048], index: 15, kind: output, shape index: {}]
  %s16 = sld [smem:[#allocation0]]
  $region82: #{gyro_encoder_forward.1} parent=0
    _
  %s18 = ssub.s32 1, %s16
  %s19 = scalar_select 0, %s18, %s16
  $region1: #{gyro_encoder_forward.1} parent=0
    #allocation3 [shape = 'u8[196608]{0}', space=vmem, size = 0x30000, scoped, tag = 'input window, operand 8, single buffered']
    #allocation4 [shape = 's32[1]{0}', space=sflag, size = 0x4, scoped, tag = 'scoped memory for gyro_encoder_forward.1']
    #allocation5 [shape = 'u8[196608]{0}', space=vmem, size = 0x30000, scoped, tag = 'input window, operand 11, single buffered']
    #allocation6 [shape = 's32[1]{0}', space=sflag, size = 0x4, scoped, tag = 'scoped memory for gyro_encoder_forward.1']
    #allocation7 [shape = 'u8[196608]{0}', space=vmem, size = 0x30000, scoped, tag = 'input window, operand 12, single buffered']
    %20 = vsyncpa [#allocation4], 0
    %21 = vsyncpa [#allocation6], 0
    // Predicated region
    $region2: #{gyro_encoder_forward.1} parent=1 // pred_check
      _
    $region3: #{gyro_encoder_forward.1} parent=1 // pred_check_branch
      %23 = sbr.rel (0) target = $region5
    $region4: #{gyro_encoder_forward.1} parent=1 // pred_region
      _
    $region5: #{gyro_encoder_forward.1} parent=1 // pred_fallthru
      _
    // Predicated region
    $region6: #{gyro_encoder_forward.1} parent=1 // pred_check
      _
    $region7: #{gyro_encoder_forward.1} parent=1 // pred_check_branch
      %25 = sbr.rel (0) target = $region9
    $region8: #{gyro_encoder_forward.1} parent=1 // pred_region
      _
    $region9: #{gyro_encoder_forward.1} parent=1 // pred_fallthru
      _
    // Predicated region
    $region10: #{gyro_encoder_forward.1} parent=1 // pred_check
      _
    $region11: #{gyro_encoder_forward.1} parent=1 // pred_check_branch
      %27 = sbr.rel (0) target = $region13
    $region12: #{gyro_encoder_forward.1} parent=1 // pred_region
      _
    $region13: #{gyro_encoder_forward.1} parent=1 // pred_fallthru
      _
    // Predicated region
    $region14: #{gyro_encoder_forward.1} parent=1 // pred_check
      _
    $region15: #{gyro_encoder_forward.1} parent=1 // pred_check_branch
      %29 = sbr.rel (0) target = $region17
    $region16: #{gyro_encoder_forward.1} parent=1 // pred_region
      _
    $region17: #{gyro_encoder_forward.1} parent=1 // pred_fallthru
      _
    // Predicated region
    $region18: #{gyro_encoder_forward.1} parent=1 // pred_check
      _
    $region19: #{gyro_encoder_forward.1} parent=1 // pred_check_branch
      %31 = sbr.rel (0) target = $region21
    $region20: #{gyro_encoder_forward.1} parent=1 // pred_region
      _
    $region21: #{gyro_encoder_forward.1} parent=1 // pred_fallthru
      _
    // Predicated region
    $region22: #{gyro_encoder_forward.1} parent=1 // pred_check
      _
    $region23: #{gyro_encoder_forward.1} parent=1 // pred_check_branch
      %33 = sbr.rel (0) target = $region25
    $region24: #{gyro_encoder_forward.1} parent=1 // pred_region
      _
    $region25: #{gyro_encoder_forward.1} parent=1 // pred_fallthru
      _
    // Predicated region
    $region26: #{gyro_encoder_forward.1} parent=1 // pred_check
      _
    $region27: #{gyro_encoder_forward.1} parent=1 // pred_check_branch
      %35 = sbr.rel (0) target = $region29
    $region28: #{gyro_encoder_forward.1} parent=1 // pred_region
      _
    $region29: #{gyro_encoder_forward.1} parent=1 // pred_fallthru
      _
    // Predicated region
    $region30: #{gyro_encoder_forward.1} parent=1 // pred_check
      _
    $region31: #{gyro_encoder_forward.1} parent=1 // pred_check_branch
      %37 = sbr.rel (0) target = $region33
    $region32: #{gyro_encoder_forward.1} parent=1 // pred_region
      _
    $region33: #{gyro_encoder_forward.1} parent=1 // pred_fallthru
      _
    // Predicated region
    $region34: #{gyro_encoder_forward.1} parent=1 // pred_check
      _
    $region35: #{gyro_encoder_forward.1} parent=1 // pred_check_branch
      %39 = sbr.rel (0) target = $region37
    $region36: #{gyro_encoder_forward.1} parent=1 // pred_region
      %s41 = ssub.s32 6144, 6144
      %42 = vsyncadd [#allocation4], %s41
      %s43 = sshll.u32 [#allocation3], 4
      %s44 = int_to_ptr.vmem [resolvable:$true] %s43
      %49 = dma.hbm_to_vmem [thread:$0]  %s8, 6144, %s44, [#allocation4], 384, 384, 24
    $region37: #{gyro_encoder_forward.1} parent=1 // pred_fallthru
      _
    // Predicated region
    $region38: #{gyro_encoder_forward.1} parent=1 // pred_check
      _
    $region39: #{gyro_encoder_forward.1} parent=1 // pred_check_branch
      %51 = sbr.rel (0) target = $region41
    $region40: #{gyro_encoder_forward.1} parent=1 // pred_region
      _
    $region41: #{gyro_encoder_forward.1} parent=1 // pred_fallthru
      _
    // Predicated region
    $region42: #{gyro_encoder_forward.1} parent=1 // pred_check
      _
    $region43: #{gyro_encoder_forward.1} parent=1 // pred_check_branch
      %53 = sbr.rel (0) target = $region45
    $region44: #{gyro_encoder_forward.1} parent=1 // pred_region
      _
    $region45: #{gyro_encoder_forward.1} parent=1 // pred_fallthru
      _
    // Predicated region
    $region46: #{gyro_encoder_forward.1} parent=1 // pred_check
      _
    $region47: #{gyro_encoder_forward.1} parent=1 // pred_check_branch
      %55 = sbr.rel (0) target = $region49
    $region48: #{gyro_encoder_forward.1} parent=1 // pred_region
      %s57 = ssub.s32 6144, 6144
      %58 = vsyncadd [#allocation6], %s57
      %s59 = sshll.u32 [#allocation5], 4
      %s60 = int_to_ptr.vmem [resolvable:$true] %s59
      %65 = dma.hbm_to_vmem [thread:$0]  %s11, 6144, %s60, [#allocation6], 384, 384, 24
    $region49: #{gyro_encoder_forward.1} parent=1 // pred_fallthru
      _
    // Predicated region
    $region50: #{gyro_encoder_forward.1} parent=1 // pred_check
      _
    $region51: #{gyro_encoder_forward.1} parent=1 // pred_check_branch
      %67 = sbr.rel (0) target = $region53
    $region52: #{gyro_encoder_forward.1} parent=1 // pred_region
      %s69 = ssub.s32 6144, 6144
      %70 = vsyncadd [#allocation6], %s69
      %s71 = sshll.u32 [#allocation7], 4
      %s72 = int_to_ptr.vmem [resolvable:$true] %s71
      %77 = dma.hbm_to_vmem [thread:$0]  %s12, 6144, %s72, [#allocation6], 384, 384, 24
    $region53: #{gyro_encoder_forward.1} parent=1 // pred_fallthru
      _
    // Predicated region
    $region54: #{gyro_encoder_forward.1} parent=1 // pred_check
      _
    $region55: #{gyro_encoder_forward.1} parent=1 // pred_check_branch
      %79 = sbr.rel (0) target = $region57
    $region56: #{gyro_encoder_forward.1} parent=1 // pred_region
      _
    $region57: #{gyro_encoder_forward.1} parent=1 // pred_fallthru
      _
    // Predicated region
    $region58: #{gyro_encoder_forward.1} parent=1 // pred_check
      _
    $region59: #{gyro_encoder_forward.1} parent=1 // pred_check_branch
      %81 = sbr.rel (0) target = $region61
    $region60: #{gyro_encoder_forward.1} parent=1 // pred_region
      _
    $region61: #{gyro_encoder_forward.1} parent=1 // pred_fallthru
      _
    // Predicated region
    $region62: #{gyro_encoder_forward.1} parent=1 // pred_check
      _
    $region63: #{gyro_encoder_forward.1} parent=1 // pred_check_branch
      %83 = sbr.rel (0) target = $region65
    $region64: #{gyro_encoder_forward.1} parent=1 // pred_region
      %84 = dma.done [#allocation4], 6144
    $region65: #{gyro_encoder_forward.1} parent=1 // pred_fallthru
      _
    // Predicated region
    $region66: #{gyro_encoder_forward.1} parent=1 // pred_check
      _
    $region67: #{gyro_encoder_forward.1} parent=1 // pred_check_branch
      %86 = sbr.rel (0) target = $region69
    $region68: #{gyro_encoder_forward.1} parent=1 // pred_region
      %87 = dma.done [#allocation6], 6144
    $region69: #{gyro_encoder_forward.1} parent=1 // pred_fallthru
      _
    // Predicated region
    $region70: #{gyro_encoder_forward.1} parent=1 // pred_check
      _
    $region71: #{gyro_encoder_forward.1} parent=1 // pred_check_branch
      %89 = sbr.rel (0) target = $region73
    $region72: #{gyro_encoder_forward.1} parent=1 // pred_region
      %90 = dma.done [#allocation6], 6144
    $region73: #{gyro_encoder_forward.1} parent=1 // pred_fallthru
      _
    %v91 = vld [vmem:[%s1] sm:$0xff]
    %v92 = vld [vmem:[%s1 + $0x8] sm:$0xff]
    %v93 = vld [vmem:[%s1 + $0x10] sm:$0xff]
    %v94 = vld [vmem:[%s1 + $0x18] sm:$0xff]
    %v95 = vld [vmem:[%s1 + $0x20] sm:$0xff]
    %v96 = vld [vmem:[%s1 + $0x28] sm:$0xff]
    %v97 = vld [vmem:[%s1 + $0x30] sm:$0xff]
    %v98 = vld [vmem:[%s1 + $0x38] sm:$0xff]
    %v99 = vld [vmem:[%s2] sm:$0xff]
    %v100 = vld [vmem:[%s2 + $0x8] sm:$0xff]
    %v101 = vld [vmem:[%s2 + $0x10] sm:$0xff]
    %v102 = vld [vmem:[%s2 + $0x18] sm:$0xff]
    %v103 = vld [vmem:[%s2 + $0x20] sm:$0xff]
    %v104 = vld [vmem:[%s2 + $0x28] sm:$0xff]
    %v105 = vld [vmem:[%s2 + $0x30] sm:$0xff]
    %v106 = vld [vmem:[%s2 + $0x38] sm:$0xff]
    %v107 = vld [vmem:[%s3] sm:$0xff]
    %v108 = vld [vmem:[%s3 + $0x8] sm:$0xff]
    %v109 = vld [vmem:[%s3 + $0x10] sm:$0xff]
    %v110 = vld [vmem:[%s3 + $0x18] sm:$0xff]
    %v111 = vld [vmem:[%s4] sm:$0xff]
    %v112 = vld [vmem:[%s4 + $0x8] sm:$0xff]
    %v113 = vld [vmem:[%s4 + $0x10] sm:$0xff]
    %v114 = vld [vmem:[%s4 + $0x18] sm:$0xff]
    %v115 = vld [vmem:[%s5] sm:$0xff]
    %v116 = vld [vmem:[%s5 + $0x8] sm:$0xff]
    %v117 = vld [vmem:[%s6] sm:$0xff]
    %v118 = vld [vmem:[%s6 + $0x8] sm:$0xff]
    %v119 = vld [vmem:[%s7] sm:$0xff]
    %v120 = vld [vmem:[%s7 + $0x8] sm:$0xff]
    %v121 = vld [vmem:[%s7 + $0x10] sm:$0xff]
    %v122 = vld [vmem:[%s7 + $0x18] sm:$0xff]
    %v123 = vld [vmem:[%s7 + $0x20] sm:$0xff]
    %v124 = vld [vmem:[%s7 + $0x28] sm:$0xff]
    %v125 = vld [vmem:[%s7 + $0x30] sm:$0xff]
    %v126 = vld [vmem:[%s7 + $0x38] sm:$0xff]
    %v127 = vld [vmem:[%s7 + $0x40] sm:$0xff]
    %v128 = vld [vmem:[%s7 + $0x48] sm:$0xff]
    %v129 = vld [vmem:[%s7 + $0x50] sm:$0xff]
    %v130 = vld [vmem:[%s7 + $0x58] sm:$0xff]
    %v131 = vld [vmem:[%s7 + $0x60] sm:$0xff]
    %v132 = vld [vmem:[%s7 + $0x68] sm:$0xff]
    %v133 = vld [vmem:[%s7 + $0x70] sm:$0xff]
    %v134 = vld [vmem:[%s7 + $0x78] sm:$0xff]
    %v135 = vld [vmem:[%s7 + $0x80] sm:$0xff]
    %v136 = vld [vmem:[%s7 + $0x88] sm:$0xff]
    %v137 = vld [vmem:[%s7 + $0x90] sm:$0xff]
    %v138 = vld [vmem:[%s7 + $0x98] sm:$0xff]
    %v139 = vld [vmem:[%s7 + $0xa0] sm:$0xff]
    %v140 = vld [vmem:[%s7 + $0xa8] sm:$0xff]
    %v141 = vld [vmem:[%s7 + $0xb0] sm:$0xff]
    %v142 = vld [vmem:[%s7 + $0xb8] sm:$0xff]
    %v143 = vld [vmem:[%s7 + $0xc0] sm:$0xff]
    %v144 = vld [vmem:[%s7 + $0xc8] sm:$0xff]
    %v145 = vld [vmem:[%s7 + $0xd0] sm:$0xff]
    %v146 = vld [vmem:[%s7 + $0xd8] sm:$0xff]
    %v147 = vld [vmem:[%s7 + $0xe0] sm:$0xff]
    %v148 = vld [vmem:[%s7 + $0xe8] sm:$0xff]
    %v149 = vld [vmem:[%s7 + $0xf0] sm:$0xff]
    %v150 = vld [vmem:[%s7 + $0xf8] sm:$0xff]
    %v151 = vld [vmem:[%s7 + $0x100] sm:$0xff]
    %v152 = vld [vmem:[%s7 + $0x108] sm:$0xff]
    %v153 = vld [vmem:[%s7 + $0x110] sm:$0xff]
    %v154 = vld [vmem:[%s7 + $0x118] sm:$0xff]
    %v155 = vld [vmem:[%s7 + $0x120] sm:$0xff]
    %v156 = vld [vmem:[%s7 + $0x128] sm:$0xff]
    %v157 = vld [vmem:[%s7 + $0x130] sm:$0xff]
    %v158 = vld [vmem:[%s7 + $0x138] sm:$0xff]
    %v159 = vld [vmem:[%s7 + $0x140] sm:$0xff]
    %v160 = vld [vmem:[%s7 + $0x148] sm:$0xff]
    %v161 = vld [vmem:[%s7 + $0x150] sm:$0xff]
    %v162 = vld [vmem:[%s7 + $0x158] sm:$0xff]
    %v163 = vld [vmem:[%s7 + $0x160] sm:$0xff]
    %v164 = vld [vmem:[%s7 + $0x168] sm:$0xff]
    %v165 = vld [vmem:[%s7 + $0x170] sm:$0xff]
    %v166 = vld [vmem:[%s7 + $0x178] sm:$0xff]
    %v167 = vld [vmem:[%s7 + $0x180] sm:$0xff]
    %v168 = vld [vmem:[%s7 + $0x188] sm:$0xff]
    %v169 = vld [vmem:[%s7 + $0x190] sm:$0xff]
    %v170 = vld [vmem:[%s7 + $0x198] sm:$0xff]
    %v171 = vld [vmem:[%s7 + $0x1a0] sm:$0xff]
    %v172 = vld [vmem:[%s7 + $0x1a8] sm:$0xff]
    %v173 = vld [vmem:[%s7 + $0x1b0] sm:$0xff]
    %v174 = vld [vmem:[%s7 + $0x1b8] sm:$0xff]
    %v175 = vld [vmem:[%s7 + $0x1c0] sm:$0xff]
    %v176 = vld [vmem:[%s7 + $0x1c8] sm:$0xff]
    %v177 = vld [vmem:[%s7 + $0x1d0] sm:$0xff]
    %v178 = vld [vmem:[%s7 + $0x1d8] sm:$0xff]
    %v179 = vld [vmem:[%s7 + $0x1e0] sm:$0xff]
    %v180 = vld [vmem:[%s7 + $0x1e8] sm:$0xff]
    %v181 = vld [vmem:[%s7 + $0x1f0] sm:$0xff]
    %v182 = vld [vmem:[%s7 + $0x1f8] sm:$0xff]
    %v183 = vld [vmem:[%s7 + $0x200] sm:$0xff]
    %v184 = vld [vmem:[%s7 + $0x208] sm:$0xff]
    %v185 = vld [vmem:[%s7 + $0x210] sm:$0xff]
    %v186 = vld [vmem:[%s7 + $0x218] sm:$0xff]
    %v187 = vld [vmem:[%s7 + $0x220] sm:$0xff]
    %v188 = vld [vmem:[%s7 + $0x228] sm:$0xff]
    %v189 = vld [vmem:[%s7 + $0x230] sm:$0xff]
    %v190 = vld [vmem:[%s7 + $0x238] sm:$0xff]
    %v191 = vld [vmem:[%s7 + $0x240] sm:$0xff]
    %v192 = vld [vmem:[%s7 + $0x248] sm:$0xff]
    %v193 = vld [vmem:[%s7 + $0x250] sm:$0xff]
    %v194 = vld [vmem:[%s7 + $0x258] sm:$0xff]
    %v195 = vld [vmem:[%s7 + $0x260] sm:$0xff]
    %v196 = vld [vmem:[%s7 + $0x268] sm:$0xff]
    %v197 = vld [vmem:[%s7 + $0x270] sm:$0xff]
    %v198 = vld [vmem:[%s7 + $0x278] sm:$0xff]
    %v199 = vld [vmem:[%s7 + $0x280] sm:$0xff]
    %v200 = vld [vmem:[%s7 + $0x288] sm:$0xff]
    %v201 = vld [vmem:[%s7 + $0x290] sm:$0xff]
    %v202 = vld [vmem:[%s7 + $0x298] sm:$0xff]
    %v203 = vld [vmem:[%s7 + $0x2a0] sm:$0xff]
    %v204 = vld [vmem:[%s7 + $0x2a8] sm:$0xff]
    %v205 = vld [vmem:[%s7 + $0x2b0] sm:$0xff]
    %v206 = vld [vmem:[%s7 + $0x2b8] sm:$0xff]
    %v207 = vld [vmem:[%s7 + $0x2c0] sm:$0xff]
    %v208 = vld [vmem:[%s7 + $0x2c8] sm:$0xff]
    %v209 = vld [vmem:[%s7 + $0x2d0] sm:$0xff]
    %v210 = vld [vmem:[%s7 + $0x2d8] sm:$0xff]
    %v211 = vld [vmem:[%s7 + $0x2e0] sm:$0xff]
    %v212 = vld [vmem:[%s7 + $0x2e8] sm:$0xff]
    %v213 = vld [vmem:[%s7 + $0x2f0] sm:$0xff]
    %v214 = vld [vmem:[%s7 + $0x2f8] sm:$0xff]
    %v215 = vld [vmem:[%s9] sm:$0x7]
    %v216 = vld [vmem:[#allocation3] sm:$0xff]
    %v217 = vld [vmem:[#allocation3 + $0x8] sm:$0xff]
    %v218 = vld [vmem:[#allocation3 + $0x10] sm:$0xff]
    %v219 = vld [vmem:[#allocation3 + $0x18] sm:$0xff]
    %v220 = vld [vmem:[#allocation3 + $0x20] sm:$0xff]
    %v221 = vld [vmem:[#allocation3 + $0x28] sm:$0xff]
    %v222 = vld [vmem:[#allocation3 + $0x30] sm:$0xff]
    %v223 = vld [vmem:[#allocation3 + $0x38] sm:$0xff]
    %v224 = vld [vmem:[#allocation3 + $0x40] sm:$0xff]
    %v225 = vld [vmem:[#allocation3 + $0x48] sm:$0xff]
    %v226 = vld [vmem:[#allocation3 + $0x50] sm:$0xff]
    %v227 = vld [vmem:[#allocation3 + $0x58] sm:$0xff]
    %v228 = vld [vmem:[#allocation3 + $0x60] sm:$0xff]
    %v229 = vld [vmem:[#allocation3 + $0x68] sm:$0xff]
    %v230 = vld [vmem:[#allocation3 + $0x70] sm:$0xff]
    %v231 = vld [vmem:[#allocation3 + $0x78] sm:$0xff]
    %v232 = vld [vmem:[#allocation3 + $0x80] sm:$0xff]
    %v233 = vld [vmem:[#allocation3 + $0x88] sm:$0xff]
    %v234 = vld [vmem:[#allocation3 + $0x90] sm:$0xff]
    %v235 = vld [vmem:[#allocation3 + $0x98] sm:$0xff]
    %v236 = vld [vmem:[#allocation3 + $0xa0] sm:$0xff]
    %v237 = vld [vmem:[#allocation3 + $0xa8] sm:$0xff]
    %v238 = vld [vmem:[#allocation3 + $0xb0] sm:$0xff]
    %v239 = vld [vmem:[#allocation3 + $0xb8] sm:$0xff]
    %v240 = vld [vmem:[#allocation3 + $0xc0] sm:$0xff]
    %v241 = vld [vmem:[#allocation3 + $0xc8] sm:$0xff]
    %v242 = vld [vmem:[#allocation3 + $0xd0] sm:$0xff]
    %v243 = vld [vmem:[#allocation3 + $0xd8] sm:$0xff]
    %v244 = vld [vmem:[#allocation3 + $0xe0] sm:$0xff]
    %v245 = vld [vmem:[#allocation3 + $0xe8] sm:$0xff]
    %v246 = vld [vmem:[#allocation3 + $0xf0] sm:$0xff]
    %v247 = vld [vmem:[#allocation3 + $0xf8] sm:$0xff]
    %v248 = vld [vmem:[#allocation3 + $0x100] sm:$0xff]
    %v249 = vld [vmem:[#allocation3 + $0x108] sm:$0xff]
    %v250 = vld [vmem:[#allocation3 + $0x110] sm:$0xff]
    %v251 = vld [vmem:[#allocation3 + $0x118] sm:$0xff]
    %v252 = vld [vmem:[#allocation3 + $0x120] sm:$0xff]
    %v253 = vld [vmem:[#allocation3 + $0x128] sm:$0xff]
    %v254 = vld [vmem:[#allocation3 + $0x130] sm:$0xff]
    %v255 = vld [vmem:[#allocation3 + $0x138] sm:$0xff]
    %v256 = vld [vmem:[#allocation3 + $0x140] sm:$0xff]
    %v257 = vld [vmem:[#allocation3 + $0x148] sm:$0xff]
    %v258 = vld [vmem:[#allocation3 + $0x150] sm:$0xff]
    %v259 = vld [vmem:[#allocation3 + $0x158] sm:$0xff]
    %v260 = vld [vmem:[#allocation3 + $0x160] sm:$0xff]
    %v261 = vld [vmem:[#allocation3 + $0x168] sm:$0xff]
    %v262 = vld [vmem:[#allocation3 + $0x170] sm:$0xff]
    %v263 = vld [vmem:[#allocation3 + $0x178] sm:$0xff]
    %v264 = vld [vmem:[#allocation5] sm:$0xff]
    %v265 = vld [vmem:[#allocation5 + $0x8] sm:$0xff]
    %v266 = vld [vmem:[#allocation5 + $0x10] sm:$0xff]
    %v267 = vld [vmem:[#allocation5 + $0x18] sm:$0xff]
    %v268 = vld [vmem:[#allocation5 + $0x20] sm:$0xff]
    %v269 = vld [vmem:[#allocation5 + $0x28] sm:$0xff]
    %v270 = vld [vmem:[#allocation5 + $0x30] sm:$0xff]
    %v271 = vld [vmem:[#allocation5 + $0x38] sm:$0xff]
    %v272 = vld [vmem:[#allocation5 + $0x40] sm:$0xff]
    %v273 = vld [vmem:[#allocation5 + $0x48] sm:$0xff]
    %v274 = vld [vmem:[#allocation5 + $0x50] sm:$0xff]
    %v275 = vld [vmem:[#allocation5 + $0x58] sm:$0xff]
    %v276 = vld [vmem:[#allocation5 + $0x60] sm:$0xff]
    %v277 = vld [vmem:[#allocation5 + $0x68] sm:$0xff]
    %v278 = vld [vmem:[#allocation5 + $0x70] sm:$0xff]
    %v279 = vld [vmem:[#allocation5 + $0x78] sm:$0xff]
    %v280 = vld [vmem:[#allocation5 + $0x80] sm:$0xff]
    %v281 = vld [vmem:[#allocation5 + $0x88] sm:$0xff]
    %v282 = vld [vmem:[#allocation5 + $0x90] sm:$0xff]
    %v283 = vld [vmem:[#allocation5 + $0x98] sm:$0xff]
    %v284 = vld [vmem:[#allocation5 + $0xa0] sm:$0xff]
    %v285 = vld [vmem:[#allocation5 + $0xa8] sm:$0xff]
    %v286 = vld [vmem:[#allocation5 + $0xb0] sm:$0xff]
    %v287 = vld [vmem:[#allocation5 + $0xb8] sm:$0xff]
    %v288 = vld [vmem:[#allocation5 + $0xc0] sm:$0xff]
    %v289 = vld [vmem:[#allocation5 + $0xc8] sm:$0xff]
    %v290 = vld [vmem:[#allocation5 + $0xd0] sm:$0xff]
    %v291 = vld [vmem:[#allocation5 + $0xd8] sm:$0xff]
    %v292 = vld [vmem:[#allocation5 + $0xe0] sm:$0xff]
    %v293 = vld [vmem:[#allocation5 + $0xe8] sm:$0xff]
    %v294 = vld [vmem:[#allocation5 + $0xf0] sm:$0xff]
    %v295 = vld [vmem:[#allocation5 + $0xf8] sm:$0xff]
    %v296 = vld [vmem:[#allocation5 + $0x100] sm:$0xff]
    %v297 = vld [vmem:[#allocation5 + $0x108] sm:$0xff]
    %v298 = vld [vmem:[#allocation5 + $0x110] sm:$0xff]
    %v299 = vld [vmem:[#allocation5 + $0x118] sm:$0xff]
    %v300 = vld [vmem:[#allocation5 + $0x120] sm:$0xff]
    %v301 = vld [vmem:[#allocation5 + $0x128] sm:$0xff]
    %v302 = vld [vmem:[#allocation5 + $0x130] sm:$0xff]
    %v303 = vld [vmem:[#allocation5 + $0x138] sm:$0xff]
    %v304 = vld [vmem:[#allocation5 + $0x140] sm:$0xff]
    %v305 = vld [vmem:[#allocation5 + $0x148] sm:$0xff]
    %v306 = vld [vmem:[#allocation5 + $0x150] sm:$0xff]
    %v307 = vld [vmem:[#allocation5 + $0x158] sm:$0xff]
    %v308 = vld [vmem:[#allocation5 + $0x160] sm:$0xff]
    %v309 = vld [vmem:[#allocation5 + $0x168] sm:$0xff]
    %v310 = vld [vmem:[#allocation5 + $0x170] sm:$0xff]
    %v311 = vld [vmem:[#allocation5 + $0x178] sm:$0xff]
    %v312 = vld [vmem:[#allocation7] sm:$0xff]
    %v313 = vld [vmem:[#allocation7 + $0x8] sm:$0xff]
    %v314 = vld [vmem:[#allocation7 + $0x10] sm:$0xff]
    %v315 = vld [vmem:[#allocation7 + $0x18] sm:$0xff]
    %v316 = vld [vmem:[#allocation7 + $0x20] sm:$0xff]
    %v317 = vld [vmem:[#allocation7 + $0x28] sm:$0xff]
    %v318 = vld [vmem:[#allocation7 + $0x30] sm:$0xff]
    %v319 = vld [vmem:[#allocation7 + $0x38] sm:$0xff]
    %v320 = vld [vmem:[#allocation7 + $0x40] sm:$0xff]
    %v321 = vld [vmem:[#allocation7 + $0x48] sm:$0xff]
    %v322 = vld [vmem:[#allocation7 + $0x50] sm:$0xff]
    %v323 = vld [vmem:[#allocation7 + $0x58] sm:$0xff]
    %v324 = vld [vmem:[#allocation7 + $0x60] sm:$0xff]
    %v325 = vld [vmem:[#allocation7 + $0x68] sm:$0xff]
    %v326 = vld [vmem:[#allocation7 + $0x70] sm:$0xff]
    %v327 = vld [vmem:[#allocation7 + $0x78] sm:$0xff]
    %v328 = vld [vmem:[#allocation7 + $0x80] sm:$0xff]
    %v329 = vld [vmem:[#allocation7 + $0x88] sm:$0xff]
    %v330 = vld [vmem:[#allocation7 + $0x90] sm:$0xff]
    %v331 = vld [vmem:[#allocation7 + $0x98] sm:$0xff]
    %v332 = vld [vmem:[#allocation7 + $0xa0] sm:$0xff]
    %v333 = vld [vmem:[#allocation7 + $0xa8] sm:$0xff]
    %v334 = vld [vmem:[#allocation7 + $0xb0] sm:$0xff]
    %v335 = vld [vmem:[#allocation7 + $0xb8] sm:$0xff]
    %v336 = vld [vmem:[#allocation7 + $0xc0] sm:$0xff]
    %v337 = vld [vmem:[#allocation7 + $0xc8] sm:$0xff]
    %v338 = vld [vmem:[#allocation7 + $0xd0] sm:$0xff]
    %v339 = vld [vmem:[#allocation7 + $0xd8] sm:$0xff]
    %v340 = vld [vmem:[#allocation7 + $0xe0] sm:$0xff]
    %v341 = vld [vmem:[#allocation7 + $0xe8] sm:$0xff]
    %v342 = vld [vmem:[#allocation7 + $0xf0] sm:$0xff]
    %v343 = vld [vmem:[#allocation7 + $0xf8] sm:$0xff]
    %v344 = vld [vmem:[#allocation7 + $0x100] sm:$0xff]
    %v345 = vld [vmem:[#allocation7 + $0x108] sm:$0xff]
    %v346 = vld [vmem:[#allocation7 + $0x110] sm:$0xff]
    %v347 = vld [vmem:[#allocation7 + $0x118] sm:$0xff]
    %v348 = vld [vmem:[#allocation7 + $0x120] sm:$0xff]
    %v349 = vld [vmem:[#allocation7 + $0x128] sm:$0xff]
    %v350 = vld [vmem:[#allocation7 + $0x130] sm:$0xff]
    %v351 = vld [vmem:[#allocation7 + $0x138] sm:$0xff]
    %v352 = vld [vmem:[#allocation7 + $0x140] sm:$0xff]
    %v353 = vld [vmem:[#allocation7 + $0x148] sm:$0xff]
    %v354 = vld [vmem:[#allocation7 + $0x150] sm:$0xff]
    %v355 = vld [vmem:[#allocation7 + $0x158] sm:$0xff]
    %v356 = vld [vmem:[#allocation7 + $0x160] sm:$0xff]
    %v357 = vld [vmem:[#allocation7 + $0x168] sm:$0xff]
    %v358 = vld [vmem:[#allocation7 + $0x170] sm:$0xff]
    %v359 = vld [vmem:[#allocation7 + $0x178] sm:$0xff]
    %v360 = vld [vmem:[%s10] sm:$0x1]
    %v362 = vlaneseq
    %v363 = vshrl.u32 %v362, 7
    %v364 = vsub.s32 0, %v363
    %v365 = vrot.slane %v360, %v364
    %v367 = vld [vmem:[%s14] sm:$0x1]
    %v369 = vlaneseq
    %v370 = vshrl.u32 %v369, 7
    %v371 = vsub.s32 0, %v370
    %v372 = vrot.slane %v367, %v371
    %v374 = vld [vmem:[%s13] sm:$0x7]
    %v376 = vlaneseq
    %v377 = vshrl.u32 %v376, 7
    %v378 = vsub.s32 0, %v377
    %v379 = vrot.slane %v374, %v378
    %v380 = vlaneseq
    %v381 = vshrl.u32 %v380, 7
    %v382 = vsub.s32 1, %v381
    %v383 = vrot.slane %v374, %v382
    %v384 = vlaneseq
    %v385 = vshrl.u32 %v384, 7
    %v386 = vsub.s32 2, %v385
    %v387 = vrot.slane %v374, %v386
    %v391 = vld [vmem:[%s0] sm:$0xff]
    %393 = vset.pattern.permute.xlu0 0
    %394 = vperm.xlu0 %393, %v99
    %v395 = vpop.permute.xlu0 %394
    %398 = vset.pattern.permute.xlu0 0
    %399 = vperm.xlu0 %398, %v100
    %v400 = vpop.permute.xlu0 %399
    %403 = vset.pattern.permute.xlu0 0
    %404 = vperm.xlu0 %403, %v101
    %v405 = vpop.permute.xlu0 %404
    %408 = vset.pattern.permute.xlu0 0
    %409 = vperm.xlu0 %408, %v102
    %v410 = vpop.permute.xlu0 %409
    %413 = vset.pattern.permute.xlu0 0
    %414 = vperm.xlu0 %413, %v103
    %v415 = vpop.permute.xlu0 %414
    %418 = vset.pattern.permute.xlu0 0
    %419 = vperm.xlu0 %418, %v104
    %v420 = vpop.permute.xlu0 %419
    %423 = vset.pattern.permute.xlu0 0
    %424 = vperm.xlu0 %423, %v105
    %v425 = vpop.permute.xlu0 %424
    %428 = vset.pattern.permute.xlu0 0
    %429 = vperm.xlu0 %428, %v106
    %v430 = vpop.permute.xlu0 %429
    %v433 = vcombine.high %v391, %v391
    %vm434 = vcmask 31744
    %v436 = vsel %vm434, %v91, 0
    %v439 = vsel %vm434, %v92, 0
    %v442 = vsel %vm434, %v93, 0
    %v445 = vsel %vm434, %v94, 0
    %v448 = vsel %vm434, %v95, 0
    %v451 = vsel %vm434, %v96, 0
    %v454 = vsel %vm434, %v97, 0
    %v457 = vsel %vm434, %v98, 0
    %vm459 = vcmask 1043456
    %v460 = vsel %vm459, %v391, 0
    %v462 = vsel %vm459, %v433, 0
    %464 = vmatprep.subr.mxu0 %v462
    %465 = vmatpush1.msra.mxu0 %v460
    %466 = vmatprep.subr.mxu0 0.0
    %467 = vmatpush1.msra.mxu0 0.0
    %468 = vmatprep.subr.mxu0 0.0
    %469 = vmatpush1.msra.mxu0 0.0
    %470 = vmatprep.subr.mxu0 0.0
    %471 = vmatpush1.msra.mxu0 0.0
    %472 = vmatprep.subr.mxu0 0.0
    %473 = vmatpush1.msra.mxu0 0.0
    %474 = vmatprep.subr.mxu0 0.0
    %475 = vmatpush1.msra.mxu0 0.0
    %476 = vmatprep.subr.mxu0 0.0
    %477 = vmatpush1.msra.mxu0 0.0
    %478 = vmatprep.subr.mxu0 0.0
    %479 = vmatpush1.msra.mxu0 0.0
    %480 = vmatprep.subr.mxu0 0.0
    %481 = vmatpush1.msra.mxu0 0.0
    %482 = vmatprep.subr.mxu0 0.0
    %483 = vmatpush1.msra.mxu0 0.0
    %484 = vmatprep.subr.mxu0 0.0
    %485 = vmatpush1.msra.mxu0 0.0
    %486 = vmatprep.subr.mxu0 0.0
    %487 = vmatpush1.msra.mxu0 0.0
    %488 = vmatprep.subr.mxu0 0.0
    %489 = vmatpush1.msra.mxu0 0.0
    %490 = vmatprep.subr.mxu0 0.0
    %491 = vmatpush1.msra.mxu0 0.0
    %492 = vmatprep.subr.mxu0 0.0
    %493 = vmatpush1.msra.mxu0 0.0
    %494 = vmatprep.subr.mxu0 0.0
    %495 = vmatpush1.msra.mxu0 0.0
    %496 = vmatprep.subr.mxu0 0.0
    %497 = vmatpush1.msra.mxu0 0.0
    %498 = vmatprep.subr.mxu0 0.0
    %499 = vmatpush1.msra.mxu0 0.0
    %500 = vmatprep.subr.mxu0 0.0
    %501 = vmatpush1.msra.mxu0 0.0
    %502 = vmatprep.subr.mxu0 0.0
    %503 = vmatpush1.msra.mxu0 0.0
    %504 = vmatprep.subr.mxu0 0.0
    %505 = vmatpush1.msra.mxu0 0.0
    %506 = vmatprep.subr.mxu0 0.0
    %507 = vmatpush1.msra.mxu0 0.0
    %508 = vmatprep.subr.mxu0 0.0
    %509 = vmatpush1.msra.mxu0 0.0
    %510 = vmatprep.subr.mxu0 0.0
    %511 = vmatpush1.msra.mxu0 0.0
    %512 = vmatprep.subr.mxu0 0.0
    %513 = vmatpush1.msra.mxu0 0.0
    %514 = vmatprep.subr.mxu0 0.0
    %515 = vmatpush1.msra.mxu0 0.0
    %516 = vmatprep.subr.mxu0 0.0
    %517 = vmatpush1.msra.mxu0 0.0
    %518 = vmatprep.subr.mxu0 0.0
    %519 = vmatpush1.msra.mxu0 0.0
    %520 = vmatprep.subr.mxu0 0.0
    %521 = vmatpush1.msra.mxu0 0.0
    %522 = vmatprep.subr.mxu0 0.0
    %523 = vmatpush1.msra.mxu0 0.0
    %524 = vmatprep.subr.mxu0 0.0
    %525 = vmatpush1.msra.mxu0 0.0
    %526 = vmatprep.subr.mxu0 0.0
    %527 = vmatpush1.msra.mxu0 0.0
    %528 = vmatprep.mubr.f32.mxu0 0.0
    %529 = vmatmul.mubr.f32.gmra.mrb[0].mxu0 %v436
    %v530 = vpop.f32.mrb[0].mxu0
    %v531 = vadd.f32 %v395, %v530
    %v532 = vpop.f32.mrb[0].mxu0
    %v533 = vadd.f32 %v395, %v532
    %534 = vmatprep.mubr.f32.mxu0 0.0
    %535 = vmatmul.mubr.f32.gmra.mrb[0].mxu0 %v439
    %v536 = vpop.f32.mrb[0].mxu0
    %v537 = vadd.f32 %v400, %v536
    %v538 = vpop.f32.mrb[0].mxu0
    %v539 = vadd.f32 %v400, %v538
    %540 = vmatprep.mubr.f32.mxu0 0.0
    %541 = vmatmul.mubr.f32.gmra.mrb[0].mxu0 %v442
    %v542 = vpop.f32.mrb[0].mxu0
    %v543 = vadd.f32 %v405, %v542
    %v544 = vpop.f32.mrb[0].mxu0
    %v545 = vadd.f32 %v405, %v544
    %546 = vmatprep.mubr.f32.mxu0 0.0
    %547 = vmatmul.mubr.f32.gmra.mrb[0].mxu0 %v445
    %v548 = vpop.f32.mrb[0].mxu0
    %v549 = vadd.f32 %v410, %v548
    %v550 = vpop.f32.mrb[0].mxu0
    %v551 = vadd.f32 %v410, %v550
    %552 = vmatprep.mubr.f32.mxu0 0.0
    %553 = vmatmul.mubr.f32.gmra.mrb[0].mxu0 %v448
    %v554 = vpop.f32.mrb[0].mxu0
    %v555 = vadd.f32 %v415, %v554
    %v556 = vpop.f32.mrb[0].mxu0
    %v557 = vadd.f32 %v415, %v556
    %558 = vmatprep.mubr.f32.mxu0 0.0
    %559 = vmatmul.mubr.f32.gmra.mrb[0].mxu0 %v451
    %v560 = vpop.f32.mrb[0].mxu0
    %v561 = vadd.f32 %v420, %v560
    %v562 = vpop.f32.mrb[0].mxu0
    %v563 = vadd.f32 %v420, %v562
    %564 = vmatprep.mubr.f32.mxu0 0.0
    %565 = vmatmul.mubr.f32.gmra.mrb[0].mxu0 %v454
    %v566 = vpop.f32.mrb[0].mxu0
    %v567 = vadd.f32 %v425, %v566
    %v568 = vpop.f32.mrb[0].mxu0
    %v569 = vadd.f32 %v425, %v568
    %570 = vmatprep.mubr.f32.mxu0 0.0
    %571 = vmatmul.mubr.f32.gmra.mrb[0].mxu0 %v457
    %v572 = vpop.f32.mrb[0].mxu0
    %v573 = vadd.f32 %v430, %v572
    %v574 = vpop.f32.mrb[0].mxu0
    %v575 = vadd.f32 %v430, %v574
    %576 = vdwg.mxu0
    %v577 = vmax.f32 %v531, 0.0
    %v578 = vmax.f32 %v533, 0.0
    %v579 = vmax.f32 %v537, 0.0
    %v580 = vmax.f32 %v539, 0.0
    %v581 = vmax.f32 %v543, 0.0
    %v582 = vmax.f32 %v545, 0.0
    %v583 = vmax.f32 %v549, 0.0
    %v584 = vmax.f32 %v551, 0.0
    %v585 = vmax.f32 %v555, 0.0
    %v586 = vmax.f32 %v557, 0.0
    %v587 = vmax.f32 %v561, 0.0
    %v588 = vmax.f32 %v563, 0.0
    %v589 = vmax.f32 %v567, 0.0
    %v590 = vmax.f32 %v569, 0.0
    %v591 = vmax.f32 %v573, 0.0
    %v592 = vmax.f32 %v575, 0.0
    %594 = vset.pattern.permute.xlu0 0
    %595 = vperm.xlu0 %594, %v111
    %v596 = vpop.permute.xlu0 %595
    %599 = vset.pattern.permute.xlu0 0
    %600 = vperm.xlu0 %599, %v112
    %v601 = vpop.permute.xlu0 %600
    %604 = vset.pattern.permute.xlu0 0
    %605 = vperm.xlu0 %604, %v113
    %v606 = vpop.permute.xlu0 %605
    %609 = vset.pattern.permute.xlu0 0
    %610 = vperm.xlu0 %609, %v114
    %v611 = vpop.permute.xlu0 %610
    %vm613 = vcmask 523264
    %v615 = vsel %vm613, %v107, 0
    %v618 = vsel %vm613, %v108, 0
    %v621 = vsel %vm613, %v109, 0
    %v624 = vsel %vm613, %v110, 0
    %626 = vmatprep.subr.mxu0 %v578
    %627 = vmatpush1.msra.mxu0 %v577
    %628 = vmatprep.subr.mxu0 %v580
    %629 = vmatpush1.msra.mxu0 %v579
    %630 = vmatprep.subr.mxu0 %v582
    %631 = vmatpush1.msra.mxu0 %v581
    %632 = vmatprep.subr.mxu0 %v584
    %633 = vmatpush1.msra.mxu0 %v583
    %634 = vmatprep.subr.mxu0 %v586
    %635 = vmatpush1.msra.mxu0 %v585
    %636 = vmatprep.subr.mxu0 %v588
    %637 = vmatpush1.msra.mxu0 %v587
    %638 = vmatprep.subr.mxu0 %v590
    %639 = vmatpush1.msra.mxu0 %v589
    %640 = vmatprep.subr.mxu0 %v592
    %641 = vmatpush1.msra.mxu0 %v591
    %642 = vmatprep.subr.mxu0 0.0
    %643 = vmatpush1.msra.mxu0 0.0
    %644 = vmatprep.subr.mxu0 0.0
    %645 = vmatpush1.msra.mxu0 0.0
    %646 = vmatprep.subr.mxu0 0.0
    %647 = vmatpush1.msra.mxu0 0.0
    %648 = vmatprep.subr.mxu0 0.0
    %649 = vmatpush1.msra.mxu0 0.0
    %650 = vmatprep.subr.mxu0 0.0
    %651 = vmatpush1.msra.mxu0 0.0
    %652 = vmatprep.subr.mxu0 0.0
    %653 = vmatpush1.msra.mxu0 0.0
    %654 = vmatprep.subr.mxu0 0.0
    %655 = vmatpush1.msra.mxu0 0.0
    %656 = vmatprep.subr.mxu0 0.0
    %657 = vmatpush1.msra.mxu0 0.0
    %658 = vmatprep.subr.mxu0 0.0
    %659 = vmatpush1.msra.mxu0 0.0
    %660 = vmatprep.subr.mxu0 0.0
    %661 = vmatpush1.msra.mxu0 0.0
    %662 = vmatprep.subr.mxu0 0.0
    %663 = vmatpush1.msra.mxu0 0.0
    %664 = vmatprep.subr.mxu0 0.0
    %665 = vmatpush1.msra.mxu0 0.0
    %666 = vmatprep.subr.mxu0 0.0
    %667 = vmatpush1.msra.mxu0 0.0
    %668 = vmatprep.subr.mxu0 0.0
    %669 = vmatpush1.msra.mxu0 0.0
    %670 = vmatprep.subr.mxu0 0.0
    %671 = vmatpush1.msra.mxu0 0.0
    %672 = vmatprep.subr.mxu0 0.0
    %673 = vmatpush1.msra.mxu0 0.0
    %674 = vmatprep.subr.mxu0 0.0
    %675 = vmatpush1.msra.mxu0 0.0
    %676 = vmatprep.subr.mxu0 0.0
    %677 = vmatpush1.msra.mxu0 0.0
    %678 = vmatprep.subr.mxu0 0.0
    %679 = vmatpush1.msra.mxu0 0.0
    %680 = vmatprep.subr.mxu0 0.0
    %681 = vmatpush1.msra.mxu0 0.0
    %682 = vmatprep.subr.mxu0 0.0
    %683 = vmatpush1.msra.mxu0 0.0
    %684 = vmatprep.subr.mxu0 0.0
    %685 = vmatpush1.msra.mxu0 0.0
    %686 = vmatprep.subr.mxu0 0.0
    %687 = vmatpush1.msra.mxu0 0.0
    %688 = vmatprep.subr.mxu0 0.0
    %689 = vmatpush1.msra.mxu0 0.0
    %690 = vmatprep.mubr.f32.mxu0 0.0
    %691 = vmatmul.mubr.f32.gmra.mrb[0].mxu0 %v615
    %v692 = vpop.f32.mrb[0].mxu0
    %v693 = vadd.f32 %v596, %v692
    %v694 = vpop.f32.mrb[0].mxu0
    %v695 = vadd.f32 %v596, %v694
    %696 = vmatprep.mubr.f32.mxu0 0.0
    %697 = vmatmul.mubr.f32.gmra.mrb[0].mxu0 %v618
    %v698 = vpop.f32.mrb[0].mxu0
    %v699 = vadd.f32 %v601, %v698
    %v700 = vpop.f32.mrb[0].mxu0
    %v701 = vadd.f32 %v601, %v700
    %702 = vmatprep.mubr.f32.mxu0 0.0
    %703 = vmatmul.mubr.f32.gmra.mrb[0].mxu0 %v621
    %v704 = vpop.f32.mrb[0].mxu0
    %v705 = vadd.f32 %v606, %v704
    %v706 = vpop.f32.mrb[0].mxu0
    %v707 = vadd.f32 %v606, %v706
    %708 = vmatprep.mubr.f32.mxu0 0.0
    %709 = vmatmul.mubr.f32.gmra.mrb[0].mxu0 %v624
    %v710 = vpop.f32.mrb[0].mxu0
    %v711 = vadd.f32 %v611, %v710
    %v712 = vpop.f32.mrb[0].mxu0
    %v713 = vadd.f32 %v611, %v712
    %714 = vdwg.mxu0
    %v715 = vmax.f32 %v693, 0.0
    %v716 = vmax.f32 %v695, 0.0
    %v717 = vmax.f32 %v699, 0.0
    %v718 = vmax.f32 %v701, 0.0
    %v719 = vmax.f32 %v705, 0.0
    %v720 = vmax.f32 %v707, 0.0
    %v721 = vmax.f32 %v711, 0.0
    %v722 = vmax.f32 %v713, 0.0
    %724 = vset.pattern.permute.xlu0 0
    %725 = vperm.xlu0 %724, %v117
    %v726 = vpop.permute.xlu0 %725
    %729 = vset.pattern.permute.xlu0 0
    %730 = vperm.xlu0 %729, %v118
    %v731 = vpop.permute.xlu0 %730
    %vm733 = vcmask 261120
    %v735 = vsel %vm733, %v115, 0
    %v738 = vsel %vm733, %v116, 0
    %740 = vmatprep.subr.mxu0 %v716
    %741 = vmatpush1.msra.mxu0 %v715
    %742 = vmatprep.subr.mxu0 %v718
    %743 = vmatpush1.msra.mxu0 %v717
    %744 = vmatprep.subr.mxu0 %v720
    %745 = vmatpush1.msra.mxu0 %v719
    %746 = vmatprep.subr.mxu0 %v722
    %747 = vmatpush1.msra.mxu0 %v721
    %748 = vmatprep.subr.mxu0 0.0
    %749 = vmatpush1.msra.mxu0 0.0
    %750 = vmatprep.subr.mxu0 0.0
    %751 = vmatpush1.msra.mxu0 0.0
    %752 = vmatprep.subr.mxu0 0.0
    %753 = vmatpush1.msra.mxu0 0.0
    %754 = vmatprep.subr.mxu0 0.0
    %755 = vmatpush1.msra.mxu0 0.0
    %756 = vmatprep.subr.mxu0 0.0
    %757 = vmatpush1.msra.mxu0 0.0
    %758 = vmatprep.subr.mxu0 0.0
    %759 = vmatpush1.msra.mxu0 0.0
    %760 = vmatprep.subr.mxu0 0.0
    %761 = vmatpush1.msra.mxu0 0.0
    %762 = vmatprep.subr.mxu0 0.0
    %763 = vmatpush1.msra.mxu0 0.0
    %764 = vmatprep.subr.mxu0 0.0
    %765 = vmatpush1.msra.mxu0 0.0
    %766 = vmatprep.subr.mxu0 0.0
    %767 = vmatpush1.msra.mxu0 0.0
    %768 = vmatprep.subr.mxu0 0.0
    %769 = vmatpush1.msra.mxu0 0.0
    %770 = vmatprep.subr.mxu0 0.0
    %771 = vmatpush1.msra.mxu0 0.0
    %772 = vmatprep.subr.mxu0 0.0
    %773 = vmatpush1.msra.mxu0 0.0
    %774 = vmatprep.subr.mxu0 0.0
    %775 = vmatpush1.msra.mxu0 0.0
    %776 = vmatprep.subr.mxu0 0.0
    %777 = vmatpush1.msra.mxu0 0.0
    %778 = vmatprep.subr.mxu0 0.0
    %779 = vmatpush1.msra.mxu0 0.0
    %780 = vmatprep.subr.mxu0 0.0
    %781 = vmatpush1.msra.mxu0 0.0
    %782 = vmatprep.subr.mxu0 0.0
    %783 = vmatpush1.msra.mxu0 0.0
    %784 = vmatprep.subr.mxu0 0.0
    %785 = vmatpush1.msra.mxu0 0.0
    %786 = vmatprep.subr.mxu0 0.0
    %787 = vmatpush1.msra.mxu0 0.0
    %788 = vmatprep.subr.mxu0 0.0
    %789 = vmatpush1.msra.mxu0 0.0
    %790 = vmatprep.subr.mxu0 0.0
    %791 = vmatpush1.msra.mxu0 0.0
    %792 = vmatprep.subr.mxu0 0.0
    %793 = vmatpush1.msra.mxu0 0.0
    %794 = vmatprep.subr.mxu0 0.0
    %795 = vmatpush1.msra.mxu0 0.0
    %796 = vmatprep.subr.mxu0 0.0
    %797 = vmatpush1.msra.mxu0 0.0
    %798 = vmatprep.subr.mxu0 0.0
    %799 = vmatpush1.msra.mxu0 0.0
    %800 = vmatprep.subr.mxu0 0.0
    %801 = vmatpush1.msra.mxu0 0.0
    %802 = vmatprep.subr.mxu0 0.0
    %803 = vmatpush1.msra.mxu0 0.0
    %804 = vmatprep.mubr.f32.mxu0 0.0
    %805 = vmatmul.mubr.f32.gmra.mrb[0].mxu0 %v735
    %v806 = vpop.f32.mrb[0].mxu0
    %v807 = vadd.f32 %v726, %v806
    %v808 = vpop.f32.mrb[0].mxu0
    %v809 = vadd.f32 %v726, %v808
    %810 = vmatprep.mubr.f32.mxu0 0.0
    %811 = vmatmul.mubr.f32.gmra.mrb[0].mxu0 %v738
    %v812 = vpop.f32.mrb[0].mxu0
    %v813 = vadd.f32 %v731, %v812
    %v814 = vpop.f32.mrb[0].mxu0
    %v815 = vadd.f32 %v731, %v814
    %816 = vdwg.mxu0
    %v817 = vmax.f32 %v807, 0.0
    %v818 = vmax.f32 %v809, 0.0
    %v819 = vmax.f32 %v813, 0.0
    %v820 = vmax.f32 %v815, 0.0
    %v822 = vlaneseq
    %v823 = vshrl.u32 %v822, 7
    %v824 = vsub.s32 0, %v823
    %v825 = vrot.slane %v215, %v824
    %v826 = vlaneseq
    %v827 = vshrl.u32 %v826, 7
    %v828 = vsub.s32 1, %v827
    %v829 = vrot.slane %v215, %v828
    %v830 = vlaneseq
    %v831 = vshrl.u32 %v830, 7
    %v832 = vsub.s32 2, %v831
    %v833 = vrot.slane %v215, %v832
    %837 = vmatprep.subr.mxu0 %v120
    %838 = vmatpush1.msra.mxu0 %v119
    %839 = vmatprep.subr.mxu0 %v123
    %840 = vmatpush1.msra.mxu0 %v122
    %841 = vmatprep.subr.mxu0 %v126
    %842 = vmatpush1.msra.mxu0 %v125
    %843 = vmatprep.subr.mxu0 %v129
    %844 = vmatpush1.msra.mxu0 %v128
    %845 = vmatprep.subr.mxu0 %v132
    %846 = vmatpush1.msra.mxu0 %v131
    %847 = vmatprep.subr.mxu0 %v135
    %848 = vmatpush1.msra.mxu0 %v134
    %849 = vmatprep.subr.mxu0 %v138
    %850 = vmatpush1.msra.mxu0 %v137
    %851 = vmatprep.subr.mxu0 %v141
    %852 = vmatpush1.msra.mxu0 %v140
    %853 = vmatprep.subr.mxu0 %v144
    %854 = vmatpush1.msra.mxu0 %v143
    %855 = vmatprep.subr.mxu0 %v147
    %856 = vmatpush1.msra.mxu0 %v146
    %857 = vmatprep.subr.mxu0 %v150
    %858 = vmatpush1.msra.mxu0 %v149
    %859 = vmatprep.subr.mxu0 %v153
    %860 = vmatpush1.msra.mxu0 %v152
    %861 = vmatprep.subr.mxu0 %v156
    %862 = vmatpush1.msra.mxu0 %v155
    %863 = vmatprep.subr.mxu0 %v159
    %864 = vmatpush1.msra.mxu0 %v158
    %865 = vmatprep.subr.mxu0 %v162
    %866 = vmatpush1.msra.mxu0 %v161
    %867 = vmatprep.subr.mxu0 %v165
    %868 = vmatpush1.msra.mxu0 %v164
    %869 = vmatprep.subr.mxu0 %v168
    %870 = vmatpush1.msra.mxu0 %v167
    %871 = vmatprep.subr.mxu0 %v171
    %872 = vmatpush1.msra.mxu0 %v170
    %873 = vmatprep.subr.mxu0 %v174
    %874 = vmatpush1.msra.mxu0 %v173
    %875 = vmatprep.subr.mxu0 %v177
    %876 = vmatpush1.msra.mxu0 %v176
    %877 = vmatprep.subr.mxu0 %v180
    %878 = vmatpush1.msra.mxu0 %v179
    %879 = vmatprep.subr.mxu0 %v183
    %880 = vmatpush1.msra.mxu0 %v182
    %881 = vmatprep.subr.mxu0 %v186
    %882 = vmatpush1.msra.mxu0 %v185
    %883 = vmatprep.subr.mxu0 %v189
    %884 = vmatpush1.msra.mxu0 %v188
    %885 = vmatprep.subr.mxu0 %v192
    %886 = vmatpush1.msra.mxu0 %v191
    %887 = vmatprep.subr.mxu0 %v195
    %888 = vmatpush1.msra.mxu0 %v194
    %889 = vmatprep.subr.mxu0 %v198
    %890 = vmatpush1.msra.mxu0 %v197
    %891 = vmatprep.subr.mxu0 %v201
    %892 = vmatpush1.msra.mxu0 %v200
    %893 = vmatprep.subr.mxu0 %v204
    %894 = vmatpush1.msra.mxu0 %v203
    %895 = vmatprep.subr.mxu0 %v207
    %896 = vmatpush1.msra.mxu0 %v206
    %897 = vmatprep.subr.mxu0 %v210
    %898 = vmatpush1.msra.mxu0 %v209
    %899 = vmatprep.subr.mxu0 %v213
    %900 = vmatpush1.msra.mxu0 %v212
    %901 = vmatprep.mubr.f32.mxu0 %v818
    %902 = vmatmul.mubr.f32.gmra.mrb[0].mxu0 %v817
    %v903 = vpop.f32.mrb[0].mxu0
    %v904 = vadd.f32 %v825, %v903
    %v905 = vpop.f32.mrb[0].mxu0
    %v906 = vadd.f32 %v829, %v905
    %907 = vmatprep.mubr.f32.mxu0 %v820
    %908 = vmatmul.mubr.f32.gmra.mrb[0].mxu0 %v819
    %v909 = vpop.f32.mrb[0].mxu0
    %v910 = vadd.f32 %v825, %v909
    %v911 = vpop.f32.mrb[0].mxu0
    %v912 = vadd.f32 %v829, %v911
    %913 = vdwg.mxu0
    %914 = vmatprep.subr.mxu0 0.0
    %915 = vmatpush1.msra.mxu0 %v121
    %916 = vmatprep.subr.mxu0 0.0
    %917 = vmatpush1.msra.mxu0 %v124
    %918 = vmatprep.subr.mxu0 0.0
    %919 = vmatpush1.msra.mxu0 %v127
    %920 = vmatprep.subr.mxu0 0.0
    %921 = vmatpush1.msra.mxu0 %v130
    %922 = vmatprep.subr.mxu0 0.0
    %923 = vmatpush1.msra.mxu0 %v133
    %924 = vmatprep.subr.mxu0 0.0
    %925 = vmatpush1.msra.mxu0 %v136
    %926 = vmatprep.subr.mxu0 0.0
    %927 = vmatpush1.msra.mxu0 %v139
    %928 = vmatprep.subr.mxu0 0.0
    %929 = vmatpush1.msra.mxu0 %v142
    %930 = vmatprep.subr.mxu0 0.0
    %931 = vmatpush1.msra.mxu0 %v145
    %932 = vmatprep.subr.mxu0 0.0
    %933 = vmatpush1.msra.mxu0 %v148
    %934 = vmatprep.subr.mxu0 0.0
    %935 = vmatpush1.msra.mxu0 %v151
    %936 = vmatprep.subr.mxu0 0.0
    %937 = vmatpush1.msra.mxu0 %v154
    %938 = vmatprep.subr.mxu0 0.0
    %939 = vmatpush1.msra.mxu0 %v157
    %940 = vmatprep.subr.mxu0 0.0
    %941 = vmatpush1.msra.mxu0 %v160
    %942 = vmatprep.subr.mxu0 0.0
    %943 = vmatpush1.msra.mxu0 %v163
    %944 = vmatprep.subr.mxu0 0.0
    %945 = vmatpush1.msra.mxu0 %v166
    %946 = vmatprep.subr.mxu0 0.0
    %947 = vmatpush1.msra.mxu0 %v169
    %948 = vmatprep.subr.mxu0 0.0
    %949 = vmatpush1.msra.mxu0 %v172
    %950 = vmatprep.subr.mxu0 0.0
    %951 = vmatpush1.msra.mxu0 %v175
    %952 = vmatprep.subr.mxu0 0.0
    %953 = vmatpush1.msra.mxu0 %v178
    %954 = vmatprep.subr.mxu0 0.0
    %955 = vmatpush1.msra.mxu0 %v181
    %956 = vmatprep.subr.mxu0 0.0
    %957 = vmatpush1.msra.mxu0 %v184
    %958 = vmatprep.subr.mxu0 0.0
    %959 = vmatpush1.msra.mxu0 %v187
    %960 = vmatprep.subr.mxu0 0.0
    %961 = vmatpush1.msra.mxu0 %v190
    %962 = vmatprep.subr.mxu0 0.0
    %963 = vmatpush1.msra.mxu0 %v193
    %964 = vmatprep.subr.mxu0 0.0
    %965 = vmatpush1.msra.mxu0 %v196
    %966 = vmatprep.subr.mxu0 0.0
    %967 = vmatpush1.msra.mxu0 %v199
    %968 = vmatprep.subr.mxu0 0.0
    %969 = vmatpush1.msra.mxu0 %v202
    %970 = vmatprep.subr.mxu0 0.0
    %971 = vmatpush1.msra.mxu0 %v205
    %972 = vmatprep.subr.mxu0 0.0
    %973 = vmatpush1.msra.mxu0 %v208
    %974 = vmatprep.subr.mxu0 0.0
    %975 = vmatpush1.msra.mxu0 %v211
    %976 = vmatprep.subr.mxu0 0.0
    %977 = vmatpush1.msra.mxu0 %v214
    %978 = vmatprep.mubr.f32.mxu0 %v818
    %979 = vmatmul.mubr.f32.gmra.mrb[0].mxu0 %v817
    %v980 = vpop.f32.mrb[0].mxu0
    %v981 = vadd.f32 %v833, %v980
    %v982 = vpop.f32.mrb[0].mxu0
    %983 = vmatprep.mubr.f32.mxu0 %v820
    %984 = vmatmul.mubr.f32.gmra.mrb[0].mxu0 %v819
    %v985 = vpop.f32.mrb[0].mxu0
    %v986 = vadd.f32 %v833, %v985
    %v987 = vpop.f32.mrb[0].mxu0
    %988 = vdwg.mxu0
    %989 = vst [vmem:[#allocation2] sm:$0xff] %v904
    %990 = vst [vmem:[#allocation2 + $0x8] sm:$0xff] %v906
    %991 = vst [vmem:[#allocation2 + $0x10] sm:$0xff] %v981
    %992 = vst [vmem:[#allocation2 + $0x18] sm:$0xff] %v910
    %993 = vst [vmem:[#allocation2 + $0x20] sm:$0xff] %v912
    %994 = vst [vmem:[#allocation2 + $0x28] sm:$0xff] %v986
    %s995 = scalar_lea.vmem %s0, 8
    %v996 = vld [vmem:[%s995] sm:$0xff]
    %v998 = vcombine.high %v996, %v996
    %v999 = vsel %vm459, %v996, 0
    %v1001 = vsel %vm459, %v998, 0
    %1003 = vmatprep.subr.mxu0 %v1001
    %1004 = vmatpush1.msra.mxu0 %v999
    %1005 = vmatprep.subr.mxu0 0.0
    %1006 = vmatpush1.msra.mxu0 0.0
    %1007 = vmatprep.subr.mxu0 0.0
    %1008 = vmatpush1.msra.mxu0 0.0
    %1009 = vmatprep.subr.mxu0 0.0
    %1010 = vmatpush1.msra.mxu0 0.0
    %1011 = vmatprep.subr.mxu0 0.0
    %1012 = vmatpush1.msra.mxu0 0.0
    %1013 = vmatprep.subr.mxu0 0.0
    %1014 = vmatpush1.msra.mxu0 0.0
    %1015 = vmatprep.subr.mxu0 0.0
    %1016 = vmatpush1.msra.mxu0 0.0
    %1017 = vmatprep.subr.mxu0 0.0
    %1018 = vmatpush1.msra.mxu0 0.0
    %1019 = vmatprep.subr.mxu0 0.0
    %1020 = vmatpush1.msra.mxu0 0.0
    %1021 = vmatprep.subr.mxu0 0.0
    %1022 = vmatpush1.msra.mxu0 0.0
    %1023 = vmatprep.subr.mxu0 0.0
    %1024 = vmatpush1.msra.mxu0 0.0
    %1025 = vmatprep.subr.mxu0 0.0
    %1026 = vmatpush1.msra.mxu0 0.0
    %1027 = vmatprep.subr.mxu0 0.0
    %1028 = vmatpush1.msra.mxu0 0.0
    %1029 = vmatprep.subr.mxu0 0.0
    %1030 = vmatpush1.msra.mxu0 0.0
    %1031 = vmatprep.subr.mxu0 0.0
    %1032 = vmatpush1.msra.mxu0 0.0
    %1033 = vmatprep.subr.mxu0 0.0
    %1034 = vmatpush1.msra.mxu0 0.0
    %1035 = vmatprep.subr.mxu0 0.0
    %1036 = vmatpush1.msra.mxu0 0.0
    %1037 = vmatprep.subr.mxu0 0.0
    %1038 = vmatpush1.msra.mxu0 0.0
    %1039 = vmatprep.subr.mxu0 0.0
    %1040 = vmatpush1.msra.mxu0 0.0
    %1041 = vmatprep.subr.mxu0 0.0
    %1042 = vmatpush1.msra.mxu0 0.0
    %1043 = vmatprep.subr.mxu0 0.0
    %1044 = vmatpush1.msra.mxu0 0.0
    %1045 = vmatprep.subr.mxu0 0.0
    %1046 = vmatpush1.msra.mxu0 0.0
    %1047 = vmatprep.subr.mxu0 0.0
    %1048 = vmatpush1.msra.mxu0 0.0
    %1049 = vmatprep.subr.mxu0 0.0
    %1050 = vmatpush1.msra.mxu0 0.0
    %1051 = vmatprep.subr.mxu0 0.0
    %1052 = vmatpush1.msra.mxu0 0.0
    %1053 = vmatprep.subr.mxu0 0.0
    %1054 = vmatpush1.msra.mxu0 0.0
    %1055 = vmatprep.subr.mxu0 0.0
    %1056 = vmatpush1.msra.mxu0 0.0
    %1057 = vmatprep.subr.mxu0 0.0
    %1058 = vmatpush1.msra.mxu0 0.0
    %1059 = vmatprep.subr.mxu0 0.0
    %1060 = vmatpush1.msra.mxu0 0.0
    %1061 = vmatprep.subr.mxu0 0.0
    %1062 = vmatpush1.msra.mxu0 0.0
    %1063 = vmatprep.subr.mxu0 0.0
    %1064 = vmatpush1.msra.mxu0 0.0
    %1065 = vmatprep.subr.mxu0 0.0
    %1066 = vmatpush1.msra.mxu0 0.0
    %1067 = vmatprep.mubr.f32.mxu0 0.0
    %1068 = vmatmul.mubr.f32.gmra.mrb[0].mxu0 %v436
    %v1069 = vpop.f32.mrb[0].mxu0
    %v1070 = vadd.f32 %v395, %v1069
    %v1071 = vpop.f32.mrb[0].mxu0
    %v1072 = vadd.f32 %v395, %v1071
    %1073 = vmatprep.mubr.f32.mxu0 0.0
    %1074 = vmatmul.mubr.f32.gmra.mrb[0].mxu0 %v439
    %v1075 = vpop.f32.mrb[0].mxu0
    %v1076 = vadd.f32 %v400, %v1075
    %v1077 = vpop.f32.mrb[0].mxu0
    %v1078 = vadd.f32 %v400, %v1077
    %1079 = vmatprep.mubr.f32.mxu0 0.0
    %1080 = vmatmul.mubr.f32.gmra.mrb[0].mxu0 %v442
    %v1081 = vpop.f32.mrb[0].mxu0
    %v1082 = vadd.f32 %v405, %v1081
    %v1083 = vpop.f32.mrb[0].mxu0
    %v1084 = vadd.f32 %v405, %v1083
    %1085 = vmatprep.mubr.f32.mxu0 0.0
    %1086 = vmatmul.mubr.f32.gmra.mrb[0].mxu0 %v445
    %v1087 = vpop.f32.mrb[0].mxu0
    %v1088 = vadd.f32 %v410, %v1087
    %v1089 = vpop.f32.mrb[0].mxu0
    %v1090 = vadd.f32 %v410, %v1089
    %1091 = vmatprep.mubr.f32.mxu0 0.0
    %1092 = vmatmul.mubr.f32.gmra.mrb[0].mxu0 %v448
    %v1093 = vpop.f32.mrb[0].mxu0
    %v1094 = vadd.f32 %v415, %v1093
    %v1095 = vpop.f32.mrb[0].mxu0
    %v1096 = vadd.f32 %v415, %v1095
    %1097 = vmatprep.mubr.f32.mxu0 0.0
    %1098 = vmatmul.mubr.f32.gmra.mrb[0].mxu0 %v451
    %v1099 = vpop.f32.mrb[0].mxu0
    %v1100 = vadd.f32 %v420, %v1099
    %v1101 = vpop.f32.mrb[0].mxu0
    %v1102 = vadd.f32 %v420, %v1101
    %1103 = vmatprep.mubr.f32.mxu0 0.0
    %1104 = vmatmul.mubr.f32.gmra.mrb[0].mxu0 %v454
    %v1105 = vpop.f32.mrb[0].mxu0
    %v1106 = vadd.f32 %v425, %v1105
    %v1107 = vpop.f32.mrb[0].mxu0
    %v1108 = vadd.f32 %v425, %v1107
    %1109 = vmatprep.mubr.f32.mxu0 0.0
    %1110 = vmatmul.mubr.f32.gmra.mrb[0].mxu0 %v457
    %v1111 = vpop.f32.mrb[0].mxu0
    %v1112 = vadd.f32 %v430, %v1111
    %v1113 = vpop.f32.mrb[0].mxu0
    %v1114 = vadd.f32 %v430, %v1113
    %1115 = vdwg.mxu0
    %v1116 = vmax.f32 %v1070, 0.0
    %v1117 = vmax.f32 %v1072, 0.0
    %v1118 = vmax.f32 %v1076, 0.0
    %v1119 = vmax.f32 %v1078, 0.0
    %v1120 = vmax.f32 %v1082, 0.0
    %v1121 = vmax.f32 %v1084, 0.0
    %v1122 = vmax.f32 %v1088, 0.0
    %v1123 = vmax.f32 %v1090, 0.0
    %v1124 = vmax.f32 %v1094, 0.0
    %v1125 = vmax.f32 %v1096, 0.0
    %v1126 = vmax.f32 %v1100, 0.0
    %v1127 = vmax.f32 %v1102, 0.0
    %v1128 = vmax.f32 %v1106, 0.0
    %v1129 = vmax.f32 %v1108, 0.0
    %v1130 = vmax.f32 %v1112, 0.0
    %v1131 = vmax.f32 %v1114, 0.0
    %1132 = vmatprep.subr.mxu0 %v1117
    %1133 = vmatpush1.msra.mxu0 %v1116
    %1134 = vmatprep.subr.mxu0 %v1119
    %1135 = vmatpush1.msra.mxu0 %v1118
    %1136 = vmatprep.subr.mxu0 %v1121
    %1137 = vmatpush1.msra.mxu0 %v1120
    %1138 = vmatprep.subr.mxu0 %v1123
    %1139 = vmatpush1.msra.mxu0 %v1122
    %1140 = vmatprep.subr.mxu0 %v1125
    %1141 = vmatpush1.msra.mxu0 %v1124
    %1142 = vmatprep.subr.mxu0 %v1127
    %1143 = vmatpush1.msra.mxu0 %v1126
    %1144 = vmatprep.subr.mxu0 %v1129
    %1145 = vmatpush1.msra.mxu0 %v1128
    %1146 = vmatprep.subr.mxu0 %v1131
    %1147 = vmatpush1.msra.mxu0 %v1130
    %1148 = vmatprep.subr.mxu0 0.0
    %1149 = vmatpush1.msra.mxu0 0.0
    %1150 = vmatprep.subr.mxu0 0.0
    %1151 = vmatpush1.msra.mxu0 0.0
    %1152 = vmatprep.subr.mxu0 0.0
    %1153 = vmatpush1.msra.mxu0 0.0
    %1154 = vmatprep.subr.mxu0 0.0
    %1155 = vmatpush1.msra.mxu0 0.0
    %1156 = vmatprep.subr.mxu0 0.0
    %1157 = vmatpush1.msra.mxu0 0.0
    %1158 = vmatprep.subr.mxu0 0.0
    %1159 = vmatpush1.msra.mxu0 0.0
    %1160 = vmatprep.subr.mxu0 0.0
    %1161 = vmatpush1.msra.mxu0 0.0
    %1162 = vmatprep.subr.mxu0 0.0
    %1163 = vmatpush1.msra.mxu0 0.0
    %1164 = vmatprep.subr.mxu0 0.0
    %1165 = vmatpush1.msra.mxu0 0.0
    %1166 = vmatprep.subr.mxu0 0.0
    %1167 = vmatpush1.msra.mxu0 0.0
    %1168 = vmatprep.subr.mxu0 0.0
    %1169 = vmatpush1.msra.mxu0 0.0
    %1170 = vmatprep.subr.mxu0 0.0
    %1171 = vmatpush1.msra.mxu0 0.0
    %1172 = vmatprep.subr.mxu0 0.0
    %1173 = vmatpush1.msra.mxu0 0.0
    %1174 = vmatprep.subr.mxu0 0.0
    %1175 = vmatpush1.msra.mxu0 0.0
    %1176 = vmatprep.subr.mxu0 0.0
    %1177 = vmatpush1.msra.mxu0 0.0
    %1178 = vmatprep.subr.mxu0 0.0
    %1179 = vmatpush1.msra.mxu0 0.0
    %1180 = vmatprep.subr.mxu0 0.0
    %1181 = vmatpush1.msra.mxu0 0.0
    %1182 = vmatprep.subr.mxu0 0.0
    %1183 = vmatpush1.msra.mxu0 0.0
    %1184 = vmatprep.subr.mxu0 0.0
    %1185 = vmatpush1.msra.mxu0 0.0
    %1186 = vmatprep.subr.mxu0 0.0
    %1187 = vmatpush1.msra.mxu0 0.0
    %1188 = vmatprep.subr.mxu0 0.0
    %1189 = vmatpush1.msra.mxu0 0.0
    %1190 = vmatprep.subr.mxu0 0.0
    %1191 = vmatpush1.msra.mxu0 0.0
    %1192 = vmatprep.subr.mxu0 0.0
    %1193 = vmatpush1.msra.mxu0 0.0
    %1194 = vmatprep.subr.mxu0 0.0
    %1195 = vmatpush1.msra.mxu0 0.0
    %1196 = vmatprep.mubr.f32.mxu0 0.0
    %1197 = vmatmul.mubr.f32.gmra.mrb[0].mxu0 %v615
    %v1198 = vpop.f32.mrb[0].mxu0
    %v1199 = vadd.f32 %v596, %v1198
    %v1200 = vpop.f32.mrb[0].mxu0
    %v1201 = vadd.f32 %v596, %v1200
    %1202 = vmatprep.mubr.f32.mxu0 0.0
    %1203 = vmatmul.mubr.f32.gmra.mrb[0].mxu0 %v618
    %v1204 = vpop.f32.mrb[0].mxu0
    %v1205 = vadd.f32 %v601, %v1204
    %v1206 = vpop.f32.mrb[0].mxu0
    %v1207 = vadd.f32 %v601, %v1206
    %1208 = vmatprep.mubr.f32.mxu0 0.0
    %1209 = vmatmul.mubr.f32.gmra.mrb[0].mxu0 %v621
    %v1210 = vpop.f32.mrb[0].mxu0
    %v1211 = vadd.f32 %v606, %v1210
    %v1212 = vpop.f32.mrb[0].mxu0
    %v1213 = vadd.f32 %v606, %v1212
    %1214 = vmatprep.mubr.f32.mxu0 0.0
    %1215 = vmatmul.mubr.f32.gmra.mrb[0].mxu0 %v624
    %v1216 = vpop.f32.mrb[0].mxu0
    %v1217 = vadd.f32 %v611, %v1216
    %v1218 = vpop.f32.mrb[0].mxu0
    %v1219 = vadd.f32 %v611, %v1218
    %1220 = vdwg.mxu0
    %v1221 = vmax.f32 %v1199, 0.0
    %v1222 = vmax.f32 %v1201, 0.0
    %v1223 = vmax.f32 %v1205, 0.0
    %v1224 = vmax.f32 %v1207, 0.0
    %v1225 = vmax.f32 %v1211, 0.0
    %v1226 = vmax.f32 %v1213, 0.0
    %v1227 = vmax.f32 %v1217, 0.0
    %v1228 = vmax.f32 %v1219, 0.0
    %1229 = vmatprep.subr.mxu0 %v1222
    %1230 = vmatpush1.msra.mxu0 %v1221
    %1231 = vmatprep.subr.mxu0 %v1224
    %1232 = vmatpush1.msra.mxu0 %v1223
    %1233 = vmatprep.subr.mxu0 %v1226
    %1234 = vmatpush1.msra.mxu0 %v1225
    %1235 = vmatprep.subr.mxu0 %v1228
    %1236 = vmatpush1.msra.mxu0 %v1227
    %1237 = vmatprep.subr.mxu0 0.0
    %1238 = vmatpush1.msra.mxu0 0.0
    %1239 = vmatprep.subr.mxu0 0.0
    %1240 = vmatpush1.msra.mxu0 0.0
    %1241 = vmatprep.subr.mxu0 0.0
    %1242 = vmatpush1.msra.mxu0 0.0
    %1243 = vmatprep.subr.mxu0 0.0
    %1244 = vmatpush1.msra.mxu0 0.0
    %1245 = vmatprep.subr.mxu0 0.0
    %1246 = vmatpush1.msra.mxu0 0.0
    %1247 = vmatprep.subr.mxu0 0.0
    %1248 = vmatpush1.msra.mxu0 0.0
    %1249 = vmatprep.subr.mxu0 0.0
    %1250 = vmatpush1.msra.mxu0 0.0
    %1251 = vmatprep.subr.mxu0 0.0
    %1252 = vmatpush1.msra.mxu0 0.0
    %1253 = vmatprep.subr.mxu0 0.0
    %1254 = vmatpush1.msra.mxu0 0.0
    %1255 = vmatprep.subr.mxu0 0.0
    %1256 = vmatpush1.msra.mxu0 0.0
    %1257 = vmatprep.subr.mxu0 0.0
    %1258 = vmatpush1.msra.mxu0 0.0
    %1259 = vmatprep.subr.mxu0 0.0
    %1260 = vmatpush1.msra.mxu0 0.0
    %1261 = vmatprep.subr.mxu0 0.0
    %1262 = vmatpush1.msra.mxu0 0.0
    %1263 = vmatprep.subr.mxu0 0.0
    %1264 = vmatpush1.msra.mxu0 0.0
    %1265 = vmatprep.subr.mxu0 0.0
    %1266 = vmatpush1.msra.mxu0 0.0
    %1267 = vmatprep.subr.mxu0 0.0
    %1268 = vmatpush1.msra.mxu0 0.0
    %1269 = vmatprep.subr.mxu0 0.0
    %1270 = vmatpush1.msra.mxu0 0.0
    %1271 = vmatprep.subr.mxu0 0.0
    %1272 = vmatpush1.msra.mxu0 0.0
    %1273 = vmatprep.subr.mxu0 0.0
    %1274 = vmatpush1.msra.mxu0 0.0
    %1275 = vmatprep.subr.mxu0 0.0
    %1276 = vmatpush1.msra.mxu0 0.0
    %1277 = vmatprep.subr.mxu0 0.0
    %1278 = vmatpush1.msra.mxu0 0.0
    %1279 = vmatprep.subr.mxu0 0.0
    %1280 = vmatpush1.msra.mxu0 0.0
    %1281 = vmatprep.subr.mxu0 0.0
    %1282 = vmatpush1.msra.mxu0 0.0
    %1283 = vmatprep.subr.mxu0 0.0
    %1284 = vmatpush1.msra.mxu0 0.0
    %1285 = vmatprep.subr.mxu0 0.0
    %1286 = vmatpush1.msra.mxu0 0.0
    %1287 = vmatprep.subr.mxu0 0.0
    %1288 = vmatpush1.msra.mxu0 0.0
    %1289 = vmatprep.subr.mxu0 0.0
    %1290 = vmatpush1.msra.mxu0 0.0
    %1291 = vmatprep.subr.mxu0 0.0
    %1292 = vmatpush1.msra.mxu0 0.0
    %1293 = vmatprep.mubr.f32.mxu0 0.0
    %1294 = vmatmul.mubr.f32.gmra.mrb[0].mxu0 %v735
    %v1295 = vpop.f32.mrb[0].mxu0
    %v1296 = vadd.f32 %v726, %v1295
    %v1297 = vpop.f32.mrb[0].mxu0
    %v1298 = vadd.f32 %v726, %v1297
    %1299 = vmatprep.mubr.f32.mxu0 0.0
    %1300 = vmatmul.mubr.f32.gmra.mrb[0].mxu0 %v738
    %v1301 = vpop.f32.mrb[0].mxu0
    %v1302 = vadd.f32 %v731, %v1301
    %v1303 = vpop.f32.mrb[0].mxu0
    %v1304 = vadd.f32 %v731, %v1303
    %1305 = vdwg.mxu0
    %v1306 = vmax.f32 %v1296, 0.0
    %v1307 = vmax.f32 %v1298, 0.0
    %v1308 = vmax.f32 %v1302, 0.0
    %v1309 = vmax.f32 %v1304, 0.0
    %1310 = vmatprep.subr.mxu0 %v120
    %1311 = vmatpush1.msra.mxu0 %v119
    %1312 = vmatprep.subr.mxu0 %v123
    %1313 = vmatpush1.msra.mxu0 %v122
    %1314 = vmatprep.subr.mxu0 %v126
    %1315 = vmatpush1.msra.mxu0 %v125
    %1316 = vmatprep.subr.mxu0 %v129
    %1317 = vmatpush1.msra.mxu0 %v128
    %1318 = vmatprep.subr.mxu0 %v132
    %1319 = vmatpush1.msra.mxu0 %v131
    %1320 = vmatprep.subr.mxu0 %v135
    %1321 = vmatpush1.msra.mxu0 %v134
    %1322 = vmatprep.subr.mxu0 %v138
    %1323 = vmatpush1.msra.mxu0 %v137
    %1324 = vmatprep.subr.mxu0 %v141
    %1325 = vmatpush1.msra.mxu0 %v140
    %1326 = vmatprep.subr.mxu0 %v144
    %1327 = vmatpush1.msra.mxu0 %v143
    %1328 = vmatprep.subr.mxu0 %v147
    %1329 = vmatpush1.msra.mxu0 %v146
    %1330 = vmatprep.subr.mxu0 %v150
    %1331 = vmatpush1.msra.mxu0 %v149
    %1332 = vmatprep.subr.mxu0 %v153
    %1333 = vmatpush1.msra.mxu0 %v152
    %1334 = vmatprep.subr.mxu0 %v156
    %1335 = vmatpush1.msra.mxu0 %v155
    %1336 = vmatprep.subr.mxu0 %v159
    %1337 = vmatpush1.msra.mxu0 %v158
    %1338 = vmatprep.subr.mxu0 %v162
    %1339 = vmatpush1.msra.mxu0 %v161
    %1340 = vmatprep.subr.mxu0 %v165
    %1341 = vmatpush1.msra.mxu0 %v164
    %1342 = vmatprep.subr.mxu0 %v168
    %1343 = vmatpush1.msra.mxu0 %v167
    %1344 = vmatprep.subr.mxu0 %v171
    %1345 = vmatpush1.msra.mxu0 %v170
    %1346 = vmatprep.subr.mxu0 %v174
    %1347 = vmatpush1.msra.mxu0 %v173
    %1348 = vmatprep.subr.mxu0 %v177
    %1349 = vmatpush1.msra.mxu0 %v176
    %1350 = vmatprep.subr.mxu0 %v180
    %1351 = vmatpush1.msra.mxu0 %v179
    %1352 = vmatprep.subr.mxu0 %v183
    %1353 = vmatpush1.msra.mxu0 %v182
    %1354 = vmatprep.subr.mxu0 %v186
    %1355 = vmatpush1.msra.mxu0 %v185
    %1356 = vmatprep.subr.mxu0 %v189
    %1357 = vmatpush1.msra.mxu0 %v188
    %1358 = vmatprep.subr.mxu0 %v192
    %1359 = vmatpush1.msra.mxu0 %v191
    %1360 = vmatprep.subr.mxu0 %v195
    %1361 = vmatpush1.msra.mxu0 %v194
    %1362 = vmatprep.subr.mxu0 %v198
    %1363 = vmatpush1.msra.mxu0 %v197
    %1364 = vmatprep.subr.mxu0 %v201
    %1365 = vmatpush1.msra.mxu0 %v200
    %1366 = vmatprep.subr.mxu0 %v204
    %1367 = vmatpush1.msra.mxu0 %v203
    %1368 = vmatprep.subr.mxu0 %v207
    %1369 = vmatpush1.msra.mxu0 %v206
    %1370 = vmatprep.subr.mxu0 %v210
    %1371 = vmatpush1.msra.mxu0 %v209
    %1372 = vmatprep.subr.mxu0 %v213
    %1373 = vmatpush1.msra.mxu0 %v212
    %1374 = vmatprep.mubr.f32.mxu0 %v1307
    %1375 = vmatmul.mubr.f32.gmra.mrb[0].mxu0 %v1306
    %v1376 = vpop.f32.mrb[0].mxu0
    %v1377 = vadd.f32 %v825, %v1376
    %v1378 = vpop.f32.mrb[0].mxu0
    %v1379 = vadd.f32 %v829, %v1378
    %1380 = vmatprep.mubr.f32.mxu0 %v1309
    %1381 = vmatmul.mubr.f32.gmra.mrb[0].mxu0 %v1308
    %v1382 = vpop.f32.mrb[0].mxu0
    %v1383 = vadd.f32 %v825, %v1382
    %v1384 = vpop.f32.mrb[0].mxu0
    %v1385 = vadd.f32 %v829, %v1384
    %1386 = vdwg.mxu0
    %1387 = vmatprep.subr.mxu0 0.0
    %1388 = vmatpush1.msra.mxu0 %v121
    %1389 = vmatprep.subr.mxu0 0.0
    %1390 = vmatpush1.msra.mxu0 %v124
    %1391 = vmatprep.subr.mxu0 0.0
    %1392 = vmatpush1.msra.mxu0 %v127
    %1393 = vmatprep.subr.mxu0 0.0
    %1394 = vmatpush1.msra.mxu0 %v130
    %1395 = vmatprep.subr.mxu0 0.0
    %1396 = vmatpush1.msra.mxu0 %v133
    %1397 = vmatprep.subr.mxu0 0.0
    %1398 = vmatpush1.msra.mxu0 %v136
    %1399 = vmatprep.subr.mxu0 0.0
    %1400 = vmatpush1.msra.mxu0 %v139
    %1401 = vmatprep.subr.mxu0 0.0
    %1402 = vmatpush1.msra.mxu0 %v142
    %1403 = vmatprep.subr.mxu0 0.0
    %1404 = vmatpush1.msra.mxu0 %v145
    %1405 = vmatprep.subr.mxu0 0.0
    %1406 = vmatpush1.msra.mxu0 %v148
    %1407 = vmatprep.subr.mxu0 0.0
    %1408 = vmatpush1.msra.mxu0 %v151
    %1409 = vmatprep.subr.mxu0 0.0
    %1410 = vmatpush1.msra.mxu0 %v154
    %1411 = vmatprep.subr.mxu0 0.0
    %1412 = vmatpush1.msra.mxu0 %v157
    %1413 = vmatprep.subr.mxu0 0.0
    %1414 = vmatpush1.msra.mxu0 %v160
    %1415 = vmatprep.subr.mxu0 0.0
    %1416 = vmatpush1.msra.mxu0 %v163
    %1417 = vmatprep.subr.mxu0 0.0
    %1418 = vmatpush1.msra.mxu0 %v166
    %1419 = vmatprep.subr.mxu0 0.0
    %1420 = vmatpush1.msra.mxu0 %v169
    %1421 = vmatprep.subr.mxu0 0.0
    %1422 = vmatpush1.msra.mxu0 %v172
    %1423 = vmatprep.subr.mxu0 0.0
    %1424 = vmatpush1.msra.mxu0 %v175
    %1425 = vmatprep.subr.mxu0 0.0
    %1426 = vmatpush1.msra.mxu0 %v178
    %1427 = vmatprep.subr.mxu0 0.0
    %1428 = vmatpush1.msra.mxu0 %v181
    %1429 = vmatprep.subr.mxu0 0.0
    %1430 = vmatpush1.msra.mxu0 %v184
    %1431 = vmatprep.subr.mxu0 0.0
    %1432 = vmatpush1.msra.mxu0 %v187
    %1433 = vmatprep.subr.mxu0 0.0
    %1434 = vmatpush1.msra.mxu0 %v190
    %1435 = vmatprep.subr.mxu0 0.0
    %1436 = vmatpush1.msra.mxu0 %v193
    %1437 = vmatprep.subr.mxu0 0.0
    %1438 = vmatpush1.msra.mxu0 %v196
    %1439 = vmatprep.subr.mxu0 0.0
    %1440 = vmatpush1.msra.mxu0 %v199
    %1441 = vmatprep.subr.mxu0 0.0
    %1442 = vmatpush1.msra.mxu0 %v202
    %1443 = vmatprep.subr.mxu0 0.0
    %1444 = vmatpush1.msra.mxu0 %v205
    %1445 = vmatprep.subr.mxu0 0.0
    %1446 = vmatpush1.msra.mxu0 %v208
    %1447 = vmatprep.subr.mxu0 0.0
    %1448 = vmatpush1.msra.mxu0 %v211
    %1449 = vmatprep.subr.mxu0 0.0
    %1450 = vmatpush1.msra.mxu0 %v214
    %1451 = vmatprep.mubr.f32.mxu0 %v1307
    %1452 = vmatmul.mubr.f32.gmra.mrb[0].mxu0 %v1306
    %v1453 = vpop.f32.mrb[0].mxu0
    %v1454 = vadd.f32 %v833, %v1453
    %v1455 = vpop.f32.mrb[0].mxu0
    %1456 = vmatprep.mubr.f32.mxu0 %v1309
    %1457 = vmatmul.mubr.f32.gmra.mrb[0].mxu0 %v1308
    %v1458 = vpop.f32.mrb[0].mxu0
    %v1459 = vadd.f32 %v833, %v1458
    %v1460 = vpop.f32.mrb[0].mxu0
    %1461 = vdwg.mxu0
    %s1462 = scalar_lea.vmem [#allocation2], 48
    %1463 = vst [vmem:[%s1462] sm:$0xff] %v1377
    %1464 = vst [vmem:[%s1462 + $0x8] sm:$0xff] %v1379
    %1465 = vst [vmem:[%s1462 + $0x10] sm:$0xff] %v1454
    %1466 = vst [vmem:[%s1462 + $0x18] sm:$0xff] %v1383
    %1467 = vst [vmem:[%s1462 + $0x20] sm:$0xff] %v1385
    %1468 = vst [vmem:[%s1462 + $0x28] sm:$0xff] %v1459
    %v1469 = vld [vmem:[#allocation2] ss:$8 sm:$0x7]
    %v1470 = vld [vmem:[%s1462] ss:$8 sm:$0x7]
    %v1472 = vlaneseq
    %v1473 = vshrl.u32 %v1472, 7
    %v1474 = vsub.s32 0, %v1473
    %v1475 = vrot.slane %v1469, %v1474
    %v1476 = vlaneseq
    %v1477 = vshrl.u32 %v1476, 7
    %v1478 = vsub.s32 1, %v1477
    %v1479 = vrot.slane %v1469, %v1478
    %v1480 = vlaneseq
    %v1481 = vshrl.u32 %v1480, 7
    %v1482 = vsub.s32 2, %v1481
    %v1483 = vrot.slane %v1469, %v1482
    %v1488 = vlaneseq
    %v1489 = vshrl.u32 %v1488, 7
    %v1490 = vsub.s32 0, %v1489
    %v1491 = vrot.slane %v1470, %v1490
    %v1492 = vlaneseq
    %v1493 = vshrl.u32 %v1492, 7
    %v1494 = vsub.s32 1, %v1493
    %v1495 = vrot.slane %v1470, %v1494
    %v1496 = vlaneseq
    %v1497 = vshrl.u32 %v1496, 7
    %v1498 = vsub.s32 2, %v1497
    %v1499 = vrot.slane %v1470, %v1498
    %vm1503 = vcmask 1040384
    %v1504 = vsel %vm1503, %v1475, %v1491
    %v1505 = vsel %vm1503, %v1479, %v1495
    %v1506 = vsel %vm1503, %v1483, %v1499
    %1507 = vmatprep.subr.mxu0 %v217
    %1508 = vmatpush1.msra.mxu0 %v216
    %1509 = vmatprep.subr.mxu0 %v220
    %1510 = vmatpush1.msra.mxu0 %v219
    %1511 = vmatprep.subr.mxu0 %v223
    %1512 = vmatpush1.msra.mxu0 %v222
    %1513 = vmatprep.subr.mxu0 %v226
    %1514 = vmatpush1.msra.mxu0 %v225
    %1515 = vmatprep.subr.mxu0 %v229
    %1516 = vmatpush1.msra.mxu0 %v228
    %1517 = vmatprep.subr.mxu0 %v232
    %1518 = vmatpush1.msra.mxu0 %v231
    %1519 = vmatprep.subr.mxu0 %v235
    %1520 = vmatpush1.msra.mxu0 %v234
    %1521 = vmatprep.subr.mxu0 %v238
    %1522 = vmatpush1.msra.mxu0 %v237
    %1523 = vmatprep.subr.mxu0 %v241
    %1524 = vmatpush1.msra.mxu0 %v240
    %1525 = vmatprep.subr.mxu0 %v244
    %1526 = vmatpush1.msra.mxu0 %v243
    %1527 = vmatprep.subr.mxu0 %v247
    %1528 = vmatpush1.msra.mxu0 %v246
    %1529 = vmatprep.subr.mxu0 %v250
    %1530 = vmatpush1.msra.mxu0 %v249
    %1531 = vmatprep.subr.mxu0 %v253
    %1532 = vmatpush1.msra.mxu0 %v252
    %1533 = vmatprep.subr.mxu0 %v256
    %1534 = vmatpush1.msra.mxu0 %v255
    %1535 = vmatprep.subr.mxu0 %v259
    %1536 = vmatpush1.msra.mxu0 %v258
    %1537 = vmatprep.subr.mxu0 %v262
    %1538 = vmatpush1.msra.mxu0 %v261
    %1539 = vmatprep.subr.mxu0 0.0
    %1540 = vmatpush1.msra.mxu0 0.0
    %1541 = vmatprep.subr.mxu0 0.0
    %1542 = vmatpush1.msra.mxu0 0.0
    %1543 = vmatprep.subr.mxu0 0.0
    %1544 = vmatpush1.msra.mxu0 0.0
    %1545 = vmatprep.subr.mxu0 0.0
    %1546 = vmatpush1.msra.mxu0 0.0
    %1547 = vmatprep.subr.mxu0 0.0
    %1548 = vmatpush1.msra.mxu0 0.0
    %1549 = vmatprep.subr.mxu0 0.0
    %1550 = vmatpush1.msra.mxu0 0.0
    %1551 = vmatprep.subr.mxu0 0.0
    %1552 = vmatpush1.msra.mxu0 0.0
    %1553 = vmatprep.subr.mxu0 0.0
    %1554 = vmatpush1.msra.mxu0 0.0
    %1555 = vmatprep.subr.mxu0 0.0
    %1556 = vmatpush1.msra.mxu0 0.0
    %1557 = vmatprep.subr.mxu0 0.0
    %1558 = vmatpush1.msra.mxu0 0.0
    %1559 = vmatprep.subr.mxu0 0.0
    %1560 = vmatpush1.msra.mxu0 0.0
    %1561 = vmatprep.subr.mxu0 0.0
    %1562 = vmatpush1.msra.mxu0 0.0
    %1563 = vmatprep.subr.mxu0 0.0
    %1564 = vmatpush1.msra.mxu0 0.0
    %1565 = vmatprep.subr.mxu0 0.0
    %1566 = vmatpush1.msra.mxu0 0.0
    %1567 = vmatprep.subr.mxu0 0.0
    %1568 = vmatpush1.msra.mxu0 0.0
    %1569 = vmatprep.subr.mxu0 0.0
    %1570 = vmatpush1.msra.mxu0 0.0
    %1571 = vmatprep.mubr.f32.mxu0 0.0
    %1572 = vmatmul.mubr.f32.gmra.mrb[0].mxu0 0.0
    %v1573 = vpop.f32.mrb[0].mxu0
    %v1574 = vadd.f32 0.0, %v1573
    %v1575 = vpop.f32.mrb[0].mxu0
    %v1576 = vadd.f32 0.0, %v1575
    %1577 = vdwg.mxu0
    %1578 = vmatprep.subr.mxu0 0.0
    %1579 = vmatpush1.msra.mxu0 %v218
    %1580 = vmatprep.subr.mxu0 0.0
    %1581 = vmatpush1.msra.mxu0 %v221
    %1582 = vmatprep.subr.mxu0 0.0
    %1583 = vmatpush1.msra.mxu0 %v224
    %1584 = vmatprep.subr.mxu0 0.0
    %1585 = vmatpush1.msra.mxu0 %v227
    %1586 = vmatprep.subr.mxu0 0.0
    %1587 = vmatpush1.msra.mxu0 %v230
    %1588 = vmatprep.subr.mxu0 0.0
    %1589 = vmatpush1.msra.mxu0 %v233
    %1590 = vmatprep.subr.mxu0 0.0
    %1591 = vmatpush1.msra.mxu0 %v236
    %1592 = vmatprep.subr.mxu0 0.0
    %1593 = vmatpush1.msra.mxu0 %v239
    %1594 = vmatprep.subr.mxu0 0.0
    %1595 = vmatpush1.msra.mxu0 %v242
    %1596 = vmatprep.subr.mxu0 0.0
    %1597 = vmatpush1.msra.mxu0 %v245
    %1598 = vmatprep.subr.mxu0 0.0
    %1599 = vmatpush1.msra.mxu0 %v248
    %1600 = vmatprep.subr.mxu0 0.0
    %1601 = vmatpush1.msra.mxu0 %v251
    %1602 = vmatprep.subr.mxu0 0.0
    %1603 = vmatpush1.msra.mxu0 %v254
    %1604 = vmatprep.subr.mxu0 0.0
    %1605 = vmatpush1.msra.mxu0 %v257
    %1606 = vmatprep.subr.mxu0 0.0
    %1607 = vmatpush1.msra.mxu0 %v260
    %1608 = vmatprep.subr.mxu0 0.0
    %1609 = vmatpush1.msra.mxu0 %v263
    %1610 = vmatprep.subr.mxu0 0.0
    %1611 = vmatpush1.msra.mxu0 0.0
    %1612 = vmatprep.subr.mxu0 0.0
    %1613 = vmatpush1.msra.mxu0 0.0
    %1614 = vmatprep.subr.mxu0 0.0
    %1615 = vmatpush1.msra.mxu0 0.0
    %1616 = vmatprep.subr.mxu0 0.0
    %1617 = vmatpush1.msra.mxu0 0.0
    %1618 = vmatprep.subr.mxu0 0.0
    %1619 = vmatpush1.msra.mxu0 0.0
    %1620 = vmatprep.subr.mxu0 0.0
    %1621 = vmatpush1.msra.mxu0 0.0
    %1622 = vmatprep.subr.mxu0 0.0
    %1623 = vmatpush1.msra.mxu0 0.0
    %1624 = vmatprep.subr.mxu0 0.0
    %1625 = vmatpush1.msra.mxu0 0.0
    %1626 = vmatprep.subr.mxu0 0.0
    %1627 = vmatpush1.msra.mxu0 0.0
    %1628 = vmatprep.subr.mxu0 0.0
    %1629 = vmatpush1.msra.mxu0 0.0
    %1630 = vmatprep.subr.mxu0 0.0
    %1631 = vmatpush1.msra.mxu0 0.0
    %1632 = vmatprep.subr.mxu0 0.0
    %1633 = vmatpush1.msra.mxu0 0.0
    %1634 = vmatprep.subr.mxu0 0.0
    %1635 = vmatpush1.msra.mxu0 0.0
    %1636 = vmatprep.subr.mxu0 0.0
    %1637 = vmatpush1.msra.mxu0 0.0
    %1638 = vmatprep.subr.mxu0 0.0
    %1639 = vmatpush1.msra.mxu0 0.0
    %1640 = vmatprep.subr.mxu0 0.0
    %1641 = vmatpush1.msra.mxu0 0.0
    %1642 = vmatprep.mubr.f32.mxu0 0.0
    %1643 = vmatmul.mubr.f32.gmra.mrb[0].mxu0 0.0
    %v1644 = vpop.f32.mrb[0].mxu0
    %v1645 = vadd.f32 0.0, %v1644
    %v1646 = vpop.f32.mrb[0].mxu0
    %1647 = vdwg.mxu0
    %v1648 = vadd.f32 %v1504, %v1574
    %v1649 = vxor.u32 %v1648, 2147483648
    %v1650 = vmul.f32 %v1649, 1.442695
    %v1651 = vpow.pop %v1650
    %v1652 = vadd.f32 %v1651, 1.0
    %v1653 = vrcp.pop %v1652
    %v1654 = vmul.f32 1.0, %v1653
    %v1655 = vadd.f32 %v1505, %v1576
    %v1656 = vxor.u32 %v1655, 2147483648
    %v1657 = vmul.f32 %v1656, 1.442695
    %v1658 = vpow.pop %v1657
    %v1659 = vadd.f32 %v1658, 1.0
    %v1660 = vrcp.pop %v1659
    %v1661 = vmul.f32 1.0, %v1660
    %v1662 = vadd.f32 %v1645, %v365
    %v1663 = vmul.f32 %v1654, %v1662
    %v1664 = vadd.f32 %v1506, %v1663
    %v1665 = vtanh.pop %v1664
    %v1666 = vsub.f32 1.0, %v1661
    %v1667 = vmul.f32 %v1666, %v1665
    %v1668 = vmul.f32 %v1661, 0.0
    %v1669 = vadd.f32 %v1667, %v1668
    %1670 = vmatprep.subr.mxu0 %v265
    %1671 = vmatpush1.msra.mxu0 %v264
    %1672 = vmatprep.subr.mxu0 %v268
    %1673 = vmatpush1.msra.mxu0 %v267
    %1674 = vmatprep.subr.mxu0 %v271
    %1675 = vmatpush1.msra.mxu0 %v270
    %1676 = vmatprep.subr.mxu0 %v274
    %1677 = vmatpush1.msra.mxu0 %v273
    %1678 = vmatprep.subr.mxu0 %v277
    %1679 = vmatpush1.msra.mxu0 %v276
    %1680 = vmatprep.subr.mxu0 %v280
    %1681 = vmatpush1.msra.mxu0 %v279
    %1682 = vmatprep.subr.mxu0 %v283
    %1683 = vmatpush1.msra.mxu0 %v282
    %1684 = vmatprep.subr.mxu0 %v286
    %1685 = vmatpush1.msra.mxu0 %v285
    %1686 = vmatprep.subr.mxu0 %v289
    %1687 = vmatpush1.msra.mxu0 %v288
    %1688 = vmatprep.subr.mxu0 %v292
    %1689 = vmatpush1.msra.mxu0 %v291
    %1690 = vmatprep.subr.mxu0 %v295
    %1691 = vmatpush1.msra.mxu0 %v294
    %1692 = vmatprep.subr.mxu0 %v298
    %1693 = vmatpush1.msra.mxu0 %v297
    %1694 = vmatprep.subr.mxu0 %v301
    %1695 = vmatpush1.msra.mxu0 %v300
    %1696 = vmatprep.subr.mxu0 %v304
    %1697 = vmatpush1.msra.mxu0 %v303
    %1698 = vmatprep.subr.mxu0 %v307
    %1699 = vmatpush1.msra.mxu0 %v306
    %1700 = vmatprep.subr.mxu0 %v310
    %1701 = vmatpush1.msra.mxu0 %v309
    %1702 = vmatprep.subr.mxu0 0.0
    %1703 = vmatpush1.msra.mxu0 0.0
    %1704 = vmatprep.subr.mxu0 0.0
    %1705 = vmatpush1.msra.mxu0 0.0
    %1706 = vmatprep.subr.mxu0 0.0
    %1707 = vmatpush1.msra.mxu0 0.0
    %1708 = vmatprep.subr.mxu0 0.0
    %1709 = vmatpush1.msra.mxu0 0.0
    %1710 = vmatprep.subr.mxu0 0.0
    %1711 = vmatpush1.msra.mxu0 0.0
    %1712 = vmatprep.subr.mxu0 0.0
    %1713 = vmatpush1.msra.mxu0 0.0
    %1714 = vmatprep.subr.mxu0 0.0
    %1715 = vmatpush1.msra.mxu0 0.0
    %1716 = vmatprep.subr.mxu0 0.0
    %1717 = vmatpush1.msra.mxu0 0.0
    %1718 = vmatprep.subr.mxu0 0.0
    %1719 = vmatpush1.msra.mxu0 0.0
    %1720 = vmatprep.subr.mxu0 0.0
    %1721 = vmatpush1.msra.mxu0 0.0
    %1722 = vmatprep.subr.mxu0 0.0
    %1723 = vmatpush1.msra.mxu0 0.0
    %1724 = vmatprep.subr.mxu0 0.0
    %1725 = vmatpush1.msra.mxu0 0.0
    %1726 = vmatprep.subr.mxu0 0.0
    %1727 = vmatpush1.msra.mxu0 0.0
    %1728 = vmatprep.subr.mxu0 0.0
    %1729 = vmatpush1.msra.mxu0 0.0
    %1730 = vmatprep.subr.mxu0 0.0
    %1731 = vmatpush1.msra.mxu0 0.0
    %1732 = vmatprep.subr.mxu0 0.0
    %1733 = vmatpush1.msra.mxu0 0.0
    %1734 = vmatprep.mubr.f32.mxu0 0.0
    %1735 = vmatmul.mubr.f32.gmra.mrb[0].mxu0 %v1669
    %v1736 = vpop.f32.mrb[0].mxu0
    %v1737 = vadd.f32 %v379, %v1736
    %v1738 = vpop.f32.mrb[0].mxu0
    %v1739 = vadd.f32 %v383, %v1738
    %1740 = vdwg.mxu0
    %1741 = vmatprep.subr.mxu0 0.0
    %1742 = vmatpush1.msra.mxu0 %v266
    %1743 = vmatprep.subr.mxu0 0.0
    %1744 = vmatpush1.msra.mxu0 %v269
    %1745 = vmatprep.subr.mxu0 0.0
    %1746 = vmatpush1.msra.mxu0 %v272
    %1747 = vmatprep.subr.mxu0 0.0
    %1748 = vmatpush1.msra.mxu0 %v275
    %1749 = vmatprep.subr.mxu0 0.0
    %1750 = vmatpush1.msra.mxu0 %v278
    %1751 = vmatprep.subr.mxu0 0.0
    %1752 = vmatpush1.msra.mxu0 %v281
    %1753 = vmatprep.subr.mxu0 0.0
    %1754 = vmatpush1.msra.mxu0 %v284
    %1755 = vmatprep.subr.mxu0 0.0
    %1756 = vmatpush1.msra.mxu0 %v287
    %1757 = vmatprep.subr.mxu0 0.0
    %1758 = vmatpush1.msra.mxu0 %v290
    %1759 = vmatprep.subr.mxu0 0.0
    %1760 = vmatpush1.msra.mxu0 %v293
    %1761 = vmatprep.subr.mxu0 0.0
    %1762 = vmatpush1.msra.mxu0 %v296
    %1763 = vmatprep.subr.mxu0 0.0
    %1764 = vmatpush1.msra.mxu0 %v299
    %1765 = vmatprep.subr.mxu0 0.0
    %1766 = vmatpush1.msra.mxu0 %v302
    %1767 = vmatprep.subr.mxu0 0.0
    %1768 = vmatpush1.msra.mxu0 %v305
    %1769 = vmatprep.subr.mxu0 0.0
    %1770 = vmatpush1.msra.mxu0 %v308
    %1771 = vmatprep.subr.mxu0 0.0
    %1772 = vmatpush1.msra.mxu0 %v311
    %1773 = vmatprep.subr.mxu0 0.0
    %1774 = vmatpush1.msra.mxu0 0.0
    %1775 = vmatprep.subr.mxu0 0.0
    %1776 = vmatpush1.msra.mxu0 0.0
    %1777 = vmatprep.subr.mxu0 0.0
    %1778 = vmatpush1.msra.mxu0 0.0
    %1779 = vmatprep.subr.mxu0 0.0
    %1780 = vmatpush1.msra.mxu0 0.0
    %1781 = vmatprep.subr.mxu0 0.0
    %1782 = vmatpush1.msra.mxu0 0.0
    %1783 = vmatprep.subr.mxu0 0.0
    %1784 = vmatpush1.msra.mxu0 0.0
    %1785 = vmatprep.subr.mxu0 0.0
    %1786 = vmatpush1.msra.mxu0 0.0
    %1787 = vmatprep.subr.mxu0 0.0
    %1788 = vmatpush1.msra.mxu0 0.0
    %1789 = vmatprep.subr.mxu0 0.0
    %1790 = vmatpush1.msra.mxu0 0.0
    %1791 = vmatprep.subr.mxu0 0.0
    %1792 = vmatpush1.msra.mxu0 0.0
    %1793 = vmatprep.subr.mxu0 0.0
    %1794 = vmatpush1.msra.mxu0 0.0
    %1795 = vmatprep.subr.mxu0 0.0
    %1796 = vmatpush1.msra.mxu0 0.0
    %1797 = vmatprep.subr.mxu0 0.0
    %1798 = vmatpush1.msra.mxu0 0.0
    %1799 = vmatprep.subr.mxu0 0.0
    %1800 = vmatpush1.msra.mxu0 0.0
    %1801 = vmatprep.subr.mxu0 0.0
    %1802 = vmatpush1.msra.mxu0 0.0
    %1803 = vmatprep.subr.mxu0 0.0
    %1804 = vmatpush1.msra.mxu0 0.0
    %1805 = vmatprep.mubr.f32.mxu0 0.0
    %1806 = vmatmul.mubr.f32.gmra.mrb[0].mxu0 %v1669
    %v1807 = vpop.f32.mrb[0].mxu0
    %v1808 = vadd.f32 %v387, %v1807
    %v1809 = vpop.f32.mrb[0].mxu0
    %1810 = vdwg.mxu0
    %s1811 = scalar_lea.vmem [#allocation2], 1
    %v1812 = vld [vmem:[%s1811] ss:$8 sm:$0x7]
    %s1813 = scalar_lea.vmem %s1462, 1 [#allocation2]
    %v1814 = vld [vmem:[%s1813] ss:$8 sm:$0x7]
    %v1816 = vlaneseq
    %v1817 = vshrl.u32 %v1816, 7
    %v1818 = vsub.s32 0, %v1817
    %v1819 = vrot.slane %v1812, %v1818
    %v1820 = vlaneseq
    %v1821 = vshrl.u32 %v1820, 7
    %v1822 = vsub.s32 1, %v1821
    %v1823 = vrot.slane %v1812, %v1822
    %v1824 = vlaneseq
    %v1825 = vshrl.u32 %v1824, 7
    %v1826 = vsub.s32 2, %v1825
    %v1827 = vrot.slane %v1812, %v1826
    %v1832 = vlaneseq
    %v1833 = vshrl.u32 %v1832, 7
    %v1834 = vsub.s32 0, %v1833
    %v1835 = vrot.slane %v1814, %v1834
    %v1836 = vlaneseq
    %v1837 = vshrl.u32 %v1836, 7
    %v1838 = vsub.s32 1, %v1837
    %v1839 = vrot.slane %v1814, %v1838
    %v1840 = vlaneseq
    %v1841 = vshrl.u32 %v1840, 7
    %v1842 = vsub.s32 2, %v1841
    %v1843 = vrot.slane %v1814, %v1842
    %v1847 = vsel %vm1503, %v1819, %v1835
    %v1848 = vsel %vm1503, %v1823, %v1839
    %v1849 = vsel %vm1503, %v1827, %v1843
    %1850 = vmatprep.subr.mxu0 %v217
    %1851 = vmatpush1.msra.mxu0 %v216
    %1852 = vmatprep.subr.mxu0 %v220
    %1853 = vmatpush1.msra.mxu0 %v219
    %1854 = vmatprep.subr.mxu0 %v223
    %1855 = vmatpush1.msra.mxu0 %v222
    %1856 = vmatprep.subr.mxu0 %v226
    %1857 = vmatpush1.msra.mxu0 %v225
    %1858 = vmatprep.subr.mxu0 %v229
    %1859 = vmatpush1.msra.mxu0 %v228
    %1860 = vmatprep.subr.mxu0 %v232
    %1861 = vmatpush1.msra.mxu0 %v231
    %1862 = vmatprep.subr.mxu0 %v235
    %1863 = vmatpush1.msra.mxu0 %v234
    %1864 = vmatprep.subr.mxu0 %v238
    %1865 = vmatpush1.msra.mxu0 %v237
    %1866 = vmatprep.subr.mxu0 %v241
    %1867 = vmatpush1.msra.mxu0 %v240
    %1868 = vmatprep.subr.mxu0 %v244
    %1869 = vmatpush1.msra.mxu0 %v243
    %1870 = vmatprep.subr.mxu0 %v247
    %1871 = vmatpush1.msra.mxu0 %v246
    %1872 = vmatprep.subr.mxu0 %v250
    %1873 = vmatpush1.msra.mxu0 %v249
    %1874 = vmatprep.subr.mxu0 %v253
    %1875 = vmatpush1.msra.mxu0 %v252
    %1876 = vmatprep.subr.mxu0 %v256
    %1877 = vmatpush1.msra.mxu0 %v255
    %1878 = vmatprep.subr.mxu0 %v259
    %1879 = vmatpush1.msra.mxu0 %v258
    %1880 = vmatprep.subr.mxu0 %v262
    %1881 = vmatpush1.msra.mxu0 %v261
    %1882 = vmatprep.subr.mxu0 0.0
    %1883 = vmatpush1.msra.mxu0 0.0
    %1884 = vmatprep.subr.mxu0 0.0
    %1885 = vmatpush1.msra.mxu0 0.0
    %1886 = vmatprep.subr.mxu0 0.0
    %1887 = vmatpush1.msra.mxu0 0.0
    %1888 = vmatprep.subr.mxu0 0.0
    %1889 = vmatpush1.msra.mxu0 0.0
    %1890 = vmatprep.subr.mxu0 0.0
    %1891 = vmatpush1.msra.mxu0 0.0
    %1892 = vmatprep.subr.mxu0 0.0
    %1893 = vmatpush1.msra.mxu0 0.0
    %1894 = vmatprep.subr.mxu0 0.0
    %1895 = vmatpush1.msra.mxu0 0.0
    %1896 = vmatprep.subr.mxu0 0.0
    %1897 = vmatpush1.msra.mxu0 0.0
    %1898 = vmatprep.subr.mxu0 0.0
    %1899 = vmatpush1.msra.mxu0 0.0
    %1900 = vmatprep.subr.mxu0 0.0
    %1901 = vmatpush1.msra.mxu0 0.0
    %1902 = vmatprep.subr.mxu0 0.0
    %1903 = vmatpush1.msra.mxu0 0.0
    %1904 = vmatprep.subr.mxu0 0.0
    %1905 = vmatpush1.msra.mxu0 0.0
    %1906 = vmatprep.subr.mxu0 0.0
    %1907 = vmatpush1.msra.mxu0 0.0
    %1908 = vmatprep.subr.mxu0 0.0
    %1909 = vmatpush1.msra.mxu0 0.0
    %1910 = vmatprep.subr.mxu0 0.0
    %1911 = vmatpush1.msra.mxu0 0.0
    %1912 = vmatprep.subr.mxu0 0.0
    %1913 = vmatpush1.msra.mxu0 0.0
    %1914 = vmatprep.mubr.f32.mxu0 0.0
    %1915 = vmatmul.mubr.f32.gmra.mrb[0].mxu0 %v1669
    %v1916 = vpop.f32.mrb[0].mxu0
    %v1917 = vadd.f32 0.0, %v1916
    %v1918 = vpop.f32.mrb[0].mxu0
    %v1919 = vadd.f32 0.0, %v1918
    %1920 = vdwg.mxu0
    %1921 = vmatprep.subr.mxu0 0.0
    %1922 = vmatpush1.msra.mxu0 %v218
    %1923 = vmatprep.subr.mxu0 0.0
    %1924 = vmatpush1.msra.mxu0 %v221
    %1925 = vmatprep.subr.mxu0 0.0
    %1926 = vmatpush1.msra.mxu0 %v224
    %1927 = vmatprep.subr.mxu0 0.0
    %1928 = vmatpush1.msra.mxu0 %v227
    %1929 = vmatprep.subr.mxu0 0.0
    %1930 = vmatpush1.msra.mxu0 %v230
    %1931 = vmatprep.subr.mxu0 0.0
    %1932 = vmatpush1.msra.mxu0 %v233
    %1933 = vmatprep.subr.mxu0 0.0
    %1934 = vmatpush1.msra.mxu0 %v236
    %1935 = vmatprep.subr.mxu0 0.0
    %1936 = vmatpush1.msra.mxu0 %v239
    %1937 = vmatprep.subr.mxu0 0.0
    %1938 = vmatpush1.msra.mxu0 %v242
    %1939 = vmatprep.subr.mxu0 0.0
    %1940 = vmatpush1.msra.mxu0 %v245
    %1941 = vmatprep.subr.mxu0 0.0
    %1942 = vmatpush1.msra.mxu0 %v248
    %1943 = vmatprep.subr.mxu0 0.0
    %1944 = vmatpush1.msra.mxu0 %v251
    %1945 = vmatprep.subr.mxu0 0.0
    %1946 = vmatpush1.msra.mxu0 %v254
    %1947 = vmatprep.subr.mxu0 0.0
    %1948 = vmatpush1.msra.mxu0 %v257
    %1949 = vmatprep.subr.mxu0 0.0
    %1950 = vmatpush1.msra.mxu0 %v260
    %1951 = vmatprep.subr.mxu0 0.0
    %1952 = vmatpush1.msra.mxu0 %v263
    %1953 = vmatprep.subr.mxu0 0.0
    %1954 = vmatpush1.msra.mxu0 0.0
    %1955 = vmatprep.subr.mxu0 0.0
    %1956 = vmatpush1.msra.mxu0 0.0
    %1957 = vmatprep.subr.mxu0 0.0
    %1958 = vmatpush1.msra.mxu0 0.0
    %1959 = vmatprep.subr.mxu0 0.0
    %1960 = vmatpush1.msra.mxu0 0.0
    %1961 = vmatprep.subr.mxu0 0.0
    %1962 = vmatpush1.msra.mxu0 0.0
    %1963 = vmatprep.subr.mxu0 0.0
    %1964 = vmatpush1.msra.mxu0 0.0
    %1965 = vmatprep.subr.mxu0 0.0
    %1966 = vmatpush1.msra.mxu0 0.0
    %1967 = vmatprep.subr.mxu0 0.0
    %1968 = vmatpush1.msra.mxu0 0.0
    %1969 = vmatprep.subr.mxu0 0.0
    %1970 = vmatpush1.msra.mxu0 0.0
    %1971 = vmatprep.subr.mxu0 0.0
    %1972 = vmatpush1.msra.mxu0 0.0
    %1973 = vmatprep.subr.mxu0 0.0
    %1974 = vmatpush1.msra.mxu0 0.0
    %1975 = vmatprep.subr.mxu0 0.0
    %1976 = vmatpush1.msra.mxu0 0.0
    %1977 = vmatprep.subr.mxu0 0.0
    %1978 = vmatpush1.msra.mxu0 0.0
    %1979 = vmatprep.subr.mxu0 0.0
    %1980 = vmatpush1.msra.mxu0 0.0
    %1981 = vmatprep.subr.mxu0 0.0
    %1982 = vmatpush1.msra.mxu0 0.0
    %1983 = vmatprep.subr.mxu0 0.0
    %1984 = vmatpush1.msra.mxu0 0.0
    %1985 = vmatprep.mubr.f32.mxu0 0.0
    %1986 = vmatmul.mubr.f32.gmra.mrb[0].mxu0 %v1669
    %v1987 = vpop.f32.mrb[0].mxu0
    %v1988 = vadd.f32 0.0, %v1987
    %v1989 = vpop.f32.mrb[0].mxu0
    %1990 = vdwg.mxu0
    %v1991 = vadd.f32 %v1847, %v1917
    %v1992 = vxor.u32 %v1991, 2147483648
    %v1993 = vmul.f32 %v1992, 1.442695
    %v1994 = vpow.pop %v1993
    %v1995 = vadd.f32 %v1994, 1.0
    %v1996 = vrcp.pop %v1995
    %v1997 = vmul.f32 1.0, %v1996
    %v1998 = vadd.f32 %v1848, %v1919
    %v1999 = vxor.u32 %v1998, 2147483648
    %v2000 = vmul.f32 %v1999, 1.442695
    %v2001 = vpow.pop %v2000
    %v2002 = vadd.f32 %v2001, 1.0
    %v2003 = vrcp.pop %v2002
    %v2004 = vmul.f32 1.0, %v2003
    %v2005 = vadd.f32 %v1988, %v365
    %v2006 = vmul.f32 %v1997, %v2005
    %v2007 = vadd.f32 %v1849, %v2006
    %v2008 = vtanh.pop %v2007
    %v2009 = vsub.f32 1.0, %v2004
    %v2010 = vmul.f32 %v2009, %v2008
    %v2011 = vmul.f32 %v2004, %v1669
    %v2012 = vadd.f32 %v2010, %v2011
    %2013 = vmatprep.subr.mxu0 %v313
    %2014 = vmatpush1.msra.mxu0 %v312
    %2015 = vmatprep.subr.mxu0 %v316
    %2016 = vmatpush1.msra.mxu0 %v315
    %2017 = vmatprep.subr.mxu0 %v319
    %2018 = vmatpush1.msra.mxu0 %v318
    %2019 = vmatprep.subr.mxu0 %v322
    %2020 = vmatpush1.msra.mxu0 %v321
    %2021 = vmatprep.subr.mxu0 %v325
    %2022 = vmatpush1.msra.mxu0 %v324
    %2023 = vmatprep.subr.mxu0 %v328
    %2024 = vmatpush1.msra.mxu0 %v327
    %2025 = vmatprep.subr.mxu0 %v331
    %2026 = vmatpush1.msra.mxu0 %v330
    %2027 = vmatprep.subr.mxu0 %v334
    %2028 = vmatpush1.msra.mxu0 %v333
    %2029 = vmatprep.subr.mxu0 %v337
    %2030 = vmatpush1.msra.mxu0 %v336
    %2031 = vmatprep.subr.mxu0 %v340
    %2032 = vmatpush1.msra.mxu0 %v339
    %2033 = vmatprep.subr.mxu0 %v343
    %2034 = vmatpush1.msra.mxu0 %v342
    %2035 = vmatprep.subr.mxu0 %v346
    %2036 = vmatpush1.msra.mxu0 %v345
    %2037 = vmatprep.subr.mxu0 %v349
    %2038 = vmatpush1.msra.mxu0 %v348
    %2039 = vmatprep.subr.mxu0 %v352
    %2040 = vmatpush1.msra.mxu0 %v351
    %2041 = vmatprep.subr.mxu0 %v355
    %2042 = vmatpush1.msra.mxu0 %v354
    %2043 = vmatprep.subr.mxu0 %v358
    %2044 = vmatpush1.msra.mxu0 %v357
    %2045 = vmatprep.subr.mxu0 0.0
    %2046 = vmatpush1.msra.mxu0 0.0
    %2047 = vmatprep.subr.mxu0 0.0
    %2048 = vmatpush1.msra.mxu0 0.0
    %2049 = vmatprep.subr.mxu0 0.0
    %2050 = vmatpush1.msra.mxu0 0.0
    %2051 = vmatprep.subr.mxu0 0.0
    %2052 = vmatpush1.msra.mxu0 0.0
    %2053 = vmatprep.subr.mxu0 0.0
    %2054 = vmatpush1.msra.mxu0 0.0
    %2055 = vmatprep.subr.mxu0 0.0
    %2056 = vmatpush1.msra.mxu0 0.0
    %2057 = vmatprep.subr.mxu0 0.0
    %2058 = vmatpush1.msra.mxu0 0.0
    %2059 = vmatprep.subr.mxu0 0.0
    %2060 = vmatpush1.msra.mxu0 0.0
    %2061 = vmatprep.subr.mxu0 0.0
    %2062 = vmatpush1.msra.mxu0 0.0
    %2063 = vmatprep.subr.mxu0 0.0
    %2064 = vmatpush1.msra.mxu0 0.0
    %2065 = vmatprep.subr.mxu0 0.0
    %2066 = vmatpush1.msra.mxu0 0.0
    %2067 = vmatprep.subr.mxu0 0.0
    %2068 = vmatpush1.msra.mxu0 0.0
    %2069 = vmatprep.subr.mxu0 0.0
    %2070 = vmatpush1.msra.mxu0 0.0
    %2071 = vmatprep.subr.mxu0 0.0
    %2072 = vmatpush1.msra.mxu0 0.0
    %2073 = vmatprep.subr.mxu0 0.0
    %2074 = vmatpush1.msra.mxu0 0.0
    %2075 = vmatprep.subr.mxu0 0.0
    %2076 = vmatpush1.msra.mxu0 0.0
    %2077 = vmatprep.mubr.f32.mxu0 0.0
    %2078 = vmatmul.mubr.f32.gmra.mrb[0].mxu0 0.0
    %v2079 = vpop.f32.mrb[0].mxu0
    %v2080 = vadd.f32 0.0, %v2079
    %v2081 = vpop.f32.mrb[0].mxu0
    %v2082 = vadd.f32 0.0, %v2081
    %2083 = vdwg.mxu0
    %2084 = vmatprep.subr.mxu0 0.0
    %2085 = vmatpush1.msra.mxu0 %v314
    %2086 = vmatprep.subr.mxu0 0.0
    %2087 = vmatpush1.msra.mxu0 %v317
    %2088 = vmatprep.subr.mxu0 0.0
    %2089 = vmatpush1.msra.mxu0 %v320
    %2090 = vmatprep.subr.mxu0 0.0
    %2091 = vmatpush1.msra.mxu0 %v323
    %2092 = vmatprep.subr.mxu0 0.0
    %2093 = vmatpush1.msra.mxu0 %v326
    %2094 = vmatprep.subr.mxu0 0.0
    %2095 = vmatpush1.msra.mxu0 %v329
    %2096 = vmatprep.subr.mxu0 0.0
    %2097 = vmatpush1.msra.mxu0 %v332
    %2098 = vmatprep.subr.mxu0 0.0
    %2099 = vmatpush1.msra.mxu0 %v335
    %2100 = vmatprep.subr.mxu0 0.0
    %2101 = vmatpush1.msra.mxu0 %v338
    %2102 = vmatprep.subr.mxu0 0.0
    %2103 = vmatpush1.msra.mxu0 %v341
    %2104 = vmatprep.subr.mxu0 0.0
    %2105 = vmatpush1.msra.mxu0 %v344
    %2106 = vmatprep.subr.mxu0 0.0
    %2107 = vmatpush1.msra.mxu0 %v347
    %2108 = vmatprep.subr.mxu0 0.0
    %2109 = vmatpush1.msra.mxu0 %v350
    %2110 = vmatprep.subr.mxu0 0.0
    %2111 = vmatpush1.msra.mxu0 %v353
    %2112 = vmatprep.subr.mxu0 0.0
    %2113 = vmatpush1.msra.mxu0 %v356
    %2114 = vmatprep.subr.mxu0 0.0
    %2115 = vmatpush1.msra.mxu0 %v359
    %2116 = vmatprep.subr.mxu0 0.0
    %2117 = vmatpush1.msra.mxu0 0.0
    %2118 = vmatprep.subr.mxu0 0.0
    %2119 = vmatpush1.msra.mxu0 0.0
    %2120 = vmatprep.subr.mxu0 0.0
    %2121 = vmatpush1.msra.mxu0 0.0
    %2122 = vmatprep.subr.mxu0 0.0
    %2123 = vmatpush1.msra.mxu0 0.0
    %2124 = vmatprep.subr.mxu0 0.0
    %2125 = vmatpush1.msra.mxu0 0.0
    %2126 = vmatprep.subr.mxu0 0.0
    %2127 = vmatpush1.msra.mxu0 0.0
    %2128 = vmatprep.subr.mxu0 0.0
    %2129 = vmatpush1.msra.mxu0 0.0
    %2130 = vmatprep.subr.mxu0 0.0
    %2131 = vmatpush1.msra.mxu0 0.0
    %2132 = vmatprep.subr.mxu0 0.0
    %2133 = vmatpush1.msra.mxu0 0.0
    %2134 = vmatprep.subr.mxu0 0.0
    %2135 = vmatpush1.msra.mxu0 0.0
    %2136 = vmatprep.subr.mxu0 0.0
    %2137 = vmatpush1.msra.mxu0 0.0
    %2138 = vmatprep.subr.mxu0 0.0
    %2139 = vmatpush1.msra.mxu0 0.0
    %2140 = vmatprep.subr.mxu0 0.0
    %2141 = vmatpush1.msra.mxu0 0.0
    %2142 = vmatprep.subr.mxu0 0.0
    %2143 = vmatpush1.msra.mxu0 0.0
    %2144 = vmatprep.subr.mxu0 0.0
    %2145 = vmatpush1.msra.mxu0 0.0
    %2146 = vmatprep.subr.mxu0 0.0
    %2147 = vmatpush1.msra.mxu0 0.0
    %2148 = vmatprep.mubr.f32.mxu0 0.0
    %2149 = vmatmul.mubr.f32.gmra.mrb[0].mxu0 0.0
    %v2150 = vpop.f32.mrb[0].mxu0
    %v2151 = vadd.f32 0.0, %v2150
    %v2152 = vpop.f32.mrb[0].mxu0
    %2153 = vdwg.mxu0
    %v2154 = vadd.f32 %v1737, %v2080
    %v2155 = vxor.u32 %v2154, 2147483648
    %v2156 = vmul.f32 %v2155, 1.442695
    %v2157 = vpow.pop %v2156
    %v2158 = vadd.f32 %v2157, 1.0
    %v2159 = vrcp.pop %v2158
    %v2160 = vmul.f32 1.0, %v2159
    %v2161 = vadd.f32 %v1739, %v2082
    %v2162 = vxor.u32 %v2161, 2147483648
    %v2163 = vmul.f32 %v2162, 1.442695
    %v2164 = vpow.pop %v2163
    %v2165 = vadd.f32 %v2164, 1.0
    %v2166 = vrcp.pop %v2165
    %v2167 = vmul.f32 1.0, %v2166
    %v2168 = vadd.f32 %v2151, %v372
    %v2169 = vmul.f32 %v2160, %v2168
    %v2170 = vadd.f32 %v1808, %v2169
    %v2171 = vtanh.pop %v2170
    %v2172 = vsub.f32 1.0, %v2167
    %v2173 = vmul.f32 %v2172, %v2171
    %v2174 = vmul.f32 %v2167, 0.0
    %v2175 = vadd.f32 %v2173, %v2174
    %2176 = vst [vmem:[%s15] sm:$0x3] %v2175
    %2177 = vmatprep.subr.mxu0 %v265
    %2178 = vmatpush1.msra.mxu0 %v264
    %2179 = vmatprep.subr.mxu0 %v268
    %2180 = vmatpush1.msra.mxu0 %v267
    %2181 = vmatprep.subr.mxu0 %v271
    %2182 = vmatpush1.msra.mxu0 %v270
    %2183 = vmatprep.subr.mxu0 %v274
    %2184 = vmatpush1.msra.mxu0 %v273
    %2185 = vmatprep.subr.mxu0 %v277
    %2186 = vmatpush1.msra.mxu0 %v276
    %2187 = vmatprep.subr.mxu0 %v280
    %2188 = vmatpush1.msra.mxu0 %v279
    %2189 = vmatprep.subr.mxu0 %v283
    %2190 = vmatpush1.msra.mxu0 %v282
    %2191 = vmatprep.subr.mxu0 %v286
    %2192 = vmatpush1.msra.mxu0 %v285
    %2193 = vmatprep.subr.mxu0 %v289
    %2194 = vmatpush1.msra.mxu0 %v288
    %2195 = vmatprep.subr.mxu0 %v292
    %2196 = vmatpush1.msra.mxu0 %v291
    %2197 = vmatprep.subr.mxu0 %v295
    %2198 = vmatpush1.msra.mxu0 %v294
    %2199 = vmatprep.subr.mxu0 %v298
    %2200 = vmatpush1.msra.mxu0 %v297
    %2201 = vmatprep.subr.mxu0 %v301
    %2202 = vmatpush1.msra.mxu0 %v300
    %2203 = vmatprep.subr.mxu0 %v304
    %2204 = vmatpush1.msra.mxu0 %v303
    %2205 = vmatprep.subr.mxu0 %v307
    %2206 = vmatpush1.msra.mxu0 %v306
    %2207 = vmatprep.subr.mxu0 %v310
    %2208 = vmatpush1.msra.mxu0 %v309
    %2209 = vmatprep.subr.mxu0 0.0
    %2210 = vmatpush1.msra.mxu0 0.0
    %2211 = vmatprep.subr.mxu0 0.0
    %2212 = vmatpush1.msra.mxu0 0.0
    %2213 = vmatprep.subr.mxu0 0.0
    %2214 = vmatpush1.msra.mxu0 0.0
    %2215 = vmatprep.subr.mxu0 0.0
    %2216 = vmatpush1.msra.mxu0 0.0
    %2217 = vmatprep.subr.mxu0 0.0
    %2218 = vmatpush1.msra.mxu0 0.0
    %2219 = vmatprep.subr.mxu0 0.0
    %2220 = vmatpush1.msra.mxu0 0.0
    %2221 = vmatprep.subr.mxu0 0.0
    %2222 = vmatpush1.msra.mxu0 0.0
    %2223 = vmatprep.subr.mxu0 0.0
    %2224 = vmatpush1.msra.mxu0 0.0
    %2225 = vmatprep.subr.mxu0 0.0
    %2226 = vmatpush1.msra.mxu0 0.0
    %2227 = vmatprep.subr.mxu0 0.0
    %2228 = vmatpush1.msra.mxu0 0.0
    %2229 = vmatprep.subr.mxu0 0.0
    %2230 = vmatpush1.msra.mxu0 0.0
    %2231 = vmatprep.subr.mxu0 0.0
    %2232 = vmatpush1.msra.mxu0 0.0
    %2233 = vmatprep.subr.mxu0 0.0
    %2234 = vmatpush1.msra.mxu0 0.0
    %2235 = vmatprep.subr.mxu0 0.0
    %2236 = vmatpush1.msra.mxu0 0.0
    %2237 = vmatprep.subr.mxu0 0.0
    %2238 = vmatpush1.msra.mxu0 0.0
    %2239 = vmatprep.subr.mxu0 0.0
    %2240 = vmatpush1.msra.mxu0 0.0
    %2241 = vmatprep.mubr.f32.mxu0 0.0
    %2242 = vmatmul.mubr.f32.gmra.mrb[0].mxu0 %v2012
    %v2243 = vpop.f32.mrb[0].mxu0
    %v2244 = vadd.f32 %v379, %v2243
    %v2245 = vpop.f32.mrb[0].mxu0
    %v2246 = vadd.f32 %v383, %v2245
    %2247 = vdwg.mxu0
    %2248 = vmatprep.subr.mxu0 0.0
    %2249 = vmatpush1.msra.mxu0 %v266
    %2250 = vmatprep.subr.mxu0 0.0
    %2251 = vmatpush1.msra.mxu0 %v269
    %2252 = vmatprep.subr.mxu0 0.0
    %2253 = vmatpush1.msra.mxu0 %v272
    %2254 = vmatprep.subr.mxu0 0.0
    %2255 = vmatpush1.msra.mxu0 %v275
    %2256 = vmatprep.subr.mxu0 0.0
    %2257 = vmatpush1.msra.mxu0 %v278
    %2258 = vmatprep.subr.mxu0 0.0
    %2259 = vmatpush1.msra.mxu0 %v281
    %2260 = vmatprep.subr.mxu0 0.0
    %2261 = vmatpush1.msra.mxu0 %v284
    %2262 = vmatprep.subr.mxu0 0.0
    %2263 = vmatpush1.msra.mxu0 %v287
    %2264 = vmatprep.subr.mxu0 0.0
    %2265 = vmatpush1.msra.mxu0 %v290
    %2266 = vmatprep.subr.mxu0 0.0
    %2267 = vmatpush1.msra.mxu0 %v293
    %2268 = vmatprep.subr.mxu0 0.0
    %2269 = vmatpush1.msra.mxu0 %v296
    %2270 = vmatprep.subr.mxu0 0.0
    %2271 = vmatpush1.msra.mxu0 %v299
    %2272 = vmatprep.subr.mxu0 0.0
    %2273 = vmatpush1.msra.mxu0 %v302
    %2274 = vmatprep.subr.mxu0 0.0
    %2275 = vmatpush1.msra.mxu0 %v305
    %2276 = vmatprep.subr.mxu0 0.0
    %2277 = vmatpush1.msra.mxu0 %v308
    %2278 = vmatprep.subr.mxu0 0.0
    %2279 = vmatpush1.msra.mxu0 %v311
    %2280 = vmatprep.subr.mxu0 0.0
    %2281 = vmatpush1.msra.mxu0 0.0
    %2282 = vmatprep.subr.mxu0 0.0
    %2283 = vmatpush1.msra.mxu0 0.0
    %2284 = vmatprep.subr.mxu0 0.0
    %2285 = vmatpush1.msra.mxu0 0.0
    %2286 = vmatprep.subr.mxu0 0.0
    %2287 = vmatpush1.msra.mxu0 0.0
    %2288 = vmatprep.subr.mxu0 0.0
    %2289 = vmatpush1.msra.mxu0 0.0
    %2290 = vmatprep.subr.mxu0 0.0
    %2291 = vmatpush1.msra.mxu0 0.0
    %2292 = vmatprep.subr.mxu0 0.0
    %2293 = vmatpush1.msra.mxu0 0.0
    %2294 = vmatprep.subr.mxu0 0.0
    %2295 = vmatpush1.msra.mxu0 0.0
    %2296 = vmatprep.subr.mxu0 0.0
    %2297 = vmatpush1.msra.mxu0 0.0
    %2298 = vmatprep.subr.mxu0 0.0
    %2299 = vmatpush1.msra.mxu0 0.0
    %2300 = vmatprep.subr.mxu0 0.0
    %2301 = vmatpush1.msra.mxu0 0.0
    %2302 = vmatprep.subr.mxu0 0.0
    %2303 = vmatpush1.msra.mxu0 0.0
    %2304 = vmatprep.subr.mxu0 0.0
    %2305 = vmatpush1.msra.mxu0 0.0
    %2306 = vmatprep.subr.mxu0 0.0
    %2307 = vmatpush1.msra.mxu0 0.0
    %2308 = vmatprep.subr.mxu0 0.0
    %2309 = vmatpush1.msra.mxu0 0.0
    %2310 = vmatprep.subr.mxu0 0.0
    %2311 = vmatpush1.msra.mxu0 0.0
    %2312 = vmatprep.mubr.f32.mxu0 0.0
    %2313 = vmatmul.mubr.f32.gmra.mrb[0].mxu0 %v2012
    %v2314 = vpop.f32.mrb[0].mxu0
    %v2315 = vadd.f32 %v387, %v2314
    %v2316 = vpop.f32.mrb[0].mxu0
    %2317 = vdwg.mxu0
    %s2318 = scalar_lea.vmem [#allocation2], 2
    %v2319 = vld [vmem:[%s2318] ss:$8 sm:$0x7]
    %s2320 = scalar_lea.vmem %s1462, 2 [#allocation2]
    %v2321 = vld [vmem:[%s2320] ss:$8 sm:$0x7]
    %v2323 = vlaneseq
    %v2324 = vshrl.u32 %v2323, 7
    %v2325 = vsub.s32 0, %v2324
    %v2326 = vrot.slane %v2319, %v2325
    %v2327 = vlaneseq
    %v2328 = vshrl.u32 %v2327, 7
    %v2329 = vsub.s32 1, %v2328
    %v2330 = vrot.slane %v2319, %v2329
    %v2331 = vlaneseq
    %v2332 = vshrl.u32 %v2331, 7
    %v2333 = vsub.s32 2, %v2332
    %v2334 = vrot.slane %v2319, %v2333
    %v2339 = vlaneseq
    %v2340 = vshrl.u32 %v2339, 7
    %v2341 = vsub.s32 0, %v2340
    %v2342 = vrot.slane %v2321, %v2341
    %v2343 = vlaneseq
    %v2344 = vshrl.u32 %v2343, 7
    %v2345 = vsub.s32 1, %v2344
    %v2346 = vrot.slane %v2321, %v2345
    %v2347 = vlaneseq
    %v2348 = vshrl.u32 %v2347, 7
    %v2349 = vsub.s32 2, %v2348
    %v2350 = vrot.slane %v2321, %v2349
    %v2354 = vsel %vm1503, %v2326, %v2342
    %v2355 = vsel %vm1503, %v2330, %v2346
    %v2356 = vsel %vm1503, %v2334, %v2350
    %2357 = vmatprep.subr.mxu0 %v217
    %2358 = vmatpush1.msra.mxu0 %v216
    %2359 = vmatprep.subr.mxu0 %v220
    %2360 = vmatpush1.msra.mxu0 %v219
    %2361 = vmatprep.subr.mxu0 %v223
    %2362 = vmatpush1.msra.mxu0 %v222
    %2363 = vmatprep.subr.mxu0 %v226
    %2364 = vmatpush1.msra.mxu0 %v225
    %2365 = vmatprep.subr.mxu0 %v229
    %2366 = vmatpush1.msra.mxu0 %v228
    %2367 = vmatprep.subr.mxu0 %v232
    %2368 = vmatpush1.msra.mxu0 %v231
    %2369 = vmatprep.subr.mxu0 %v235
    %2370 = vmatpush1.msra.mxu0 %v234
    %2371 = vmatprep.subr.mxu0 %v238
    %2372 = vmatpush1.msra.mxu0 %v237
    %2373 = vmatprep.subr.mxu0 %v241
    %2374 = vmatpush1.msra.mxu0 %v240
    %2375 = vmatprep.subr.mxu0 %v244
    %2376 = vmatpush1.msra.mxu0 %v243
    %2377 = vmatprep.subr.mxu0 %v247
    %2378 = vmatpush1.msra.mxu0 %v246
    %2379 = vmatprep.subr.mxu0 %v250
    %2380 = vmatpush1.msra.mxu0 %v249
    %2381 = vmatprep.subr.mxu0 %v253
    %2382 = vmatpush1.msra.mxu0 %v252
    %2383 = vmatprep.subr.mxu0 %v256
    %2384 = vmatpush1.msra.mxu0 %v255
    %2385 = vmatprep.subr.mxu0 %v259
    %2386 = vmatpush1.msra.mxu0 %v258
    %2387 = vmatprep.subr.mxu0 %v262
    %2388 = vmatpush1.msra.mxu0 %v261
    %2389 = vmatprep.subr.mxu0 0.0
    %2390 = vmatpush1.msra.mxu0 0.0
    %2391 = vmatprep.subr.mxu0 0.0
    %2392 = vmatpush1.msra.mxu0 0.0
    %2393 = vmatprep.subr.mxu0 0.0
    %2394 = vmatpush1.msra.mxu0 0.0
    %2395 = vmatprep.subr.mxu0 0.0
    %2396 = vmatpush1.msra.mxu0 0.0
    %2397 = vmatprep.subr.mxu0 0.0
    %2398 = vmatpush1.msra.mxu0 0.0
    %2399 = vmatprep.subr.mxu0 0.0
    %2400 = vmatpush1.msra.mxu0 0.0
    %2401 = vmatprep.subr.mxu0 0.0
    %2402 = vmatpush1.msra.mxu0 0.0
    %2403 = vmatprep.subr.mxu0 0.0
    %2404 = vmatpush1.msra.mxu0 0.0
    %2405 = vmatprep.subr.mxu0 0.0
    %2406 = vmatpush1.msra.mxu0 0.0
    %2407 = vmatprep.subr.mxu0 0.0
    %2408 = vmatpush1.msra.mxu0 0.0
    %2409 = vmatprep.subr.mxu0 0.0
    %2410 = vmatpush1.msra.mxu0 0.0
    %2411 = vmatprep.subr.mxu0 0.0
    %2412 = vmatpush1.msra.mxu0 0.0
    %2413 = vmatprep.subr.mxu0 0.0
    %2414 = vmatpush1.msra.mxu0 0.0
    %2415 = vmatprep.subr.mxu0 0.0
    %2416 = vmatpush1.msra.mxu0 0.0
    %2417 = vmatprep.subr.mxu0 0.0
    %2418 = vmatpush1.msra.mxu0 0.0
    %2419 = vmatprep.subr.mxu0 0.0
    %2420 = vmatpush1.msra.mxu0 0.0
    %2421 = vmatprep.mubr.f32.mxu0 0.0
    %2422 = vmatmul.mubr.f32.gmra.mrb[0].mxu0 %v2012
    %v2423 = vpop.f32.mrb[0].mxu0
    %v2424 = vadd.f32 0.0, %v2423
    %v2425 = vpop.f32.mrb[0].mxu0
    %v2426 = vadd.f32 0.0, %v2425
    %2427 = vdwg.mxu0
    %2428 = vmatprep.subr.mxu0 0.0
    %2429 = vmatpush1.msra.mxu0 %v218
    %2430 = vmatprep.subr.mxu0 0.0
    %2431 = vmatpush1.msra.mxu0 %v221
    %2432 = vmatprep.subr.mxu0 0.0
    %2433 = vmatpush1.msra.mxu0 %v224
    %2434 = vmatprep.subr.mxu0 0.0
    %2435 = vmatpush1.msra.mxu0 %v227
    %2436 = vmatprep.subr.mxu0 0.0
    %2437 = vmatpush1.msra.mxu0 %v230
    %2438 = vmatprep.subr.mxu0 0.0
    %2439 = vmatpush1.msra.mxu0 %v233
    %2440 = vmatprep.subr.mxu0 0.0
    %2441 = vmatpush1.msra.mxu0 %v236
    %2442 = vmatprep.subr.mxu0 0.0
    %2443 = vmatpush1.msra.mxu0 %v239
    %2444 = vmatprep.subr.mxu0 0.0
    %2445 = vmatpush1.msra.mxu0 %v242
    %2446 = vmatprep.subr.mxu0 0.0
    %2447 = vmatpush1.msra.mxu0 %v245
    %2448 = vmatprep.subr.mxu0 0.0
    %2449 = vmatpush1.msra.mxu0 %v248
    %2450 = vmatprep.subr.mxu0 0.0
    %2451 = vmatpush1.msra.mxu0 %v251
    %2452 = vmatprep.subr.mxu0 0.0
    %2453 = vmatpush1.msra.mxu0 %v254
    %2454 = vmatprep.subr.mxu0 0.0
    %2455 = vmatpush1.msra.mxu0 %v257
    %2456 = vmatprep.subr.mxu0 0.0
    %2457 = vmatpush1.msra.mxu0 %v260
    %2458 = vmatprep.subr.mxu0 0.0
    %2459 = vmatpush1.msra.mxu0 %v263
    %2460 = vmatprep.subr.mxu0 0.0
    %2461 = vmatpush1.msra.mxu0 0.0
    %2462 = vmatprep.subr.mxu0 0.0
    %2463 = vmatpush1.msra.mxu0 0.0
    %2464 = vmatprep.subr.mxu0 0.0
    %2465 = vmatpush1.msra.mxu0 0.0
    %2466 = vmatprep.subr.mxu0 0.0
    %2467 = vmatpush1.msra.mxu0 0.0
    %2468 = vmatprep.subr.mxu0 0.0
    %2469 = vmatpush1.msra.mxu0 0.0
    %2470 = vmatprep.subr.mxu0 0.0
    %2471 = vmatpush1.msra.mxu0 0.0
    %2472 = vmatprep.subr.mxu0 0.0
    %2473 = vmatpush1.msra.mxu0 0.0
    %2474 = vmatprep.subr.mxu0 0.0
    %2475 = vmatpush1.msra.mxu0 0.0
    %2476 = vmatprep.subr.mxu0 0.0
    %2477 = vmatpush1.msra.mxu0 0.0
    %2478 = vmatprep.subr.mxu0 0.0
    %2479 = vmatpush1.msra.mxu0 0.0
    %2480 = vmatprep.subr.mxu0 0.0
    %2481 = vmatpush1.msra.mxu0 0.0
    %2482 = vmatprep.subr.mxu0 0.0
    %2483 = vmatpush1.msra.mxu0 0.0
    %2484 = vmatprep.subr.mxu0 0.0
    %2485 = vmatpush1.msra.mxu0 0.0
    %2486 = vmatprep.subr.mxu0 0.0
    %2487 = vmatpush1.msra.mxu0 0.0
    %2488 = vmatprep.subr.mxu0 0.0
    %2489 = vmatpush1.msra.mxu0 0.0
    %2490 = vmatprep.subr.mxu0 0.0
    %2491 = vmatpush1.msra.mxu0 0.0
    %2492 = vmatprep.mubr.f32.mxu0 0.0
    %2493 = vmatmul.mubr.f32.gmra.mrb[0].mxu0 %v2012
    %v2494 = vpop.f32.mrb[0].mxu0
    %v2495 = vadd.f32 0.0, %v2494
    %v2496 = vpop.f32.mrb[0].mxu0
    %2497 = vdwg.mxu0
    %v2498 = vadd.f32 %v2354, %v2424
    %v2499 = vxor.u32 %v2498, 2147483648
    %v2500 = vmul.f32 %v2499, 1.442695
    %v2501 = vpow.pop %v2500
    %v2502 = vadd.f32 %v2501, 1.0
    %v2503 = vrcp.pop %v2502
    %v2504 = vmul.f32 1.0, %v2503
    %v2505 = vadd.f32 %v2355, %v2426
    %v2506 = vxor.u32 %v2505, 2147483648
    %v2507 = vmul.f32 %v2506, 1.442695
    %v2508 = vpow.pop %v2507
    %v2509 = vadd.f32 %v2508, 1.0
    %v2510 = vrcp.pop %v2509
    %v2511 = vmul.f32 1.0, %v2510
    %v2512 = vadd.f32 %v2495, %v365
    %v2513 = vmul.f32 %v2504, %v2512
    %v2514 = vadd.f32 %v2356, %v2513
    %v2515 = vtanh.pop %v2514
    %v2516 = vsub.f32 1.0, %v2511
    %v2517 = vmul.f32 %v2516, %v2515
    %v2518 = vmul.f32 %v2511, %v2012
    %v2519 = vadd.f32 %v2517, %v2518
    %2520 = vmatprep.subr.mxu0 %v313
    %2521 = vmatpush1.msra.mxu0 %v312
    %2522 = vmatprep.subr.mxu0 %v316
    %2523 = vmatpush1.msra.mxu0 %v315
    %2524 = vmatprep.subr.mxu0 %v319
    %2525 = vmatpush1.msra.mxu0 %v318
    %2526 = vmatprep.subr.mxu0 %v322
    %2527 = vmatpush1.msra.mxu0 %v321
    %2528 = vmatprep.subr.mxu0 %v325
    %2529 = vmatpush1.msra.mxu0 %v324
    %2530 = vmatprep.subr.mxu0 %v328
    %2531 = vmatpush1.msra.mxu0 %v327
    %2532 = vmatprep.subr.mxu0 %v331
    %2533 = vmatpush1.msra.mxu0 %v330
    %2534 = vmatprep.subr.mxu0 %v334
    %2535 = vmatpush1.msra.mxu0 %v333
    %2536 = vmatprep.subr.mxu0 %v337
    %2537 = vmatpush1.msra.mxu0 %v336
    %2538 = vmatprep.subr.mxu0 %v340
    %2539 = vmatpush1.msra.mxu0 %v339
    %2540 = vmatprep.subr.mxu0 %v343
    %2541 = vmatpush1.msra.mxu0 %v342
    %2542 = vmatprep.subr.mxu0 %v346
    %2543 = vmatpush1.msra.mxu0 %v345
    %2544 = vmatprep.subr.mxu0 %v349
    %2545 = vmatpush1.msra.mxu0 %v348
    %2546 = vmatprep.subr.mxu0 %v352
    %2547 = vmatpush1.msra.mxu0 %v351
    %2548 = vmatprep.subr.mxu0 %v355
    %2549 = vmatpush1.msra.mxu0 %v354
    %2550 = vmatprep.subr.mxu0 %v358
    %2551 = vmatpush1.msra.mxu0 %v357
    %2552 = vmatprep.subr.mxu0 0.0
    %2553 = vmatpush1.msra.mxu0 0.0
    %2554 = vmatprep.subr.mxu0 0.0
    %2555 = vmatpush1.msra.mxu0 0.0
    %2556 = vmatprep.subr.mxu0 0.0
    %2557 = vmatpush1.msra.mxu0 0.0
    %2558 = vmatprep.subr.mxu0 0.0
    %2559 = vmatpush1.msra.mxu0 0.0
    %2560 = vmatprep.subr.mxu0 0.0
    %2561 = vmatpush1.msra.mxu0 0.0
    %2562 = vmatprep.subr.mxu0 0.0
    %2563 = vmatpush1.msra.mxu0 0.0
    %2564 = vmatprep.subr.mxu0 0.0
    %2565 = vmatpush1.msra.mxu0 0.0
    %2566 = vmatprep.subr.mxu0 0.0
    %2567 = vmatpush1.msra.mxu0 0.0
    %2568 = vmatprep.subr.mxu0 0.0
    %2569 = vmatpush1.msra.mxu0 0.0
    %2570 = vmatprep.subr.mxu0 0.0
    %2571 = vmatpush1.msra.mxu0 0.0
    %2572 = vmatprep.subr.mxu0 0.0
    %2573 = vmatpush1.msra.mxu0 0.0
    %2574 = vmatprep.subr.mxu0 0.0
    %2575 = vmatpush1.msra.mxu0 0.0
    %2576 = vmatprep.subr.mxu0 0.0
    %2577 = vmatpush1.msra.mxu0 0.0
    %2578 = vmatprep.subr.mxu0 0.0
    %2579 = vmatpush1.msra.mxu0 0.0
    %2580 = vmatprep.subr.mxu0 0.0
    %2581 = vmatpush1.msra.mxu0 0.0
    %2582 = vmatprep.subr.mxu0 0.0
    %2583 = vmatpush1.msra.mxu0 0.0
    %2584 = vmatprep.mubr.f32.mxu0 0.0
    %2585 = vmatmul.mubr.f32.gmra.mrb[0].mxu0 %v2175
    %v2586 = vpop.f32.mrb[0].mxu0
    %v2587 = vadd.f32 0.0, %v2586
    %v2588 = vpop.f32.mrb[0].mxu0
    %v2589 = vadd.f32 0.0, %v2588
    %2590 = vdwg.mxu0
    %2591 = vmatprep.subr.mxu0 0.0
    %2592 = vmatpush1.msra.mxu0 %v314
    %2593 = vmatprep.subr.mxu0 0.0
    %2594 = vmatpush1.msra.mxu0 %v317
    %2595 = vmatprep.subr.mxu0 0.0
    %2596 = vmatpush1.msra.mxu0 %v320
    %2597 = vmatprep.subr.mxu0 0.0
    %2598 = vmatpush1.msra.mxu0 %v323
    %2599 = vmatprep.subr.mxu0 0.0
    %2600 = vmatpush1.msra.mxu0 %v326
    %2601 = vmatprep.subr.mxu0 0.0
    %2602 = vmatpush1.msra.mxu0 %v329
    %2603 = vmatprep.subr.mxu0 0.0
    %2604 = vmatpush1.msra.mxu0 %v332
    %2605 = vmatprep.subr.mxu0 0.0
    %2606 = vmatpush1.msra.mxu0 %v335
    %2607 = vmatprep.subr.mxu0 0.0
    %2608 = vmatpush1.msra.mxu0 %v338
    %2609 = vmatprep.subr.mxu0 0.0
    %2610 = vmatpush1.msra.mxu0 %v341
    %2611 = vmatprep.subr.mxu0 0.0
    %2612 = vmatpush1.msra.mxu0 %v344
    %2613 = vmatprep.subr.mxu0 0.0
    %2614 = vmatpush1.msra.mxu0 %v347
    %2615 = vmatprep.subr.mxu0 0.0
    %2616 = vmatpush1.msra.mxu0 %v350
    %2617 = vmatprep.subr.mxu0 0.0
    %2618 = vmatpush1.msra.mxu0 %v353
    %2619 = vmatprep.subr.mxu0 0.0
    %2620 = vmatpush1.msra.mxu0 %v356
    %2621 = vmatprep.subr.mxu0 0.0
    %2622 = vmatpush1.msra.mxu0 %v359
    %2623 = vmatprep.subr.mxu0 0.0
    %2624 = vmatpush1.msra.mxu0 0.0
    %2625 = vmatprep.subr.mxu0 0.0
    %2626 = vmatpush1.msra.mxu0 0.0
    %2627 = vmatprep.subr.mxu0 0.0
    %2628 = vmatpush1.msra.mxu0 0.0
    %2629 = vmatprep.subr.mxu0 0.0
    %2630 = vmatpush1.msra.mxu0 0.0
    %2631 = vmatprep.subr.mxu0 0.0
    %2632 = vmatpush1.msra.mxu0 0.0
    %2633 = vmatprep.subr.mxu0 0.0
    %2634 = vmatpush1.msra.mxu0 0.0
    %2635 = vmatprep.subr.mxu0 0.0
    %2636 = vmatpush1.msra.mxu0 0.0
    %2637 = vmatprep.subr.mxu0 0.0
    %2638 = vmatpush1.msra.mxu0 0.0
    %2639 = vmatprep.subr.mxu0 0.0
    %2640 = vmatpush1.msra.mxu0 0.0
    %2641 = vmatprep.subr.mxu0 0.0
    %2642 = vmatpush1.msra.mxu0 0.0
    %2643 = vmatprep.subr.mxu0 0.0
    %2644 = vmatpush1.msra.mxu0 0.0
    %2645 = vmatprep.subr.mxu0 0.0
    %2646 = vmatpush1.msra.mxu0 0.0
    %2647 = vmatprep.subr.mxu0 0.0
    %2648 = vmatpush1.msra.mxu0 0.0
    %2649 = vmatprep.subr.mxu0 0.0
    %2650 = vmatpush1.msra.mxu0 0.0
    %2651 = vmatprep.subr.mxu0 0.0
    %2652 = vmatpush1.msra.mxu0 0.0
    %2653 = vmatprep.subr.mxu0 0.0
    %2654 = vmatpush1.msra.mxu0 0.0
    %2655 = vmatprep.mubr.f32.mxu0 0.0
    %2656 = vmatmul.mubr.f32.gmra.mrb[0].mxu0 %v2175
    %v2657 = vpop.f32.mrb[0].mxu0
    %v2658 = vadd.f32 0.0, %v2657
    %v2659 = vpop.f32.mrb[0].mxu0
    %2660 = vdwg.mxu0
    %v2661 = vadd.f32 %v2244, %v2587
    %v2662 = vxor.u32 %v2661, 2147483648
    %v2663 = vmul.f32 %v2662, 1.442695
    %v2664 = vpow.pop %v2663
    %v2665 = vadd.f32 %v2664, 1.0
    %v2666 = vrcp.pop %v2665
    %v2667 = vmul.f32 1.0, %v2666
    %v2668 = vadd.f32 %v2246, %v2589
    %v2669 = vxor.u32 %v2668, 2147483648
    %v2670 = vmul.f32 %v2669, 1.442695
    %v2671 = vpow.pop %v2670
    %v2672 = vadd.f32 %v2671, 1.0
    %v2673 = vrcp.pop %v2672
    %v2674 = vmul.f32 1.0, %v2673
    %v2675 = vadd.f32 %v2658, %v372
    %v2676 = vmul.f32 %v2667, %v2675
    %v2677 = vadd.f32 %v2315, %v2676
    %v2678 = vtanh.pop %v2677
    %v2679 = vsub.f32 1.0, %v2674
    %v2680 = vmul.f32 %v2679, %v2678
    %v2681 = vmul.f32 %v2674, %v2175
    %v2682 = vadd.f32 %v2680, %v2681
    %2683 = vst [vmem:[%s15 + $0x2] sm:$0x3] %v2682
    %2684 = vmatprep.subr.mxu0 %v265
    %2685 = vmatpush1.msra.mxu0 %v264
    %2686 = vmatprep.subr.mxu0 %v268
    %2687 = vmatpush1.msra.mxu0 %v267
    %2688 = vmatprep.subr.mxu0 %v271
    %2689 = vmatpush1.msra.mxu0 %v270
    %2690 = vmatprep.subr.mxu0 %v274
    %2691 = vmatpush1.msra.mxu0 %v273
    %2692 = vmatprep.subr.mxu0 %v277
    %2693 = vmatpush1.msra.mxu0 %v276
    %2694 = vmatprep.subr.mxu0 %v280
    %2695 = vmatpush1.msra.mxu0 %v279
    %2696 = vmatprep.subr.mxu0 %v283
    %2697 = vmatpush1.msra.mxu0 %v282
    %2698 = vmatprep.subr.mxu0 %v286
    %2699 = vmatpush1.msra.mxu0 %v285
    %2700 = vmatprep.subr.mxu0 %v289
    %2701 = vmatpush1.msra.mxu0 %v288
    %2702 = vmatprep.subr.mxu0 %v292
    %2703 = vmatpush1.msra.mxu0 %v291
    %2704 = vmatprep.subr.mxu0 %v295
    %2705 = vmatpush1.msra.mxu0 %v294
    %2706 = vmatprep.subr.mxu0 %v298
    %2707 = vmatpush1.msra.mxu0 %v297
    %2708 = vmatprep.subr.mxu0 %v301
    %2709 = vmatpush1.msra.mxu0 %v300
    %2710 = vmatprep.subr.mxu0 %v304
    %2711 = vmatpush1.msra.mxu0 %v303
    %2712 = vmatprep.subr.mxu0 %v307
    %2713 = vmatpush1.msra.mxu0 %v306
    %2714 = vmatprep.subr.mxu0 %v310
    %2715 = vmatpush1.msra.mxu0 %v309
    %2716 = vmatprep.subr.mxu0 0.0
    %2717 = vmatpush1.msra.mxu0 0.0
    %2718 = vmatprep.subr.mxu0 0.0
    %2719 = vmatpush1.msra.mxu0 0.0
    %2720 = vmatprep.subr.mxu0 0.0
    %2721 = vmatpush1.msra.mxu0 0.0
    %2722 = vmatprep.subr.mxu0 0.0
    %2723 = vmatpush1.msra.mxu0 0.0
    %2724 = vmatprep.subr.mxu0 0.0
    %2725 = vmatpush1.msra.mxu0 0.0
    %2726 = vmatprep.subr.mxu0 0.0
    %2727 = vmatpush1.msra.mxu0 0.0
    %2728 = vmatprep.subr.mxu0 0.0
    %2729 = vmatpush1.msra.mxu0 0.0
    %2730 = vmatprep.subr.mxu0 0.0
    %2731 = vmatpush1.msra.mxu0 0.0
    %2732 = vmatprep.subr.mxu0 0.0
    %2733 = vmatpush1.msra.mxu0 0.0
    %2734 = vmatprep.subr.mxu0 0.0
    %2735 = vmatpush1.msra.mxu0 0.0
    %2736 = vmatprep.subr.mxu0 0.0
    %2737 = vmatpush1.msra.mxu0 0.0
    %2738 = vmatprep.subr.mxu0 0.0
    %2739 = vmatpush1.msra.mxu0 0.0
    %2740 = vmatprep.subr.mxu0 0.0
    %2741 = vmatpush1.msra.mxu0 0.0
    %2742 = vmatprep.subr.mxu0 0.0
    %2743 = vmatpush1.msra.mxu0 0.0
    %2744 = vmatprep.subr.mxu0 0.0
    %2745 = vmatpush1.msra.mxu0 0.0
    %2746 = vmatprep.subr.mxu0 0.0
    %2747 = vmatpush1.msra.mxu0 0.0
    %2748 = vmatprep.mubr.f32.mxu0 0.0
    %2749 = vmatmul.mubr.f32.gmra.mrb[0].mxu0 %v2519
    %v2750 = vpop.f32.mrb[0].mxu0
    %v2751 = vadd.f32 %v379, %v2750
    %v2752 = vpop.f32.mrb[0].mxu0
    %v2753 = vadd.f32 %v383, %v2752
    %2754 = vdwg.mxu0
    %2755 = vmatprep.subr.mxu0 0.0
    %2756 = vmatpush1.msra.mxu0 %v266
    %2757 = vmatprep.subr.mxu0 0.0
    %2758 = vmatpush1.msra.mxu0 %v269
    %2759 = vmatprep.subr.mxu0 0.0
    %2760 = vmatpush1.msra.mxu0 %v272
    %2761 = vmatprep.subr.mxu0 0.0
    %2762 = vmatpush1.msra.mxu0 %v275
    %2763 = vmatprep.subr.mxu0 0.0
    %2764 = vmatpush1.msra.mxu0 %v278
    %2765 = vmatprep.subr.mxu0 0.0
    %2766 = vmatpush1.msra.mxu0 %v281
    %2767 = vmatprep.subr.mxu0 0.0
    %2768 = vmatpush1.msra.mxu0 %v284
    %2769 = vmatprep.subr.mxu0 0.0
    %2770 = vmatpush1.msra.mxu0 %v287
    %2771 = vmatprep.subr.mxu0 0.0
    %2772 = vmatpush1.msra.mxu0 %v290
    %2773 = vmatprep.subr.mxu0 0.0
    %2774 = vmatpush1.msra.mxu0 %v293
    %2775 = vmatprep.subr.mxu0 0.0
    %2776 = vmatpush1.msra.mxu0 %v296
    %2777 = vmatprep.subr.mxu0 0.0
    %2778 = vmatpush1.msra.mxu0 %v299
    %2779 = vmatprep.subr.mxu0 0.0
    %2780 = vmatpush1.msra.mxu0 %v302
    %2781 = vmatprep.subr.mxu0 0.0
    %2782 = vmatpush1.msra.mxu0 %v305
    %2783 = vmatprep.subr.mxu0 0.0
    %2784 = vmatpush1.msra.mxu0 %v308
    %2785 = vmatprep.subr.mxu0 0.0
    %2786 = vmatpush1.msra.mxu0 %v311
    %2787 = vmatprep.subr.mxu0 0.0
    %2788 = vmatpush1.msra.mxu0 0.0
    %2789 = vmatprep.subr.mxu0 0.0
    %2790 = vmatpush1.msra.mxu0 0.0
    %2791 = vmatprep.subr.mxu0 0.0
    %2792 = vmatpush1.msra.mxu0 0.0
    %2793 = vmatprep.subr.mxu0 0.0
    %2794 = vmatpush1.msra.mxu0 0.0
    %2795 = vmatprep.subr.mxu0 0.0
    %2796 = vmatpush1.msra.mxu0 0.0
    %2797 = vmatprep.subr.mxu0 0.0
    %2798 = vmatpush1.msra.mxu0 0.0
    %2799 = vmatprep.subr.mxu0 0.0
    %2800 = vmatpush1.msra.mxu0 0.0
    %2801 = vmatprep.subr.mxu0 0.0
    %2802 = vmatpush1.msra.mxu0 0.0
    %2803 = vmatprep.subr.mxu0 0.0
    %2804 = vmatpush1.msra.mxu0 0.0
    %2805 = vmatprep.subr.mxu0 0.0
    %2806 = vmatpush1.msra.mxu0 0.0
    %2807 = vmatprep.subr.mxu0 0.0
    %2808 = vmatpush1.msra.mxu0 0.0
    %2809 = vmatprep.subr.mxu0 0.0
    %2810 = vmatpush1.msra.mxu0 0.0
    %2811 = vmatprep.subr.mxu0 0.0
    %2812 = vmatpush1.msra.mxu0 0.0
    %2813 = vmatprep.subr.mxu0 0.0
    %2814 = vmatpush1.msra.mxu0 0.0
    %2815 = vmatprep.subr.mxu0 0.0
    %2816 = vmatpush1.msra.mxu0 0.0
    %2817 = vmatprep.subr.mxu0 0.0
    %2818 = vmatpush1.msra.mxu0 0.0
    %2819 = vmatprep.mubr.f32.mxu0 0.0
    %2820 = vmatmul.mubr.f32.gmra.mrb[0].mxu0 %v2519
    %v2821 = vpop.f32.mrb[0].mxu0
    %v2822 = vadd.f32 %v387, %v2821
    %v2823 = vpop.f32.mrb[0].mxu0
    %2824 = vdwg.mxu0
    %s2825 = scalar_lea.vmem [#allocation2], 3
    %v2826 = vld [vmem:[%s2825] ss:$8 sm:$0x7]
    %s2827 = scalar_lea.vmem %s1462, 3 [#allocation2]
    %v2828 = vld [vmem:[%s2827] ss:$8 sm:$0x7]
    %v2830 = vlaneseq
    %v2831 = vshrl.u32 %v2830, 7
    %v2832 = vsub.s32 0, %v2831
    %v2833 = vrot.slane %v2826, %v2832
    %v2834 = vlaneseq
    %v2835 = vshrl.u32 %v2834, 7
    %v2836 = vsub.s32 1, %v2835
    %v2837 = vrot.slane %v2826, %v2836
    %v2838 = vlaneseq
    %v2839 = vshrl.u32 %v2838, 7
    %v2840 = vsub.s32 2, %v2839
    %v2841 = vrot.slane %v2826, %v2840
    %v2846 = vlaneseq
    %v2847 = vshrl.u32 %v2846, 7
    %v2848 = vsub.s32 0, %v2847
    %v2849 = vrot.slane %v2828, %v2848
    %v2850 = vlaneseq
    %v2851 = vshrl.u32 %v2850, 7
    %v2852 = vsub.s32 1, %v2851
    %v2853 = vrot.slane %v2828, %v2852
    %v2854 = vlaneseq
    %v2855 = vshrl.u32 %v2854, 7
    %v2856 = vsub.s32 2, %v2855
    %v2857 = vrot.slane %v2828, %v2856
    %v2861 = vsel %vm1503, %v2833, %v2849
    %v2862 = vsel %vm1503, %v2837, %v2853
    %v2863 = vsel %vm1503, %v2841, %v2857
    %2864 = vmatprep.subr.mxu0 %v217
    %2865 = vmatpush1.msra.mxu0 %v216
    %2866 = vmatprep.subr.mxu0 %v220
    %2867 = vmatpush1.msra.mxu0 %v219
    %2868 = vmatprep.subr.mxu0 %v223
    %2869 = vmatpush1.msra.mxu0 %v222
    %2870 = vmatprep.subr.mxu0 %v226
    %2871 = vmatpush1.msra.mxu0 %v225
    %2872 = vmatprep.subr.mxu0 %v229
    %2873 = vmatpush1.msra.mxu0 %v228
    %2874 = vmatprep.subr.mxu0 %v232
    %2875 = vmatpush1.msra.mxu0 %v231
    %2876 = vmatprep.subr.mxu0 %v235
    %2877 = vmatpush1.msra.mxu0 %v234
    %2878 = vmatprep.subr.mxu0 %v238
    %2879 = vmatpush1.msra.mxu0 %v237
    %2880 = vmatprep.subr.mxu0 %v241
    %2881 = vmatpush1.msra.mxu0 %v240
    %2882 = vmatprep.subr.mxu0 %v244
    %2883 = vmatpush1.msra.mxu0 %v243
    %2884 = vmatprep.subr.mxu0 %v247
    %2885 = vmatpush1.msra.mxu0 %v246
    %2886 = vmatprep.subr.mxu0 %v250
    %2887 = vmatpush1.msra.mxu0 %v249
    %2888 = vmatprep.subr.mxu0 %v253
    %2889 = vmatpush1.msra.mxu0 %v252
    %2890 = vmatprep.subr.mxu0 %v256
    %2891 = vmatpush1.msra.mxu0 %v255
    %2892 = vmatprep.subr.mxu0 %v259
    %2893 = vmatpush1.msra.mxu0 %v258
    %2894 = vmatprep.subr.mxu0 %v262
    %2895 = vmatpush1.msra.mxu0 %v261
    %2896 = vmatprep.subr.mxu0 0.0
    %2897 = vmatpush1.msra.mxu0 0.0
    %2898 = vmatprep.subr.mxu0 0.0
    %2899 = vmatpush1.msra.mxu0 0.0
    %2900 = vmatprep.subr.mxu0 0.0
    %2901 = vmatpush1.msra.mxu0 0.0
    %2902 = vmatprep.subr.mxu0 0.0
    %2903 = vmatpush1.msra.mxu0 0.0
    %2904 = vmatprep.subr.mxu0 0.0
    %2905 = vmatpush1.msra.mxu0 0.0
    %2906 = vmatprep.subr.mxu0 0.0
    %2907 = vmatpush1.msra.mxu0 0.0
    %2908 = vmatprep.subr.mxu0 0.0
    %2909 = vmatpush1.msra.mxu0 0.0
    %2910 = vmatprep.subr.mxu0 0.0
    %2911 = vmatpush1.msra.mxu0 0.0
    %2912 = vmatprep.subr.mxu0 0.0
    %2913 = vmatpush1.msra.mxu0 0.0
    %2914 = vmatprep.subr.mxu0 0.0
    %2915 = vmatpush1.msra.mxu0 0.0
    %2916 = vmatprep.subr.mxu0 0.0
    %2917 = vmatpush1.msra.mxu0 0.0
    %2918 = vmatprep.subr.mxu0 0.0
    %2919 = vmatpush1.msra.mxu0 0.0
    %2920 = vmatprep.subr.mxu0 0.0
    %2921 = vmatpush1.msra.mxu0 0.0
    %2922 = vmatprep.subr.mxu0 0.0
    %2923 = vmatpush1.msra.mxu0 0.0
    %2924 = vmatprep.subr.mxu0 0.0
    %2925 = vmatpush1.msra.mxu0 0.0
    %2926 = vmatprep.subr.mxu0 0.0
    %2927 = vmatpush1.msra.mxu0 0.0
    %2928 = vmatprep.mubr.f32.mxu0 0.0
    %2929 = vmatmul.mubr.f32.gmra.mrb[0].mxu0 %v2519
    %v2930 = vpop.f32.mrb[0].mxu0
    %v2931 = vadd.f32 0.0, %v2930
    %v2932 = vpop.f32.mrb[0].mxu0
    %v2933 = vadd.f32 0.0, %v2932
    %2934 = vdwg.mxu0
    %2935 = vmatprep.subr.mxu0 0.0
    %2936 = vmatpush1.msra.mxu0 %v218
    %2937 = vmatprep.subr.mxu0 0.0
    %2938 = vmatpush1.msra.mxu0 %v221
    %2939 = vmatprep.subr.mxu0 0.0
    %2940 = vmatpush1.msra.mxu0 %v224
    %2941 = vmatprep.subr.mxu0 0.0
    %2942 = vmatpush1.msra.mxu0 %v227
    %2943 = vmatprep.subr.mxu0 0.0
    %2944 = vmatpush1.msra.mxu0 %v230
    %2945 = vmatprep.subr.mxu0 0.0
    %2946 = vmatpush1.msra.mxu0 %v233
    %2947 = vmatprep.subr.mxu0 0.0
    %2948 = vmatpush1.msra.mxu0 %v236
    %2949 = vmatprep.subr.mxu0 0.0
    %2950 = vmatpush1.msra.mxu0 %v239
    %2951 = vmatprep.subr.mxu0 0.0
    %2952 = vmatpush1.msra.mxu0 %v242
    %2953 = vmatprep.subr.mxu0 0.0
    %2954 = vmatpush1.msra.mxu0 %v245
    %2955 = vmatprep.subr.mxu0 0.0
    %2956 = vmatpush1.msra.mxu0 %v248
    %2957 = vmatprep.subr.mxu0 0.0
    %2958 = vmatpush1.msra.mxu0 %v251
    %2959 = vmatprep.subr.mxu0 0.0
    %2960 = vmatpush1.msra.mxu0 %v254
    %2961 = vmatprep.subr.mxu0 0.0
    %2962 = vmatpush1.msra.mxu0 %v257
    %2963 = vmatprep.subr.mxu0 0.0
    %2964 = vmatpush1.msra.mxu0 %v260
    %2965 = vmatprep.subr.mxu0 0.0
    %2966 = vmatpush1.msra.mxu0 %v263
    %2967 = vmatprep.subr.mxu0 0.0
    %2968 = vmatpush1.msra.mxu0 0.0
    %2969 = vmatprep.subr.mxu0 0.0
    %2970 = vmatpush1.msra.mxu0 0.0
    %2971 = vmatprep.subr.mxu0 0.0
    %2972 = vmatpush1.msra.mxu0 0.0
    %2973 = vmatprep.subr.mxu0 0.0
    %2974 = vmatpush1.msra.mxu0 0.0
    %2975 = vmatprep.subr.mxu0 0.0
    %2976 = vmatpush1.msra.mxu0 0.0
    %2977 = vmatprep.subr.mxu0 0.0
    %2978 = vmatpush1.msra.mxu0 0.0
    %2979 = vmatprep.subr.mxu0 0.0
    %2980 = vmatpush1.msra.mxu0 0.0
    %2981 = vmatprep.subr.mxu0 0.0
    %2982 = vmatpush1.msra.mxu0 0.0
    %2983 = vmatprep.subr.mxu0 0.0
    %2984 = vmatpush1.msra.mxu0 0.0
    %2985 = vmatprep.subr.mxu0 0.0
    %2986 = vmatpush1.msra.mxu0 0.0
    %2987 = vmatprep.subr.mxu0 0.0
    %2988 = vmatpush1.msra.mxu0 0.0
    %2989 = vmatprep.subr.mxu0 0.0
    %2990 = vmatpush1.msra.mxu0 0.0
    %2991 = vmatprep.subr.mxu0 0.0
    %2992 = vmatpush1.msra.mxu0 0.0
    %2993 = vmatprep.subr.mxu0 0.0
    %2994 = vmatpush1.msra.mxu0 0.0
    %2995 = vmatprep.subr.mxu0 0.0
    %2996 = vmatpush1.msra.mxu0 0.0
    %2997 = vmatprep.subr.mxu0 0.0
    %2998 = vmatpush1.msra.mxu0 0.0
    %2999 = vmatprep.mubr.f32.mxu0 0.0
    %3000 = vmatmul.mubr.f32.gmra.mrb[0].mxu0 %v2519
    %v3001 = vpop.f32.mrb[0].mxu0
    %v3002 = vadd.f32 0.0, %v3001
    %v3003 = vpop.f32.mrb[0].mxu0
    %3004 = vdwg.mxu0
    %v3005 = vadd.f32 %v2861, %v2931
    %v3006 = vxor.u32 %v3005, 2147483648
    %v3007 = vmul.f32 %v3006, 1.442695
    %v3008 = vpow.pop %v3007
    %v3009 = vadd.f32 %v3008, 1.0
    %v3010 = vrcp.pop %v3009
    %v3011 = vmul.f32 1.0, %v3010
    %v3012 = vadd.f32 %v2862, %v2933
    %v3013 = vxor.u32 %v3012, 2147483648
    %v3014 = vmul.f32 %v3013, 1.442695
    %v3015 = vpow.pop %v3014
    %v3016 = vadd.f32 %v3015, 1.0
    %v3017 = vrcp.pop %v3016
    %v3018 = vmul.f32 1.0, %v3017
    %v3019 = vadd.f32 %v3002, %v365
    %v3020 = vmul.f32 %v3011, %v3019
    %v3021 = vadd.f32 %v2863, %v3020
    %v3022 = vtanh.pop %v3021
    %v3023 = vsub.f32 1.0, %v3018
    %v3024 = vmul.f32 %v3023, %v3022
    %v3025 = vmul.f32 %v3018, %v2519
    %v3026 = vadd.f32 %v3024, %v3025
    %3027 = vmatprep.subr.mxu0 %v313
    %3028 = vmatpush1.msra.mxu0 %v312
    %3029 = vmatprep.subr.mxu0 %v316
    %3030 = vmatpush1.msra.mxu0 %v315
    %3031 = vmatprep.subr.mxu0 %v319
    %3032 = vmatpush1.msra.mxu0 %v318
    %3033 = vmatprep.subr.mxu0 %v322
    %3034 = vmatpush1.msra.mxu0 %v321
    %3035 = vmatprep.subr.mxu0 %v325
    %3036 = vmatpush1.msra.mxu0 %v324
    %3037 = vmatprep.subr.mxu0 %v328
    %3038 = vmatpush1.msra.mxu0 %v327
    %3039 = vmatprep.subr.mxu0 %v331
    %3040 = vmatpush1.msra.mxu0 %v330
    %3041 = vmatprep.subr.mxu0 %v334
    %3042 = vmatpush1.msra.mxu0 %v333
    %3043 = vmatprep.subr.mxu0 %v337
    %3044 = vmatpush1.msra.mxu0 %v336
    %3045 = vmatprep.subr.mxu0 %v340
    %3046 = vmatpush1.msra.mxu0 %v339
    %3047 = vmatprep.subr.mxu0 %v343
    %3048 = vmatpush1.msra.mxu0 %v342
    %3049 = vmatprep.subr.mxu0 %v346
    %3050 = vmatpush1.msra.mxu0 %v345
    %3051 = vmatprep.subr.mxu0 %v349
    %3052 = vmatpush1.msra.mxu0 %v348
    %3053 = vmatprep.subr.mxu0 %v352
    %3054 = vmatpush1.msra.mxu0 %v351
    %3055 = vmatprep.subr.mxu0 %v355
    %3056 = vmatpush1.msra.mxu0 %v354
    %3057 = vmatprep.subr.mxu0 %v358
    %3058 = vmatpush1.msra.mxu0 %v357
    %3059 = vmatprep.subr.mxu0 0.0
    %3060 = vmatpush1.msra.mxu0 0.0
    %3061 = vmatprep.subr.mxu0 0.0
    %3062 = vmatpush1.msra.mxu0 0.0
    %3063 = vmatprep.subr.mxu0 0.0
    %3064 = vmatpush1.msra.mxu0 0.0
    %3065 = vmatprep.subr.mxu0 0.0
    %3066 = vmatpush1.msra.mxu0 0.0
    %3067 = vmatprep.subr.mxu0 0.0
    %3068 = vmatpush1.msra.mxu0 0.0
    %3069 = vmatprep.subr.mxu0 0.0
    %3070 = vmatpush1.msra.mxu0 0.0
    %3071 = vmatprep.subr.mxu0 0.0
    %3072 = vmatpush1.msra.mxu0 0.0
    %3073 = vmatprep.subr.mxu0 0.0
    %3074 = vmatpush1.msra.mxu0 0.0
    %3075 = vmatprep.subr.mxu0 0.0
    %3076 = vmatpush1.msra.mxu0 0.0
    %3077 = vmatprep.subr.mxu0 0.0
    %3078 = vmatpush1.msra.mxu0 0.0
    %3079 = vmatprep.subr.mxu0 0.0
    %3080 = vmatpush1.msra.mxu0 0.0
    %3081 = vmatprep.subr.mxu0 0.0
    %3082 = vmatpush1.msra.mxu0 0.0
    %3083 = vmatprep.subr.mxu0 0.0
    %3084 = vmatpush1.msra.mxu0 0.0
    %3085 = vmatprep.subr.mxu0 0.0
    %3086 = vmatpush1.msra.mxu0 0.0
    %3087 = vmatprep.subr.mxu0 0.0
    %3088 = vmatpush1.msra.mxu0 0.0
    %3089 = vmatprep.subr.mxu0 0.0
    %3090 = vmatpush1.msra.mxu0 0.0
    %3091 = vmatprep.mubr.f32.mxu0 0.0
    %3092 = vmatmul.mubr.f32.gmra.mrb[0].mxu0 %v2682
    %v3093 = vpop.f32.mrb[0].mxu0
    %v3094 = vadd.f32 0.0, %v3093
    %v3095 = vpop.f32.mrb[0].mxu0
    %v3096 = vadd.f32 0.0, %v3095
    %3097 = vdwg.mxu0
    %3098 = vmatprep.subr.mxu0 0.0
    %3099 = vmatpush1.msra.mxu0 %v314
    %3100 = vmatprep.subr.mxu0 0.0
    %3101 = vmatpush1.msra.mxu0 %v317
    %3102 = vmatprep.subr.mxu0 0.0
    %3103 = vmatpush1.msra.mxu0 %v320
    %3104 = vmatprep.subr.mxu0 0.0
    %3105 = vmatpush1.msra.mxu0 %v323
    %3106 = vmatprep.subr.mxu0 0.0
    %3107 = vmatpush1.msra.mxu0 %v326
    %3108 = vmatprep.subr.mxu0 0.0
    %3109 = vmatpush1.msra.mxu0 %v329
    %3110 = vmatprep.subr.mxu0 0.0
    %3111 = vmatpush1.msra.mxu0 %v332
    %3112 = vmatprep.subr.mxu0 0.0
    %3113 = vmatpush1.msra.mxu0 %v335
    %3114 = vmatprep.subr.mxu0 0.0
    %3115 = vmatpush1.msra.mxu0 %v338
    %3116 = vmatprep.subr.mxu0 0.0
    %3117 = vmatpush1.msra.mxu0 %v341
    %3118 = vmatprep.subr.mxu0 0.0
    %3119 = vmatpush1.msra.mxu0 %v344
    %3120 = vmatprep.subr.mxu0 0.0
    %3121 = vmatpush1.msra.mxu0 %v347
    %3122 = vmatprep.subr.mxu0 0.0
    %3123 = vmatpush1.msra.mxu0 %v350
    %3124 = vmatprep.subr.mxu0 0.0
    %3125 = vmatpush1.msra.mxu0 %v353
    %3126 = vmatprep.subr.mxu0 0.0
    %3127 = vmatpush1.msra.mxu0 %v356
    %3128 = vmatprep.subr.mxu0 0.0
    %3129 = vmatpush1.msra.mxu0 %v359
    %3130 = vmatprep.subr.mxu0 0.0
    %3131 = vmatpush1.msra.mxu0 0.0
    %3132 = vmatprep.subr.mxu0 0.0
    %3133 = vmatpush1.msra.mxu0 0.0
    %3134 = vmatprep.subr.mxu0 0.0
    %3135 = vmatpush1.msra.mxu0 0.0
    %3136 = vmatprep.subr.mxu0 0.0
    %3137 = vmatpush1.msra.mxu0 0.0
    %3138 = vmatprep.subr.mxu0 0.0
    %3139 = vmatpush1.msra.mxu0 0.0
    %3140 = vmatprep.subr.mxu0 0.0
    %3141 = vmatpush1.msra.mxu0 0.0
    %3142 = vmatprep.subr.mxu0 0.0
    %3143 = vmatpush1.msra.mxu0 0.0
    %3144 = vmatprep.subr.mxu0 0.0
    %3145 = vmatpush1.msra.mxu0 0.0
    %3146 = vmatprep.subr.mxu0 0.0
    %3147 = vmatpush1.msra.mxu0 0.0
    %3148 = vmatprep.subr.mxu0 0.0
    %3149 = vmatpush1.msra.mxu0 0.0
    %3150 = vmatprep.subr.mxu0 0.0
    %3151 = vmatpush1.msra.mxu0 0.0
    %3152 = vmatprep.subr.mxu0 0.0
    %3153 = vmatpush1.msra.mxu0 0.0
    %3154 = vmatprep.subr.mxu0 0.0
    %3155 = vmatpush1.msra.mxu0 0.0
    %3156 = vmatprep.subr.mxu0 0.0
    %3157 = vmatpush1.msra.mxu0 0.0
    %3158 = vmatprep.subr.mxu0 0.0
    %3159 = vmatpush1.msra.mxu0 0.0
    %3160 = vmatprep.subr.mxu0 0.0
    %3161 = vmatpush1.msra.mxu0 0.0
    %3162 = vmatprep.mubr.f32.mxu0 0.0
    %3163 = vmatmul.mubr.f32.gmra.mrb[0].mxu0 %v2682
    %v3164 = vpop.f32.mrb[0].mxu0
    %v3165 = vadd.f32 0.0, %v3164
    %v3166 = vpop.f32.mrb[0].mxu0
    %3167 = vdwg.mxu0
    %v3168 = vadd.f32 %v2751, %v3094
    %v3169 = vxor.u32 %v3168, 2147483648
    %v3170 = vmul.f32 %v3169, 1.442695
    %v3171 = vpow.pop %v3170
    %v3172 = vadd.f32 %v3171, 1.0
    %v3173 = vrcp.pop %v3172
    %v3174 = vmul.f32 1.0, %v3173
    %v3175 = vadd.f32 %v2753, %v3096
    %v3176 = vxor.u32 %v3175, 2147483648
    %v3177 = vmul.f32 %v3176, 1.442695
    %v3178 = vpow.pop %v3177
    %v3179 = vadd.f32 %v3178, 1.0
    %v3180 = vrcp.pop %v3179
    %v3181 = vmul.f32 1.0, %v3180
    %v3182 = vadd.f32 %v3165, %v372
    %v3183 = vmul.f32 %v3174, %v3182
    %v3184 = vadd.f32 %v2822, %v3183
    %v3185 = vtanh.pop %v3184
    %v3186 = vsub.f32 1.0, %v3181
    %v3187 = vmul.f32 %v3186, %v3185
    %v3188 = vmul.f32 %v3181, %v2682
    %v3189 = vadd.f32 %v3187, %v3188
    %3190 = vst [vmem:[%s15 + $0x4] sm:$0x3] %v3189
    %3191 = vmatprep.subr.mxu0 %v265
    %3192 = vmatpush1.msra.mxu0 %v264
    %3193 = vmatprep.subr.mxu0 %v268
    %3194 = vmatpush1.msra.mxu0 %v267
    %3195 = vmatprep.subr.mxu0 %v271
    %3196 = vmatpush1.msra.mxu0 %v270
    %3197 = vmatprep.subr.mxu0 %v274
    %3198 = vmatpush1.msra.mxu0 %v273
    %3199 = vmatprep.subr.mxu0 %v277
    %3200 = vmatpush1.msra.mxu0 %v276
    %3201 = vmatprep.subr.mxu0 %v280
    %3202 = vmatpush1.msra.mxu0 %v279
    %3203 = vmatprep.subr.mxu0 %v283
    %3204 = vmatpush1.msra.mxu0 %v282
    %3205 = vmatprep.subr.mxu0 %v286
    %3206 = vmatpush1.msra.mxu0 %v285
    %3207 = vmatprep.subr.mxu0 %v289
    %3208 = vmatpush1.msra.mxu0 %v288
    %3209 = vmatprep.subr.mxu0 %v292
    %3210 = vmatpush1.msra.mxu0 %v291
    %3211 = vmatprep.subr.mxu0 %v295
    %3212 = vmatpush1.msra.mxu0 %v294
    %3213 = vmatprep.subr.mxu0 %v298
    %3214 = vmatpush1.msra.mxu0 %v297
    %3215 = vmatprep.subr.mxu0 %v301
    %3216 = vmatpush1.msra.mxu0 %v300
    %3217 = vmatprep.subr.mxu0 %v304
    %3218 = vmatpush1.msra.mxu0 %v303
    %3219 = vmatprep.subr.mxu0 %v307
    %3220 = vmatpush1.msra.mxu0 %v306
    %3221 = vmatprep.subr.mxu0 %v310
    %3222 = vmatpush1.msra.mxu0 %v309
    %3223 = vmatprep.subr.mxu0 0.0
    %3224 = vmatpush1.msra.mxu0 0.0
    %3225 = vmatprep.subr.mxu0 0.0
    %3226 = vmatpush1.msra.mxu0 0.0
    %3227 = vmatprep.subr.mxu0 0.0
    %3228 = vmatpush1.msra.mxu0 0.0
    %3229 = vmatprep.subr.mxu0 0.0
    %3230 = vmatpush1.msra.mxu0 0.0
    %3231 = vmatprep.subr.mxu0 0.0
    %3232 = vmatpush1.msra.mxu0 0.0
    %3233 = vmatprep.subr.mxu0 0.0
    %3234 = vmatpush1.msra.mxu0 0.0
    %3235 = vmatprep.subr.mxu0 0.0
    %3236 = vmatpush1.msra.mxu0 0.0
    %3237 = vmatprep.subr.mxu0 0.0
    %3238 = vmatpush1.msra.mxu0 0.0
    %3239 = vmatprep.subr.mxu0 0.0
    %3240 = vmatpush1.msra.mxu0 0.0
    %3241 = vmatprep.subr.mxu0 0.0
    %3242 = vmatpush1.msra.mxu0 0.0
    %3243 = vmatprep.subr.mxu0 0.0
    %3244 = vmatpush1.msra.mxu0 0.0
    %3245 = vmatprep.subr.mxu0 0.0
    %3246 = vmatpush1.msra.mxu0 0.0
    %3247 = vmatprep.subr.mxu0 0.0
    %3248 = vmatpush1.msra.mxu0 0.0
    %3249 = vmatprep.subr.mxu0 0.0
    %3250 = vmatpush1.msra.mxu0 0.0
    %3251 = vmatprep.subr.mxu0 0.0
    %3252 = vmatpush1.msra.mxu0 0.0
    %3253 = vmatprep.subr.mxu0 0.0
    %3254 = vmatpush1.msra.mxu0 0.0
    %3255 = vmatprep.mubr.f32.mxu0 0.0
    %3256 = vmatmul.mubr.f32.gmra.mrb[0].mxu0 %v3026
    %v3257 = vpop.f32.mrb[0].mxu0
    %v3258 = vadd.f32 %v379, %v3257
    %v3259 = vpop.f32.mrb[0].mxu0
    %v3260 = vadd.f32 %v383, %v3259
    %3261 = vdwg.mxu0
    %3262 = vmatprep.subr.mxu0 0.0
    %3263 = vmatpush1.msra.mxu0 %v266
    %3264 = vmatprep.subr.mxu0 0.0
    %3265 = vmatpush1.msra.mxu0 %v269
    %3266 = vmatprep.subr.mxu0 0.0
    %3267 = vmatpush1.msra.mxu0 %v272
    %3268 = vmatprep.subr.mxu0 0.0
    %3269 = vmatpush1.msra.mxu0 %v275
    %3270 = vmatprep.subr.mxu0 0.0
    %3271 = vmatpush1.msra.mxu0 %v278
    %3272 = vmatprep.subr.mxu0 0.0
    %3273 = vmatpush1.msra.mxu0 %v281
    %3274 = vmatprep.subr.mxu0 0.0
    %3275 = vmatpush1.msra.mxu0 %v284
    %3276 = vmatprep.subr.mxu0 0.0
    %3277 = vmatpush1.msra.mxu0 %v287
    %3278 = vmatprep.subr.mxu0 0.0
    %3279 = vmatpush1.msra.mxu0 %v290
    %3280 = vmatprep.subr.mxu0 0.0
    %3281 = vmatpush1.msra.mxu0 %v293
    %3282 = vmatprep.subr.mxu0 0.0
    %3283 = vmatpush1.msra.mxu0 %v296
    %3284 = vmatprep.subr.mxu0 0.0
    %3285 = vmatpush1.msra.mxu0 %v299
    %3286 = vmatprep.subr.mxu0 0.0
    %3287 = vmatpush1.msra.mxu0 %v302
    %3288 = vmatprep.subr.mxu0 0.0
    %3289 = vmatpush1.msra.mxu0 %v305
    %3290 = vmatprep.subr.mxu0 0.0
    %3291 = vmatpush1.msra.mxu0 %v308
    %3292 = vmatprep.subr.mxu0 0.0
    %3293 = vmatpush1.msra.mxu0 %v311
    %3294 = vmatprep.subr.mxu0 0.0
    %3295 = vmatpush1.msra.mxu0 0.0
    %3296 = vmatprep.subr.mxu0 0.0
    %3297 = vmatpush1.msra.mxu0 0.0
    %3298 = vmatprep.subr.mxu0 0.0
    %3299 = vmatpush1.msra.mxu0 0.0
    %3300 = vmatprep.subr.mxu0 0.0
    %3301 = vmatpush1.msra.mxu0 0.0
    %3302 = vmatprep.subr.mxu0 0.0
    %3303 = vmatpush1.msra.mxu0 0.0
    %3304 = vmatprep.subr.mxu0 0.0
    %3305 = vmatpush1.msra.mxu0 0.0
    %3306 = vmatprep.subr.mxu0 0.0
    %3307 = vmatpush1.msra.mxu0 0.0
    %3308 = vmatprep.subr.mxu0 0.0
    %3309 = vmatpush1.msra.mxu0 0.0
    %3310 = vmatprep.subr.mxu0 0.0
    %3311 = vmatpush1.msra.mxu0 0.0
    %3312 = vmatprep.subr.mxu0 0.0
    %3313 = vmatpush1.msra.mxu0 0.0
    %3314 = vmatprep.subr.mxu0 0.0
    %3315 = vmatpush1.msra.mxu0 0.0
    %3316 = vmatprep.subr.mxu0 0.0
    %3317 = vmatpush1.msra.mxu0 0.0
    %3318 = vmatprep.subr.mxu0 0.0
    %3319 = vmatpush1.msra.mxu0 0.0
    %3320 = vmatprep.subr.mxu0 0.0
    %3321 = vmatpush1.msra.mxu0 0.0
    %3322 = vmatprep.subr.mxu0 0.0
    %3323 = vmatpush1.msra.mxu0 0.0
    %3324 = vmatprep.subr.mxu0 0.0
    %3325 = vmatpush1.msra.mxu0 0.0
    %3326 = vmatprep.mubr.f32.mxu0 0.0
    %3327 = vmatmul.mubr.f32.gmra.mrb[0].mxu0 %v3026
    %v3328 = vpop.f32.mrb[0].mxu0
    %v3329 = vadd.f32 %v387, %v3328
    %v3330 = vpop.f32.mrb[0].mxu0
    %3331 = vdwg.mxu0
    %s3332 = scalar_lea.vmem [#allocation2], 4
    %v3333 = vld [vmem:[%s3332] ss:$8 sm:$0x7]
    %s3334 = scalar_lea.vmem %s1462, 4 [#allocation2]
    %v3335 = vld [vmem:[%s3334] ss:$8 sm:$0x7]
    %v3337 = vlaneseq
    %v3338 = vshrl.u32 %v3337, 7
    %v3339 = vsub.s32 0, %v3338
    %v3340 = vrot.slane %v3333, %v3339
    %v3341 = vlaneseq
    %v3342 = vshrl.u32 %v3341, 7
    %v3343 = vsub.s32 1, %v3342
    %v3344 = vrot.slane %v3333, %v3343
    %v3345 = vlaneseq
    %v3346 = vshrl.u32 %v3345, 7
    %v3347 = vsub.s32 2, %v3346
    %v3348 = vrot.slane %v3333, %v3347
    %v3353 = vlaneseq
    %v3354 = vshrl.u32 %v3353, 7
    %v3355 = vsub.s32 0, %v3354
    %v3356 = vrot.slane %v3335, %v3355
    %v3357 = vlaneseq
    %v3358 = vshrl.u32 %v3357, 7
    %v3359 = vsub.s32 1, %v3358
    %v3360 = vrot.slane %v3335, %v3359
    %v3361 = vlaneseq
    %v3362 = vshrl.u32 %v3361, 7
    %v3363 = vsub.s32 2, %v3362
    %v3364 = vrot.slane %v3335, %v3363
    %v3368 = vsel %vm1503, %v3340, %v3356
    %v3369 = vsel %vm1503, %v3344, %v3360
    %v3370 = vsel %vm1503, %v3348, %v3364
    %3371 = vmatprep.subr.mxu0 %v217
    %3372 = vmatpush1.msra.mxu0 %v216
    %3373 = vmatprep.subr.mxu0 %v220
    %3374 = vmatpush1.msra.mxu0 %v219
    %3375 = vmatprep.subr.mxu0 %v223
    %3376 = vmatpush1.msra.mxu0 %v222
    %3377 = vmatprep.subr.mxu0 %v226
    %3378 = vmatpush1.msra.mxu0 %v225
    %3379 = vmatprep.subr.mxu0 %v229
    %3380 = vmatpush1.msra.mxu0 %v228
    %3381 = vmatprep.subr.mxu0 %v232
    %3382 = vmatpush1.msra.mxu0 %v231
    %3383 = vmatprep.subr.mxu0 %v235
    %3384 = vmatpush1.msra.mxu0 %v234
    %3385 = vmatprep.subr.mxu0 %v238
    %3386 = vmatpush1.msra.mxu0 %v237
    %3387 = vmatprep.subr.mxu0 %v241
    %3388 = vmatpush1.msra.mxu0 %v240
    %3389 = vmatprep.subr.mxu0 %v244
    %3390 = vmatpush1.msra.mxu0 %v243
    %3391 = vmatprep.subr.mxu0 %v247
    %3392 = vmatpush1.msra.mxu0 %v246
    %3393 = vmatprep.subr.mxu0 %v250
    %3394 = vmatpush1.msra.mxu0 %v249
    %3395 = vmatprep.subr.mxu0 %v253
    %3396 = vmatpush1.msra.mxu0 %v252
    %3397 = vmatprep.subr.mxu0 %v256
    %3398 = vmatpush1.msra.mxu0 %v255
    %3399 = vmatprep.subr.mxu0 %v259
    %3400 = vmatpush1.msra.mxu0 %v258
    %3401 = vmatprep.subr.mxu0 %v262
    %3402 = vmatpush1.msra.mxu0 %v261
    %3403 = vmatprep.subr.mxu0 0.0
    %3404 = vmatpush1.msra.mxu0 0.0
    %3405 = vmatprep.subr.mxu0 0.0
    %3406 = vmatpush1.msra.mxu0 0.0
    %3407 = vmatprep.subr.mxu0 0.0
    %3408 = vmatpush1.msra.mxu0 0.0
    %3409 = vmatprep.subr.mxu0 0.0
    %3410 = vmatpush1.msra.mxu0 0.0
    %3411 = vmatprep.subr.mxu0 0.0
    %3412 = vmatpush1.msra.mxu0 0.0
    %3413 = vmatprep.subr.mxu0 0.0
    %3414 = vmatpush1.msra.mxu0 0.0
    %3415 = vmatprep.subr.mxu0 0.0
    %3416 = vmatpush1.msra.mxu0 0.0
    %3417 = vmatprep.subr.mxu0 0.0
    %3418 = vmatpush1.msra.mxu0 0.0
    %3419 = vmatprep.subr.mxu0 0.0
    %3420 = vmatpush1.msra.mxu0 0.0
    %3421 = vmatprep.subr.mxu0 0.0
    %3422 = vmatpush1.msra.mxu0 0.0
    %3423 = vmatprep.subr.mxu0 0.0
    %3424 = vmatpush1.msra.mxu0 0.0
    %3425 = vmatprep.subr.mxu0 0.0
    %3426 = vmatpush1.msra.mxu0 0.0
    %3427 = vmatprep.subr.mxu0 0.0
    %3428 = vmatpush1.msra.mxu0 0.0
    %3429 = vmatprep.subr.mxu0 0.0
    %3430 = vmatpush1.msra.mxu0 0.0
    %3431 = vmatprep.subr.mxu0 0.0
    %3432 = vmatpush1.msra.mxu0 0.0
    %3433 = vmatprep.subr.mxu0 0.0
    %3434 = vmatpush1.msra.mxu0 0.0
    %3435 = vmatprep.mubr.f32.mxu0 0.0
    %3436 = vmatmul.mubr.f32.gmra.mrb[0].mxu0 %v3026
    %v3437 = vpop.f32.mrb[0].mxu0
    %v3438 = vadd.f32 0.0, %v3437
    %v3439 = vpop.f32.mrb[0].mxu0
    %v3440 = vadd.f32 0.0, %v3439
    %3441 = vdwg.mxu0
    %3442 = vmatprep.subr.mxu0 0.0
    %3443 = vmatpush1.msra.mxu0 %v218
    %3444 = vmatprep.subr.mxu0 0.0
    %3445 = vmatpush1.msra.mxu0 %v221
    %3446 = vmatprep.subr.mxu0 0.0
    %3447 = vmatpush1.msra.mxu0 %v224
    %3448 = vmatprep.subr.mxu0 0.0
    %3449 = vmatpush1.msra.mxu0 %v227
    %3450 = vmatprep.subr.mxu0 0.0
    %3451 = vmatpush1.msra.mxu0 %v230
    %3452 = vmatprep.subr.mxu0 0.0
    %3453 = vmatpush1.msra.mxu0 %v233
    %3454 = vmatprep.subr.mxu0 0.0
    %3455 = vmatpush1.msra.mxu0 %v236
    %3456 = vmatprep.subr.mxu0 0.0
    %3457 = vmatpush1.msra.mxu0 %v239
    %3458 = vmatprep.subr.mxu0 0.0
    %3459 = vmatpush1.msra.mxu0 %v242
    %3460 = vmatprep.subr.mxu0 0.0
    %3461 = vmatpush1.msra.mxu0 %v245
    %3462 = vmatprep.subr.mxu0 0.0
    %3463 = vmatpush1.msra.mxu0 %v248
    %3464 = vmatprep.subr.mxu0 0.0
    %3465 = vmatpush1.msra.mxu0 %v251
    %3466 = vmatprep.subr.mxu0 0.0
    %3467 = vmatpush1.msra.mxu0 %v254
    %3468 = vmatprep.subr.mxu0 0.0
    %3469 = vmatpush1.msra.mxu0 %v257
    %3470 = vmatprep.subr.mxu0 0.0
    %3471 = vmatpush1.msra.mxu0 %v260
    %3472 = vmatprep.subr.mxu0 0.0
    %3473 = vmatpush1.msra.mxu0 %v263
    %3474 = vmatprep.subr.mxu0 0.0
    %3475 = vmatpush1.msra.mxu0 0.0
    %3476 = vmatprep.subr.mxu0 0.0
    %3477 = vmatpush1.msra.mxu0 0.0
    %3478 = vmatprep.subr.mxu0 0.0
    %3479 = vmatpush1.msra.mxu0 0.0
    %3480 = vmatprep.subr.mxu0 0.0
    %3481 = vmatpush1.msra.mxu0 0.0
    %3482 = vmatprep.subr.mxu0 0.0
    %3483 = vmatpush1.msra.mxu0 0.0
    %3484 = vmatprep.subr.mxu0 0.0
    %3485 = vmatpush1.msra.mxu0 0.0
    %3486 = vmatprep.subr.mxu0 0.0
    %3487 = vmatpush1.msra.mxu0 0.0
    %3488 = vmatprep.subr.mxu0 0.0
    %3489 = vmatpush1.msra.mxu0 0.0
    %3490 = vmatprep.subr.mxu0 0.0
    %3491 = vmatpush1.msra.mxu0 0.0
    %3492 = vmatprep.subr.mxu0 0.0
    %3493 = vmatpush1.msra.mxu0 0.0
    %3494 = vmatprep.subr.mxu0 0.0
    %3495 = vmatpush1.msra.mxu0 0.0
    %3496 = vmatprep.subr.mxu0 0.0
    %3497 = vmatpush1.msra.mxu0 0.0
    %3498 = vmatprep.subr.mxu0 0.0
    %3499 = vmatpush1.msra.mxu0 0.0
    %3500 = vmatprep.subr.mxu0 0.0
    %3501 = vmatpush1.msra.mxu0 0.0
    %3502 = vmatprep.subr.mxu0 0.0
    %3503 = vmatpush1.msra.mxu0 0.0
    %3504 = vmatprep.subr.mxu0 0.0
    %3505 = vmatpush1.msra.mxu0 0.0
    %3506 = vmatprep.mubr.f32.mxu0 0.0
    %3507 = vmatmul.mubr.f32.gmra.mrb[0].mxu0 %v3026
    %v3508 = vpop.f32.mrb[0].mxu0
    %v3509 = vadd.f32 0.0, %v3508
    %v3510 = vpop.f32.mrb[0].mxu0
    %3511 = vdwg.mxu0
    %v3512 = vadd.f32 %v3368, %v3438
    %v3513 = vxor.u32 %v3512, 2147483648
    %v3514 = vmul.f32 %v3513, 1.442695
    %v3515 = vpow.pop %v3514
    %v3516 = vadd.f32 %v3515, 1.0
    %v3517 = vrcp.pop %v3516
    %v3518 = vmul.f32 1.0, %v3517
    %v3519 = vadd.f32 %v3369, %v3440
    %v3520 = vxor.u32 %v3519, 2147483648
    %v3521 = vmul.f32 %v3520, 1.442695
    %v3522 = vpow.pop %v3521
    %v3523 = vadd.f32 %v3522, 1.0
    %v3524 = vrcp.pop %v3523
    %v3525 = vmul.f32 1.0, %v3524
    %v3526 = vadd.f32 %v3509, %v365
    %v3527 = vmul.f32 %v3518, %v3526
    %v3528 = vadd.f32 %v3370, %v3527
    %v3529 = vtanh.pop %v3528
    %v3530 = vsub.f32 1.0, %v3525
    %v3531 = vmul.f32 %v3530, %v3529
    %v3532 = vmul.f32 %v3525, %v3026
    %v3533 = vadd.f32 %v3531, %v3532
    %3534 = vmatprep.subr.mxu0 %v313
    %3535 = vmatpush1.msra.mxu0 %v312
    %3536 = vmatprep.subr.mxu0 %v316
    %3537 = vmatpush1.msra.mxu0 %v315
    %3538 = vmatprep.subr.mxu0 %v319
    %3539 = vmatpush1.msra.mxu0 %v318
    %3540 = vmatprep.subr.mxu0 %v322
    %3541 = vmatpush1.msra.mxu0 %v321
    %3542 = vmatprep.subr.mxu0 %v325
    %3543 = vmatpush1.msra.mxu0 %v324
    %3544 = vmatprep.subr.mxu0 %v328
    %3545 = vmatpush1.msra.mxu0 %v327
    %3546 = vmatprep.subr.mxu0 %v331
    %3547 = vmatpush1.msra.mxu0 %v330
    %3548 = vmatprep.subr.mxu0 %v334
    %3549 = vmatpush1.msra.mxu0 %v333
    %3550 = vmatprep.subr.mxu0 %v337
    %3551 = vmatpush1.msra.mxu0 %v336
    %3552 = vmatprep.subr.mxu0 %v340
    %3553 = vmatpush1.msra.mxu0 %v339
    %3554 = vmatprep.subr.mxu0 %v343
    %3555 = vmatpush1.msra.mxu0 %v342
    %3556 = vmatprep.subr.mxu0 %v346
    %3557 = vmatpush1.msra.mxu0 %v345
    %3558 = vmatprep.subr.mxu0 %v349
    %3559 = vmatpush1.msra.mxu0 %v348
    %3560 = vmatprep.subr.mxu0 %v352
    %3561 = vmatpush1.msra.mxu0 %v351
    %3562 = vmatprep.subr.mxu0 %v355
    %3563 = vmatpush1.msra.mxu0 %v354
    %3564 = vmatprep.subr.mxu0 %v358
    %3565 = vmatpush1.msra.mxu0 %v357
    %3566 = vmatprep.subr.mxu0 0.0
    %3567 = vmatpush1.msra.mxu0 0.0
    %3568 = vmatprep.subr.mxu0 0.0
    %3569 = vmatpush1.msra.mxu0 0.0
    %3570 = vmatprep.subr.mxu0 0.0
    %3571 = vmatpush1.msra.mxu0 0.0
    %3572 = vmatprep.subr.mxu0 0.0
    %3573 = vmatpush1.msra.mxu0 0.0
    %3574 = vmatprep.subr.mxu0 0.0
    %3575 = vmatpush1.msra.mxu0 0.0
    %3576 = vmatprep.subr.mxu0 0.0
    %3577 = vmatpush1.msra.mxu0 0.0
    %3578 = vmatprep.subr.mxu0 0.0
    %3579 = vmatpush1.msra.mxu0 0.0
    %3580 = vmatprep.subr.mxu0 0.0
    %3581 = vmatpush1.msra.mxu0 0.0
    %3582 = vmatprep.subr.mxu0 0.0
    %3583 = vmatpush1.msra.mxu0 0.0
    %3584 = vmatprep.subr.mxu0 0.0
    %3585 = vmatpush1.msra.mxu0 0.0
    %3586 = vmatprep.subr.mxu0 0.0
    %3587 = vmatpush1.msra.mxu0 0.0
    %3588 = vmatprep.subr.mxu0 0.0
    %3589 = vmatpush1.msra.mxu0 0.0
    %3590 = vmatprep.subr.mxu0 0.0
    %3591 = vmatpush1.msra.mxu0 0.0
    %3592 = vmatprep.subr.mxu0 0.0
    %3593 = vmatpush1.msra.mxu0 0.0
    %3594 = vmatprep.subr.mxu0 0.0
    %3595 = vmatpush1.msra.mxu0 0.0
    %3596 = vmatprep.subr.mxu0 0.0
    %3597 = vmatpush1.msra.mxu0 0.0
    %3598 = vmatprep.mubr.f32.mxu0 0.0
    %3599 = vmatmul.mubr.f32.gmra.mrb[0].mxu0 %v3189
    %v3600 = vpop.f32.mrb[0].mxu0
    %v3601 = vadd.f32 0.0, %v3600
    %v3602 = vpop.f32.mrb[0].mxu0
    %v3603 = vadd.f32 0.0, %v3602
    %3604 = vdwg.mxu0
    %3605 = vmatprep.subr.mxu0 0.0
    %3606 = vmatpush1.msra.mxu0 %v314
    %3607 = vmatprep.subr.mxu0 0.0
    %3608 = vmatpush1.msra.mxu0 %v317
    %3609 = vmatprep.subr.mxu0 0.0
    %3610 = vmatpush1.msra.mxu0 %v320
    %3611 = vmatprep.subr.mxu0 0.0
    %3612 = vmatpush1.msra.mxu0 %v323
    %3613 = vmatprep.subr.mxu0 0.0
    %3614 = vmatpush1.msra.mxu0 %v326
    %3615 = vmatprep.subr.mxu0 0.0
    %3616 = vmatpush1.msra.mxu0 %v329
    %3617 = vmatprep.subr.mxu0 0.0
    %3618 = vmatpush1.msra.mxu0 %v332
    %3619 = vmatprep.subr.mxu0 0.0
    %3620 = vmatpush1.msra.mxu0 %v335
    %3621 = vmatprep.subr.mxu0 0.0
    %3622 = vmatpush1.msra.mxu0 %v338
    %3623 = vmatprep.subr.mxu0 0.0
    %3624 = vmatpush1.msra.mxu0 %v341
    %3625 = vmatprep.subr.mxu0 0.0
    %3626 = vmatpush1.msra.mxu0 %v344
    %3627 = vmatprep.subr.mxu0 0.0
    %3628 = vmatpush1.msra.mxu0 %v347
    %3629 = vmatprep.subr.mxu0 0.0
    %3630 = vmatpush1.msra.mxu0 %v350
    %3631 = vmatprep.subr.mxu0 0.0
    %3632 = vmatpush1.msra.mxu0 %v353
    %3633 = vmatprep.subr.mxu0 0.0
    %3634 = vmatpush1.msra.mxu0 %v356
    %3635 = vmatprep.subr.mxu0 0.0
    %3636 = vmatpush1.msra.mxu0 %v359
    %3637 = vmatprep.subr.mxu0 0.0
    %3638 = vmatpush1.msra.mxu0 0.0
    %3639 = vmatprep.subr.mxu0 0.0
    %3640 = vmatpush1.msra.mxu0 0.0
    %3641 = vmatprep.subr.mxu0 0.0
    %3642 = vmatpush1.msra.mxu0 0.0
    %3643 = vmatprep.subr.mxu0 0.0
    %3644 = vmatpush1.msra.mxu0 0.0
    %3645 = vmatprep.subr.mxu0 0.0
    %3646 = vmatpush1.msra.mxu0 0.0
    %3647 = vmatprep.subr.mxu0 0.0
    %3648 = vmatpush1.msra.mxu0 0.0
    %3649 = vmatprep.subr.mxu0 0.0
    %3650 = vmatpush1.msra.mxu0 0.0
    %3651 = vmatprep.subr.mxu0 0.0
    %3652 = vmatpush1.msra.mxu0 0.0
    %3653 = vmatprep.subr.mxu0 0.0
    %3654 = vmatpush1.msra.mxu0 0.0
    %3655 = vmatprep.subr.mxu0 0.0
    %3656 = vmatpush1.msra.mxu0 0.0
    %3657 = vmatprep.subr.mxu0 0.0
    %3658 = vmatpush1.msra.mxu0 0.0
    %3659 = vmatprep.subr.mxu0 0.0
    %3660 = vmatpush1.msra.mxu0 0.0
    %3661 = vmatprep.subr.mxu0 0.0
    %3662 = vmatpush1.msra.mxu0 0.0
    %3663 = vmatprep.subr.mxu0 0.0
    %3664 = vmatpush1.msra.mxu0 0.0
    %3665 = vmatprep.subr.mxu0 0.0
    %3666 = vmatpush1.msra.mxu0 0.0
    %3667 = vmatprep.subr.mxu0 0.0
    %3668 = vmatpush1.msra.mxu0 0.0
    %3669 = vmatprep.mubr.f32.mxu0 0.0
    %3670 = vmatmul.mubr.f32.gmra.mrb[0].mxu0 %v3189
    %v3671 = vpop.f32.mrb[0].mxu0
    %v3672 = vadd.f32 0.0, %v3671
    %v3673 = vpop.f32.mrb[0].mxu0
    %3674 = vdwg.mxu0
    %v3675 = vadd.f32 %v3258, %v3601
    %v3676 = vxor.u32 %v3675, 2147483648
    %v3677 = vmul.f32 %v3676, 1.442695
    %v3678 = vpow.pop %v3677
    %v3679 = vadd.f32 %v3678, 1.0
    %v3680 = vrcp.pop %v3679
    %v3681 = vmul.f32 1.0, %v3680
    %v3682 = vadd.f32 %v3260, %v3603
    %v3683 = vxor.u32 %v3682, 2147483648
    %v3684 = vmul.f32 %v3683, 1.442695
    %v3685 = vpow.pop %v3684
    %v3686 = vadd.f32 %v3685, 1.0
    %v3687 = vrcp.pop %v3686
    %v3688 = vmul.f32 1.0, %v3687
    %v3689 = vadd.f32 %v3672, %v372
    %v3690 = vmul.f32 %v3681, %v3689
    %v3691 = vadd.f32 %v3329, %v3690
    %v3692 = vtanh.pop %v3691
    %v3693 = vsub.f32 1.0, %v3688
    %v3694 = vmul.f32 %v3693, %v3692
    %v3695 = vmul.f32 %v3688, %v3189
    %v3696 = vadd.f32 %v3694, %v3695
    %3697 = vst [vmem:[%s15 + $0x6] sm:$0x3] %v3696
    %3698 = vmatprep.subr.mxu0 %v265
    %3699 = vmatpush1.msra.mxu0 %v264
    %3700 = vmatprep.subr.mxu0 %v268
    %3701 = vmatpush1.msra.mxu0 %v267
    %3702 = vmatprep.subr.mxu0 %v271
    %3703 = vmatpush1.msra.mxu0 %v270
    %3704 = vmatprep.subr.mxu0 %v274
    %3705 = vmatpush1.msra.mxu0 %v273
    %3706 = vmatprep.subr.mxu0 %v277
    %3707 = vmatpush1.msra.mxu0 %v276
    %3708 = vmatprep.subr.mxu0 %v280
    %3709 = vmatpush1.msra.mxu0 %v279
    %3710 = vmatprep.subr.mxu0 %v283
    %3711 = vmatpush1.msra.mxu0 %v282
    %3712 = vmatprep.subr.mxu0 %v286
    %3713 = vmatpush1.msra.mxu0 %v285
    %3714 = vmatprep.subr.mxu0 %v289
    %3715 = vmatpush1.msra.mxu0 %v288
    %3716 = vmatprep.subr.mxu0 %v292
    %3717 = vmatpush1.msra.mxu0 %v291
    %3718 = vmatprep.subr.mxu0 %v295
    %3719 = vmatpush1.msra.mxu0 %v294
    %3720 = vmatprep.subr.mxu0 %v298
    %3721 = vmatpush1.msra.mxu0 %v297
    %3722 = vmatprep.subr.mxu0 %v301
    %3723 = vmatpush1.msra.mxu0 %v300
    %3724 = vmatprep.subr.mxu0 %v304
    %3725 = vmatpush1.msra.mxu0 %v303
    %3726 = vmatprep.subr.mxu0 %v307
    %3727 = vmatpush1.msra.mxu0 %v306
    %3728 = vmatprep.subr.mxu0 %v310
    %3729 = vmatpush1.msra.mxu0 %v309
    %3730 = vmatprep.subr.mxu0 0.0
    %3731 = vmatpush1.msra.mxu0 0.0
    %3732 = vmatprep.subr.mxu0 0.0
    %3733 = vmatpush1.msra.mxu0 0.0
    %3734 = vmatprep.subr.mxu0 0.0
    %3735 = vmatpush1.msra.mxu0 0.0
    %3736 = vmatprep.subr.mxu0 0.0
    %3737 = vmatpush1.msra.mxu0 0.0
    %3738 = vmatprep.subr.mxu0 0.0
    %3739 = vmatpush1.msra.mxu0 0.0
    %3740 = vmatprep.subr.mxu0 0.0
    %3741 = vmatpush1.msra.mxu0 0.0
    %3742 = vmatprep.subr.mxu0 0.0
    %3743 = vmatpush1.msra.mxu0 0.0
    %3744 = vmatprep.subr.mxu0 0.0
    %3745 = vmatpush1.msra.mxu0 0.0
    %3746 = vmatprep.subr.mxu0 0.0
    %3747 = vmatpush1.msra.mxu0 0.0
    %3748 = vmatprep.subr.mxu0 0.0
    %3749 = vmatpush1.msra.mxu0 0.0
    %3750 = vmatprep.subr.mxu0 0.0
    %3751 = vmatpush1.msra.mxu0 0.0
    %3752 = vmatprep.subr.mxu0 0.0
    %3753 = vmatpush1.msra.mxu0 0.0
    %3754 = vmatprep.subr.mxu0 0.0
    %3755 = vmatpush1.msra.mxu0 0.0
    %3756 = vmatprep.subr.mxu0 0.0
    %3757 = vmatpush1.msra.mxu0 0.0
    %3758 = vmatprep.subr.mxu0 0.0
    %3759 = vmatpush1.msra.mxu0 0.0
    %3760 = vmatprep.subr.mxu0 0.0
    %3761 = vmatpush1.msra.mxu0 0.0
    %3762 = vmatprep.mubr.f32.mxu0 0.0
    %3763 = vmatmul.mubr.f32.gmra.mrb[0].mxu0 %v3533
    %v3764 = vpop.f32.mrb[0].mxu0
    %v3765 = vadd.f32 %v379, %v3764
    %v3766 = vpop.f32.mrb[0].mxu0
    %v3767 = vadd.f32 %v383, %v3766
    %3768 = vdwg.mxu0
    %3769 = vmatprep.subr.mxu0 0.0
    %3770 = vmatpush1.msra.mxu0 %v266
    %3771 = vmatprep.subr.mxu0 0.0
    %3772 = vmatpush1.msra.mxu0 %v269
    %3773 = vmatprep.subr.mxu0 0.0
    %3774 = vmatpush1.msra.mxu0 %v272
    %3775 = vmatprep.subr.mxu0 0.0
    %3776 = vmatpush1.msra.mxu0 %v275
    %3777 = vmatprep.subr.mxu0 0.0
    %3778 = vmatpush1.msra.mxu0 %v278
    %3779 = vmatprep.subr.mxu0 0.0
    %3780 = vmatpush1.msra.mxu0 %v281
    %3781 = vmatprep.subr.mxu0 0.0
    %3782 = vmatpush1.msra.mxu0 %v284
    %3783 = vmatprep.subr.mxu0 0.0
    %3784 = vmatpush1.msra.mxu0 %v287
    %3785 = vmatprep.subr.mxu0 0.0
    %3786 = vmatpush1.msra.mxu0 %v290
    %3787 = vmatprep.subr.mxu0 0.0
    %3788 = vmatpush1.msra.mxu0 %v293
    %3789 = vmatprep.subr.mxu0 0.0
    %3790 = vmatpush1.msra.mxu0 %v296
    %3791 = vmatprep.subr.mxu0 0.0
    %3792 = vmatpush1.msra.mxu0 %v299
    %3793 = vmatprep.subr.mxu0 0.0
    %3794 = vmatpush1.msra.mxu0 %v302
    %3795 = vmatprep.subr.mxu0 0.0
    %3796 = vmatpush1.msra.mxu0 %v305
    %3797 = vmatprep.subr.mxu0 0.0
    %3798 = vmatpush1.msra.mxu0 %v308
    %3799 = vmatprep.subr.mxu0 0.0
    %3800 = vmatpush1.msra.mxu0 %v311
    %3801 = vmatprep.subr.mxu0 0.0
    %3802 = vmatpush1.msra.mxu0 0.0
    %3803 = vmatprep.subr.mxu0 0.0
    %3804 = vmatpush1.msra.mxu0 0.0
    %3805 = vmatprep.subr.mxu0 0.0
    %3806 = vmatpush1.msra.mxu0 0.0
    %3807 = vmatprep.subr.mxu0 0.0
    %3808 = vmatpush1.msra.mxu0 0.0
    %3809 = vmatprep.subr.mxu0 0.0
    %3810 = vmatpush1.msra.mxu0 0.0
    %3811 = vmatprep.subr.mxu0 0.0
    %3812 = vmatpush1.msra.mxu0 0.0
    %3813 = vmatprep.subr.mxu0 0.0
    %3814 = vmatpush1.msra.mxu0 0.0
    %3815 = vmatprep.subr.mxu0 0.0
    %3816 = vmatpush1.msra.mxu0 0.0
    %3817 = vmatprep.subr.mxu0 0.0
    %3818 = vmatpush1.msra.mxu0 0.0
    %3819 = vmatprep.subr.mxu0 0.0
    %3820 = vmatpush1.msra.mxu0 0.0
    %3821 = vmatprep.subr.mxu0 0.0
    %3822 = vmatpush1.msra.mxu0 0.0
    %3823 = vmatprep.subr.mxu0 0.0
    %3824 = vmatpush1.msra.mxu0 0.0
    %3825 = vmatprep.subr.mxu0 0.0
    %3826 = vmatpush1.msra.mxu0 0.0
    %3827 = vmatprep.subr.mxu0 0.0
    %3828 = vmatpush1.msra.mxu0 0.0
    %3829 = vmatprep.subr.mxu0 0.0
    %3830 = vmatpush1.msra.mxu0 0.0
    %3831 = vmatprep.subr.mxu0 0.0
    %3832 = vmatpush1.msra.mxu0 0.0
    %3833 = vmatprep.mubr.f32.mxu0 0.0
    %3834 = vmatmul.mubr.f32.gmra.mrb[0].mxu0 %v3533
    %v3835 = vpop.f32.mrb[0].mxu0
    %v3836 = vadd.f32 %v387, %v3835
    %v3837 = vpop.f32.mrb[0].mxu0
    %3838 = vdwg.mxu0
    %s3839 = scalar_lea.vmem [#allocation2], 5
    %v3840 = vld [vmem:[%s3839] ss:$8 sm:$0x7]
    %s3841 = scalar_lea.vmem %s1462, 5 [#allocation2]
    %v3842 = vld [vmem:[%s3841] ss:$8 sm:$0x7]
    %v3844 = vlaneseq
    %v3845 = vshrl.u32 %v3844, 7
    %v3846 = vsub.s32 0, %v3845
    %v3847 = vrot.slane %v3840, %v3846
    %v3848 = vlaneseq
    %v3849 = vshrl.u32 %v3848, 7
    %v3850 = vsub.s32 1, %v3849
    %v3851 = vrot.slane %v3840, %v3850
    %v3852 = vlaneseq
    %v3853 = vshrl.u32 %v3852, 7
    %v3854 = vsub.s32 2, %v3853
    %v3855 = vrot.slane %v3840, %v3854
    %v3860 = vlaneseq
    %v3861 = vshrl.u32 %v3860, 7
    %v3862 = vsub.s32 0, %v3861
    %v3863 = vrot.slane %v3842, %v3862
    %v3864 = vlaneseq
    %v3865 = vshrl.u32 %v3864, 7
    %v3866 = vsub.s32 1, %v3865
    %v3867 = vrot.slane %v3842, %v3866
    %v3868 = vlaneseq
    %v3869 = vshrl.u32 %v3868, 7
    %v3870 = vsub.s32 2, %v3869
    %v3871 = vrot.slane %v3842, %v3870
    %v3875 = vsel %vm1503, %v3847, %v3863
    %v3876 = vsel %vm1503, %v3851, %v3867
    %v3877 = vsel %vm1503, %v3855, %v3871
    %3878 = vmatprep.subr.mxu0 %v217
    %3879 = vmatpush1.msra.mxu0 %v216
    %3880 = vmatprep.subr.mxu0 %v220
    %3881 = vmatpush1.msra.mxu0 %v219
    %3882 = vmatprep.subr.mxu0 %v223
    %3883 = vmatpush1.msra.mxu0 %v222
    %3884 = vmatprep.subr.mxu0 %v226
    %3885 = vmatpush1.msra.mxu0 %v225
    %3886 = vmatprep.subr.mxu0 %v229
    %3887 = vmatpush1.msra.mxu0 %v228
    %3888 = vmatprep.subr.mxu0 %v232
    %3889 = vmatpush1.msra.mxu0 %v231
    %3890 = vmatprep.subr.mxu0 %v235
    %3891 = vmatpush1.msra.mxu0 %v234
    %3892 = vmatprep.subr.mxu0 %v238
    %3893 = vmatpush1.msra.mxu0 %v237
    %3894 = vmatprep.subr.mxu0 %v241
    %3895 = vmatpush1.msra.mxu0 %v240
    %3896 = vmatprep.subr.mxu0 %v244
    %3897 = vmatpush1.msra.mxu0 %v243
    %3898 = vmatprep.subr.mxu0 %v247
    %3899 = vmatpush1.msra.mxu0 %v246
    %3900 = vmatprep.subr.mxu0 %v250
    %3901 = vmatpush1.msra.mxu0 %v249
    %3902 = vmatprep.subr.mxu0 %v253
    %3903 = vmatpush1.msra.mxu0 %v252
    %3904 = vmatprep.subr.mxu0 %v256
    %3905 = vmatpush1.msra.mxu0 %v255
    %3906 = vmatprep.subr.mxu0 %v259
    %3907 = vmatpush1.msra.mxu0 %v258
    %3908 = vmatprep.subr.mxu0 %v262
    %3909 = vmatpush1.msra.mxu0 %v261
    %3910 = vmatprep.subr.mxu0 0.0
    %3911 = vmatpush1.msra.mxu0 0.0
    %3912 = vmatprep.subr.mxu0 0.0
    %3913 = vmatpush1.msra.mxu0 0.0
    %3914 = vmatprep.subr.mxu0 0.0
    %3915 = vmatpush1.msra.mxu0 0.0
    %3916 = vmatprep.subr.mxu0 0.0
    %3917 = vmatpush1.msra.mxu0 0.0
    %3918 = vmatprep.subr.mxu0 0.0
    %3919 = vmatpush1.msra.mxu0 0.0
    %3920 = vmatprep.subr.mxu0 0.0
    %3921 = vmatpush1.msra.mxu0 0.0
    %3922 = vmatprep.subr.mxu0 0.0
    %3923 = vmatpush1.msra.mxu0 0.0
    %3924 = vmatprep.subr.mxu0 0.0
    %3925 = vmatpush1.msra.mxu0 0.0
    %3926 = vmatprep.subr.mxu0 0.0
    %3927 = vmatpush1.msra.mxu0 0.0
    %3928 = vmatprep.subr.mxu0 0.0
    %3929 = vmatpush1.msra.mxu0 0.0
    %3930 = vmatprep.subr.mxu0 0.0
    %3931 = vmatpush1.msra.mxu0 0.0
    %3932 = vmatprep.subr.mxu0 0.0
    %3933 = vmatpush1.msra.mxu0 0.0
    %3934 = vmatprep.subr.mxu0 0.0
    %3935 = vmatpush1.msra.mxu0 0.0
    %3936 = vmatprep.subr.mxu0 0.0
    %3937 = vmatpush1.msra.mxu0 0.0
    %3938 = vmatprep.subr.mxu0 0.0
    %3939 = vmatpush1.msra.mxu0 0.0
    %3940 = vmatprep.subr.mxu0 0.0
    %3941 = vmatpush1.msra.mxu0 0.0
    %3942 = vmatprep.mubr.f32.mxu0 0.0
    %3943 = vmatmul.mubr.f32.gmra.mrb[0].mxu0 %v3533
    %v3944 = vpop.f32.mrb[0].mxu0
    %v3945 = vadd.f32 0.0, %v3944
    %v3946 = vpop.f32.mrb[0].mxu0
    %v3947 = vadd.f32 0.0, %v3946
    %3948 = vdwg.mxu0
    %3949 = vmatprep.subr.mxu0 0.0
    %3950 = vmatpush1.msra.mxu0 %v218
    %3951 = vmatprep.subr.mxu0 0.0
    %3952 = vmatpush1.msra.mxu0 %v221
    %3953 = vmatprep.subr.mxu0 0.0
    %3954 = vmatpush1.msra.mxu0 %v224
    %3955 = vmatprep.subr.mxu0 0.0
    %3956 = vmatpush1.msra.mxu0 %v227
    %3957 = vmatprep.subr.mxu0 0.0
    %3958 = vmatpush1.msra.mxu0 %v230
    %3959 = vmatprep.subr.mxu0 0.0
    %3960 = vmatpush1.msra.mxu0 %v233
    %3961 = vmatprep.subr.mxu0 0.0
    %3962 = vmatpush1.msra.mxu0 %v236
    %3963 = vmatprep.subr.mxu0 0.0
    %3964 = vmatpush1.msra.mxu0 %v239
    %3965 = vmatprep.subr.mxu0 0.0
    %3966 = vmatpush1.msra.mxu0 %v242
    %3967 = vmatprep.subr.mxu0 0.0
    %3968 = vmatpush1.msra.mxu0 %v245
    %3969 = vmatprep.subr.mxu0 0.0
    %3970 = vmatpush1.msra.mxu0 %v248
    %3971 = vmatprep.subr.mxu0 0.0
    %3972 = vmatpush1.msra.mxu0 %v251
    %3973 = vmatprep.subr.mxu0 0.0
    %3974 = vmatpush1.msra.mxu0 %v254
    %3975 = vmatprep.subr.mxu0 0.0
    %3976 = vmatpush1.msra.mxu0 %v257
    %3977 = vmatprep.subr.mxu0 0.0
    %3978 = vmatpush1.msra.mxu0 %v260
    %3979 = vmatprep.subr.mxu0 0.0
    %3980 = vmatpush1.msra.mxu0 %v263
    %3981 = vmatprep.subr.mxu0 0.0
    %3982 = vmatpush1.msra.mxu0 0.0
    %3983 = vmatprep.subr.mxu0 0.0
    %3984 = vmatpush1.msra.mxu0 0.0
    %3985 = vmatprep.subr.mxu0 0.0
    %3986 = vmatpush1.msra.mxu0 0.0
    %3987 = vmatprep.subr.mxu0 0.0
    %3988 = vmatpush1.msra.mxu0 0.0
    %3989 = vmatprep.subr.mxu0 0.0
    %3990 = vmatpush1.msra.mxu0 0.0
    %3991 = vmatprep.subr.mxu0 0.0
    %3992 = vmatpush1.msra.mxu0 0.0
    %3993 = vmatprep.subr.mxu0 0.0
    %3994 = vmatpush1.msra.mxu0 0.0
    %3995 = vmatprep.subr.mxu0 0.0
    %3996 = vmatpush1.msra.mxu0 0.0
    %3997 = vmatprep.subr.mxu0 0.0
    %3998 = vmatpush1.msra.mxu0 0.0
    %3999 = vmatprep.subr.mxu0 0.0
    %4000 = vmatpush1.msra.mxu0 0.0
    %4001 = vmatprep.subr.mxu0 0.0
    %4002 = vmatpush1.msra.mxu0 0.0
    %4003 = vmatprep.subr.mxu0 0.0
    %4004 = vmatpush1.msra.mxu0 0.0
    %4005 = vmatprep.subr.mxu0 0.0
    %4006 = vmatpush1.msra.mxu0 0.0
    %4007 = vmatprep.subr.mxu0 0.0
    %4008 = vmatpush1.msra.mxu0 0.0
    %4009 = vmatprep.subr.mxu0 0.0
    %4010 = vmatpush1.msra.mxu0 0.0
    %4011 = vmatprep.subr.mxu0 0.0
    %4012 = vmatpush1.msra.mxu0 0.0
    %4013 = vmatprep.mubr.f32.mxu0 0.0
    %4014 = vmatmul.mubr.f32.gmra.mrb[0].mxu0 %v3533
    %v4015 = vpop.f32.mrb[0].mxu0
    %v4016 = vadd.f32 0.0, %v4015
    %v4017 = vpop.f32.mrb[0].mxu0
    %4018 = vdwg.mxu0
    %v4019 = vadd.f32 %v3875, %v3945
    %v4020 = vxor.u32 %v4019, 2147483648
    %v4021 = vmul.f32 %v4020, 1.442695
    %v4022 = vpow.pop %v4021
    %v4023 = vadd.f32 %v4022, 1.0
    %v4024 = vrcp.pop %v4023
    %v4025 = vmul.f32 1.0, %v4024
    %v4026 = vadd.f32 %v3876, %v3947
    %v4027 = vxor.u32 %v4026, 2147483648
    %v4028 = vmul.f32 %v4027, 1.442695
    %v4029 = vpow.pop %v4028
    %v4030 = vadd.f32 %v4029, 1.0
    %v4031 = vrcp.pop %v4030
    %v4032 = vmul.f32 1.0, %v4031
    %v4033 = vadd.f32 %v4016, %v365
    %v4034 = vmul.f32 %v4025, %v4033
    %v4035 = vadd.f32 %v3877, %v4034
    %v4036 = vtanh.pop %v4035
    %v4037 = vsub.f32 1.0, %v4032
    %v4038 = vmul.f32 %v4037, %v4036
    %v4039 = vmul.f32 %v4032, %v3533
    %v4040 = vadd.f32 %v4038, %v4039
    %4041 = vmatprep.subr.mxu0 %v313
    %4042 = vmatpush1.msra.mxu0 %v312
    %4043 = vmatprep.subr.mxu0 %v316
    %4044 = vmatpush1.msra.mxu0 %v315
    %4045 = vmatprep.subr.mxu0 %v319
    %4046 = vmatpush1.msra.mxu0 %v318
    %4047 = vmatprep.subr.mxu0 %v322
    %4048 = vmatpush1.msra.mxu0 %v321
    %4049 = vmatprep.subr.mxu0 %v325
    %4050 = vmatpush1.msra.mxu0 %v324
    %4051 = vmatprep.subr.mxu0 %v328
    %4052 = vmatpush1.msra.mxu0 %v327
    %4053 = vmatprep.subr.mxu0 %v331
    %4054 = vmatpush1.msra.mxu0 %v330
    %4055 = vmatprep.subr.mxu0 %v334
    %4056 = vmatpush1.msra.mxu0 %v333
    %4057 = vmatprep.subr.mxu0 %v337
    %4058 = vmatpush1.msra.mxu0 %v336
    %4059 = vmatprep.subr.mxu0 %v340
    %4060 = vmatpush1.msra.mxu0 %v339
    %4061 = vmatprep.subr.mxu0 %v343
    %4062 = vmatpush1.msra.mxu0 %v342
    %4063 = vmatprep.subr.mxu0 %v346
    %4064 = vmatpush1.msra.mxu0 %v345
    %4065 = vmatprep.subr.mxu0 %v349
    %4066 = vmatpush1.msra.mxu0 %v348
    %4067 = vmatprep.subr.mxu0 %v352
    %4068 = vmatpush1.msra.mxu0 %v351
    %4069 = vmatprep.subr.mxu0 %v355
    %4070 = vmatpush1.msra.mxu0 %v354
    %4071 = vmatprep.subr.mxu0 %v358
    %4072 = vmatpush1.msra.mxu0 %v357
    %4073 = vmatprep.subr.mxu0 0.0
    %4074 = vmatpush1.msra.mxu0 0.0
    %4075 = vmatprep.subr.mxu0 0.0
    %4076 = vmatpush1.msra.mxu0 0.0
    %4077 = vmatprep.subr.mxu0 0.0
    %4078 = vmatpush1.msra.mxu0 0.0
    %4079 = vmatprep.subr.mxu0 0.0
    %4080 = vmatpush1.msra.mxu0 0.0
    %4081 = vmatprep.subr.mxu0 0.0
    %4082 = vmatpush1.msra.mxu0 0.0
    %4083 = vmatprep.subr.mxu0 0.0
    %4084 = vmatpush1.msra.mxu0 0.0
    %4085 = vmatprep.subr.mxu0 0.0
    %4086 = vmatpush1.msra.mxu0 0.0
    %4087 = vmatprep.subr.mxu0 0.0
    %4088 = vmatpush1.msra.mxu0 0.0
    %4089 = vmatprep.subr.mxu0 0.0
    %4090 = vmatpush1.msra.mxu0 0.0
    %4091 = vmatprep.subr.mxu0 0.0
    %4092 = vmatpush1.msra.mxu0 0.0
    %4093 = vmatprep.subr.mxu0 0.0
    %4094 = vmatpush1.msra.mxu0 0.0
    %4095 = vmatprep.subr.mxu0 0.0
    %4096 = vmatpush1.msra.mxu0 0.0
    %4097 = vmatprep.subr.mxu0 0.0
    %4098 = vmatpush1.msra.mxu0 0.0
    %4099 = vmatprep.subr.mxu0 0.0
    %4100 = vmatpush1.msra.mxu0 0.0
    %4101 = vmatprep.subr.mxu0 0.0
    %4102 = vmatpush1.msra.mxu0 0.0
    %4103 = vmatprep.subr.mxu0 0.0
    %4104 = vmatpush1.msra.mxu0 0.0
    %4105 = vmatprep.mubr.f32.mxu0 0.0
    %4106 = vmatmul.mubr.f32.gmra.mrb[0].mxu0 %v3696
    %v4107 = vpop.f32.mrb[0].mxu0
    %v4108 = vadd.f32 0.0, %v4107
    %v4109 = vpop.f32.mrb[0].mxu0
    %v4110 = vadd.f32 0.0, %v4109
    %4111 = vdwg.mxu0
    %4112 = vmatprep.subr.mxu0 0.0
    %4113 = vmatpush1.msra.mxu0 %v314
    %4114 = vmatprep.subr.mxu0 0.0
    %4115 = vmatpush1.msra.mxu0 %v317
    %4116 = vmatprep.subr.mxu0 0.0
    %4117 = vmatpush1.msra.mxu0 %v320
    %4118 = vmatprep.subr.mxu0 0.0
    %4119 = vmatpush1.msra.mxu0 %v323
    %4120 = vmatprep.subr.mxu0 0.0
    %4121 = vmatpush1.msra.mxu0 %v326
    %4122 = vmatprep.subr.mxu0 0.0
    %4123 = vmatpush1.msra.mxu0 %v329
    %4124 = vmatprep.subr.mxu0 0.0
    %4125 = vmatpush1.msra.mxu0 %v332
    %4126 = vmatprep.subr.mxu0 0.0
    %4127 = vmatpush1.msra.mxu0 %v335
    %4128 = vmatprep.subr.mxu0 0.0
    %4129 = vmatpush1.msra.mxu0 %v338
    %4130 = vmatprep.subr.mxu0 0.0
    %4131 = vmatpush1.msra.mxu0 %v341
    %4132 = vmatprep.subr.mxu0 0.0
    %4133 = vmatpush1.msra.mxu0 %v344
    %4134 = vmatprep.subr.mxu0 0.0
    %4135 = vmatpush1.msra.mxu0 %v347
    %4136 = vmatprep.subr.mxu0 0.0
    %4137 = vmatpush1.msra.mxu0 %v350
    %4138 = vmatprep.subr.mxu0 0.0
    %4139 = vmatpush1.msra.mxu0 %v353
    %4140 = vmatprep.subr.mxu0 0.0
    %4141 = vmatpush1.msra.mxu0 %v356
    %4142 = vmatprep.subr.mxu0 0.0
    %4143 = vmatpush1.msra.mxu0 %v359
    %4144 = vmatprep.subr.mxu0 0.0
    %4145 = vmatpush1.msra.mxu0 0.0
    %4146 = vmatprep.subr.mxu0 0.0
    %4147 = vmatpush1.msra.mxu0 0.0
    %4148 = vmatprep.subr.mxu0 0.0
    %4149 = vmatpush1.msra.mxu0 0.0
    %4150 = vmatprep.subr.mxu0 0.0
    %4151 = vmatpush1.msra.mxu0 0.0
    %4152 = vmatprep.subr.mxu0 0.0
    %4153 = vmatpush1.msra.mxu0 0.0
    %4154 = vmatprep.subr.mxu0 0.0
    %4155 = vmatpush1.msra.mxu0 0.0
    %4156 = vmatprep.subr.mxu0 0.0
    %4157 = vmatpush1.msra.mxu0 0.0
    %4158 = vmatprep.subr.mxu0 0.0
    %4159 = vmatpush1.msra.mxu0 0.0
    %4160 = vmatprep.subr.mxu0 0.0
    %4161 = vmatpush1.msra.mxu0 0.0
    %4162 = vmatprep.subr.mxu0 0.0
    %4163 = vmatpush1.msra.mxu0 0.0
    %4164 = vmatprep.subr.mxu0 0.0
    %4165 = vmatpush1.msra.mxu0 0.0
    %4166 = vmatprep.subr.mxu0 0.0
    %4167 = vmatpush1.msra.mxu0 0.0
    %4168 = vmatprep.subr.mxu0 0.0
    %4169 = vmatpush1.msra.mxu0 0.0
    %4170 = vmatprep.subr.mxu0 0.0
    %4171 = vmatpush1.msra.mxu0 0.0
    %4172 = vmatprep.subr.mxu0 0.0
    %4173 = vmatpush1.msra.mxu0 0.0
    %4174 = vmatprep.subr.mxu0 0.0
    %4175 = vmatpush1.msra.mxu0 0.0
    %4176 = vmatprep.mubr.f32.mxu0 0.0
    %4177 = vmatmul.mubr.f32.gmra.mrb[0].mxu0 %v3696
    %v4178 = vpop.f32.mrb[0].mxu0
    %v4179 = vadd.f32 0.0, %v4178
    %v4180 = vpop.f32.mrb[0].mxu0
    %4181 = vdwg.mxu0
    %v4182 = vadd.f32 %v3765, %v4108
    %v4183 = vxor.u32 %v4182, 2147483648
    %v4184 = vmul.f32 %v4183, 1.442695
    %v4185 = vpow.pop %v4184
    %v4186 = vadd.f32 %v4185, 1.0
    %v4187 = vrcp.pop %v4186
    %v4188 = vmul.f32 1.0, %v4187
    %v4189 = vadd.f32 %v3767, %v4110
    %v4190 = vxor.u32 %v4189, 2147483648
    %v4191 = vmul.f32 %v4190, 1.442695
    %v4192 = vpow.pop %v4191
    %v4193 = vadd.f32 %v4192, 1.0
    %v4194 = vrcp.pop %v4193
    %v4195 = vmul.f32 1.0, %v4194
    %v4196 = vadd.f32 %v4179, %v372
    %v4197 = vmul.f32 %v4188, %v4196
    %v4198 = vadd.f32 %v3836, %v4197
    %v4199 = vtanh.pop %v4198
    %v4200 = vsub.f32 1.0, %v4195
    %v4201 = vmul.f32 %v4200, %v4199
    %v4202 = vmul.f32 %v4195, %v3696
    %v4203 = vadd.f32 %v4201, %v4202
    %4204 = vst [vmem:[%s15 + $0x8] sm:$0x3] %v4203
    %4205 = vmatprep.subr.mxu0 %v265
    %4206 = vmatpush1.msra.mxu0 %v264
    %4207 = vmatprep.subr.mxu0 %v268
    %4208 = vmatpush1.msra.mxu0 %v267
    %4209 = vmatprep.subr.mxu0 %v271
    %4210 = vmatpush1.msra.mxu0 %v270
    %4211 = vmatprep.subr.mxu0 %v274
    %4212 = vmatpush1.msra.mxu0 %v273
    %4213 = vmatprep.subr.mxu0 %v277
    %4214 = vmatpush1.msra.mxu0 %v276
    %4215 = vmatprep.subr.mxu0 %v280
    %4216 = vmatpush1.msra.mxu0 %v279
    %4217 = vmatprep.subr.mxu0 %v283
    %4218 = vmatpush1.msra.mxu0 %v282
    %4219 = vmatprep.subr.mxu0 %v286
    %4220 = vmatpush1.msra.mxu0 %v285
    %4221 = vmatprep.subr.mxu0 %v289
    %4222 = vmatpush1.msra.mxu0 %v288
    %4223 = vmatprep.subr.mxu0 %v292
    %4224 = vmatpush1.msra.mxu0 %v291
    %4225 = vmatprep.subr.mxu0 %v295
    %4226 = vmatpush1.msra.mxu0 %v294
    %4227 = vmatprep.subr.mxu0 %v298
    %4228 = vmatpush1.msra.mxu0 %v297
    %4229 = vmatprep.subr.mxu0 %v301
    %4230 = vmatpush1.msra.mxu0 %v300
    %4231 = vmatprep.subr.mxu0 %v304
    %4232 = vmatpush1.msra.mxu0 %v303
    %4233 = vmatprep.subr.mxu0 %v307
    %4234 = vmatpush1.msra.mxu0 %v306
    %4235 = vmatprep.subr.mxu0 %v310
    %4236 = vmatpush1.msra.mxu0 %v309
    %4237 = vmatprep.subr.mxu0 0.0
    %4238 = vmatpush1.msra.mxu0 0.0
    %4239 = vmatprep.subr.mxu0 0.0
    %4240 = vmatpush1.msra.mxu0 0.0
    %4241 = vmatprep.subr.mxu0 0.0
    %4242 = vmatpush1.msra.mxu0 0.0
    %4243 = vmatprep.subr.mxu0 0.0
    %4244 = vmatpush1.msra.mxu0 0.0
    %4245 = vmatprep.subr.mxu0 0.0
    %4246 = vmatpush1.msra.mxu0 0.0
    %4247 = vmatprep.subr.mxu0 0.0
    %4248 = vmatpush1.msra.mxu0 0.0
    %4249 = vmatprep.subr.mxu0 0.0
    %4250 = vmatpush1.msra.mxu0 0.0
    %4251 = vmatprep.subr.mxu0 0.0
    %4252 = vmatpush1.msra.mxu0 0.0
    %4253 = vmatprep.subr.mxu0 0.0
    %4254 = vmatpush1.msra.mxu0 0.0
    %4255 = vmatprep.subr.mxu0 0.0
    %4256 = vmatpush1.msra.mxu0 0.0
    %4257 = vmatprep.subr.mxu0 0.0
    %4258 = vmatpush1.msra.mxu0 0.0
    %4259 = vmatprep.subr.mxu0 0.0
    %4260 = vmatpush1.msra.mxu0 0.0
    %4261 = vmatprep.subr.mxu0 0.0
    %4262 = vmatpush1.msra.mxu0 0.0
    %4263 = vmatprep.subr.mxu0 0.0
    %4264 = vmatpush1.msra.mxu0 0.0
    %4265 = vmatprep.subr.mxu0 0.0
    %4266 = vmatpush1.msra.mxu0 0.0
    %4267 = vmatprep.subr.mxu0 0.0
    %4268 = vmatpush1.msra.mxu0 0.0
    %4269 = vmatprep.mubr.f32.mxu0 0.0
    %4270 = vmatmul.mubr.f32.gmra.mrb[0].mxu0 %v4040
    %v4271 = vpop.f32.mrb[0].mxu0
    %v4272 = vadd.f32 %v379, %v4271
    %v4273 = vpop.f32.mrb[0].mxu0
    %v4274 = vadd.f32 %v383, %v4273
    %4275 = vdwg.mxu0
    %4276 = vmatprep.subr.mxu0 0.0
    %4277 = vmatpush1.msra.mxu0 %v266
    %4278 = vmatprep.subr.mxu0 0.0
    %4279 = vmatpush1.msra.mxu0 %v269
    %4280 = vmatprep.subr.mxu0 0.0
    %4281 = vmatpush1.msra.mxu0 %v272
    %4282 = vmatprep.subr.mxu0 0.0
    %4283 = vmatpush1.msra.mxu0 %v275
    %4284 = vmatprep.subr.mxu0 0.0
    %4285 = vmatpush1.msra.mxu0 %v278
    %4286 = vmatprep.subr.mxu0 0.0
    %4287 = vmatpush1.msra.mxu0 %v281
    %4288 = vmatprep.subr.mxu0 0.0
    %4289 = vmatpush1.msra.mxu0 %v284
    %4290 = vmatprep.subr.mxu0 0.0
    %4291 = vmatpush1.msra.mxu0 %v287
    %4292 = vmatprep.subr.mxu0 0.0
    %4293 = vmatpush1.msra.mxu0 %v290
    %4294 = vmatprep.subr.mxu0 0.0
    %4295 = vmatpush1.msra.mxu0 %v293
    %4296 = vmatprep.subr.mxu0 0.0
    %4297 = vmatpush1.msra.mxu0 %v296
    %4298 = vmatprep.subr.mxu0 0.0
    %4299 = vmatpush1.msra.mxu0 %v299
    %4300 = vmatprep.subr.mxu0 0.0
    %4301 = vmatpush1.msra.mxu0 %v302
    %4302 = vmatprep.subr.mxu0 0.0
    %4303 = vmatpush1.msra.mxu0 %v305
    %4304 = vmatprep.subr.mxu0 0.0
    %4305 = vmatpush1.msra.mxu0 %v308
    %4306 = vmatprep.subr.mxu0 0.0
    %4307 = vmatpush1.msra.mxu0 %v311
    %4308 = vmatprep.subr.mxu0 0.0
    %4309 = vmatpush1.msra.mxu0 0.0
    %4310 = vmatprep.subr.mxu0 0.0
    %4311 = vmatpush1.msra.mxu0 0.0
    %4312 = vmatprep.subr.mxu0 0.0
    %4313 = vmatpush1.msra.mxu0 0.0
    %4314 = vmatprep.subr.mxu0 0.0
    %4315 = vmatpush1.msra.mxu0 0.0
    %4316 = vmatprep.subr.mxu0 0.0
    %4317 = vmatpush1.msra.mxu0 0.0
    %4318 = vmatprep.subr.mxu0 0.0
    %4319 = vmatpush1.msra.mxu0 0.0
    %4320 = vmatprep.subr.mxu0 0.0
    %4321 = vmatpush1.msra.mxu0 0.0
    %4322 = vmatprep.subr.mxu0 0.0
    %4323 = vmatpush1.msra.mxu0 0.0
    %4324 = vmatprep.subr.mxu0 0.0
    %4325 = vmatpush1.msra.mxu0 0.0
    %4326 = vmatprep.subr.mxu0 0.0
    %4327 = vmatpush1.msra.mxu0 0.0
    %4328 = vmatprep.subr.mxu0 0.0
    %4329 = vmatpush1.msra.mxu0 0.0
    %4330 = vmatprep.subr.mxu0 0.0
    %4331 = vmatpush1.msra.mxu0 0.0
    %4332 = vmatprep.subr.mxu0 0.0
    %4333 = vmatpush1.msra.mxu0 0.0
    %4334 = vmatprep.subr.mxu0 0.0
    %4335 = vmatpush1.msra.mxu0 0.0
    %4336 = vmatprep.subr.mxu0 0.0
    %4337 = vmatpush1.msra.mxu0 0.0
    %4338 = vmatprep.subr.mxu0 0.0
    %4339 = vmatpush1.msra.mxu0 0.0
    %4340 = vmatprep.mubr.f32.mxu0 0.0
    %4341 = vmatmul.mubr.f32.gmra.mrb[0].mxu0 %v4040
    %v4342 = vpop.f32.mrb[0].mxu0
    %v4343 = vadd.f32 %v387, %v4342
    %v4344 = vpop.f32.mrb[0].mxu0
    %4345 = vdwg.mxu0
    %s4346 = scalar_lea.vmem [#allocation2], 6
    %v4347 = vld [vmem:[%s4346] ss:$8 sm:$0x7]
    %s4348 = scalar_lea.vmem %s1462, 6 [#allocation2]
    %v4349 = vld [vmem:[%s4348] ss:$8 sm:$0x7]
    %v4351 = vlaneseq
    %v4352 = vshrl.u32 %v4351, 7
    %v4353 = vsub.s32 0, %v4352
    %v4354 = vrot.slane %v4347, %v4353
    %v4355 = vlaneseq
    %v4356 = vshrl.u32 %v4355, 7
    %v4357 = vsub.s32 1, %v4356
    %v4358 = vrot.slane %v4347, %v4357
    %v4359 = vlaneseq
    %v4360 = vshrl.u32 %v4359, 7
    %v4361 = vsub.s32 2, %v4360
    %v4362 = vrot.slane %v4347, %v4361
    %v4367 = vlaneseq
    %v4368 = vshrl.u32 %v4367, 7
    %v4369 = vsub.s32 0, %v4368
    %v4370 = vrot.slane %v4349, %v4369
    %v4371 = vlaneseq
    %v4372 = vshrl.u32 %v4371, 7
    %v4373 = vsub.s32 1, %v4372
    %v4374 = vrot.slane %v4349, %v4373
    %v4375 = vlaneseq
    %v4376 = vshrl.u32 %v4375, 7
    %v4377 = vsub.s32 2, %v4376
    %v4378 = vrot.slane %v4349, %v4377
    %v4382 = vsel %vm1503, %v4354, %v4370
    %v4383 = vsel %vm1503, %v4358, %v4374
    %v4384 = vsel %vm1503, %v4362, %v4378
    %4385 = vmatprep.subr.mxu0 %v217
    %4386 = vmatpush1.msra.mxu0 %v216
    %4387 = vmatprep.subr.mxu0 %v220
    %4388 = vmatpush1.msra.mxu0 %v219
    %4389 = vmatprep.subr.mxu0 %v223
    %4390 = vmatpush1.msra.mxu0 %v222
    %4391 = vmatprep.subr.mxu0 %v226
    %4392 = vmatpush1.msra.mxu0 %v225
    %4393 = vmatprep.subr.mxu0 %v229
    %4394 = vmatpush1.msra.mxu0 %v228
    %4395 = vmatprep.subr.mxu0 %v232
    %4396 = vmatpush1.msra.mxu0 %v231
    %4397 = vmatprep.subr.mxu0 %v235
    %4398 = vmatpush1.msra.mxu0 %v234
    %4399 = vmatprep.subr.mxu0 %v238
    %4400 = vmatpush1.msra.mxu0 %v237
    %4401 = vmatprep.subr.mxu0 %v241
    %4402 = vmatpush1.msra.mxu0 %v240
    %4403 = vmatprep.subr.mxu0 %v244
    %4404 = vmatpush1.msra.mxu0 %v243
    %4405 = vmatprep.subr.mxu0 %v247
    %4406 = vmatpush1.msra.mxu0 %v246
    %4407 = vmatprep.subr.mxu0 %v250
    %4408 = vmatpush1.msra.mxu0 %v249
    %4409 = vmatprep.subr.mxu0 %v253
    %4410 = vmatpush1.msra.mxu0 %v252
    %4411 = vmatprep.subr.mxu0 %v256
    %4412 = vmatpush1.msra.mxu0 %v255
    %4413 = vmatprep.subr.mxu0 %v259
    %4414 = vmatpush1.msra.mxu0 %v258
    %4415 = vmatprep.subr.mxu0 %v262
    %4416 = vmatpush1.msra.mxu0 %v261
    %4417 = vmatprep.subr.mxu0 0.0
    %4418 = vmatpush1.msra.mxu0 0.0
    %4419 = vmatprep.subr.mxu0 0.0
    %4420 = vmatpush1.msra.mxu0 0.0
    %4421 = vmatprep.subr.mxu0 0.0
    %4422 = vmatpush1.msra.mxu0 0.0
    %4423 = vmatprep.subr.mxu0 0.0
    %4424 = vmatpush1.msra.mxu0 0.0
    %4425 = vmatprep.subr.mxu0 0.0
    %4426 = vmatpush1.msra.mxu0 0.0
    %4427 = vmatprep.subr.mxu0 0.0
    %4428 = vmatpush1.msra.mxu0 0.0
    %4429 = vmatprep.subr.mxu0 0.0
    %4430 = vmatpush1.msra.mxu0 0.0
    %4431 = vmatprep.subr.mxu0 0.0
    %4432 = vmatpush1.msra.mxu0 0.0
    %4433 = vmatprep.subr.mxu0 0.0
    %4434 = vmatpush1.msra.mxu0 0.0
    %4435 = vmatprep.subr.mxu0 0.0
    %4436 = vmatpush1.msra.mxu0 0.0
    %4437 = vmatprep.subr.mxu0 0.0
    %4438 = vmatpush1.msra.mxu0 0.0
    %4439 = vmatprep.subr.mxu0 0.0
    %4440 = vmatpush1.msra.mxu0 0.0
    %4441 = vmatprep.subr.mxu0 0.0
    %4442 = vmatpush1.msra.mxu0 0.0
    %4443 = vmatprep.subr.mxu0 0.0
    %4444 = vmatpush1.msra.mxu0 0.0
    %4445 = vmatprep.subr.mxu0 0.0
    %4446 = vmatpush1.msra.mxu0 0.0
    %4447 = vmatprep.subr.mxu0 0.0
    %4448 = vmatpush1.msra.mxu0 0.0
    %4449 = vmatprep.mubr.f32.mxu0 0.0
    %4450 = vmatmul.mubr.f32.gmra.mrb[0].mxu0 %v4040
    %v4451 = vpop.f32.mrb[0].mxu0
    %v4452 = vadd.f32 0.0, %v4451
    %v4453 = vpop.f32.mrb[0].mxu0
    %v4454 = vadd.f32 0.0, %v4453
    %4455 = vdwg.mxu0
    %4456 = vmatprep.subr.mxu0 0.0
    %4457 = vmatpush1.msra.mxu0 %v218
    %4458 = vmatprep.subr.mxu0 0.0
    %4459 = vmatpush1.msra.mxu0 %v221
    %4460 = vmatprep.subr.mxu0 0.0
    %4461 = vmatpush1.msra.mxu0 %v224
    %4462 = vmatprep.subr.mxu0 0.0
    %4463 = vmatpush1.msra.mxu0 %v227
    %4464 = vmatprep.subr.mxu0 0.0
    %4465 = vmatpush1.msra.mxu0 %v230
    %4466 = vmatprep.subr.mxu0 0.0
    %4467 = vmatpush1.msra.mxu0 %v233
    %4468 = vmatprep.subr.mxu0 0.0
    %4469 = vmatpush1.msra.mxu0 %v236
    %4470 = vmatprep.subr.mxu0 0.0
    %4471 = vmatpush1.msra.mxu0 %v239
    %4472 = vmatprep.subr.mxu0 0.0
    %4473 = vmatpush1.msra.mxu0 %v242
    %4474 = vmatprep.subr.mxu0 0.0
    %4475 = vmatpush1.msra.mxu0 %v245
    %4476 = vmatprep.subr.mxu0 0.0
    %4477 = vmatpush1.msra.mxu0 %v248
    %4478 = vmatprep.subr.mxu0 0.0
    %4479 = vmatpush1.msra.mxu0 %v251
    %4480 = vmatprep.subr.mxu0 0.0
    %4481 = vmatpush1.msra.mxu0 %v254
    %4482 = vmatprep.subr.mxu0 0.0
    %4483 = vmatpush1.msra.mxu0 %v257
    %4484 = vmatprep.subr.mxu0 0.0
    %4485 = vmatpush1.msra.mxu0 %v260
    %4486 = vmatprep.subr.mxu0 0.0
    %4487 = vmatpush1.msra.mxu0 %v263
    %4488 = vmatprep.subr.mxu0 0.0
    %4489 = vmatpush1.msra.mxu0 0.0
    %4490 = vmatprep.subr.mxu0 0.0
    %4491 = vmatpush1.msra.mxu0 0.0
    %4492 = vmatprep.subr.mxu0 0.0
    %4493 = vmatpush1.msra.mxu0 0.0
    %4494 = vmatprep.subr.mxu0 0.0
    %4495 = vmatpush1.msra.mxu0 0.0
    %4496 = vmatprep.subr.mxu0 0.0
    %4497 = vmatpush1.msra.mxu0 0.0
    %4498 = vmatprep.subr.mxu0 0.0
    %4499 = vmatpush1.msra.mxu0 0.0
    %4500 = vmatprep.subr.mxu0 0.0
    %4501 = vmatpush1.msra.mxu0 0.0
    %4502 = vmatprep.subr.mxu0 0.0
    %4503 = vmatpush1.msra.mxu0 0.0
    %4504 = vmatprep.subr.mxu0 0.0
    %4505 = vmatpush1.msra.mxu0 0.0
    %4506 = vmatprep.subr.mxu0 0.0
    %4507 = vmatpush1.msra.mxu0 0.0
    %4508 = vmatprep.subr.mxu0 0.0
    %4509 = vmatpush1.msra.mxu0 0.0
    %4510 = vmatprep.subr.mxu0 0.0
    %4511 = vmatpush1.msra.mxu0 0.0
    %4512 = vmatprep.subr.mxu0 0.0
    %4513 = vmatpush1.msra.mxu0 0.0
    %4514 = vmatprep.subr.mxu0 0.0
    %4515 = vmatpush1.msra.mxu0 0.0
    %4516 = vmatprep.subr.mxu0 0.0
    %4517 = vmatpush1.msra.mxu0 0.0
    %4518 = vmatprep.subr.mxu0 0.0
    %4519 = vmatpush1.msra.mxu0 0.0
    %4520 = vmatprep.mubr.f32.mxu0 0.0
    %4521 = vmatmul.mubr.f32.gmra.mrb[0].mxu0 %v4040
    %v4522 = vpop.f32.mrb[0].mxu0
    %v4523 = vadd.f32 0.0, %v4522
    %v4524 = vpop.f32.mrb[0].mxu0
    %4525 = vdwg.mxu0
    %v4526 = vadd.f32 %v4382, %v4452
    %v4527 = vxor.u32 %v4526, 2147483648
    %v4528 = vmul.f32 %v4527, 1.442695
    %v4529 = vpow.pop %v4528
    %v4530 = vadd.f32 %v4529, 1.0
    %v4531 = vrcp.pop %v4530
    %v4532 = vmul.f32 1.0, %v4531
    %v4533 = vadd.f32 %v4383, %v4454
    %v4534 = vxor.u32 %v4533, 2147483648
    %v4535 = vmul.f32 %v4534, 1.442695
    %v4536 = vpow.pop %v4535
    %v4537 = vadd.f32 %v4536, 1.0
    %v4538 = vrcp.pop %v4537
    %v4539 = vmul.f32 1.0, %v4538
    %v4540 = vadd.f32 %v4523, %v365
    %v4541 = vmul.f32 %v4532, %v4540
    %v4542 = vadd.f32 %v4384, %v4541
    %v4543 = vtanh.pop %v4542
    %v4544 = vsub.f32 1.0, %v4539
    %v4545 = vmul.f32 %v4544, %v4543
    %v4546 = vmul.f32 %v4539, %v4040
    %v4547 = vadd.f32 %v4545, %v4546
    %4548 = vmatprep.subr.mxu0 %v313
    %4549 = vmatpush1.msra.mxu0 %v312
    %4550 = vmatprep.subr.mxu0 %v316
    %4551 = vmatpush1.msra.mxu0 %v315
    %4552 = vmatprep.subr.mxu0 %v319
    %4553 = vmatpush1.msra.mxu0 %v318
    %4554 = vmatprep.subr.mxu0 %v322
    %4555 = vmatpush1.msra.mxu0 %v321
    %4556 = vmatprep.subr.mxu0 %v325
    %4557 = vmatpush1.msra.mxu0 %v324
    %4558 = vmatprep.subr.mxu0 %v328
    %4559 = vmatpush1.msra.mxu0 %v327
    %4560 = vmatprep.subr.mxu0 %v331
    %4561 = vmatpush1.msra.mxu0 %v330
    %4562 = vmatprep.subr.mxu0 %v334
    %4563 = vmatpush1.msra.mxu0 %v333
    %4564 = vmatprep.subr.mxu0 %v337
    %4565 = vmatpush1.msra.mxu0 %v336
    %4566 = vmatprep.subr.mxu0 %v340
    %4567 = vmatpush1.msra.mxu0 %v339
    %4568 = vmatprep.subr.mxu0 %v343
    %4569 = vmatpush1.msra.mxu0 %v342
    %4570 = vmatprep.subr.mxu0 %v346
    %4571 = vmatpush1.msra.mxu0 %v345
    %4572 = vmatprep.subr.mxu0 %v349
    %4573 = vmatpush1.msra.mxu0 %v348
    %4574 = vmatprep.subr.mxu0 %v352
    %4575 = vmatpush1.msra.mxu0 %v351
    %4576 = vmatprep.subr.mxu0 %v355
    %4577 = vmatpush1.msra.mxu0 %v354
    %4578 = vmatprep.subr.mxu0 %v358
    %4579 = vmatpush1.msra.mxu0 %v357
    %4580 = vmatprep.subr.mxu0 0.0
    %4581 = vmatpush1.msra.mxu0 0.0
    %4582 = vmatprep.subr.mxu0 0.0
    %4583 = vmatpush1.msra.mxu0 0.0
    %4584 = vmatprep.subr.mxu0 0.0
    %4585 = vmatpush1.msra.mxu0 0.0
    %4586 = vmatprep.subr.mxu0 0.0
    %4587 = vmatpush1.msra.mxu0 0.0
    %4588 = vmatprep.subr.mxu0 0.0
    %4589 = vmatpush1.msra.mxu0 0.0
    %4590 = vmatprep.subr.mxu0 0.0
    %4591 = vmatpush1.msra.mxu0 0.0
    %4592 = vmatprep.subr.mxu0 0.0
    %4593 = vmatpush1.msra.mxu0 0.0
    %4594 = vmatprep.subr.mxu0 0.0
    %4595 = vmatpush1.msra.mxu0 0.0
    %4596 = vmatprep.subr.mxu0 0.0
    %4597 = vmatpush1.msra.mxu0 0.0
    %4598 = vmatprep.subr.mxu0 0.0
    %4599 = vmatpush1.msra.mxu0 0.0
    %4600 = vmatprep.subr.mxu0 0.0
    %4601 = vmatpush1.msra.mxu0 0.0
    %4602 = vmatprep.subr.mxu0 0.0
    %4603 = vmatpush1.msra.mxu0 0.0
    %4604 = vmatprep.subr.mxu0 0.0
    %4605 = vmatpush1.msra.mxu0 0.0
    %4606 = vmatprep.subr.mxu0 0.0
    %4607 = vmatpush1.msra.mxu0 0.0
    %4608 = vmatprep.subr.mxu0 0.0
    %4609 = vmatpush1.msra.mxu0 0.0
    %4610 = vmatprep.subr.mxu0 0.0
    %4611 = vmatpush1.msra.mxu0 0.0
    %4612 = vmatprep.mubr.f32.mxu0 0.0
    %4613 = vmatmul.mubr.f32.gmra.mrb[0].mxu0 %v4203
    %v4614 = vpop.f32.mrb[0].mxu0
    %v4615 = vadd.f32 0.0, %v4614
    %v4616 = vpop.f32.mrb[0].mxu0
    %v4617 = vadd.f32 0.0, %v4616
    %4618 = vdwg.mxu0
    %4619 = vmatprep.subr.mxu0 0.0
    %4620 = vmatpush1.msra.mxu0 %v314
    %4621 = vmatprep.subr.mxu0 0.0
    %4622 = vmatpush1.msra.mxu0 %v317
    %4623 = vmatprep.subr.mxu0 0.0
    %4624 = vmatpush1.msra.mxu0 %v320
    %4625 = vmatprep.subr.mxu0 0.0
    %4626 = vmatpush1.msra.mxu0 %v323
    %4627 = vmatprep.subr.mxu0 0.0
    %4628 = vmatpush1.msra.mxu0 %v326
    %4629 = vmatprep.subr.mxu0 0.0
    %4630 = vmatpush1.msra.mxu0 %v329
    %4631 = vmatprep.subr.mxu0 0.0
    %4632 = vmatpush1.msra.mxu0 %v332
    %4633 = vmatprep.subr.mxu0 0.0
    %4634 = vmatpush1.msra.mxu0 %v335
    %4635 = vmatprep.subr.mxu0 0.0
    %4636 = vmatpush1.msra.mxu0 %v338
    %4637 = vmatprep.subr.mxu0 0.0
    %4638 = vmatpush1.msra.mxu0 %v341
    %4639 = vmatprep.subr.mxu0 0.0
    %4640 = vmatpush1.msra.mxu0 %v344
    %4641 = vmatprep.subr.mxu0 0.0
    %4642 = vmatpush1.msra.mxu0 %v347
    %4643 = vmatprep.subr.mxu0 0.0
    %4644 = vmatpush1.msra.mxu0 %v350
    %4645 = vmatprep.subr.mxu0 0.0
    %4646 = vmatpush1.msra.mxu0 %v353
    %4647 = vmatprep.subr.mxu0 0.0
    %4648 = vmatpush1.msra.mxu0 %v356
    %4649 = vmatprep.subr.mxu0 0.0
    %4650 = vmatpush1.msra.mxu0 %v359
    %4651 = vmatprep.subr.mxu0 0.0
    %4652 = vmatpush1.msra.mxu0 0.0
    %4653 = vmatprep.subr.mxu0 0.0
    %4654 = vmatpush1.msra.mxu0 0.0
    %4655 = vmatprep.subr.mxu0 0.0
    %4656 = vmatpush1.msra.mxu0 0.0
    %4657 = vmatprep.subr.mxu0 0.0
    %4658 = vmatpush1.msra.mxu0 0.0
    %4659 = vmatprep.subr.mxu0 0.0
    %4660 = vmatpush1.msra.mxu0 0.0
    %4661 = vmatprep.subr.mxu0 0.0
    %4662 = vmatpush1.msra.mxu0 0.0
    %4663 = vmatprep.subr.mxu0 0.0
    %4664 = vmatpush1.msra.mxu0 0.0
    %4665 = vmatprep.subr.mxu0 0.0
    %4666 = vmatpush1.msra.mxu0 0.0
    %4667 = vmatprep.subr.mxu0 0.0
    %4668 = vmatpush1.msra.mxu0 0.0
    %4669 = vmatprep.subr.mxu0 0.0
    %4670 = vmatpush1.msra.mxu0 0.0
    %4671 = vmatprep.subr.mxu0 0.0
    %4672 = vmatpush1.msra.mxu0 0.0
    %4673 = vmatprep.subr.mxu0 0.0
    %4674 = vmatpush1.msra.mxu0 0.0
    %4675 = vmatprep.subr.mxu0 0.0
    %4676 = vmatpush1.msra.mxu0 0.0
    %4677 = vmatprep.subr.mxu0 0.0
    %4678 = vmatpush1.msra.mxu0 0.0
    %4679 = vmatprep.subr.mxu0 0.0
    %4680 = vmatpush1.msra.mxu0 0.0
    %4681 = vmatprep.subr.mxu0 0.0
    %4682 = vmatpush1.msra.mxu0 0.0
    %4683 = vmatprep.mubr.f32.mxu0 0.0
    %4684 = vmatmul.mubr.f32.gmra.mrb[0].mxu0 %v4203
    %v4685 = vpop.f32.mrb[0].mxu0
    %v4686 = vadd.f32 0.0, %v4685
    %v4687 = vpop.f32.mrb[0].mxu0
    %4688 = vdwg.mxu0
    %v4689 = vadd.f32 %v4272, %v4615
    %v4690 = vxor.u32 %v4689, 2147483648
    %v4691 = vmul.f32 %v4690, 1.442695
    %v4692 = vpow.pop %v4691
    %v4693 = vadd.f32 %v4692, 1.0
    %v4694 = vrcp.pop %v4693
    %v4695 = vmul.f32 1.0, %v4694
    %v4696 = vadd.f32 %v4274, %v4617
    %v4697 = vxor.u32 %v4696, 2147483648
    %v4698 = vmul.f32 %v4697, 1.442695
    %v4699 = vpow.pop %v4698
    %v4700 = vadd.f32 %v4699, 1.0
    %v4701 = vrcp.pop %v4700
    %v4702 = vmul.f32 1.0, %v4701
    %v4703 = vadd.f32 %v4686, %v372
    %v4704 = vmul.f32 %v4695, %v4703
    %v4705 = vadd.f32 %v4343, %v4704
    %v4706 = vtanh.pop %v4705
    %v4707 = vsub.f32 1.0, %v4702
    %v4708 = vmul.f32 %v4707, %v4706
    %v4709 = vmul.f32 %v4702, %v4203
    %v4710 = vadd.f32 %v4708, %v4709
    %4711 = vst [vmem:[%s15 + $0xa] sm:$0x3] %v4710
    %4712 = vmatprep.subr.mxu0 %v265
    %4713 = vmatpush1.msra.mxu0 %v264
    %4714 = vmatprep.subr.mxu0 %v268
    %4715 = vmatpush1.msra.mxu0 %v267
    %4716 = vmatprep.subr.mxu0 %v271
    %4717 = vmatpush1.msra.mxu0 %v270
    %4718 = vmatprep.subr.mxu0 %v274
    %4719 = vmatpush1.msra.mxu0 %v273
    %4720 = vmatprep.subr.mxu0 %v277
    %4721 = vmatpush1.msra.mxu0 %v276
    %4722 = vmatprep.subr.mxu0 %v280
    %4723 = vmatpush1.msra.mxu0 %v279
    %4724 = vmatprep.subr.mxu0 %v283
    %4725 = vmatpush1.msra.mxu0 %v282
    %4726 = vmatprep.subr.mxu0 %v286
    %4727 = vmatpush1.msra.mxu0 %v285
    %4728 = vmatprep.subr.mxu0 %v289
    %4729 = vmatpush1.msra.mxu0 %v288
    %4730 = vmatprep.subr.mxu0 %v292
    %4731 = vmatpush1.msra.mxu0 %v291
    %4732 = vmatprep.subr.mxu0 %v295
    %4733 = vmatpush1.msra.mxu0 %v294
    %4734 = vmatprep.subr.mxu0 %v298
    %4735 = vmatpush1.msra.mxu0 %v297
    %4736 = vmatprep.subr.mxu0 %v301
    %4737 = vmatpush1.msra.mxu0 %v300
    %4738 = vmatprep.subr.mxu0 %v304
    %4739 = vmatpush1.msra.mxu0 %v303
    %4740 = vmatprep.subr.mxu0 %v307
    %4741 = vmatpush1.msra.mxu0 %v306
    %4742 = vmatprep.subr.mxu0 %v310
    %4743 = vmatpush1.msra.mxu0 %v309
    %4744 = vmatprep.subr.mxu0 0.0
    %4745 = vmatpush1.msra.mxu0 0.0
    %4746 = vmatprep.subr.mxu0 0.0
    %4747 = vmatpush1.msra.mxu0 0.0
    %4748 = vmatprep.subr.mxu0 0.0
    %4749 = vmatpush1.msra.mxu0 0.0
    %4750 = vmatprep.subr.mxu0 0.0
    %4751 = vmatpush1.msra.mxu0 0.0
    %4752 = vmatprep.subr.mxu0 0.0
    %4753 = vmatpush1.msra.mxu0 0.0
    %4754 = vmatprep.subr.mxu0 0.0
    %4755 = vmatpush1.msra.mxu0 0.0
    %4756 = vmatprep.subr.mxu0 0.0
    %4757 = vmatpush1.msra.mxu0 0.0
    %4758 = vmatprep.subr.mxu0 0.0
    %4759 = vmatpush1.msra.mxu0 0.0
    %4760 = vmatprep.subr.mxu0 0.0
    %4761 = vmatpush1.msra.mxu0 0.0
    %4762 = vmatprep.subr.mxu0 0.0
    %4763 = vmatpush1.msra.mxu0 0.0
    %4764 = vmatprep.subr.mxu0 0.0
    %4765 = vmatpush1.msra.mxu0 0.0
    %4766 = vmatprep.subr.mxu0 0.0
    %4767 = vmatpush1.msra.mxu0 0.0
    %4768 = vmatprep.subr.mxu0 0.0
    %4769 = vmatpush1.msra.mxu0 0.0
    %4770 = vmatprep.subr.mxu0 0.0
    %4771 = vmatpush1.msra.mxu0 0.0
    %4772 = vmatprep.subr.mxu0 0.0
    %4773 = vmatpush1.msra.mxu0 0.0
    %4774 = vmatprep.subr.mxu0 0.0
    %4775 = vmatpush1.msra.mxu0 0.0
    %4776 = vmatprep.mubr.f32.mxu0 0.0
    %4777 = vmatmul.mubr.f32.gmra.mrb[0].mxu0 %v4547
    %v4778 = vpop.f32.mrb[0].mxu0
    %v4779 = vadd.f32 %v379, %v4778
    %v4780 = vpop.f32.mrb[0].mxu0
    %v4781 = vadd.f32 %v383, %v4780
    %4782 = vdwg.mxu0
    %4783 = vmatprep.subr.mxu0 0.0
    %4784 = vmatpush1.msra.mxu0 %v266
    %4785 = vmatprep.subr.mxu0 0.0
    %4786 = vmatpush1.msra.mxu0 %v269
    %4787 = vmatprep.subr.mxu0 0.0
    %4788 = vmatpush1.msra.mxu0 %v272
    %4789 = vmatprep.subr.mxu0 0.0
    %4790 = vmatpush1.msra.mxu0 %v275
    %4791 = vmatprep.subr.mxu0 0.0
    %4792 = vmatpush1.msra.mxu0 %v278
    %4793 = vmatprep.subr.mxu0 0.0
    %4794 = vmatpush1.msra.mxu0 %v281
    %4795 = vmatprep.subr.mxu0 0.0
    %4796 = vmatpush1.msra.mxu0 %v284
    %4797 = vmatprep.subr.mxu0 0.0
    %4798 = vmatpush1.msra.mxu0 %v287
    %4799 = vmatprep.subr.mxu0 0.0
    %4800 = vmatpush1.msra.mxu0 %v290
    %4801 = vmatprep.subr.mxu0 0.0
    %4802 = vmatpush1.msra.mxu0 %v293
    %4803 = vmatprep.subr.mxu0 0.0
    %4804 = vmatpush1.msra.mxu0 %v296
    %4805 = vmatprep.subr.mxu0 0.0
    %4806 = vmatpush1.msra.mxu0 %v299
    %4807 = vmatprep.subr.mxu0 0.0
    %4808 = vmatpush1.msra.mxu0 %v302
    %4809 = vmatprep.subr.mxu0 0.0
    %4810 = vmatpush1.msra.mxu0 %v305
    %4811 = vmatprep.subr.mxu0 0.0
    %4812 = vmatpush1.msra.mxu0 %v308
    %4813 = vmatprep.subr.mxu0 0.0
    %4814 = vmatpush1.msra.mxu0 %v311
    %4815 = vmatprep.subr.mxu0 0.0
    %4816 = vmatpush1.msra.mxu0 0.0
    %4817 = vmatprep.subr.mxu0 0.0
    %4818 = vmatpush1.msra.mxu0 0.0
    %4819 = vmatprep.subr.mxu0 0.0
    %4820 = vmatpush1.msra.mxu0 0.0
    %4821 = vmatprep.subr.mxu0 0.0
    %4822 = vmatpush1.msra.mxu0 0.0
    %4823 = vmatprep.subr.mxu0 0.0
    %4824 = vmatpush1.msra.mxu0 0.0
    %4825 = vmatprep.subr.mxu0 0.0
    %4826 = vmatpush1.msra.mxu0 0.0
    %4827 = vmatprep.subr.mxu0 0.0
    %4828 = vmatpush1.msra.mxu0 0.0
    %4829 = vmatprep.subr.mxu0 0.0
    %4830 = vmatpush1.msra.mxu0 0.0
    %4831 = vmatprep.subr.mxu0 0.0
    %4832 = vmatpush1.msra.mxu0 0.0
    %4833 = vmatprep.subr.mxu0 0.0
    %4834 = vmatpush1.msra.mxu0 0.0
    %4835 = vmatprep.subr.mxu0 0.0
    %4836 = vmatpush1.msra.mxu0 0.0
    %4837 = vmatprep.subr.mxu0 0.0
    %4838 = vmatpush1.msra.mxu0 0.0
    %4839 = vmatprep.subr.mxu0 0.0
    %4840 = vmatpush1.msra.mxu0 0.0
    %4841 = vmatprep.subr.mxu0 0.0
    %4842 = vmatpush1.msra.mxu0 0.0
    %4843 = vmatprep.subr.mxu0 0.0
    %4844 = vmatpush1.msra.mxu0 0.0
    %4845 = vmatprep.subr.mxu0 0.0
    %4846 = vmatpush1.msra.mxu0 0.0
    %4847 = vmatprep.mubr.f32.mxu0 0.0
    %4848 = vmatmul.mubr.f32.gmra.mrb[0].mxu0 %v4547
    %v4849 = vpop.f32.mrb[0].mxu0
    %v4850 = vadd.f32 %v387, %v4849
    %v4851 = vpop.f32.mrb[0].mxu0
    %4852 = vdwg.mxu0
    %s4853 = scalar_lea.vmem [#allocation2], 7
    %v4854 = vld [vmem:[%s4853] ss:$8 sm:$0x7]
    %s4855 = scalar_lea.vmem %s1462, 7 [#allocation2]
    %v4856 = vld [vmem:[%s4855] ss:$8 sm:$0x7]
    %v4858 = vlaneseq
    %v4859 = vshrl.u32 %v4858, 7
    %v4860 = vsub.s32 0, %v4859
    %v4861 = vrot.slane %v4854, %v4860
    %v4862 = vlaneseq
    %v4863 = vshrl.u32 %v4862, 7
    %v4864 = vsub.s32 1, %v4863
    %v4865 = vrot.slane %v4854, %v4864
    %v4866 = vlaneseq
    %v4867 = vshrl.u32 %v4866, 7
    %v4868 = vsub.s32 2, %v4867
    %v4869 = vrot.slane %v4854, %v4868
    %v4874 = vlaneseq
    %v4875 = vshrl.u32 %v4874, 7
    %v4876 = vsub.s32 0, %v4875
    %v4877 = vrot.slane %v4856, %v4876
    %v4878 = vlaneseq
    %v4879 = vshrl.u32 %v4878, 7
    %v4880 = vsub.s32 1, %v4879
    %v4881 = vrot.slane %v4856, %v4880
    %v4882 = vlaneseq
    %v4883 = vshrl.u32 %v4882, 7
    %v4884 = vsub.s32 2, %v4883
    %v4885 = vrot.slane %v4856, %v4884
    %v4889 = vsel %vm1503, %v4861, %v4877
    %v4890 = vsel %vm1503, %v4865, %v4881
    %v4891 = vsel %vm1503, %v4869, %v4885
    %4892 = vmatprep.subr.mxu0 %v217
    %4893 = vmatpush1.msra.mxu0 %v216
    %4894 = vmatprep.subr.mxu0 %v220
    %4895 = vmatpush1.msra.mxu0 %v219
    %4896 = vmatprep.subr.mxu0 %v223
    %4897 = vmatpush1.msra.mxu0 %v222
    %4898 = vmatprep.subr.mxu0 %v226
    %4899 = vmatpush1.msra.mxu0 %v225
    %4900 = vmatprep.subr.mxu0 %v229
    %4901 = vmatpush1.msra.mxu0 %v228
    %4902 = vmatprep.subr.mxu0 %v232
    %4903 = vmatpush1.msra.mxu0 %v231
    %4904 = vmatprep.subr.mxu0 %v235
    %4905 = vmatpush1.msra.mxu0 %v234
    %4906 = vmatprep.subr.mxu0 %v238
    %4907 = vmatpush1.msra.mxu0 %v237
    %4908 = vmatprep.subr.mxu0 %v241
    %4909 = vmatpush1.msra.mxu0 %v240
    %4910 = vmatprep.subr.mxu0 %v244
    %4911 = vmatpush1.msra.mxu0 %v243
    %4912 = vmatprep.subr.mxu0 %v247
    %4913 = vmatpush1.msra.mxu0 %v246
    %4914 = vmatprep.subr.mxu0 %v250
    %4915 = vmatpush1.msra.mxu0 %v249
    %4916 = vmatprep.subr.mxu0 %v253
    %4917 = vmatpush1.msra.mxu0 %v252
    %4918 = vmatprep.subr.mxu0 %v256
    %4919 = vmatpush1.msra.mxu0 %v255
    %4920 = vmatprep.subr.mxu0 %v259
    %4921 = vmatpush1.msra.mxu0 %v258
    %4922 = vmatprep.subr.mxu0 %v262
    %4923 = vmatpush1.msra.mxu0 %v261
    %4924 = vmatprep.subr.mxu0 0.0
    %4925 = vmatpush1.msra.mxu0 0.0
    %4926 = vmatprep.subr.mxu0 0.0
    %4927 = vmatpush1.msra.mxu0 0.0
    %4928 = vmatprep.subr.mxu0 0.0
    %4929 = vmatpush1.msra.mxu0 0.0
    %4930 = vmatprep.subr.mxu0 0.0
    %4931 = vmatpush1.msra.mxu0 0.0
    %4932 = vmatprep.subr.mxu0 0.0
    %4933 = vmatpush1.msra.mxu0 0.0
    %4934 = vmatprep.subr.mxu0 0.0
    %4935 = vmatpush1.msra.mxu0 0.0
    %4936 = vmatprep.subr.mxu0 0.0
    %4937 = vmatpush1.msra.mxu0 0.0
    %4938 = vmatprep.subr.mxu0 0.0
    %4939 = vmatpush1.msra.mxu0 0.0
    %4940 = vmatprep.subr.mxu0 0.0
    %4941 = vmatpush1.msra.mxu0 0.0
    %4942 = vmatprep.subr.mxu0 0.0
    %4943 = vmatpush1.msra.mxu0 0.0
    %4944 = vmatprep.subr.mxu0 0.0
    %4945 = vmatpush1.msra.mxu0 0.0
    %4946 = vmatprep.subr.mxu0 0.0
    %4947 = vmatpush1.msra.mxu0 0.0
    %4948 = vmatprep.subr.mxu0 0.0
    %4949 = vmatpush1.msra.mxu0 0.0
    %4950 = vmatprep.subr.mxu0 0.0
    %4951 = vmatpush1.msra.mxu0 0.0
    %4952 = vmatprep.subr.mxu0 0.0
    %4953 = vmatpush1.msra.mxu0 0.0
    %4954 = vmatprep.subr.mxu0 0.0
    %4955 = vmatpush1.msra.mxu0 0.0
    %4956 = vmatprep.mubr.f32.mxu0 0.0
    %4957 = vmatmul.mubr.f32.gmra.mrb[0].mxu0 %v4547
    %v4958 = vpop.f32.mrb[0].mxu0
    %v4959 = vadd.f32 0.0, %v4958
    %v4960 = vpop.f32.mrb[0].mxu0
    %v4961 = vadd.f32 0.0, %v4960
    %4962 = vdwg.mxu0
    %4963 = vmatprep.subr.mxu0 0.0
    %4964 = vmatpush1.msra.mxu0 %v218
    %4965 = vmatprep.subr.mxu0 0.0
    %4966 = vmatpush1.msra.mxu0 %v221
    %4967 = vmatprep.subr.mxu0 0.0
    %4968 = vmatpush1.msra.mxu0 %v224
    %4969 = vmatprep.subr.mxu0 0.0
    %4970 = vmatpush1.msra.mxu0 %v227
    %4971 = vmatprep.subr.mxu0 0.0
    %4972 = vmatpush1.msra.mxu0 %v230
    %4973 = vmatprep.subr.mxu0 0.0
    %4974 = vmatpush1.msra.mxu0 %v233
    %4975 = vmatprep.subr.mxu0 0.0
    %4976 = vmatpush1.msra.mxu0 %v236
    %4977 = vmatprep.subr.mxu0 0.0
    %4978 = vmatpush1.msra.mxu0 %v239
    %4979 = vmatprep.subr.mxu0 0.0
    %4980 = vmatpush1.msra.mxu0 %v242
    %4981 = vmatprep.subr.mxu0 0.0
    %4982 = vmatpush1.msra.mxu0 %v245
    %4983 = vmatprep.subr.mxu0 0.0
    %4984 = vmatpush1.msra.mxu0 %v248
    %4985 = vmatprep.subr.mxu0 0.0
    %4986 = vmatpush1.msra.mxu0 %v251
    %4987 = vmatprep.subr.mxu0 0.0
    %4988 = vmatpush1.msra.mxu0 %v254
    %4989 = vmatprep.subr.mxu0 0.0
    %4990 = vmatpush1.msra.mxu0 %v257
    %4991 = vmatprep.subr.mxu0 0.0
    %4992 = vmatpush1.msra.mxu0 %v260
    %4993 = vmatprep.subr.mxu0 0.0
    %4994 = vmatpush1.msra.mxu0 %v263
    %4995 = vmatprep.subr.mxu0 0.0
    %4996 = vmatpush1.msra.mxu0 0.0
    %4997 = vmatprep.subr.mxu0 0.0
    %4998 = vmatpush1.msra.mxu0 0.0
    %4999 = vmatprep.subr.mxu0 0.0
    %5000 = vmatpush1.msra.mxu0 0.0
    %5001 = vmatprep.subr.mxu0 0.0
    %5002 = vmatpush1.msra.mxu0 0.0
    %5003 = vmatprep.subr.mxu0 0.0
    %5004 = vmatpush1.msra.mxu0 0.0
    %5005 = vmatprep.subr.mxu0 0.0
    %5006 = vmatpush1.msra.mxu0 0.0
    %5007 = vmatprep.subr.mxu0 0.0
    %5008 = vmatpush1.msra.mxu0 0.0
    %5009 = vmatprep.subr.mxu0 0.0
    %5010 = vmatpush1.msra.mxu0 0.0
    %5011 = vmatprep.subr.mxu0 0.0
    %5012 = vmatpush1.msra.mxu0 0.0
    %5013 = vmatprep.subr.mxu0 0.0
    %5014 = vmatpush1.msra.mxu0 0.0
    %5015 = vmatprep.subr.mxu0 0.0
    %5016 = vmatpush1.msra.mxu0 0.0
    %5017 = vmatprep.subr.mxu0 0.0
    %5018 = vmatpush1.msra.mxu0 0.0
    %5019 = vmatprep.subr.mxu0 0.0
    %5020 = vmatpush1.msra.mxu0 0.0
    %5021 = vmatprep.subr.mxu0 0.0
    %5022 = vmatpush1.msra.mxu0 0.0
    %5023 = vmatprep.subr.mxu0 0.0
    %5024 = vmatpush1.msra.mxu0 0.0
    %5025 = vmatprep.subr.mxu0 0.0
    %5026 = vmatpush1.msra.mxu0 0.0
    %5027 = vmatprep.mubr.f32.mxu0 0.0
    %5028 = vmatmul.mubr.f32.gmra.mrb[0].mxu0 %v4547
    %v5029 = vpop.f32.mrb[0].mxu0
    %v5030 = vadd.f32 0.0, %v5029
    %v5031 = vpop.f32.mrb[0].mxu0
    %5032 = vdwg.mxu0
    %v5033 = vadd.f32 %v4889, %v4959
    %v5034 = vxor.u32 %v5033, 2147483648
    %v5035 = vmul.f32 %v5034, 1.442695
    %v5036 = vpow.pop %v5035
    %v5037 = vadd.f32 %v5036, 1.0
    %v5038 = vrcp.pop %v5037
    %v5039 = vmul.f32 1.0, %v5038
    %v5040 = vadd.f32 %v4890, %v4961
    %v5041 = vxor.u32 %v5040, 2147483648
    %v5042 = vmul.f32 %v5041, 1.442695
    %v5043 = vpow.pop %v5042
    %v5044 = vadd.f32 %v5043, 1.0
    %v5045 = vrcp.pop %v5044
    %v5046 = vmul.f32 1.0, %v5045
    %v5047 = vadd.f32 %v5030, %v365
    %v5048 = vmul.f32 %v5039, %v5047
    %v5049 = vadd.f32 %v4891, %v5048
    %v5050 = vtanh.pop %v5049
    %v5051 = vsub.f32 1.0, %v5046
    %v5052 = vmul.f32 %v5051, %v5050
    %v5053 = vmul.f32 %v5046, %v4547
    %v5054 = vadd.f32 %v5052, %v5053
    %5055 = vmatprep.subr.mxu0 %v313
    %5056 = vmatpush1.msra.mxu0 %v312
    %5057 = vmatprep.subr.mxu0 %v316
    %5058 = vmatpush1.msra.mxu0 %v315
    %5059 = vmatprep.subr.mxu0 %v319
    %5060 = vmatpush1.msra.mxu0 %v318
    %5061 = vmatprep.subr.mxu0 %v322
    %5062 = vmatpush1.msra.mxu0 %v321
    %5063 = vmatprep.subr.mxu0 %v325
    %5064 = vmatpush1.msra.mxu0 %v324
    %5065 = vmatprep.subr.mxu0 %v328
    %5066 = vmatpush1.msra.mxu0 %v327
    %5067 = vmatprep.subr.mxu0 %v331
    %5068 = vmatpush1.msra.mxu0 %v330
    %5069 = vmatprep.subr.mxu0 %v334
    %5070 = vmatpush1.msra.mxu0 %v333
    %5071 = vmatprep.subr.mxu0 %v337
    %5072 = vmatpush1.msra.mxu0 %v336
    %5073 = vmatprep.subr.mxu0 %v340
    %5074 = vmatpush1.msra.mxu0 %v339
    %5075 = vmatprep.subr.mxu0 %v343
    %5076 = vmatpush1.msra.mxu0 %v342
    %5077 = vmatprep.subr.mxu0 %v346
    %5078 = vmatpush1.msra.mxu0 %v345
    %5079 = vmatprep.subr.mxu0 %v349
    %5080 = vmatpush1.msra.mxu0 %v348
    %5081 = vmatprep.subr.mxu0 %v352
    %5082 = vmatpush1.msra.mxu0 %v351
    %5083 = vmatprep.subr.mxu0 %v355
    %5084 = vmatpush1.msra.mxu0 %v354
    %5085 = vmatprep.subr.mxu0 %v358
    %5086 = vmatpush1.msra.mxu0 %v357
    %5087 = vmatprep.subr.mxu0 0.0
    %5088 = vmatpush1.msra.mxu0 0.0
    %5089 = vmatprep.subr.mxu0 0.0
    %5090 = vmatpush1.msra.mxu0 0.0
    %5091 = vmatprep.subr.mxu0 0.0
    %5092 = vmatpush1.msra.mxu0 0.0
    %5093 = vmatprep.subr.mxu0 0.0
    %5094 = vmatpush1.msra.mxu0 0.0
    %5095 = vmatprep.subr.mxu0 0.0
    %5096 = vmatpush1.msra.mxu0 0.0
    %5097 = vmatprep.subr.mxu0 0.0
    %5098 = vmatpush1.msra.mxu0 0.0
    %5099 = vmatprep.subr.mxu0 0.0
    %5100 = vmatpush1.msra.mxu0 0.0
    %5101 = vmatprep.subr.mxu0 0.0
    %5102 = vmatpush1.msra.mxu0 0.0
    %5103 = vmatprep.subr.mxu0 0.0
    %5104 = vmatpush1.msra.mxu0 0.0
    %5105 = vmatprep.subr.mxu0 0.0
    %5106 = vmatpush1.msra.mxu0 0.0
    %5107 = vmatprep.subr.mxu0 0.0
    %5108 = vmatpush1.msra.mxu0 0.0
    %5109 = vmatprep.subr.mxu0 0.0
    %5110 = vmatpush1.msra.mxu0 0.0
    %5111 = vmatprep.subr.mxu0 0.0
    %5112 = vmatpush1.msra.mxu0 0.0
    %5113 = vmatprep.subr.mxu0 0.0
    %5114 = vmatpush1.msra.mxu0 0.0
    %5115 = vmatprep.subr.mxu0 0.0
    %5116 = vmatpush1.msra.mxu0 0.0
    %5117 = vmatprep.subr.mxu0 0.0
    %5118 = vmatpush1.msra.mxu0 0.0
    %5119 = vmatprep.mubr.f32.mxu0 0.0
    %5120 = vmatmul.mubr.f32.gmra.mrb[0].mxu0 %v4710
    %v5121 = vpop.f32.mrb[0].mxu0
    %v5122 = vadd.f32 0.0, %v5121
    %v5123 = vpop.f32.mrb[0].mxu0
    %v5124 = vadd.f32 0.0, %v5123
    %5125 = vdwg.mxu0
    %5126 = vmatprep.subr.mxu0 0.0
    %5127 = vmatpush1.msra.mxu0 %v314
    %5128 = vmatprep.subr.mxu0 0.0
    %5129 = vmatpush1.msra.mxu0 %v317
    %5130 = vmatprep.subr.mxu0 0.0
    %5131 = vmatpush1.msra.mxu0 %v320
    %5132 = vmatprep.subr.mxu0 0.0
    %5133 = vmatpush1.msra.mxu0 %v323
    %5134 = vmatprep.subr.mxu0 0.0
    %5135 = vmatpush1.msra.mxu0 %v326
    %5136 = vmatprep.subr.mxu0 0.0
    %5137 = vmatpush1.msra.mxu0 %v329
    %5138 = vmatprep.subr.mxu0 0.0
    %5139 = vmatpush1.msra.mxu0 %v332
    %5140 = vmatprep.subr.mxu0 0.0
    %5141 = vmatpush1.msra.mxu0 %v335
    %5142 = vmatprep.subr.mxu0 0.0
    %5143 = vmatpush1.msra.mxu0 %v338
    %5144 = vmatprep.subr.mxu0 0.0
    %5145 = vmatpush1.msra.mxu0 %v341
    %5146 = vmatprep.subr.mxu0 0.0
    %5147 = vmatpush1.msra.mxu0 %v344
    %5148 = vmatprep.subr.mxu0 0.0
    %5149 = vmatpush1.msra.mxu0 %v347
    %5150 = vmatprep.subr.mxu0 0.0
    %5151 = vmatpush1.msra.mxu0 %v350
    %5152 = vmatprep.subr.mxu0 0.0
    %5153 = vmatpush1.msra.mxu0 %v353
    %5154 = vmatprep.subr.mxu0 0.0
    %5155 = vmatpush1.msra.mxu0 %v356
    %5156 = vmatprep.subr.mxu0 0.0
    %5157 = vmatpush1.msra.mxu0 %v359
    %5158 = vmatprep.subr.mxu0 0.0
    %5159 = vmatpush1.msra.mxu0 0.0
    %5160 = vmatprep.subr.mxu0 0.0
    %5161 = vmatpush1.msra.mxu0 0.0
    %5162 = vmatprep.subr.mxu0 0.0
    %5163 = vmatpush1.msra.mxu0 0.0
    %5164 = vmatprep.subr.mxu0 0.0
    %5165 = vmatpush1.msra.mxu0 0.0
    %5166 = vmatprep.subr.mxu0 0.0
    %5167 = vmatpush1.msra.mxu0 0.0
    %5168 = vmatprep.subr.mxu0 0.0
    %5169 = vmatpush1.msra.mxu0 0.0
    %5170 = vmatprep.subr.mxu0 0.0
    %5171 = vmatpush1.msra.mxu0 0.0
    %5172 = vmatprep.subr.mxu0 0.0
    %5173 = vmatpush1.msra.mxu0 0.0
    %5174 = vmatprep.subr.mxu0 0.0
    %5175 = vmatpush1.msra.mxu0 0.0
    %5176 = vmatprep.subr.mxu0 0.0
    %5177 = vmatpush1.msra.mxu0 0.0
    %5178 = vmatprep.subr.mxu0 0.0
    %5179 = vmatpush1.msra.mxu0 0.0
    %5180 = vmatprep.subr.mxu0 0.0
    %5181 = vmatpush1.msra.mxu0 0.0
    %5182 = vmatprep.subr.mxu0 0.0
    %5183 = vmatpush1.msra.mxu0 0.0
    %5184 = vmatprep.subr.mxu0 0.0
    %5185 = vmatpush1.msra.mxu0 0.0
    %5186 = vmatprep.subr.mxu0 0.0
    %5187 = vmatpush1.msra.mxu0 0.0
    %5188 = vmatprep.subr.mxu0 0.0
    %5189 = vmatpush1.msra.mxu0 0.0
    %5190 = vmatprep.mubr.f32.mxu0 0.0
    %5191 = vmatmul.mubr.f32.gmra.mrb[0].mxu0 %v4710
    %v5192 = vpop.f32.mrb[0].mxu0
    %v5193 = vadd.f32 0.0, %v5192
    %v5194 = vpop.f32.mrb[0].mxu0
    %5195 = vdwg.mxu0
    %v5196 = vadd.f32 %v4779, %v5122
    %v5197 = vxor.u32 %v5196, 2147483648
    %v5198 = vmul.f32 %v5197, 1.442695
    %v5199 = vpow.pop %v5198
    %v5200 = vadd.f32 %v5199, 1.0
    %v5201 = vrcp.pop %v5200
    %v5202 = vmul.f32 1.0, %v5201
    %v5203 = vadd.f32 %v4781, %v5124
    %v5204 = vxor.u32 %v5203, 2147483648
    %v5205 = vmul.f32 %v5204, 1.442695
    %v5206 = vpow.pop %v5205
    %v5207 = vadd.f32 %v5206, 1.0
    %v5208 = vrcp.pop %v5207
    %v5209 = vmul.f32 1.0, %v5208
    %v5210 = vadd.f32 %v5193, %v372
    %v5211 = vmul.f32 %v5202, %v5210
    %v5212 = vadd.f32 %v4850, %v5211
    %v5213 = vtanh.pop %v5212
    %v5214 = vsub.f32 1.0, %v5209
    %v5215 = vmul.f32 %v5214, %v5213
    %v5216 = vmul.f32 %v5209, %v4710
    %v5217 = vadd.f32 %v5215, %v5216
    %5218 = vst [vmem:[%s15 + $0xc] sm:$0x3] %v5217
    %5219 = vmatprep.subr.mxu0 %v265
    %5220 = vmatpush1.msra.mxu0 %v264
    %5221 = vmatprep.subr.mxu0 %v268
    %5222 = vmatpush1.msra.mxu0 %v267
    %5223 = vmatprep.subr.mxu0 %v271
    %5224 = vmatpush1.msra.mxu0 %v270
    %5225 = vmatprep.subr.mxu0 %v274
    %5226 = vmatpush1.msra.mxu0 %v273
    %5227 = vmatprep.subr.mxu0 %v277
    %5228 = vmatpush1.msra.mxu0 %v276
    %5229 = vmatprep.subr.mxu0 %v280
    %5230 = vmatpush1.msra.mxu0 %v279
    %5231 = vmatprep.subr.mxu0 %v283
    %5232 = vmatpush1.msra.mxu0 %v282
    %5233 = vmatprep.subr.mxu0 %v286
    %5234 = vmatpush1.msra.mxu0 %v285
    %5235 = vmatprep.subr.mxu0 %v289
    %5236 = vmatpush1.msra.mxu0 %v288
    %5237 = vmatprep.subr.mxu0 %v292
    %5238 = vmatpush1.msra.mxu0 %v291
    %5239 = vmatprep.subr.mxu0 %v295
    %5240 = vmatpush1.msra.mxu0 %v294
    %5241 = vmatprep.subr.mxu0 %v298
    %5242 = vmatpush1.msra.mxu0 %v297
    %5243 = vmatprep.subr.mxu0 %v301
    %5244 = vmatpush1.msra.mxu0 %v300
    %5245 = vmatprep.subr.mxu0 %v304
    %5246 = vmatpush1.msra.mxu0 %v303
    %5247 = vmatprep.subr.mxu0 %v307
    %5248 = vmatpush1.msra.mxu0 %v306
    %5249 = vmatprep.subr.mxu0 %v310
    %5250 = vmatpush1.msra.mxu0 %v309
    %5251 = vmatprep.subr.mxu0 0.0
    %5252 = vmatpush1.msra.mxu0 0.0
    %5253 = vmatprep.subr.mxu0 0.0
    %5254 = vmatpush1.msra.mxu0 0.0
    %5255 = vmatprep.subr.mxu0 0.0
    %5256 = vmatpush1.msra.mxu0 0.0
    %5257 = vmatprep.subr.mxu0 0.0
    %5258 = vmatpush1.msra.mxu0 0.0
    %5259 = vmatprep.subr.mxu0 0.0
    %5260 = vmatpush1.msra.mxu0 0.0
    %5261 = vmatprep.subr.mxu0 0.0
    %5262 = vmatpush1.msra.mxu0 0.0
    %5263 = vmatprep.subr.mxu0 0.0
    %5264 = vmatpush1.msra.mxu0 0.0
    %5265 = vmatprep.subr.mxu0 0.0
    %5266 = vmatpush1.msra.mxu0 0.0
    %5267 = vmatprep.subr.mxu0 0.0
    %5268 = vmatpush1.msra.mxu0 0.0
    %5269 = vmatprep.subr.mxu0 0.0
    %5270 = vmatpush1.msra.mxu0 0.0
    %5271 = vmatprep.subr.mxu0 0.0
    %5272 = vmatpush1.msra.mxu0 0.0
    %5273 = vmatprep.subr.mxu0 0.0
    %5274 = vmatpush1.msra.mxu0 0.0
    %5275 = vmatprep.subr.mxu0 0.0
    %5276 = vmatpush1.msra.mxu0 0.0
    %5277 = vmatprep.subr.mxu0 0.0
    %5278 = vmatpush1.msra.mxu0 0.0
    %5279 = vmatprep.subr.mxu0 0.0
    %5280 = vmatpush1.msra.mxu0 0.0
    %5281 = vmatprep.subr.mxu0 0.0
    %5282 = vmatpush1.msra.mxu0 0.0
    %5283 = vmatprep.mubr.f32.mxu0 0.0
    %5284 = vmatmul.mubr.f32.gmra.mrb[0].mxu0 %v5054
    %v5285 = vpop.f32.mrb[0].mxu0
    %v5286 = vadd.f32 %v379, %v5285
    %v5287 = vpop.f32.mrb[0].mxu0
    %v5288 = vadd.f32 %v383, %v5287
    %5289 = vdwg.mxu0
    %5290 = vmatprep.subr.mxu0 0.0
    %5291 = vmatpush1.msra.mxu0 %v266
    %5292 = vmatprep.subr.mxu0 0.0
    %5293 = vmatpush1.msra.mxu0 %v269
    %5294 = vmatprep.subr.mxu0 0.0
    %5295 = vmatpush1.msra.mxu0 %v272
    %5296 = vmatprep.subr.mxu0 0.0
    %5297 = vmatpush1.msra.mxu0 %v275
    %5298 = vmatprep.subr.mxu0 0.0
    %5299 = vmatpush1.msra.mxu0 %v278
    %5300 = vmatprep.subr.mxu0 0.0
    %5301 = vmatpush1.msra.mxu0 %v281
    %5302 = vmatprep.subr.mxu0 0.0
    %5303 = vmatpush1.msra.mxu0 %v284
    %5304 = vmatprep.subr.mxu0 0.0
    %5305 = vmatpush1.msra.mxu0 %v287
    %5306 = vmatprep.subr.mxu0 0.0
    %5307 = vmatpush1.msra.mxu0 %v290
    %5308 = vmatprep.subr.mxu0 0.0
    %5309 = vmatpush1.msra.mxu0 %v293
    %5310 = vmatprep.subr.mxu0 0.0
    %5311 = vmatpush1.msra.mxu0 %v296
    %5312 = vmatprep.subr.mxu0 0.0
    %5313 = vmatpush1.msra.mxu0 %v299
    %5314 = vmatprep.subr.mxu0 0.0
    %5315 = vmatpush1.msra.mxu0 %v302
    %5316 = vmatprep.subr.mxu0 0.0
    %5317 = vmatpush1.msra.mxu0 %v305
    %5318 = vmatprep.subr.mxu0 0.0
    %5319 = vmatpush1.msra.mxu0 %v308
    %5320 = vmatprep.subr.mxu0 0.0
    %5321 = vmatpush1.msra.mxu0 %v311
    %5322 = vmatprep.subr.mxu0 0.0
    %5323 = vmatpush1.msra.mxu0 0.0
    %5324 = vmatprep.subr.mxu0 0.0
    %5325 = vmatpush1.msra.mxu0 0.0
    %5326 = vmatprep.subr.mxu0 0.0
    %5327 = vmatpush1.msra.mxu0 0.0
    %5328 = vmatprep.subr.mxu0 0.0
    %5329 = vmatpush1.msra.mxu0 0.0
    %5330 = vmatprep.subr.mxu0 0.0
    %5331 = vmatpush1.msra.mxu0 0.0
    %5332 = vmatprep.subr.mxu0 0.0
    %5333 = vmatpush1.msra.mxu0 0.0
    %5334 = vmatprep.subr.mxu0 0.0
    %5335 = vmatpush1.msra.mxu0 0.0
    %5336 = vmatprep.subr.mxu0 0.0
    %5337 = vmatpush1.msra.mxu0 0.0
    %5338 = vmatprep.subr.mxu0 0.0
    %5339 = vmatpush1.msra.mxu0 0.0
    %5340 = vmatprep.subr.mxu0 0.0
    %5341 = vmatpush1.msra.mxu0 0.0
    %5342 = vmatprep.subr.mxu0 0.0
    %5343 = vmatpush1.msra.mxu0 0.0
    %5344 = vmatprep.subr.mxu0 0.0
    %5345 = vmatpush1.msra.mxu0 0.0
    %5346 = vmatprep.subr.mxu0 0.0
    %5347 = vmatpush1.msra.mxu0 0.0
    %5348 = vmatprep.subr.mxu0 0.0
    %5349 = vmatpush1.msra.mxu0 0.0
    %5350 = vmatprep.subr.mxu0 0.0
    %5351 = vmatpush1.msra.mxu0 0.0
    %5352 = vmatprep.subr.mxu0 0.0
    %5353 = vmatpush1.msra.mxu0 0.0
    %5354 = vmatprep.mubr.f32.mxu0 0.0
    %5355 = vmatmul.mubr.f32.gmra.mrb[0].mxu0 %v5054
    %v5356 = vpop.f32.mrb[0].mxu0
    %v5357 = vadd.f32 %v387, %v5356
    %v5358 = vpop.f32.mrb[0].mxu0
    %5359 = vdwg.mxu0
    %s5360 = scalar_lea.vmem [#allocation2], 24
    %v5361 = vld [vmem:[%s5360] ss:$8 sm:$0x7]
    %s5362 = scalar_lea.vmem %s1462, 24 [#allocation2]
    %v5363 = vld [vmem:[%s5362] ss:$8 sm:$0x7]
    %v5365 = vlaneseq
    %v5366 = vshrl.u32 %v5365, 7
    %v5367 = vsub.s32 0, %v5366
    %v5368 = vrot.slane %v5361, %v5367
    %v5369 = vlaneseq
    %v5370 = vshrl.u32 %v5369, 7
    %v5371 = vsub.s32 1, %v5370
    %v5372 = vrot.slane %v5361, %v5371
    %v5373 = vlaneseq
    %v5374 = vshrl.u32 %v5373, 7
    %v5375 = vsub.s32 2, %v5374
    %v5376 = vrot.slane %v5361, %v5375
    %v5381 = vlaneseq
    %v5382 = vshrl.u32 %v5381, 7
    %v5383 = vsub.s32 0, %v5382
    %v5384 = vrot.slane %v5363, %v5383
    %v5385 = vlaneseq
    %v5386 = vshrl.u32 %v5385, 7
    %v5387 = vsub.s32 1, %v5386
    %v5388 = vrot.slane %v5363, %v5387
    %v5389 = vlaneseq
    %v5390 = vshrl.u32 %v5389, 7
    %v5391 = vsub.s32 2, %v5390
    %v5392 = vrot.slane %v5363, %v5391
    %v5396 = vsel %vm1503, %v5368, %v5384
    %v5397 = vsel %vm1503, %v5372, %v5388
    %v5398 = vsel %vm1503, %v5376, %v5392
    %5399 = vmatprep.subr.mxu0 %v217
    %5400 = vmatpush1.msra.mxu0 %v216
    %5401 = vmatprep.subr.mxu0 %v220
    %5402 = vmatpush1.msra.mxu0 %v219
    %5403 = vmatprep.subr.mxu0 %v223
    %5404 = vmatpush1.msra.mxu0 %v222
    %5405 = vmatprep.subr.mxu0 %v226
    %5406 = vmatpush1.msra.mxu0 %v225
    %5407 = vmatprep.subr.mxu0 %v229
    %5408 = vmatpush1.msra.mxu0 %v228
    %5409 = vmatprep.subr.mxu0 %v232
    %5410 = vmatpush1.msra.mxu0 %v231
    %5411 = vmatprep.subr.mxu0 %v235
    %5412 = vmatpush1.msra.mxu0 %v234
    %5413 = vmatprep.subr.mxu0 %v238
    %5414 = vmatpush1.msra.mxu0 %v237
    %5415 = vmatprep.subr.mxu0 %v241
    %5416 = vmatpush1.msra.mxu0 %v240
    %5417 = vmatprep.subr.mxu0 %v244
    %5418 = vmatpush1.msra.mxu0 %v243
    %5419 = vmatprep.subr.mxu0 %v247
    %5420 = vmatpush1.msra.mxu0 %v246
    %5421 = vmatprep.subr.mxu0 %v250
    %5422 = vmatpush1.msra.mxu0 %v249
    %5423 = vmatprep.subr.mxu0 %v253
    %5424 = vmatpush1.msra.mxu0 %v252
    %5425 = vmatprep.subr.mxu0 %v256
    %5426 = vmatpush1.msra.mxu0 %v255
    %5427 = vmatprep.subr.mxu0 %v259
    %5428 = vmatpush1.msra.mxu0 %v258
    %5429 = vmatprep.subr.mxu0 %v262
    %5430 = vmatpush1.msra.mxu0 %v261
    %5431 = vmatprep.subr.mxu0 0.0
    %5432 = vmatpush1.msra.mxu0 0.0
    %5433 = vmatprep.subr.mxu0 0.0
    %5434 = vmatpush1.msra.mxu0 0.0
    %5435 = vmatprep.subr.mxu0 0.0
    %5436 = vmatpush1.msra.mxu0 0.0
    %5437 = vmatprep.subr.mxu0 0.0
    %5438 = vmatpush1.msra.mxu0 0.0
    %5439 = vmatprep.subr.mxu0 0.0
    %5440 = vmatpush1.msra.mxu0 0.0
    %5441 = vmatprep.subr.mxu0 0.0
    %5442 = vmatpush1.msra.mxu0 0.0
    %5443 = vmatprep.subr.mxu0 0.0
    %5444 = vmatpush1.msra.mxu0 0.0
    %5445 = vmatprep.subr.mxu0 0.0
    %5446 = vmatpush1.msra.mxu0 0.0
    %5447 = vmatprep.subr.mxu0 0.0
    %5448 = vmatpush1.msra.mxu0 0.0
    %5449 = vmatprep.subr.mxu0 0.0
    %5450 = vmatpush1.msra.mxu0 0.0
    %5451 = vmatprep.subr.mxu0 0.0
    %5452 = vmatpush1.msra.mxu0 0.0
    %5453 = vmatprep.subr.mxu0 0.0
    %5454 = vmatpush1.msra.mxu0 0.0
    %5455 = vmatprep.subr.mxu0 0.0
    %5456 = vmatpush1.msra.mxu0 0.0
    %5457 = vmatprep.subr.mxu0 0.0
    %5458 = vmatpush1.msra.mxu0 0.0
    %5459 = vmatprep.subr.mxu0 0.0
    %5460 = vmatpush1.msra.mxu0 0.0
    %5461 = vmatprep.subr.mxu0 0.0
    %5462 = vmatpush1.msra.mxu0 0.0
    %5463 = vmatprep.mubr.f32.mxu0 0.0
    %5464 = vmatmul.mubr.f32.gmra.mrb[0].mxu0 %v5054
    %v5465 = vpop.f32.mrb[0].mxu0
    %v5466 = vadd.f32 0.0, %v5465
    %v5467 = vpop.f32.mrb[0].mxu0
    %v5468 = vadd.f32 0.0, %v5467
    %5469 = vdwg.mxu0
    %5470 = vmatprep.subr.mxu0 0.0
    %5471 = vmatpush1.msra.mxu0 %v218
    %5472 = vmatprep.subr.mxu0 0.0
    %5473 = vmatpush1.msra.mxu0 %v221
    %5474 = vmatprep.subr.mxu0 0.0
    %5475 = vmatpush1.msra.mxu0 %v224
    %5476 = vmatprep.subr.mxu0 0.0
    %5477 = vmatpush1.msra.mxu0 %v227
    %5478 = vmatprep.subr.mxu0 0.0
    %5479 = vmatpush1.msra.mxu0 %v230
    %5480 = vmatprep.subr.mxu0 0.0
    %5481 = vmatpush1.msra.mxu0 %v233
    %5482 = vmatprep.subr.mxu0 0.0
    %5483 = vmatpush1.msra.mxu0 %v236
    %5484 = vmatprep.subr.mxu0 0.0
    %5485 = vmatpush1.msra.mxu0 %v239
    %5486 = vmatprep.subr.mxu0 0.0
    %5487 = vmatpush1.msra.mxu0 %v242
    %5488 = vmatprep.subr.mxu0 0.0
    %5489 = vmatpush1.msra.mxu0 %v245
    %5490 = vmatprep.subr.mxu0 0.0
    %5491 = vmatpush1.msra.mxu0 %v248
    %5492 = vmatprep.subr.mxu0 0.0
    %5493 = vmatpush1.msra.mxu0 %v251
    %5494 = vmatprep.subr.mxu0 0.0
    %5495 = vmatpush1.msra.mxu0 %v254
    %5496 = vmatprep.subr.mxu0 0.0
    %5497 = vmatpush1.msra.mxu0 %v257
    %5498 = vmatprep.subr.mxu0 0.0
    %5499 = vmatpush1.msra.mxu0 %v260
    %5500 = vmatprep.subr.mxu0 0.0
    %5501 = vmatpush1.msra.mxu0 %v263
    %5502 = vmatprep.subr.mxu0 0.0
    %5503 = vmatpush1.msra.mxu0 0.0
    %5504 = vmatprep.subr.mxu0 0.0
    %5505 = vmatpush1.msra.mxu0 0.0
    %5506 = vmatprep.subr.mxu0 0.0
    %5507 = vmatpush1.msra.mxu0 0.0
    %5508 = vmatprep.subr.mxu0 0.0
    %5509 = vmatpush1.msra.mxu0 0.0
    %5510 = vmatprep.subr.mxu0 0.0
    %5511 = vmatpush1.msra.mxu0 0.0
    %5512 = vmatprep.subr.mxu0 0.0
    %5513 = vmatpush1.msra.mxu0 0.0
    %5514 = vmatprep.subr.mxu0 0.0
    %5515 = vmatpush1.msra.mxu0 0.0
    %5516 = vmatprep.subr.mxu0 0.0
    %5517 = vmatpush1.msra.mxu0 0.0
    %5518 = vmatprep.subr.mxu0 0.0
    %5519 = vmatpush1.msra.mxu0 0.0
    %5520 = vmatprep.subr.mxu0 0.0
    %5521 = vmatpush1.msra.mxu0 0.0
    %5522 = vmatprep.subr.mxu0 0.0
    %5523 = vmatpush1.msra.mxu0 0.0
    %5524 = vmatprep.subr.mxu0 0.0
    %5525 = vmatpush1.msra.mxu0 0.0
    %5526 = vmatprep.subr.mxu0 0.0
    %5527 = vmatpush1.msra.mxu0 0.0
    %5528 = vmatprep.subr.mxu0 0.0
    %5529 = vmatpush1.msra.mxu0 0.0
    %5530 = vmatprep.subr.mxu0 0.0
    %5531 = vmatpush1.msra.mxu0 0.0
    %5532 = vmatprep.subr.mxu0 0.0
    %5533 = vmatpush1.msra.mxu0 0.0
    %5534 = vmatprep.mubr.f32.mxu0 0.0
    %5535 = vmatmul.mubr.f32.gmra.mrb[0].mxu0 %v5054
    %v5536 = vpop.f32.mrb[0].mxu0
    %v5537 = vadd.f32 0.0, %v5536
    %v5538 = vpop.f32.mrb[0].mxu0
    %5539 = vdwg.mxu0
    %v5540 = vadd.f32 %v5396, %v5466
    %v5541 = vxor.u32 %v5540, 2147483648
    %v5542 = vmul.f32 %v5541, 1.442695
    %v5543 = vpow.pop %v5542
    %v5544 = vadd.f32 %v5543, 1.0
    %v5545 = vrcp.pop %v5544
    %v5546 = vmul.f32 1.0, %v5545
    %v5547 = vadd.f32 %v5397, %v5468
    %v5548 = vxor.u32 %v5547, 2147483648
    %v5549 = vmul.f32 %v5548, 1.442695
    %v5550 = vpow.pop %v5549
    %v5551 = vadd.f32 %v5550, 1.0
    %v5552 = vrcp.pop %v5551
    %v5553 = vmul.f32 1.0, %v5552
    %v5554 = vadd.f32 %v5537, %v365
    %v5555 = vmul.f32 %v5546, %v5554
    %v5556 = vadd.f32 %v5398, %v5555
    %v5557 = vtanh.pop %v5556
    %v5558 = vsub.f32 1.0, %v5553
    %v5559 = vmul.f32 %v5558, %v5557
    %v5560 = vmul.f32 %v5553, %v5054
    %v5561 = vadd.f32 %v5559, %v5560
    %5562 = vmatprep.subr.mxu0 %v313
    %5563 = vmatpush1.msra.mxu0 %v312
    %5564 = vmatprep.subr.mxu0 %v316
    %5565 = vmatpush1.msra.mxu0 %v315
    %5566 = vmatprep.subr.mxu0 %v319
    %5567 = vmatpush1.msra.mxu0 %v318
    %5568 = vmatprep.subr.mxu0 %v322
    %5569 = vmatpush1.msra.mxu0 %v321
    %5570 = vmatprep.subr.mxu0 %v325
    %5571 = vmatpush1.msra.mxu0 %v324
    %5572 = vmatprep.subr.mxu0 %v328
    %5573 = vmatpush1.msra.mxu0 %v327
    %5574 = vmatprep.subr.mxu0 %v331
    %5575 = vmatpush1.msra.mxu0 %v330
    %5576 = vmatprep.subr.mxu0 %v334
    %5577 = vmatpush1.msra.mxu0 %v333
    %5578 = vmatprep.subr.mxu0 %v337
    %5579 = vmatpush1.msra.mxu0 %v336
    %5580 = vmatprep.subr.mxu0 %v340
    %5581 = vmatpush1.msra.mxu0 %v339
    %5582 = vmatprep.subr.mxu0 %v343
    %5583 = vmatpush1.msra.mxu0 %v342
    %5584 = vmatprep.subr.mxu0 %v346
    %5585 = vmatpush1.msra.mxu0 %v345
    %5586 = vmatprep.subr.mxu0 %v349
    %5587 = vmatpush1.msra.mxu0 %v348
    %5588 = vmatprep.subr.mxu0 %v352
    %5589 = vmatpush1.msra.mxu0 %v351
    %5590 = vmatprep.subr.mxu0 %v355
    %5591 = vmatpush1.msra.mxu0 %v354
    %5592 = vmatprep.subr.mxu0 %v358
    %5593 = vmatpush1.msra.mxu0 %v357
    %5594 = vmatprep.subr.mxu0 0.0
    %5595 = vmatpush1.msra.mxu0 0.0
    %5596 = vmatprep.subr.mxu0 0.0
    %5597 = vmatpush1.msra.mxu0 0.0
    %5598 = vmatprep.subr.mxu0 0.0
    %5599 = vmatpush1.msra.mxu0 0.0
    %5600 = vmatprep.subr.mxu0 0.0
    %5601 = vmatpush1.msra.mxu0 0.0
    %5602 = vmatprep.subr.mxu0 0.0
    %5603 = vmatpush1.msra.mxu0 0.0
    %5604 = vmatprep.subr.mxu0 0.0
    %5605 = vmatpush1.msra.mxu0 0.0
    %5606 = vmatprep.subr.mxu0 0.0
    %5607 = vmatpush1.msra.mxu0 0.0
    %5608 = vmatprep.subr.mxu0 0.0
    %5609 = vmatpush1.msra.mxu0 0.0
    %5610 = vmatprep.subr.mxu0 0.0
    %5611 = vmatpush1.msra.mxu0 0.0
    %5612 = vmatprep.subr.mxu0 0.0
    %5613 = vmatpush1.msra.mxu0 0.0
    %5614 = vmatprep.subr.mxu0 0.0
    %5615 = vmatpush1.msra.mxu0 0.0
    %5616 = vmatprep.subr.mxu0 0.0
    %5617 = vmatpush1.msra.mxu0 0.0
    %5618 = vmatprep.subr.mxu0 0.0
    %5619 = vmatpush1.msra.mxu0 0.0
    %5620 = vmatprep.subr.mxu0 0.0
    %5621 = vmatpush1.msra.mxu0 0.0
    %5622 = vmatprep.subr.mxu0 0.0
    %5623 = vmatpush1.msra.mxu0 0.0
    %5624 = vmatprep.subr.mxu0 0.0
    %5625 = vmatpush1.msra.mxu0 0.0
    %5626 = vmatprep.mubr.f32.mxu0 0.0
    %5627 = vmatmul.mubr.f32.gmra.mrb[0].mxu0 %v5217
    %v5628 = vpop.f32.mrb[0].mxu0
    %v5629 = vadd.f32 0.0, %v5628
    %v5630 = vpop.f32.mrb[0].mxu0
    %v5631 = vadd.f32 0.0, %v5630
    %5632 = vdwg.mxu0
    %5633 = vmatprep.subr.mxu0 0.0
    %5634 = vmatpush1.msra.mxu0 %v314
    %5635 = vmatprep.subr.mxu0 0.0
    %5636 = vmatpush1.msra.mxu0 %v317
    %5637 = vmatprep.subr.mxu0 0.0
    %5638 = vmatpush1.msra.mxu0 %v320
    %5639 = vmatprep.subr.mxu0 0.0
    %5640 = vmatpush1.msra.mxu0 %v323
    %5641 = vmatprep.subr.mxu0 0.0
    %5642 = vmatpush1.msra.mxu0 %v326
    %5643 = vmatprep.subr.mxu0 0.0
    %5644 = vmatpush1.msra.mxu0 %v329
    %5645 = vmatprep.subr.mxu0 0.0
    %5646 = vmatpush1.msra.mxu0 %v332
    %5647 = vmatprep.subr.mxu0 0.0
    %5648 = vmatpush1.msra.mxu0 %v335
    %5649 = vmatprep.subr.mxu0 0.0
    %5650 = vmatpush1.msra.mxu0 %v338
    %5651 = vmatprep.subr.mxu0 0.0
    %5652 = vmatpush1.msra.mxu0 %v341
    %5653 = vmatprep.subr.mxu0 0.0
    %5654 = vmatpush1.msra.mxu0 %v344
    %5655 = vmatprep.subr.mxu0 0.0
    %5656 = vmatpush1.msra.mxu0 %v347
    %5657 = vmatprep.subr.mxu0 0.0
    %5658 = vmatpush1.msra.mxu0 %v350
    %5659 = vmatprep.subr.mxu0 0.0
    %5660 = vmatpush1.msra.mxu0 %v353
    %5661 = vmatprep.subr.mxu0 0.0
    %5662 = vmatpush1.msra.mxu0 %v356
    %5663 = vmatprep.subr.mxu0 0.0
    %5664 = vmatpush1.msra.mxu0 %v359
    %5665 = vmatprep.subr.mxu0 0.0
    %5666 = vmatpush1.msra.mxu0 0.0
    %5667 = vmatprep.subr.mxu0 0.0
    %5668 = vmatpush1.msra.mxu0 0.0
    %5669 = vmatprep.subr.mxu0 0.0
    %5670 = vmatpush1.msra.mxu0 0.0
    %5671 = vmatprep.subr.mxu0 0.0
    %5672 = vmatpush1.msra.mxu0 0.0
    %5673 = vmatprep.subr.mxu0 0.0
    %5674 = vmatpush1.msra.mxu0 0.0
    %5675 = vmatprep.subr.mxu0 0.0
    %5676 = vmatpush1.msra.mxu0 0.0
    %5677 = vmatprep.subr.mxu0 0.0
    %5678 = vmatpush1.msra.mxu0 0.0
    %5679 = vmatprep.subr.mxu0 0.0
    %5680 = vmatpush1.msra.mxu0 0.0
    %5681 = vmatprep.subr.mxu0 0.0
    %5682 = vmatpush1.msra.mxu0 0.0
    %5683 = vmatprep.subr.mxu0 0.0
    %5684 = vmatpush1.msra.mxu0 0.0
    %5685 = vmatprep.subr.mxu0 0.0
    %5686 = vmatpush1.msra.mxu0 0.0
    %5687 = vmatprep.subr.mxu0 0.0
    %5688 = vmatpush1.msra.mxu0 0.0
    %5689 = vmatprep.subr.mxu0 0.0
    %5690 = vmatpush1.msra.mxu0 0.0
    %5691 = vmatprep.subr.mxu0 0.0
    %5692 = vmatpush1.msra.mxu0 0.0
    %5693 = vmatprep.subr.mxu0 0.0
    %5694 = vmatpush1.msra.mxu0 0.0
    %5695 = vmatprep.subr.mxu0 0.0
    %5696 = vmatpush1.msra.mxu0 0.0
    %5697 = vmatprep.mubr.f32.mxu0 0.0
    %5698 = vmatmul.mubr.f32.gmra.mrb[0].mxu0 %v5217
    %v5699 = vpop.f32.mrb[0].mxu0
    %v5700 = vadd.f32 0.0, %v5699
    %v5701 = vpop.f32.mrb[0].mxu0
    %5702 = vdwg.mxu0
    %v5703 = vadd.f32 %v5286, %v5629
    %v5704 = vxor.u32 %v5703, 2147483648
    %v5705 = vmul.f32 %v5704, 1.442695
    %v5706 = vpow.pop %v5705
    %v5707 = vadd.f32 %v5706, 1.0
    %v5708 = vrcp.pop %v5707
    %v5709 = vmul.f32 1.0, %v5708
    %v5710 = vadd.f32 %v5288, %v5631
    %v5711 = vxor.u32 %v5710, 2147483648
    %v5712 = vmul.f32 %v5711, 1.442695
    %v5713 = vpow.pop %v5712
    %v5714 = vadd.f32 %v5713, 1.0
    %v5715 = vrcp.pop %v5714
    %v5716 = vmul.f32 1.0, %v5715
    %v5717 = vadd.f32 %v5700, %v372
    %v5718 = vmul.f32 %v5709, %v5717
    %v5719 = vadd.f32 %v5357, %v5718
    %v5720 = vtanh.pop %v5719
    %v5721 = vsub.f32 1.0, %v5716
    %v5722 = vmul.f32 %v5721, %v5720
    %v5723 = vmul.f32 %v5716, %v5217
    %v5724 = vadd.f32 %v5722, %v5723
    %5725 = vst [vmem:[%s15 + $0xe] sm:$0x3] %v5724
    %5726 = vmatprep.subr.mxu0 %v265
    %5727 = vmatpush1.msra.mxu0 %v264
    %5728 = vmatprep.subr.mxu0 %v268
    %5729 = vmatpush1.msra.mxu0 %v267
    %5730 = vmatprep.subr.mxu0 %v271
    %5731 = vmatpush1.msra.mxu0 %v270
    %5732 = vmatprep.subr.mxu0 %v274
    %5733 = vmatpush1.msra.mxu0 %v273
    %5734 = vmatprep.subr.mxu0 %v277
    %5735 = vmatpush1.msra.mxu0 %v276
    %5736 = vmatprep.subr.mxu0 %v280
    %5737 = vmatpush1.msra.mxu0 %v279
    %5738 = vmatprep.subr.mxu0 %v283
    %5739 = vmatpush1.msra.mxu0 %v282
    %5740 = vmatprep.subr.mxu0 %v286
    %5741 = vmatpush1.msra.mxu0 %v285
    %5742 = vmatprep.subr.mxu0 %v289
    %5743 = vmatpush1.msra.mxu0 %v288
    %5744 = vmatprep.subr.mxu0 %v292
    %5745 = vmatpush1.msra.mxu0 %v291
    %5746 = vmatprep.subr.mxu0 %v295
    %5747 = vmatpush1.msra.mxu0 %v294
    %5748 = vmatprep.subr.mxu0 %v298
    %5749 = vmatpush1.msra.mxu0 %v297
    %5750 = vmatprep.subr.mxu0 %v301
    %5751 = vmatpush1.msra.mxu0 %v300
    %5752 = vmatprep.subr.mxu0 %v304
    %5753 = vmatpush1.msra.mxu0 %v303
    %5754 = vmatprep.subr.mxu0 %v307
    %5755 = vmatpush1.msra.mxu0 %v306
    %5756 = vmatprep.subr.mxu0 %v310
    %5757 = vmatpush1.msra.mxu0 %v309
    %5758 = vmatprep.subr.mxu0 0.0
    %5759 = vmatpush1.msra.mxu0 0.0
    %5760 = vmatprep.subr.mxu0 0.0
    %5761 = vmatpush1.msra.mxu0 0.0
    %5762 = vmatprep.subr.mxu0 0.0
    %5763 = vmatpush1.msra.mxu0 0.0
    %5764 = vmatprep.subr.mxu0 0.0
    %5765 = vmatpush1.msra.mxu0 0.0
    %5766 = vmatprep.subr.mxu0 0.0
    %5767 = vmatpush1.msra.mxu0 0.0
    %5768 = vmatprep.subr.mxu0 0.0
    %5769 = vmatpush1.msra.mxu0 0.0
    %5770 = vmatprep.subr.mxu0 0.0
    %5771 = vmatpush1.msra.mxu0 0.0
    %5772 = vmatprep.subr.mxu0 0.0
    %5773 = vmatpush1.msra.mxu0 0.0
    %5774 = vmatprep.subr.mxu0 0.0
    %5775 = vmatpush1.msra.mxu0 0.0
    %5776 = vmatprep.subr.mxu0 0.0
    %5777 = vmatpush1.msra.mxu0 0.0
    %5778 = vmatprep.subr.mxu0 0.0
    %5779 = vmatpush1.msra.mxu0 0.0
    %5780 = vmatprep.subr.mxu0 0.0
    %5781 = vmatpush1.msra.mxu0 0.0
    %5782 = vmatprep.subr.mxu0 0.0
    %5783 = vmatpush1.msra.mxu0 0.0
    %5784 = vmatprep.subr.mxu0 0.0
    %5785 = vmatpush1.msra.mxu0 0.0
    %5786 = vmatprep.subr.mxu0 0.0
    %5787 = vmatpush1.msra.mxu0 0.0
    %5788 = vmatprep.subr.mxu0 0.0
    %5789 = vmatpush1.msra.mxu0 0.0
    %5790 = vmatprep.mubr.f32.mxu0 0.0
    %5791 = vmatmul.mubr.f32.gmra.mrb[0].mxu0 %v5561
    %v5792 = vpop.f32.mrb[0].mxu0
    %v5793 = vadd.f32 %v379, %v5792
    %v5794 = vpop.f32.mrb[0].mxu0
    %v5795 = vadd.f32 %v383, %v5794
    %5796 = vdwg.mxu0
    %5797 = vmatprep.subr.mxu0 0.0
    %5798 = vmatpush1.msra.mxu0 %v266
    %5799 = vmatprep.subr.mxu0 0.0
    %5800 = vmatpush1.msra.mxu0 %v269
    %5801 = vmatprep.subr.mxu0 0.0
    %5802 = vmatpush1.msra.mxu0 %v272
    %5803 = vmatprep.subr.mxu0 0.0
    %5804 = vmatpush1.msra.mxu0 %v275
    %5805 = vmatprep.subr.mxu0 0.0
    %5806 = vmatpush1.msra.mxu0 %v278
    %5807 = vmatprep.subr.mxu0 0.0
    %5808 = vmatpush1.msra.mxu0 %v281
    %5809 = vmatprep.subr.mxu0 0.0
    %5810 = vmatpush1.msra.mxu0 %v284
    %5811 = vmatprep.subr.mxu0 0.0
    %5812 = vmatpush1.msra.mxu0 %v287
    %5813 = vmatprep.subr.mxu0 0.0
    %5814 = vmatpush1.msra.mxu0 %v290
    %5815 = vmatprep.subr.mxu0 0.0
    %5816 = vmatpush1.msra.mxu0 %v293
    %5817 = vmatprep.subr.mxu0 0.0
    %5818 = vmatpush1.msra.mxu0 %v296
    %5819 = vmatprep.subr.mxu0 0.0
    %5820 = vmatpush1.msra.mxu0 %v299
    %5821 = vmatprep.subr.mxu0 0.0
    %5822 = vmatpush1.msra.mxu0 %v302
    %5823 = vmatprep.subr.mxu0 0.0
    %5824 = vmatpush1.msra.mxu0 %v305
    %5825 = vmatprep.subr.mxu0 0.0
    %5826 = vmatpush1.msra.mxu0 %v308
    %5827 = vmatprep.subr.mxu0 0.0
    %5828 = vmatpush1.msra.mxu0 %v311
    %5829 = vmatprep.subr.mxu0 0.0
    %5830 = vmatpush1.msra.mxu0 0.0
    %5831 = vmatprep.subr.mxu0 0.0
    %5832 = vmatpush1.msra.mxu0 0.0
    %5833 = vmatprep.subr.mxu0 0.0
    %5834 = vmatpush1.msra.mxu0 0.0
    %5835 = vmatprep.subr.mxu0 0.0
    %5836 = vmatpush1.msra.mxu0 0.0
    %5837 = vmatprep.subr.mxu0 0.0
    %5838 = vmatpush1.msra.mxu0 0.0
    %5839 = vmatprep.subr.mxu0 0.0
    %5840 = vmatpush1.msra.mxu0 0.0
    %5841 = vmatprep.subr.mxu0 0.0
    %5842 = vmatpush1.msra.mxu0 0.0
    %5843 = vmatprep.subr.mxu0 0.0
    %5844 = vmatpush1.msra.mxu0 0.0
    %5845 = vmatprep.subr.mxu0 0.0
    %5846 = vmatpush1.msra.mxu0 0.0
    %5847 = vmatprep.subr.mxu0 0.0
    %5848 = vmatpush1.msra.mxu0 0.0
    %5849 = vmatprep.subr.mxu0 0.0
    %5850 = vmatpush1.msra.mxu0 0.0
    %5851 = vmatprep.subr.mxu0 0.0
    %5852 = vmatpush1.msra.mxu0 0.0
    %5853 = vmatprep.subr.mxu0 0.0
    %5854 = vmatpush1.msra.mxu0 0.0
    %5855 = vmatprep.subr.mxu0 0.0
    %5856 = vmatpush1.msra.mxu0 0.0
    %5857 = vmatprep.subr.mxu0 0.0
    %5858 = vmatpush1.msra.mxu0 0.0
    %5859 = vmatprep.subr.mxu0 0.0
    %5860 = vmatpush1.msra.mxu0 0.0
    %5861 = vmatprep.mubr.f32.mxu0 0.0
    %5862 = vmatmul.mubr.f32.gmra.mrb[0].mxu0 %v5561
    %v5863 = vpop.f32.mrb[0].mxu0
    %v5864 = vadd.f32 %v387, %v5863
    %v5865 = vpop.f32.mrb[0].mxu0
    %5866 = vdwg.mxu0
    %s5867 = scalar_lea.vmem [#allocation2], 25
    %v5868 = vld [vmem:[%s5867] ss:$8 sm:$0x7]
    %s5869 = scalar_lea.vmem %s1462, 25 [#allocation2]
    %v5870 = vld [vmem:[%s5869] ss:$8 sm:$0x7]
    %v5872 = vlaneseq
    %v5873 = vshrl.u32 %v5872, 7
    %v5874 = vsub.s32 0, %v5873
    %v5875 = vrot.slane %v5868, %v5874
    %v5876 = vlaneseq
    %v5877 = vshrl.u32 %v5876, 7
    %v5878 = vsub.s32 1, %v5877
    %v5879 = vrot.slane %v5868, %v5878
    %v5880 = vlaneseq
    %v5881 = vshrl.u32 %v5880, 7
    %v5882 = vsub.s32 2, %v5881
    %v5883 = vrot.slane %v5868, %v5882
    %v5888 = vlaneseq
    %v5889 = vshrl.u32 %v5888, 7
    %v5890 = vsub.s32 0, %v5889
    %v5891 = vrot.slane %v5870, %v5890
    %v5892 = vlaneseq
    %v5893 = vshrl.u32 %v5892, 7
    %v5894 = vsub.s32 1, %v5893
    %v5895 = vrot.slane %v5870, %v5894
    %v5896 = vlaneseq
    %v5897 = vshrl.u32 %v5896, 7
    %v5898 = vsub.s32 2, %v5897
    %v5899 = vrot.slane %v5870, %v5898
    %v5903 = vsel %vm1503, %v5875, %v5891
    %v5904 = vsel %vm1503, %v5879, %v5895
    %v5905 = vsel %vm1503, %v5883, %v5899
    %5906 = vmatprep.subr.mxu0 %v217
    %5907 = vmatpush1.msra.mxu0 %v216
    %5908 = vmatprep.subr.mxu0 %v220
    %5909 = vmatpush1.msra.mxu0 %v219
    %5910 = vmatprep.subr.mxu0 %v223
    %5911 = vmatpush1.msra.mxu0 %v222
    %5912 = vmatprep.subr.mxu0 %v226
    %5913 = vmatpush1.msra.mxu0 %v225
    %5914 = vmatprep.subr.mxu0 %v229
    %5915 = vmatpush1.msra.mxu0 %v228
    %5916 = vmatprep.subr.mxu0 %v232
    %5917 = vmatpush1.msra.mxu0 %v231
    %5918 = vmatprep.subr.mxu0 %v235
    %5919 = vmatpush1.msra.mxu0 %v234
    %5920 = vmatprep.subr.mxu0 %v238
    %5921 = vmatpush1.msra.mxu0 %v237
    %5922 = vmatprep.subr.mxu0 %v241
    %5923 = vmatpush1.msra.mxu0 %v240
    %5924 = vmatprep.subr.mxu0 %v244
    %5925 = vmatpush1.msra.mxu0 %v243
    %5926 = vmatprep.subr.mxu0 %v247
    %5927 = vmatpush1.msra.mxu0 %v246
    %5928 = vmatprep.subr.mxu0 %v250
    %5929 = vmatpush1.msra.mxu0 %v249
    %5930 = vmatprep.subr.mxu0 %v253
    %5931 = vmatpush1.msra.mxu0 %v252
    %5932 = vmatprep.subr.mxu0 %v256
    %5933 = vmatpush1.msra.mxu0 %v255
    %5934 = vmatprep.subr.mxu0 %v259
    %5935 = vmatpush1.msra.mxu0 %v258
    %5936 = vmatprep.subr.mxu0 %v262
    %5937 = vmatpush1.msra.mxu0 %v261
    %5938 = vmatprep.subr.mxu0 0.0
    %5939 = vmatpush1.msra.mxu0 0.0
    %5940 = vmatprep.subr.mxu0 0.0
    %5941 = vmatpush1.msra.mxu0 0.0
    %5942 = vmatprep.subr.mxu0 0.0
    %5943 = vmatpush1.msra.mxu0 0.0
    %5944 = vmatprep.subr.mxu0 0.0
    %5945 = vmatpush1.msra.mxu0 0.0
    %5946 = vmatprep.subr.mxu0 0.0
    %5947 = vmatpush1.msra.mxu0 0.0
    %5948 = vmatprep.subr.mxu0 0.0
    %5949 = vmatpush1.msra.mxu0 0.0
    %5950 = vmatprep.subr.mxu0 0.0
    %5951 = vmatpush1.msra.mxu0 0.0
    %5952 = vmatprep.subr.mxu0 0.0
    %5953 = vmatpush1.msra.mxu0 0.0
    %5954 = vmatprep.subr.mxu0 0.0
    %5955 = vmatpush1.msra.mxu0 0.0
    %5956 = vmatprep.subr.mxu0 0.0
    %5957 = vmatpush1.msra.mxu0 0.0
    %5958 = vmatprep.subr.mxu0 0.0
    %5959 = vmatpush1.msra.mxu0 0.0
    %5960 = vmatprep.subr.mxu0 0.0
    %5961 = vmatpush1.msra.mxu0 0.0
    %5962 = vmatprep.subr.mxu0 0.0
    %5963 = vmatpush1.msra.mxu0 0.0
    %5964 = vmatprep.subr.mxu0 0.0
    %5965 = vmatpush1.msra.mxu0 0.0
    %5966 = vmatprep.subr.mxu0 0.0
    %5967 = vmatpush1.msra.mxu0 0.0
    %5968 = vmatprep.subr.mxu0 0.0
    %5969 = vmatpush1.msra.mxu0 0.0
    %5970 = vmatprep.mubr.f32.mxu0 0.0
    %5971 = vmatmul.mubr.f32.gmra.mrb[0].mxu0 %v5561
    %v5972 = vpop.f32.mrb[0].mxu0
    %v5973 = vadd.f32 0.0, %v5972
    %v5974 = vpop.f32.mrb[0].mxu0
    %v5975 = vadd.f32 0.0, %v5974
    %5976 = vdwg.mxu0
    %5977 = vmatprep.subr.mxu0 0.0
    %5978 = vmatpush1.msra.mxu0 %v218
    %5979 = vmatprep.subr.mxu0 0.0
    %5980 = vmatpush1.msra.mxu0 %v221
    %5981 = vmatprep.subr.mxu0 0.0
    %5982 = vmatpush1.msra.mxu0 %v224
    %5983 = vmatprep.subr.mxu0 0.0
    %5984 = vmatpush1.msra.mxu0 %v227
    %5985 = vmatprep.subr.mxu0 0.0
    %5986 = vmatpush1.msra.mxu0 %v230
    %5987 = vmatprep.subr.mxu0 0.0
    %5988 = vmatpush1.msra.mxu0 %v233
    %5989 = vmatprep.subr.mxu0 0.0
    %5990 = vmatpush1.msra.mxu0 %v236
    %5991 = vmatprep.subr.mxu0 0.0
    %5992 = vmatpush1.msra.mxu0 %v239
    %5993 = vmatprep.subr.mxu0 0.0
    %5994 = vmatpush1.msra.mxu0 %v242
    %5995 = vmatprep.subr.mxu0 0.0
    %5996 = vmatpush1.msra.mxu0 %v245
    %5997 = vmatprep.subr.mxu0 0.0
    %5998 = vmatpush1.msra.mxu0 %v248
    %5999 = vmatprep.subr.mxu0 0.0
    %6000 = vmatpush1.msra.mxu0 %v251
    %6001 = vmatprep.subr.mxu0 0.0
    %6002 = vmatpush1.msra.mxu0 %v254
    %6003 = vmatprep.subr.mxu0 0.0
    %6004 = vmatpush1.msra.mxu0 %v257
    %6005 = vmatprep.subr.mxu0 0.0
    %6006 = vmatpush1.msra.mxu0 %v260
    %6007 = vmatprep.subr.mxu0 0.0
    %6008 = vmatpush1.msra.mxu0 %v263
    %6009 = vmatprep.subr.mxu0 0.0
    %6010 = vmatpush1.msra.mxu0 0.0
    %6011 = vmatprep.subr.mxu0 0.0
    %6012 = vmatpush1.msra.mxu0 0.0
    %6013 = vmatprep.subr.mxu0 0.0
    %6014 = vmatpush1.msra.mxu0 0.0
    %6015 = vmatprep.subr.mxu0 0.0
    %6016 = vmatpush1.msra.mxu0 0.0
    %6017 = vmatprep.subr.mxu0 0.0
    %6018 = vmatpush1.msra.mxu0 0.0
    %6019 = vmatprep.subr.mxu0 0.0
    %6020 = vmatpush1.msra.mxu0 0.0
    %6021 = vmatprep.subr.mxu0 0.0
    %6022 = vmatpush1.msra.mxu0 0.0
    %6023 = vmatprep.subr.mxu0 0.0
    %6024 = vmatpush1.msra.mxu0 0.0
    %6025 = vmatprep.subr.mxu0 0.0
    %6026 = vmatpush1.msra.mxu0 0.0
    %6027 = vmatprep.subr.mxu0 0.0
    %6028 = vmatpush1.msra.mxu0 0.0
    %6029 = vmatprep.subr.mxu0 0.0
    %6030 = vmatpush1.msra.mxu0 0.0
    %6031 = vmatprep.subr.mxu0 0.0
    %6032 = vmatpush1.msra.mxu0 0.0
    %6033 = vmatprep.subr.mxu0 0.0
    %6034 = vmatpush1.msra.mxu0 0.0
    %6035 = vmatprep.subr.mxu0 0.0
    %6036 = vmatpush1.msra.mxu0 0.0
    %6037 = vmatprep.subr.mxu0 0.0
    %6038 = vmatpush1.msra.mxu0 0.0
    %6039 = vmatprep.subr.mxu0 0.0
    %6040 = vmatpush1.msra.mxu0 0.0
    %6041 = vmatprep.mubr.f32.mxu0 0.0
    %6042 = vmatmul.mubr.f32.gmra.mrb[0].mxu0 %v5561
    %v6043 = vpop.f32.mrb[0].mxu0
    %v6044 = vadd.f32 0.0, %v6043
    %v6045 = vpop.f32.mrb[0].mxu0
    %6046 = vdwg.mxu0
    %v6047 = vadd.f32 %v5903, %v5973
    %v6048 = vxor.u32 %v6047, 2147483648
    %v6049 = vmul.f32 %v6048, 1.442695
    %v6050 = vpow.pop %v6049
    %v6051 = vadd.f32 %v6050, 1.0
    %v6052 = vrcp.pop %v6051
    %v6053 = vmul.f32 1.0, %v6052
    %v6054 = vadd.f32 %v5904, %v5975
    %v6055 = vxor.u32 %v6054, 2147483648
    %v6056 = vmul.f32 %v6055, 1.442695
    %v6057 = vpow.pop %v6056
    %v6058 = vadd.f32 %v6057, 1.0
    %v6059 = vrcp.pop %v6058
    %v6060 = vmul.f32 1.0, %v6059
    %v6061 = vadd.f32 %v6044, %v365
    %v6062 = vmul.f32 %v6053, %v6061
    %v6063 = vadd.f32 %v5905, %v6062
    %v6064 = vtanh.pop %v6063
    %v6065 = vsub.f32 1.0, %v6060
    %v6066 = vmul.f32 %v6065, %v6064
    %v6067 = vmul.f32 %v6060, %v5561
    %v6068 = vadd.f32 %v6066, %v6067
    %6069 = vmatprep.subr.mxu0 %v313
    %6070 = vmatpush1.msra.mxu0 %v312
    %6071 = vmatprep.subr.mxu0 %v316
    %6072 = vmatpush1.msra.mxu0 %v315
    %6073 = vmatprep.subr.mxu0 %v319
    %6074 = vmatpush1.msra.mxu0 %v318
    %6075 = vmatprep.subr.mxu0 %v322
    %6076 = vmatpush1.msra.mxu0 %v321
    %6077 = vmatprep.subr.mxu0 %v325
    %6078 = vmatpush1.msra.mxu0 %v324
    %6079 = vmatprep.subr.mxu0 %v328
    %6080 = vmatpush1.msra.mxu0 %v327
    %6081 = vmatprep.subr.mxu0 %v331
    %6082 = vmatpush1.msra.mxu0 %v330
    %6083 = vmatprep.subr.mxu0 %v334
    %6084 = vmatpush1.msra.mxu0 %v333
    %6085 = vmatprep.subr.mxu0 %v337
    %6086 = vmatpush1.msra.mxu0 %v336
    %6087 = vmatprep.subr.mxu0 %v340
    %6088 = vmatpush1.msra.mxu0 %v339
    %6089 = vmatprep.subr.mxu0 %v343
    %6090 = vmatpush1.msra.mxu0 %v342
    %6091 = vmatprep.subr.mxu0 %v346
    %6092 = vmatpush1.msra.mxu0 %v345
    %6093 = vmatprep.subr.mxu0 %v349
    %6094 = vmatpush1.msra.mxu0 %v348
    %6095 = vmatprep.subr.mxu0 %v352
    %6096 = vmatpush1.msra.mxu0 %v351
    %6097 = vmatprep.subr.mxu0 %v355
    %6098 = vmatpush1.msra.mxu0 %v354
    %6099 = vmatprep.subr.mxu0 %v358
    %6100 = vmatpush1.msra.mxu0 %v357
    %6101 = vmatprep.subr.mxu0 0.0
    %6102 = vmatpush1.msra.mxu0 0.0
    %6103 = vmatprep.subr.mxu0 0.0
    %6104 = vmatpush1.msra.mxu0 0.0
    %6105 = vmatprep.subr.mxu0 0.0
    %6106 = vmatpush1.msra.mxu0 0.0
    %6107 = vmatprep.subr.mxu0 0.0
    %6108 = vmatpush1.msra.mxu0 0.0
    %6109 = vmatprep.subr.mxu0 0.0
    %6110 = vmatpush1.msra.mxu0 0.0
    %6111 = vmatprep.subr.mxu0 0.0
    %6112 = vmatpush1.msra.mxu0 0.0
    %6113 = vmatprep.subr.mxu0 0.0
    %6114 = vmatpush1.msra.mxu0 0.0
    %6115 = vmatprep.subr.mxu0 0.0
    %6116 = vmatpush1.msra.mxu0 0.0
    %6117 = vmatprep.subr.mxu0 0.0
    %6118 = vmatpush1.msra.mxu0 0.0
    %6119 = vmatprep.subr.mxu0 0.0
    %6120 = vmatpush1.msra.mxu0 0.0
    %6121 = vmatprep.subr.mxu0 0.0
    %6122 = vmatpush1.msra.mxu0 0.0
    %6123 = vmatprep.subr.mxu0 0.0
    %6124 = vmatpush1.msra.mxu0 0.0
    %6125 = vmatprep.subr.mxu0 0.0
    %6126 = vmatpush1.msra.mxu0 0.0
    %6127 = vmatprep.subr.mxu0 0.0
    %6128 = vmatpush1.msra.mxu0 0.0
    %6129 = vmatprep.subr.mxu0 0.0
    %6130 = vmatpush1.msra.mxu0 0.0
    %6131 = vmatprep.subr.mxu0 0.0
    %6132 = vmatpush1.msra.mxu0 0.0
    %6133 = vmatprep.mubr.f32.mxu0 0.0
    %6134 = vmatmul.mubr.f32.gmra.mrb[0].mxu0 %v5724
    %v6135 = vpop.f32.mrb[0].mxu0
    %v6136 = vadd.f32 0.0, %v6135
    %v6137 = vpop.f32.mrb[0].mxu0
    %v6138 = vadd.f32 0.0, %v6137
    %6139 = vdwg.mxu0
    %6140 = vmatprep.subr.mxu0 0.0
    %6141 = vmatpush1.msra.mxu0 %v314
    %6142 = vmatprep.subr.mxu0 0.0
    %6143 = vmatpush1.msra.mxu0 %v317
    %6144 = vmatprep.subr.mxu0 0.0
    %6145 = vmatpush1.msra.mxu0 %v320
    %6146 = vmatprep.subr.mxu0 0.0
    %6147 = vmatpush1.msra.mxu0 %v323
    %6148 = vmatprep.subr.mxu0 0.0
    %6149 = vmatpush1.msra.mxu0 %v326
    %6150 = vmatprep.subr.mxu0 0.0
    %6151 = vmatpush1.msra.mxu0 %v329
    %6152 = vmatprep.subr.mxu0 0.0
    %6153 = vmatpush1.msra.mxu0 %v332
    %6154 = vmatprep.subr.mxu0 0.0
    %6155 = vmatpush1.msra.mxu0 %v335
    %6156 = vmatprep.subr.mxu0 0.0
    %6157 = vmatpush1.msra.mxu0 %v338
    %6158 = vmatprep.subr.mxu0 0.0
    %6159 = vmatpush1.msra.mxu0 %v341
    %6160 = vmatprep.subr.mxu0 0.0
    %6161 = vmatpush1.msra.mxu0 %v344
    %6162 = vmatprep.subr.mxu0 0.0
    %6163 = vmatpush1.msra.mxu0 %v347
    %6164 = vmatprep.subr.mxu0 0.0
    %6165 = vmatpush1.msra.mxu0 %v350
    %6166 = vmatprep.subr.mxu0 0.0
    %6167 = vmatpush1.msra.mxu0 %v353
    %6168 = vmatprep.subr.mxu0 0.0
    %6169 = vmatpush1.msra.mxu0 %v356
    %6170 = vmatprep.subr.mxu0 0.0
    %6171 = vmatpush1.msra.mxu0 %v359
    %6172 = vmatprep.subr.mxu0 0.0
    %6173 = vmatpush1.msra.mxu0 0.0
    %6174 = vmatprep.subr.mxu0 0.0
    %6175 = vmatpush1.msra.mxu0 0.0
    %6176 = vmatprep.subr.mxu0 0.0
    %6177 = vmatpush1.msra.mxu0 0.0
    %6178 = vmatprep.subr.mxu0 0.0
    %6179 = vmatpush1.msra.mxu0 0.0
    %6180 = vmatprep.subr.mxu0 0.0
    %6181 = vmatpush1.msra.mxu0 0.0
    %6182 = vmatprep.subr.mxu0 0.0
    %6183 = vmatpush1.msra.mxu0 0.0
    %6184 = vmatprep.subr.mxu0 0.0
    %6185 = vmatpush1.msra.mxu0 0.0
    %6186 = vmatprep.subr.mxu0 0.0
    %6187 = vmatpush1.msra.mxu0 0.0
    %6188 = vmatprep.subr.mxu0 0.0
    %6189 = vmatpush1.msra.mxu0 0.0
    %6190 = vmatprep.subr.mxu0 0.0
    %6191 = vmatpush1.msra.mxu0 0.0
    %6192 = vmatprep.subr.mxu0 0.0
    %6193 = vmatpush1.msra.mxu0 0.0
    %6194 = vmatprep.subr.mxu0 0.0
    %6195 = vmatpush1.msra.mxu0 0.0
    %6196 = vmatprep.subr.mxu0 0.0
    %6197 = vmatpush1.msra.mxu0 0.0
    %6198 = vmatprep.subr.mxu0 0.0
    %6199 = vmatpush1.msra.mxu0 0.0
    %6200 = vmatprep.subr.mxu0 0.0
    %6201 = vmatpush1.msra.mxu0 0.0
    %6202 = vmatprep.subr.mxu0 0.0
    %6203 = vmatpush1.msra.mxu0 0.0
    %6204 = vmatprep.mubr.f32.mxu0 0.0
    %6205 = vmatmul.mubr.f32.gmra.mrb[0].mxu0 %v5724
    %v6206 = vpop.f32.mrb[0].mxu0
    %v6207 = vadd.f32 0.0, %v6206
    %v6208 = vpop.f32.mrb[0].mxu0
    %6209 = vdwg.mxu0
    %v6210 = vadd.f32 %v5793, %v6136
    %v6211 = vxor.u32 %v6210, 2147483648
    %v6212 = vmul.f32 %v6211, 1.442695
    %v6213 = vpow.pop %v6212
    %v6214 = vadd.f32 %v6213, 1.0
    %v6215 = vrcp.pop %v6214
    %v6216 = vmul.f32 1.0, %v6215
    %v6217 = vadd.f32 %v5795, %v6138
    %v6218 = vxor.u32 %v6217, 2147483648
    %v6219 = vmul.f32 %v6218, 1.442695
    %v6220 = vpow.pop %v6219
    %v6221 = vadd.f32 %v6220, 1.0
    %v6222 = vrcp.pop %v6221
    %v6223 = vmul.f32 1.0, %v6222
    %v6224 = vadd.f32 %v6207, %v372
    %v6225 = vmul.f32 %v6216, %v6224
    %v6226 = vadd.f32 %v5864, %v6225
    %v6227 = vtanh.pop %v6226
    %v6228 = vsub.f32 1.0, %v6223
    %v6229 = vmul.f32 %v6228, %v6227
    %v6230 = vmul.f32 %v6223, %v5724
    %v6231 = vadd.f32 %v6229, %v6230
    %6232 = vst [vmem:[%s15 + $0x10] sm:$0x3] %v6231
    %6233 = vmatprep.subr.mxu0 %v265
    %6234 = vmatpush1.msra.mxu0 %v264
    %6235 = vmatprep.subr.mxu0 %v268
    %6236 = vmatpush1.msra.mxu0 %v267
    %6237 = vmatprep.subr.mxu0 %v271
    %6238 = vmatpush1.msra.mxu0 %v270
    %6239 = vmatprep.subr.mxu0 %v274
    %6240 = vmatpush1.msra.mxu0 %v273
    %6241 = vmatprep.subr.mxu0 %v277
    %6242 = vmatpush1.msra.mxu0 %v276
    %6243 = vmatprep.subr.mxu0 %v280
    %6244 = vmatpush1.msra.mxu0 %v279
    %6245 = vmatprep.subr.mxu0 %v283
    %6246 = vmatpush1.msra.mxu0 %v282
    %6247 = vmatprep.subr.mxu0 %v286
    %6248 = vmatpush1.msra.mxu0 %v285
    %6249 = vmatprep.subr.mxu0 %v289
    %6250 = vmatpush1.msra.mxu0 %v288
    %6251 = vmatprep.subr.mxu0 %v292
    %6252 = vmatpush1.msra.mxu0 %v291
    %6253 = vmatprep.subr.mxu0 %v295
    %6254 = vmatpush1.msra.mxu0 %v294
    %6255 = vmatprep.subr.mxu0 %v298
    %6256 = vmatpush1.msra.mxu0 %v297
    %6257 = vmatprep.subr.mxu0 %v301
    %6258 = vmatpush1.msra.mxu0 %v300
    %6259 = vmatprep.subr.mxu0 %v304
    %6260 = vmatpush1.msra.mxu0 %v303
    %6261 = vmatprep.subr.mxu0 %v307
    %6262 = vmatpush1.msra.mxu0 %v306
    %6263 = vmatprep.subr.mxu0 %v310
    %6264 = vmatpush1.msra.mxu0 %v309
    %6265 = vmatprep.subr.mxu0 0.0
    %6266 = vmatpush1.msra.mxu0 0.0
    %6267 = vmatprep.subr.mxu0 0.0
    %6268 = vmatpush1.msra.mxu0 0.0
    %6269 = vmatprep.subr.mxu0 0.0
    %6270 = vmatpush1.msra.mxu0 0.0
    %6271 = vmatprep.subr.mxu0 0.0
    %6272 = vmatpush1.msra.mxu0 0.0
    %6273 = vmatprep.subr.mxu0 0.0
    %6274 = vmatpush1.msra.mxu0 0.0
    %6275 = vmatprep.subr.mxu0 0.0
    %6276 = vmatpush1.msra.mxu0 0.0
    %6277 = vmatprep.subr.mxu0 0.0
    %6278 = vmatpush1.msra.mxu0 0.0
    %6279 = vmatprep.subr.mxu0 0.0
    %6280 = vmatpush1.msra.mxu0 0.0
    %6281 = vmatprep.subr.mxu0 0.0
    %6282 = vmatpush1.msra.mxu0 0.0
    %6283 = vmatprep.subr.mxu0 0.0
    %6284 = vmatpush1.msra.mxu0 0.0
    %6285 = vmatprep.subr.mxu0 0.0
    %6286 = vmatpush1.msra.mxu0 0.0
    %6287 = vmatprep.subr.mxu0 0.0
    %6288 = vmatpush1.msra.mxu0 0.0
    %6289 = vmatprep.subr.mxu0 0.0
    %6290 = vmatpush1.msra.mxu0 0.0
    %6291 = vmatprep.subr.mxu0 0.0
    %6292 = vmatpush1.msra.mxu0 0.0
    %6293 = vmatprep.subr.mxu0 0.0
    %6294 = vmatpush1.msra.mxu0 0.0
    %6295 = vmatprep.subr.mxu0 0.0
    %6296 = vmatpush1.msra.mxu0 0.0
    %6297 = vmatprep.mubr.f32.mxu0 0.0
    %6298 = vmatmul.mubr.f32.gmra.mrb[0].mxu0 %v6068
    %v6299 = vpop.f32.mrb[0].mxu0
    %v6300 = vadd.f32 %v379, %v6299
    %v6301 = vpop.f32.mrb[0].mxu0
    %v6302 = vadd.f32 %v383, %v6301
    %6303 = vdwg.mxu0
    %6304 = vmatprep.subr.mxu0 0.0
    %6305 = vmatpush1.msra.mxu0 %v266
    %6306 = vmatprep.subr.mxu0 0.0
    %6307 = vmatpush1.msra.mxu0 %v269
    %6308 = vmatprep.subr.mxu0 0.0
    %6309 = vmatpush1.msra.mxu0 %v272
    %6310 = vmatprep.subr.mxu0 0.0
    %6311 = vmatpush1.msra.mxu0 %v275
    %6312 = vmatprep.subr.mxu0 0.0
    %6313 = vmatpush1.msra.mxu0 %v278
    %6314 = vmatprep.subr.mxu0 0.0
    %6315 = vmatpush1.msra.mxu0 %v281
    %6316 = vmatprep.subr.mxu0 0.0
    %6317 = vmatpush1.msra.mxu0 %v284
    %6318 = vmatprep.subr.mxu0 0.0
    %6319 = vmatpush1.msra.mxu0 %v287
    %6320 = vmatprep.subr.mxu0 0.0
    %6321 = vmatpush1.msra.mxu0 %v290
    %6322 = vmatprep.subr.mxu0 0.0
    %6323 = vmatpush1.msra.mxu0 %v293
    %6324 = vmatprep.subr.mxu0 0.0
    %6325 = vmatpush1.msra.mxu0 %v296
    %6326 = vmatprep.subr.mxu0 0.0
    %6327 = vmatpush1.msra.mxu0 %v299
    %6328 = vmatprep.subr.mxu0 0.0
    %6329 = vmatpush1.msra.mxu0 %v302
    %6330 = vmatprep.subr.mxu0 0.0
    %6331 = vmatpush1.msra.mxu0 %v305
    %6332 = vmatprep.subr.mxu0 0.0
    %6333 = vmatpush1.msra.mxu0 %v308
    %6334 = vmatprep.subr.mxu0 0.0
    %6335 = vmatpush1.msra.mxu0 %v311
    %6336 = vmatprep.subr.mxu0 0.0
    %6337 = vmatpush1.msra.mxu0 0.0
    %6338 = vmatprep.subr.mxu0 0.0
    %6339 = vmatpush1.msra.mxu0 0.0
    %6340 = vmatprep.subr.mxu0 0.0
    %6341 = vmatpush1.msra.mxu0 0.0
    %6342 = vmatprep.subr.mxu0 0.0
    %6343 = vmatpush1.msra.mxu0 0.0
    %6344 = vmatprep.subr.mxu0 0.0
    %6345 = vmatpush1.msra.mxu0 0.0
    %6346 = vmatprep.subr.mxu0 0.0
    %6347 = vmatpush1.msra.mxu0 0.0
    %6348 = vmatprep.subr.mxu0 0.0
    %6349 = vmatpush1.msra.mxu0 0.0
    %6350 = vmatprep.subr.mxu0 0.0
    %6351 = vmatpush1.msra.mxu0 0.0
    %6352 = vmatprep.subr.mxu0 0.0
    %6353 = vmatpush1.msra.mxu0 0.0
    %6354 = vmatprep.subr.mxu0 0.0
    %6355 = vmatpush1.msra.mxu0 0.0
    %6356 = vmatprep.subr.mxu0 0.0
    %6357 = vmatpush1.msra.mxu0 0.0
    %6358 = vmatprep.subr.mxu0 0.0
    %6359 = vmatpush1.msra.mxu0 0.0
    %6360 = vmatprep.subr.mxu0 0.0
    %6361 = vmatpush1.msra.mxu0 0.0
    %6362 = vmatprep.subr.mxu0 0.0
    %6363 = vmatpush1.msra.mxu0 0.0
    %6364 = vmatprep.subr.mxu0 0.0
    %6365 = vmatpush1.msra.mxu0 0.0
    %6366 = vmatprep.subr.mxu0 0.0
    %6367 = vmatpush1.msra.mxu0 0.0
    %6368 = vmatprep.mubr.f32.mxu0 0.0
    %6369 = vmatmul.mubr.f32.gmra.mrb[0].mxu0 %v6068
    %v6370 = vpop.f32.mrb[0].mxu0
    %v6371 = vadd.f32 %v387, %v6370
    %v6372 = vpop.f32.mrb[0].mxu0
    %6373 = vdwg.mxu0
    %s6374 = scalar_lea.vmem [#allocation2], 26
    %v6375 = vld [vmem:[%s6374] ss:$8 sm:$0x7]
    %s6376 = scalar_lea.vmem %s1462, 26 [#allocation2]
    %v6377 = vld [vmem:[%s6376] ss:$8 sm:$0x7]
    %v6379 = vlaneseq
    %v6380 = vshrl.u32 %v6379, 7
    %v6381 = vsub.s32 0, %v6380
    %v6382 = vrot.slane %v6375, %v6381
    %v6383 = vlaneseq
    %v6384 = vshrl.u32 %v6383, 7
    %v6385 = vsub.s32 1, %v6384
    %v6386 = vrot.slane %v6375, %v6385
    %v6387 = vlaneseq
    %v6388 = vshrl.u32 %v6387, 7
    %v6389 = vsub.s32 2, %v6388
    %v6390 = vrot.slane %v6375, %v6389
    %v6395 = vlaneseq
    %v6396 = vshrl.u32 %v6395, 7
    %v6397 = vsub.s32 0, %v6396
    %v6398 = vrot.slane %v6377, %v6397
    %v6399 = vlaneseq
    %v6400 = vshrl.u32 %v6399, 7
    %v6401 = vsub.s32 1, %v6400
    %v6402 = vrot.slane %v6377, %v6401
    %v6403 = vlaneseq
    %v6404 = vshrl.u32 %v6403, 7
    %v6405 = vsub.s32 2, %v6404
    %v6406 = vrot.slane %v6377, %v6405
    %v6410 = vsel %vm1503, %v6382, %v6398
    %v6411 = vsel %vm1503, %v6386, %v6402
    %v6412 = vsel %vm1503, %v6390, %v6406
    %6413 = vmatprep.subr.mxu0 %v217
    %6414 = vmatpush1.msra.mxu0 %v216
    %6415 = vmatprep.subr.mxu0 %v220
    %6416 = vmatpush1.msra.mxu0 %v219
    %6417 = vmatprep.subr.mxu0 %v223
    %6418 = vmatpush1.msra.mxu0 %v222
    %6419 = vmatprep.subr.mxu0 %v226
    %6420 = vmatpush1.msra.mxu0 %v225
    %6421 = vmatprep.subr.mxu0 %v229
    %6422 = vmatpush1.msra.mxu0 %v228
    %6423 = vmatprep.subr.mxu0 %v232
    %6424 = vmatpush1.msra.mxu0 %v231
    %6425 = vmatprep.subr.mxu0 %v235
    %6426 = vmatpush1.msra.mxu0 %v234
    %6427 = vmatprep.subr.mxu0 %v238
    %6428 = vmatpush1.msra.mxu0 %v237
    %6429 = vmatprep.subr.mxu0 %v241
    %6430 = vmatpush1.msra.mxu0 %v240
    %6431 = vmatprep.subr.mxu0 %v244
    %6432 = vmatpush1.msra.mxu0 %v243
    %6433 = vmatprep.subr.mxu0 %v247
    %6434 = vmatpush1.msra.mxu0 %v246
    %6435 = vmatprep.subr.mxu0 %v250
    %6436 = vmatpush1.msra.mxu0 %v249
    %6437 = vmatprep.subr.mxu0 %v253
    %6438 = vmatpush1.msra.mxu0 %v252
    %6439 = vmatprep.subr.mxu0 %v256
    %6440 = vmatpush1.msra.mxu0 %v255
    %6441 = vmatprep.subr.mxu0 %v259
    %6442 = vmatpush1.msra.mxu0 %v258
    %6443 = vmatprep.subr.mxu0 %v262
    %6444 = vmatpush1.msra.mxu0 %v261
    %6445 = vmatprep.subr.mxu0 0.0
    %6446 = vmatpush1.msra.mxu0 0.0
    %6447 = vmatprep.subr.mxu0 0.0
    %6448 = vmatpush1.msra.mxu0 0.0
    %6449 = vmatprep.subr.mxu0 0.0
    %6450 = vmatpush1.msra.mxu0 0.0
    %6451 = vmatprep.subr.mxu0 0.0
    %6452 = vmatpush1.msra.mxu0 0.0
    %6453 = vmatprep.subr.mxu0 0.0
    %6454 = vmatpush1.msra.mxu0 0.0
    %6455 = vmatprep.subr.mxu0 0.0
    %6456 = vmatpush1.msra.mxu0 0.0
    %6457 = vmatprep.subr.mxu0 0.0
    %6458 = vmatpush1.msra.mxu0 0.0
    %6459 = vmatprep.subr.mxu0 0.0
    %6460 = vmatpush1.msra.mxu0 0.0
    %6461 = vmatprep.subr.mxu0 0.0
    %6462 = vmatpush1.msra.mxu0 0.0
    %6463 = vmatprep.subr.mxu0 0.0
    %6464 = vmatpush1.msra.mxu0 0.0
    %6465 = vmatprep.subr.mxu0 0.0
    %6466 = vmatpush1.msra.mxu0 0.0
    %6467 = vmatprep.subr.mxu0 0.0
    %6468 = vmatpush1.msra.mxu0 0.0
    %6469 = vmatprep.subr.mxu0 0.0
    %6470 = vmatpush1.msra.mxu0 0.0
    %6471 = vmatprep.subr.mxu0 0.0
    %6472 = vmatpush1.msra.mxu0 0.0
    %6473 = vmatprep.subr.mxu0 0.0
    %6474 = vmatpush1.msra.mxu0 0.0
    %6475 = vmatprep.subr.mxu0 0.0
    %6476 = vmatpush1.msra.mxu0 0.0
    %6477 = vmatprep.mubr.f32.mxu0 0.0
    %6478 = vmatmul.mubr.f32.gmra.mrb[0].mxu0 %v6068
    %v6479 = vpop.f32.mrb[0].mxu0
    %v6480 = vadd.f32 0.0, %v6479
    %v6481 = vpop.f32.mrb[0].mxu0
    %v6482 = vadd.f32 0.0, %v6481
    %6483 = vdwg.mxu0
    %6484 = vmatprep.subr.mxu0 0.0
    %6485 = vmatpush1.msra.mxu0 %v218
    %6486 = vmatprep.subr.mxu0 0.0
    %6487 = vmatpush1.msra.mxu0 %v221
    %6488 = vmatprep.subr.mxu0 0.0
    %6489 = vmatpush1.msra.mxu0 %v224
    %6490 = vmatprep.subr.mxu0 0.0
    %6491 = vmatpush1.msra.mxu0 %v227
    %6492 = vmatprep.subr.mxu0 0.0
    %6493 = vmatpush1.msra.mxu0 %v230
    %6494 = vmatprep.subr.mxu0 0.0
    %6495 = vmatpush1.msra.mxu0 %v233
    %6496 = vmatprep.subr.mxu0 0.0
    %6497 = vmatpush1.msra.mxu0 %v236
    %6498 = vmatprep.subr.mxu0 0.0
    %6499 = vmatpush1.msra.mxu0 %v239
    %6500 = vmatprep.subr.mxu0 0.0
    %6501 = vmatpush1.msra.mxu0 %v242
    %6502 = vmatprep.subr.mxu0 0.0
    %6503 = vmatpush1.msra.mxu0 %v245
    %6504 = vmatprep.subr.mxu0 0.0
    %6505 = vmatpush1.msra.mxu0 %v248
    %6506 = vmatprep.subr.mxu0 0.0
    %6507 = vmatpush1.msra.mxu0 %v251
    %6508 = vmatprep.subr.mxu0 0.0
    %6509 = vmatpush1.msra.mxu0 %v254
    %6510 = vmatprep.subr.mxu0 0.0
    %6511 = vmatpush1.msra.mxu0 %v257
    %6512 = vmatprep.subr.mxu0 0.0
    %6513 = vmatpush1.msra.mxu0 %v260
    %6514 = vmatprep.subr.mxu0 0.0
    %6515 = vmatpush1.msra.mxu0 %v263
    %6516 = vmatprep.subr.mxu0 0.0
    %6517 = vmatpush1.msra.mxu0 0.0
    %6518 = vmatprep.subr.mxu0 0.0
    %6519 = vmatpush1.msra.mxu0 0.0
    %6520 = vmatprep.subr.mxu0 0.0
    %6521 = vmatpush1.msra.mxu0 0.0
    %6522 = vmatprep.subr.mxu0 0.0
    %6523 = vmatpush1.msra.mxu0 0.0
    %6524 = vmatprep.subr.mxu0 0.0
    %6525 = vmatpush1.msra.mxu0 0.0
    %6526 = vmatprep.subr.mxu0 0.0
    %6527 = vmatpush1.msra.mxu0 0.0
    %6528 = vmatprep.subr.mxu0 0.0
    %6529 = vmatpush1.msra.mxu0 0.0
    %6530 = vmatprep.subr.mxu0 0.0
    %6531 = vmatpush1.msra.mxu0 0.0
    %6532 = vmatprep.subr.mxu0 0.0
    %6533 = vmatpush1.msra.mxu0 0.0
    %6534 = vmatprep.subr.mxu0 0.0
    %6535 = vmatpush1.msra.mxu0 0.0
    %6536 = vmatprep.subr.mxu0 0.0
    %6537 = vmatpush1.msra.mxu0 0.0
    %6538 = vmatprep.subr.mxu0 0.0
    %6539 = vmatpush1.msra.mxu0 0.0
    %6540 = vmatprep.subr.mxu0 0.0
    %6541 = vmatpush1.msra.mxu0 0.0
    %6542 = vmatprep.subr.mxu0 0.0
    %6543 = vmatpush1.msra.mxu0 0.0
    %6544 = vmatprep.subr.mxu0 0.0
    %6545 = vmatpush1.msra.mxu0 0.0
    %6546 = vmatprep.subr.mxu0 0.0
    %6547 = vmatpush1.msra.mxu0 0.0
    %6548 = vmatprep.mubr.f32.mxu0 0.0
    %6549 = vmatmul.mubr.f32.gmra.mrb[0].mxu0 %v6068
    %v6550 = vpop.f32.mrb[0].mxu0
    %v6551 = vadd.f32 0.0, %v6550
    %v6552 = vpop.f32.mrb[0].mxu0
    %6553 = vdwg.mxu0
    %v6554 = vadd.f32 %v6410, %v6480
    %v6555 = vxor.u32 %v6554, 2147483648
    %v6556 = vmul.f32 %v6555, 1.442695
    %v6557 = vpow.pop %v6556
    %v6558 = vadd.f32 %v6557, 1.0
    %v6559 = vrcp.pop %v6558
    %v6560 = vmul.f32 1.0, %v6559
    %v6561 = vadd.f32 %v6411, %v6482
    %v6562 = vxor.u32 %v6561, 2147483648
    %v6563 = vmul.f32 %v6562, 1.442695
    %v6564 = vpow.pop %v6563
    %v6565 = vadd.f32 %v6564, 1.0
    %v6566 = vrcp.pop %v6565
    %v6567 = vmul.f32 1.0, %v6566
    %v6568 = vadd.f32 %v6551, %v365
    %v6569 = vmul.f32 %v6560, %v6568
    %v6570 = vadd.f32 %v6412, %v6569
    %v6571 = vtanh.pop %v6570
    %v6572 = vsub.f32 1.0, %v6567
    %v6573 = vmul.f32 %v6572, %v6571
    %v6574 = vmul.f32 %v6567, %v6068
    %v6575 = vadd.f32 %v6573, %v6574
    %6576 = vmatprep.subr.mxu0 %v313
    %6577 = vmatpush1.msra.mxu0 %v312
    %6578 = vmatprep.subr.mxu0 %v316
    %6579 = vmatpush1.msra.mxu0 %v315
    %6580 = vmatprep.subr.mxu0 %v319
    %6581 = vmatpush1.msra.mxu0 %v318
    %6582 = vmatprep.subr.mxu0 %v322
    %6583 = vmatpush1.msra.mxu0 %v321
    %6584 = vmatprep.subr.mxu0 %v325
    %6585 = vmatpush1.msra.mxu0 %v324
    %6586 = vmatprep.subr.mxu0 %v328
    %6587 = vmatpush1.msra.mxu0 %v327
    %6588 = vmatprep.subr.mxu0 %v331
    %6589 = vmatpush1.msra.mxu0 %v330
    %6590 = vmatprep.subr.mxu0 %v334
    %6591 = vmatpush1.msra.mxu0 %v333
    %6592 = vmatprep.subr.mxu0 %v337
    %6593 = vmatpush1.msra.mxu0 %v336
    %6594 = vmatprep.subr.mxu0 %v340
    %6595 = vmatpush1.msra.mxu0 %v339
    %6596 = vmatprep.subr.mxu0 %v343
    %6597 = vmatpush1.msra.mxu0 %v342
    %6598 = vmatprep.subr.mxu0 %v346
    %6599 = vmatpush1.msra.mxu0 %v345
    %6600 = vmatprep.subr.mxu0 %v349
    %6601 = vmatpush1.msra.mxu0 %v348
    %6602 = vmatprep.subr.mxu0 %v352
    %6603 = vmatpush1.msra.mxu0 %v351
    %6604 = vmatprep.subr.mxu0 %v355
    %6605 = vmatpush1.msra.mxu0 %v354
    %6606 = vmatprep.subr.mxu0 %v358
    %6607 = vmatpush1.msra.mxu0 %v357
    %6608 = vmatprep.subr.mxu0 0.0
    %6609 = vmatpush1.msra.mxu0 0.0
    %6610 = vmatprep.subr.mxu0 0.0
    %6611 = vmatpush1.msra.mxu0 0.0
    %6612 = vmatprep.subr.mxu0 0.0
    %6613 = vmatpush1.msra.mxu0 0.0
    %6614 = vmatprep.subr.mxu0 0.0
    %6615 = vmatpush1.msra.mxu0 0.0
    %6616 = vmatprep.subr.mxu0 0.0
    %6617 = vmatpush1.msra.mxu0 0.0
    %6618 = vmatprep.subr.mxu0 0.0
    %6619 = vmatpush1.msra.mxu0 0.0
    %6620 = vmatprep.subr.mxu0 0.0
    %6621 = vmatpush1.msra.mxu0 0.0
    %6622 = vmatprep.subr.mxu0 0.0
    %6623 = vmatpush1.msra.mxu0 0.0
    %6624 = vmatprep.subr.mxu0 0.0
    %6625 = vmatpush1.msra.mxu0 0.0
    %6626 = vmatprep.subr.mxu0 0.0
    %6627 = vmatpush1.msra.mxu0 0.0
    %6628 = vmatprep.subr.mxu0 0.0
    %6629 = vmatpush1.msra.mxu0 0.0
    %6630 = vmatprep.subr.mxu0 0.0
    %6631 = vmatpush1.msra.mxu0 0.0
    %6632 = vmatprep.subr.mxu0 0.0
    %6633 = vmatpush1.msra.mxu0 0.0
    %6634 = vmatprep.subr.mxu0 0.0
    %6635 = vmatpush1.msra.mxu0 0.0
    %6636 = vmatprep.subr.mxu0 0.0
    %6637 = vmatpush1.msra.mxu0 0.0
    %6638 = vmatprep.subr.mxu0 0.0
    %6639 = vmatpush1.msra.mxu0 0.0
    %6640 = vmatprep.mubr.f32.mxu0 0.0
    %6641 = vmatmul.mubr.f32.gmra.mrb[0].mxu0 %v6231
    %v6642 = vpop.f32.mrb[0].mxu0
    %v6643 = vadd.f32 0.0, %v6642
    %v6644 = vpop.f32.mrb[0].mxu0
    %v6645 = vadd.f32 0.0, %v6644
    %6646 = vdwg.mxu0
    %6647 = vmatprep.subr.mxu0 0.0
    %6648 = vmatpush1.msra.mxu0 %v314
    %6649 = vmatprep.subr.mxu0 0.0
    %6650 = vmatpush1.msra.mxu0 %v317
    %6651 = vmatprep.subr.mxu0 0.0
    %6652 = vmatpush1.msra.mxu0 %v320
    %6653 = vmatprep.subr.mxu0 0.0
    %6654 = vmatpush1.msra.mxu0 %v323
    %6655 = vmatprep.subr.mxu0 0.0
    %6656 = vmatpush1.msra.mxu0 %v326
    %6657 = vmatprep.subr.mxu0 0.0
    %6658 = vmatpush1.msra.mxu0 %v329
    %6659 = vmatprep.subr.mxu0 0.0
    %6660 = vmatpush1.msra.mxu0 %v332
    %6661 = vmatprep.subr.mxu0 0.0
    %6662 = vmatpush1.msra.mxu0 %v335
    %6663 = vmatprep.subr.mxu0 0.0
    %6664 = vmatpush1.msra.mxu0 %v338
    %6665 = vmatprep.subr.mxu0 0.0
    %6666 = vmatpush1.msra.mxu0 %v341
    %6667 = vmatprep.subr.mxu0 0.0
    %6668 = vmatpush1.msra.mxu0 %v344
    %6669 = vmatprep.subr.mxu0 0.0
    %6670 = vmatpush1.msra.mxu0 %v347
    %6671 = vmatprep.subr.mxu0 0.0
    %6672 = vmatpush1.msra.mxu0 %v350
    %6673 = vmatprep.subr.mxu0 0.0
    %6674 = vmatpush1.msra.mxu0 %v353
    %6675 = vmatprep.subr.mxu0 0.0
    %6676 = vmatpush1.msra.mxu0 %v356
    %6677 = vmatprep.subr.mxu0 0.0
    %6678 = vmatpush1.msra.mxu0 %v359
    %6679 = vmatprep.subr.mxu0 0.0
    %6680 = vmatpush1.msra.mxu0 0.0
    %6681 = vmatprep.subr.mxu0 0.0
    %6682 = vmatpush1.msra.mxu0 0.0
    %6683 = vmatprep.subr.mxu0 0.0
    %6684 = vmatpush1.msra.mxu0 0.0
    %6685 = vmatprep.subr.mxu0 0.0
    %6686 = vmatpush1.msra.mxu0 0.0
    %6687 = vmatprep.subr.mxu0 0.0
    %6688 = vmatpush1.msra.mxu0 0.0
    %6689 = vmatprep.subr.mxu0 0.0
    %6690 = vmatpush1.msra.mxu0 0.0
    %6691 = vmatprep.subr.mxu0 0.0
    %6692 = vmatpush1.msra.mxu0 0.0
    %6693 = vmatprep.subr.mxu0 0.0
    %6694 = vmatpush1.msra.mxu0 0.0
    %6695 = vmatprep.subr.mxu0 0.0
    %6696 = vmatpush1.msra.mxu0 0.0
    %6697 = vmatprep.subr.mxu0 0.0
    %6698 = vmatpush1.msra.mxu0 0.0
    %6699 = vmatprep.subr.mxu0 0.0
    %6700 = vmatpush1.msra.mxu0 0.0
    %6701 = vmatprep.subr.mxu0 0.0
    %6702 = vmatpush1.msra.mxu0 0.0
    %6703 = vmatprep.subr.mxu0 0.0
    %6704 = vmatpush1.msra.mxu0 0.0
    %6705 = vmatprep.subr.mxu0 0.0
    %6706 = vmatpush1.msra.mxu0 0.0
    %6707 = vmatprep.subr.mxu0 0.0
    %6708 = vmatpush1.msra.mxu0 0.0
    %6709 = vmatprep.subr.mxu0 0.0
    %6710 = vmatpush1.msra.mxu0 0.0
    %6711 = vmatprep.mubr.f32.mxu0 0.0
    %6712 = vmatmul.mubr.f32.gmra.mrb[0].mxu0 %v6231
    %v6713 = vpop.f32.mrb[0].mxu0
    %v6714 = vadd.f32 0.0, %v6713
    %v6715 = vpop.f32.mrb[0].mxu0
    %6716 = vdwg.mxu0
    %v6717 = vadd.f32 %v6300, %v6643
    %v6718 = vxor.u32 %v6717, 2147483648
    %v6719 = vmul.f32 %v6718, 1.442695
    %v6720 = vpow.pop %v6719
    %v6721 = vadd.f32 %v6720, 1.0
    %v6722 = vrcp.pop %v6721
    %v6723 = vmul.f32 1.0, %v6722
    %v6724 = vadd.f32 %v6302, %v6645
    %v6725 = vxor.u32 %v6724, 2147483648
    %v6726 = vmul.f32 %v6725, 1.442695
    %v6727 = vpow.pop %v6726
    %v6728 = vadd.f32 %v6727, 1.0
    %v6729 = vrcp.pop %v6728
    %v6730 = vmul.f32 1.0, %v6729
    %v6731 = vadd.f32 %v6714, %v372
    %v6732 = vmul.f32 %v6723, %v6731
    %v6733 = vadd.f32 %v6371, %v6732
    %v6734 = vtanh.pop %v6733
    %v6735 = vsub.f32 1.0, %v6730
    %v6736 = vmul.f32 %v6735, %v6734
    %v6737 = vmul.f32 %v6730, %v6231
    %v6738 = vadd.f32 %v6736, %v6737
    %6739 = vst [vmem:[%s15 + $0x12] sm:$0x3] %v6738
    %6740 = vmatprep.subr.mxu0 %v265
    %6741 = vmatpush1.msra.mxu0 %v264
    %6742 = vmatprep.subr.mxu0 %v268
    %6743 = vmatpush1.msra.mxu0 %v267
    %6744 = vmatprep.subr.mxu0 %v271
    %6745 = vmatpush1.msra.mxu0 %v270
    %6746 = vmatprep.subr.mxu0 %v274
    %6747 = vmatpush1.msra.mxu0 %v273
    %6748 = vmatprep.subr.mxu0 %v277
    %6749 = vmatpush1.msra.mxu0 %v276
    %6750 = vmatprep.subr.mxu0 %v280
    %6751 = vmatpush1.msra.mxu0 %v279
    %6752 = vmatprep.subr.mxu0 %v283
    %6753 = vmatpush1.msra.mxu0 %v282
    %6754 = vmatprep.subr.mxu0 %v286
    %6755 = vmatpush1.msra.mxu0 %v285
    %6756 = vmatprep.subr.mxu0 %v289
    %6757 = vmatpush1.msra.mxu0 %v288
    %6758 = vmatprep.subr.mxu0 %v292
    %6759 = vmatpush1.msra.mxu0 %v291
    %6760 = vmatprep.subr.mxu0 %v295
    %6761 = vmatpush1.msra.mxu0 %v294
    %6762 = vmatprep.subr.mxu0 %v298
    %6763 = vmatpush1.msra.mxu0 %v297
    %6764 = vmatprep.subr.mxu0 %v301
    %6765 = vmatpush1.msra.mxu0 %v300
    %6766 = vmatprep.subr.mxu0 %v304
    %6767 = vmatpush1.msra.mxu0 %v303
    %6768 = vmatprep.subr.mxu0 %v307
    %6769 = vmatpush1.msra.mxu0 %v306
    %6770 = vmatprep.subr.mxu0 %v310
    %6771 = vmatpush1.msra.mxu0 %v309
    %6772 = vmatprep.subr.mxu0 0.0
    %6773 = vmatpush1.msra.mxu0 0.0
    %6774 = vmatprep.subr.mxu0 0.0
    %6775 = vmatpush1.msra.mxu0 0.0
    %6776 = vmatprep.subr.mxu0 0.0
    %6777 = vmatpush1.msra.mxu0 0.0
    %6778 = vmatprep.subr.mxu0 0.0
    %6779 = vmatpush1.msra.mxu0 0.0
    %6780 = vmatprep.subr.mxu0 0.0
    %6781 = vmatpush1.msra.mxu0 0.0
    %6782 = vmatprep.subr.mxu0 0.0
    %6783 = vmatpush1.msra.mxu0 0.0
    %6784 = vmatprep.subr.mxu0 0.0
    %6785 = vmatpush1.msra.mxu0 0.0
    %6786 = vmatprep.subr.mxu0 0.0
    %6787 = vmatpush1.msra.mxu0 0.0
    %6788 = vmatprep.subr.mxu0 0.0
    %6789 = vmatpush1.msra.mxu0 0.0
    %6790 = vmatprep.subr.mxu0 0.0
    %6791 = vmatpush1.msra.mxu0 0.0
    %6792 = vmatprep.subr.mxu0 0.0
    %6793 = vmatpush1.msra.mxu0 0.0
    %6794 = vmatprep.subr.mxu0 0.0
    %6795 = vmatpush1.msra.mxu0 0.0
    %6796 = vmatprep.subr.mxu0 0.0
    %6797 = vmatpush1.msra.mxu0 0.0
    %6798 = vmatprep.subr.mxu0 0.0
    %6799 = vmatpush1.msra.mxu0 0.0
    %6800 = vmatprep.subr.mxu0 0.0
    %6801 = vmatpush1.msra.mxu0 0.0
    %6802 = vmatprep.subr.mxu0 0.0
    %6803 = vmatpush1.msra.mxu0 0.0
    %6804 = vmatprep.mubr.f32.mxu0 0.0
    %6805 = vmatmul.mubr.f32.gmra.mrb[0].mxu0 %v6575
    %v6806 = vpop.f32.mrb[0].mxu0
    %v6807 = vadd.f32 %v379, %v6806
    %v6808 = vpop.f32.mrb[0].mxu0
    %v6809 = vadd.f32 %v383, %v6808
    %6810 = vdwg.mxu0
    %6811 = vmatprep.subr.mxu0 0.0
    %6812 = vmatpush1.msra.mxu0 %v266
    %6813 = vmatprep.subr.mxu0 0.0
    %6814 = vmatpush1.msra.mxu0 %v269
    %6815 = vmatprep.subr.mxu0 0.0
    %6816 = vmatpush1.msra.mxu0 %v272
    %6817 = vmatprep.subr.mxu0 0.0
    %6818 = vmatpush1.msra.mxu0 %v275
    %6819 = vmatprep.subr.mxu0 0.0
    %6820 = vmatpush1.msra.mxu0 %v278
    %6821 = vmatprep.subr.mxu0 0.0
    %6822 = vmatpush1.msra.mxu0 %v281
    %6823 = vmatprep.subr.mxu0 0.0
    %6824 = vmatpush1.msra.mxu0 %v284
    %6825 = vmatprep.subr.mxu0 0.0
    %6826 = vmatpush1.msra.mxu0 %v287
    %6827 = vmatprep.subr.mxu0 0.0
    %6828 = vmatpush1.msra.mxu0 %v290
    %6829 = vmatprep.subr.mxu0 0.0
    %6830 = vmatpush1.msra.mxu0 %v293
    %6831 = vmatprep.subr.mxu0 0.0
    %6832 = vmatpush1.msra.mxu0 %v296
    %6833 = vmatprep.subr.mxu0 0.0
    %6834 = vmatpush1.msra.mxu0 %v299
    %6835 = vmatprep.subr.mxu0 0.0
    %6836 = vmatpush1.msra.mxu0 %v302
    %6837 = vmatprep.subr.mxu0 0.0
    %6838 = vmatpush1.msra.mxu0 %v305
    %6839 = vmatprep.subr.mxu0 0.0
    %6840 = vmatpush1.msra.mxu0 %v308
    %6841 = vmatprep.subr.mxu0 0.0
    %6842 = vmatpush1.msra.mxu0 %v311
    %6843 = vmatprep.subr.mxu0 0.0
    %6844 = vmatpush1.msra.mxu0 0.0
    %6845 = vmatprep.subr.mxu0 0.0
    %6846 = vmatpush1.msra.mxu0 0.0
    %6847 = vmatprep.subr.mxu0 0.0
    %6848 = vmatpush1.msra.mxu0 0.0
    %6849 = vmatprep.subr.mxu0 0.0
    %6850 = vmatpush1.msra.mxu0 0.0
    %6851 = vmatprep.subr.mxu0 0.0
    %6852 = vmatpush1.msra.mxu0 0.0
    %6853 = vmatprep.subr.mxu0 0.0
    %6854 = vmatpush1.msra.mxu0 0.0
    %6855 = vmatprep.subr.mxu0 0.0
    %6856 = vmatpush1.msra.mxu0 0.0
    %6857 = vmatprep.subr.mxu0 0.0
    %6858 = vmatpush1.msra.mxu0 0.0
    %6859 = vmatprep.subr.mxu0 0.0
    %6860 = vmatpush1.msra.mxu0 0.0
    %6861 = vmatprep.subr.mxu0 0.0
    %6862 = vmatpush1.msra.mxu0 0.0
    %6863 = vmatprep.subr.mxu0 0.0
    %6864 = vmatpush1.msra.mxu0 0.0
    %6865 = vmatprep.subr.mxu0 0.0
    %6866 = vmatpush1.msra.mxu0 0.0
    %6867 = vmatprep.subr.mxu0 0.0
    %6868 = vmatpush1.msra.mxu0 0.0
    %6869 = vmatprep.subr.mxu0 0.0
    %6870 = vmatpush1.msra.mxu0 0.0
    %6871 = vmatprep.subr.mxu0 0.0
    %6872 = vmatpush1.msra.mxu0 0.0
    %6873 = vmatprep.subr.mxu0 0.0
    %6874 = vmatpush1.msra.mxu0 0.0
    %6875 = vmatprep.mubr.f32.mxu0 0.0
    %6876 = vmatmul.mubr.f32.gmra.mrb[0].mxu0 %v6575
    %v6877 = vpop.f32.mrb[0].mxu0
    %v6878 = vadd.f32 %v387, %v6877
    %v6879 = vpop.f32.mrb[0].mxu0
    %6880 = vdwg.mxu0
    %s6881 = scalar_lea.vmem [#allocation2], 27
    %v6882 = vld [vmem:[%s6881] ss:$8 sm:$0x7]
    %s6883 = scalar_lea.vmem %s1462, 27 [#allocation2]
    %v6884 = vld [vmem:[%s6883] ss:$8 sm:$0x7]
    %v6886 = vlaneseq
    %v6887 = vshrl.u32 %v6886, 7
    %v6888 = vsub.s32 0, %v6887
    %v6889 = vrot.slane %v6882, %v6888
    %v6890 = vlaneseq
    %v6891 = vshrl.u32 %v6890, 7
    %v6892 = vsub.s32 1, %v6891
    %v6893 = vrot.slane %v6882, %v6892
    %v6894 = vlaneseq
    %v6895 = vshrl.u32 %v6894, 7
    %v6896 = vsub.s32 2, %v6895
    %v6897 = vrot.slane %v6882, %v6896
    %v6902 = vlaneseq
    %v6903 = vshrl.u32 %v6902, 7
    %v6904 = vsub.s32 0, %v6903
    %v6905 = vrot.slane %v6884, %v6904
    %v6906 = vlaneseq
    %v6907 = vshrl.u32 %v6906, 7
    %v6908 = vsub.s32 1, %v6907
    %v6909 = vrot.slane %v6884, %v6908
    %v6910 = vlaneseq
    %v6911 = vshrl.u32 %v6910, 7
    %v6912 = vsub.s32 2, %v6911
    %v6913 = vrot.slane %v6884, %v6912
    %v6917 = vsel %vm1503, %v6889, %v6905
    %v6918 = vsel %vm1503, %v6893, %v6909
    %v6919 = vsel %vm1503, %v6897, %v6913
    %6920 = vmatprep.subr.mxu0 %v217
    %6921 = vmatpush1.msra.mxu0 %v216
    %6922 = vmatprep.subr.mxu0 %v220
    %6923 = vmatpush1.msra.mxu0 %v219
    %6924 = vmatprep.subr.mxu0 %v223
    %6925 = vmatpush1.msra.mxu0 %v222
    %6926 = vmatprep.subr.mxu0 %v226
    %6927 = vmatpush1.msra.mxu0 %v225
    %6928 = vmatprep.subr.mxu0 %v229
    %6929 = vmatpush1.msra.mxu0 %v228
    %6930 = vmatprep.subr.mxu0 %v232
    %6931 = vmatpush1.msra.mxu0 %v231
    %6932 = vmatprep.subr.mxu0 %v235
    %6933 = vmatpush1.msra.mxu0 %v234
    %6934 = vmatprep.subr.mxu0 %v238
    %6935 = vmatpush1.msra.mxu0 %v237
    %6936 = vmatprep.subr.mxu0 %v241
    %6937 = vmatpush1.msra.mxu0 %v240
    %6938 = vmatprep.subr.mxu0 %v244
    %6939 = vmatpush1.msra.mxu0 %v243
    %6940 = vmatprep.subr.mxu0 %v247
    %6941 = vmatpush1.msra.mxu0 %v246
    %6942 = vmatprep.subr.mxu0 %v250
    %6943 = vmatpush1.msra.mxu0 %v249
    %6944 = vmatprep.subr.mxu0 %v253
    %6945 = vmatpush1.msra.mxu0 %v252
    %6946 = vmatprep.subr.mxu0 %v256
    %6947 = vmatpush1.msra.mxu0 %v255
    %6948 = vmatprep.subr.mxu0 %v259
    %6949 = vmatpush1.msra.mxu0 %v258
    %6950 = vmatprep.subr.mxu0 %v262
    %6951 = vmatpush1.msra.mxu0 %v261
    %6952 = vmatprep.subr.mxu0 0.0
    %6953 = vmatpush1.msra.mxu0 0.0
    %6954 = vmatprep.subr.mxu0 0.0
    %6955 = vmatpush1.msra.mxu0 0.0
    %6956 = vmatprep.subr.mxu0 0.0
    %6957 = vmatpush1.msra.mxu0 0.0
    %6958 = vmatprep.subr.mxu0 0.0
    %6959 = vmatpush1.msra.mxu0 0.0
    %6960 = vmatprep.subr.mxu0 0.0
    %6961 = vmatpush1.msra.mxu0 0.0
    %6962 = vmatprep.subr.mxu0 0.0
    %6963 = vmatpush1.msra.mxu0 0.0
    %6964 = vmatprep.subr.mxu0 0.0
    %6965 = vmatpush1.msra.mxu0 0.0
    %6966 = vmatprep.subr.mxu0 0.0
    %6967 = vmatpush1.msra.mxu0 0.0
    %6968 = vmatprep.subr.mxu0 0.0
    %6969 = vmatpush1.msra.mxu0 0.0
    %6970 = vmatprep.subr.mxu0 0.0
    %6971 = vmatpush1.msra.mxu0 0.0
    %6972 = vmatprep.subr.mxu0 0.0
    %6973 = vmatpush1.msra.mxu0 0.0
    %6974 = vmatprep.subr.mxu0 0.0
    %6975 = vmatpush1.msra.mxu0 0.0
    %6976 = vmatprep.subr.mxu0 0.0
    %6977 = vmatpush1.msra.mxu0 0.0
    %6978 = vmatprep.subr.mxu0 0.0
    %6979 = vmatpush1.msra.mxu0 0.0
    %6980 = vmatprep.subr.mxu0 0.0
    %6981 = vmatpush1.msra.mxu0 0.0
    %6982 = vmatprep.subr.mxu0 0.0
    %6983 = vmatpush1.msra.mxu0 0.0
    %6984 = vmatprep.mubr.f32.mxu0 0.0
    %6985 = vmatmul.mubr.f32.gmra.mrb[0].mxu0 %v6575
    %v6986 = vpop.f32.mrb[0].mxu0
    %v6987 = vadd.f32 0.0, %v6986
    %v6988 = vpop.f32.mrb[0].mxu0
    %v6989 = vadd.f32 0.0, %v6988
    %6990 = vdwg.mxu0
    %6991 = vmatprep.subr.mxu0 0.0
    %6992 = vmatpush1.msra.mxu0 %v218
    %6993 = vmatprep.subr.mxu0 0.0
    %6994 = vmatpush1.msra.mxu0 %v221
    %6995 = vmatprep.subr.mxu0 0.0
    %6996 = vmatpush1.msra.mxu0 %v224
    %6997 = vmatprep.subr.mxu0 0.0
    %6998 = vmatpush1.msra.mxu0 %v227
    %6999 = vmatprep.subr.mxu0 0.0
    %7000 = vmatpush1.msra.mxu0 %v230
    %7001 = vmatprep.subr.mxu0 0.0
    %7002 = vmatpush1.msra.mxu0 %v233
    %7003 = vmatprep.subr.mxu0 0.0
    %7004 = vmatpush1.msra.mxu0 %v236
    %7005 = vmatprep.subr.mxu0 0.0
    %7006 = vmatpush1.msra.mxu0 %v239
    %7007 = vmatprep.subr.mxu0 0.0
    %7008 = vmatpush1.msra.mxu0 %v242
    %7009 = vmatprep.subr.mxu0 0.0
    %7010 = vmatpush1.msra.mxu0 %v245
    %7011 = vmatprep.subr.mxu0 0.0
    %7012 = vmatpush1.msra.mxu0 %v248
    %7013 = vmatprep.subr.mxu0 0.0
    %7014 = vmatpush1.msra.mxu0 %v251
    %7015 = vmatprep.subr.mxu0 0.0
    %7016 = vmatpush1.msra.mxu0 %v254
    %7017 = vmatprep.subr.mxu0 0.0
    %7018 = vmatpush1.msra.mxu0 %v257
    %7019 = vmatprep.subr.mxu0 0.0
    %7020 = vmatpush1.msra.mxu0 %v260
    %7021 = vmatprep.subr.mxu0 0.0
    %7022 = vmatpush1.msra.mxu0 %v263
    %7023 = vmatprep.subr.mxu0 0.0
    %7024 = vmatpush1.msra.mxu0 0.0
    %7025 = vmatprep.subr.mxu0 0.0
    %7026 = vmatpush1.msra.mxu0 0.0
    %7027 = vmatprep.subr.mxu0 0.0
    %7028 = vmatpush1.msra.mxu0 0.0
    %7029 = vmatprep.subr.mxu0 0.0
    %7030 = vmatpush1.msra.mxu0 0.0
    %7031 = vmatprep.subr.mxu0 0.0
    %7032 = vmatpush1.msra.mxu0 0.0
    %7033 = vmatprep.subr.mxu0 0.0
    %7034 = vmatpush1.msra.mxu0 0.0
    %7035 = vmatprep.subr.mxu0 0.0
    %7036 = vmatpush1.msra.mxu0 0.0
    %7037 = vmatprep.subr.mxu0 0.0
    %7038 = vmatpush1.msra.mxu0 0.0
    %7039 = vmatprep.subr.mxu0 0.0
    %7040 = vmatpush1.msra.mxu0 0.0
    %7041 = vmatprep.subr.mxu0 0.0
    %7042 = vmatpush1.msra.mxu0 0.0
    %7043 = vmatprep.subr.mxu0 0.0
    %7044 = vmatpush1.msra.mxu0 0.0
    %7045 = vmatprep.subr.mxu0 0.0
    %7046 = vmatpush1.msra.mxu0 0.0
    %7047 = vmatprep.subr.mxu0 0.0
    %7048 = vmatpush1.msra.mxu0 0.0
    %7049 = vmatprep.subr.mxu0 0.0
    %7050 = vmatpush1.msra.mxu0 0.0
    %7051 = vmatprep.subr.mxu0 0.0
    %7052 = vmatpush1.msra.mxu0 0.0
    %7053 = vmatprep.subr.mxu0 0.0
    %7054 = vmatpush1.msra.mxu0 0.0
    %7055 = vmatprep.mubr.f32.mxu0 0.0
    %7056 = vmatmul.mubr.f32.gmra.mrb[0].mxu0 %v6575
    %v7057 = vpop.f32.mrb[0].mxu0
    %v7058 = vadd.f32 0.0, %v7057
    %v7059 = vpop.f32.mrb[0].mxu0
    %7060 = vdwg.mxu0
    %v7061 = vadd.f32 %v6917, %v6987
    %v7062 = vxor.u32 %v7061, 2147483648
    %v7063 = vmul.f32 %v7062, 1.442695
    %v7064 = vpow.pop %v7063
    %v7065 = vadd.f32 %v7064, 1.0
    %v7066 = vrcp.pop %v7065
    %v7067 = vmul.f32 1.0, %v7066
    %v7068 = vadd.f32 %v6918, %v6989
    %v7069 = vxor.u32 %v7068, 2147483648
    %v7070 = vmul.f32 %v7069, 1.442695
    %v7071 = vpow.pop %v7070
    %v7072 = vadd.f32 %v7071, 1.0
    %v7073 = vrcp.pop %v7072
    %v7074 = vmul.f32 1.0, %v7073
    %v7075 = vadd.f32 %v7058, %v365
    %v7076 = vmul.f32 %v7067, %v7075
    %v7077 = vadd.f32 %v6919, %v7076
    %v7078 = vtanh.pop %v7077
    %v7079 = vsub.f32 1.0, %v7074
    %v7080 = vmul.f32 %v7079, %v7078
    %v7081 = vmul.f32 %v7074, %v6575
    %v7082 = vadd.f32 %v7080, %v7081
    %7083 = vmatprep.subr.mxu0 %v313
    %7084 = vmatpush1.msra.mxu0 %v312
    %7085 = vmatprep.subr.mxu0 %v316
    %7086 = vmatpush1.msra.mxu0 %v315
    %7087 = vmatprep.subr.mxu0 %v319
    %7088 = vmatpush1.msra.mxu0 %v318
    %7089 = vmatprep.subr.mxu0 %v322
    %7090 = vmatpush1.msra.mxu0 %v321
    %7091 = vmatprep.subr.mxu0 %v325
    %7092 = vmatpush1.msra.mxu0 %v324
    %7093 = vmatprep.subr.mxu0 %v328
    %7094 = vmatpush1.msra.mxu0 %v327
    %7095 = vmatprep.subr.mxu0 %v331
    %7096 = vmatpush1.msra.mxu0 %v330
    %7097 = vmatprep.subr.mxu0 %v334
    %7098 = vmatpush1.msra.mxu0 %v333
    %7099 = vmatprep.subr.mxu0 %v337
    %7100 = vmatpush1.msra.mxu0 %v336
    %7101 = vmatprep.subr.mxu0 %v340
    %7102 = vmatpush1.msra.mxu0 %v339
    %7103 = vmatprep.subr.mxu0 %v343
    %7104 = vmatpush1.msra.mxu0 %v342
    %7105 = vmatprep.subr.mxu0 %v346
    %7106 = vmatpush1.msra.mxu0 %v345
    %7107 = vmatprep.subr.mxu0 %v349
    %7108 = vmatpush1.msra.mxu0 %v348
    %7109 = vmatprep.subr.mxu0 %v352
    %7110 = vmatpush1.msra.mxu0 %v351
    %7111 = vmatprep.subr.mxu0 %v355
    %7112 = vmatpush1.msra.mxu0 %v354
    %7113 = vmatprep.subr.mxu0 %v358
    %7114 = vmatpush1.msra.mxu0 %v357
    %7115 = vmatprep.subr.mxu0 0.0
    %7116 = vmatpush1.msra.mxu0 0.0
    %7117 = vmatprep.subr.mxu0 0.0
    %7118 = vmatpush1.msra.mxu0 0.0
    %7119 = vmatprep.subr.mxu0 0.0
    %7120 = vmatpush1.msra.mxu0 0.0
    %7121 = vmatprep.subr.mxu0 0.0
    %7122 = vmatpush1.msra.mxu0 0.0
    %7123 = vmatprep.subr.mxu0 0.0
    %7124 = vmatpush1.msra.mxu0 0.0
    %7125 = vmatprep.subr.mxu0 0.0
    %7126 = vmatpush1.msra.mxu0 0.0
    %7127 = vmatprep.subr.mxu0 0.0
    %7128 = vmatpush1.msra.mxu0 0.0
    %7129 = vmatprep.subr.mxu0 0.0
    %7130 = vmatpush1.msra.mxu0 0.0
    %7131 = vmatprep.subr.mxu0 0.0
    %7132 = vmatpush1.msra.mxu0 0.0
    %7133 = vmatprep.subr.mxu0 0.0
    %7134 = vmatpush1.msra.mxu0 0.0
    %7135 = vmatprep.subr.mxu0 0.0
    %7136 = vmatpush1.msra.mxu0 0.0
    %7137 = vmatprep.subr.mxu0 0.0
    %7138 = vmatpush1.msra.mxu0 0.0
    %7139 = vmatprep.subr.mxu0 0.0
    %7140 = vmatpush1.msra.mxu0 0.0
    %7141 = vmatprep.subr.mxu0 0.0
    %7142 = vmatpush1.msra.mxu0 0.0
    %7143 = vmatprep.subr.mxu0 0.0
    %7144 = vmatpush1.msra.mxu0 0.0
    %7145 = vmatprep.subr.mxu0 0.0
    %7146 = vmatpush1.msra.mxu0 0.0
    %7147 = vmatprep.mubr.f32.mxu0 0.0
    %7148 = vmatmul.mubr.f32.gmra.mrb[0].mxu0 %v6738
    %v7149 = vpop.f32.mrb[0].mxu0
    %v7150 = vadd.f32 0.0, %v7149
    %v7151 = vpop.f32.mrb[0].mxu0
    %v7152 = vadd.f32 0.0, %v7151
    %7153 = vdwg.mxu0
    %7154 = vmatprep.subr.mxu0 0.0
    %7155 = vmatpush1.msra.mxu0 %v314
    %7156 = vmatprep.subr.mxu0 0.0
    %7157 = vmatpush1.msra.mxu0 %v317
    %7158 = vmatprep.subr.mxu0 0.0
    %7159 = vmatpush1.msra.mxu0 %v320
    %7160 = vmatprep.subr.mxu0 0.0
    %7161 = vmatpush1.msra.mxu0 %v323
    %7162 = vmatprep.subr.mxu0 0.0
    %7163 = vmatpush1.msra.mxu0 %v326
    %7164 = vmatprep.subr.mxu0 0.0
    %7165 = vmatpush1.msra.mxu0 %v329
    %7166 = vmatprep.subr.mxu0 0.0
    %7167 = vmatpush1.msra.mxu0 %v332
    %7168 = vmatprep.subr.mxu0 0.0
    %7169 = vmatpush1.msra.mxu0 %v335
    %7170 = vmatprep.subr.mxu0 0.0
    %7171 = vmatpush1.msra.mxu0 %v338
    %7172 = vmatprep.subr.mxu0 0.0
    %7173 = vmatpush1.msra.mxu0 %v341
    %7174 = vmatprep.subr.mxu0 0.0
    %7175 = vmatpush1.msra.mxu0 %v344
    %7176 = vmatprep.subr.mxu0 0.0
    %7177 = vmatpush1.msra.mxu0 %v347
    %7178 = vmatprep.subr.mxu0 0.0
    %7179 = vmatpush1.msra.mxu0 %v350
    %7180 = vmatprep.subr.mxu0 0.0
    %7181 = vmatpush1.msra.mxu0 %v353
    %7182 = vmatprep.subr.mxu0 0.0
    %7183 = vmatpush1.msra.mxu0 %v356
    %7184 = vmatprep.subr.mxu0 0.0
    %7185 = vmatpush1.msra.mxu0 %v359
    %7186 = vmatprep.subr.mxu0 0.0
    %7187 = vmatpush1.msra.mxu0 0.0
    %7188 = vmatprep.subr.mxu0 0.0
    %7189 = vmatpush1.msra.mxu0 0.0
    %7190 = vmatprep.subr.mxu0 0.0
    %7191 = vmatpush1.msra.mxu0 0.0
    %7192 = vmatprep.subr.mxu0 0.0
    %7193 = vmatpush1.msra.mxu0 0.0
    %7194 = vmatprep.subr.mxu0 0.0
    %7195 = vmatpush1.msra.mxu0 0.0
    %7196 = vmatprep.subr.mxu0 0.0
    %7197 = vmatpush1.msra.mxu0 0.0
    %7198 = vmatprep.subr.mxu0 0.0
    %7199 = vmatpush1.msra.mxu0 0.0
    %7200 = vmatprep.subr.mxu0 0.0
    %7201 = vmatpush1.msra.mxu0 0.0
    %7202 = vmatprep.subr.mxu0 0.0
    %7203 = vmatpush1.msra.mxu0 0.0
    %7204 = vmatprep.subr.mxu0 0.0
    %7205 = vmatpush1.msra.mxu0 0.0
    %7206 = vmatprep.subr.mxu0 0.0
    %7207 = vmatpush1.msra.mxu0 0.0
    %7208 = vmatprep.subr.mxu0 0.0
    %7209 = vmatpush1.msra.mxu0 0.0
    %7210 = vmatprep.subr.mxu0 0.0
    %7211 = vmatpush1.msra.mxu0 0.0
    %7212 = vmatprep.subr.mxu0 0.0
    %7213 = vmatpush1.msra.mxu0 0.0
    %7214 = vmatprep.subr.mxu0 0.0
    %7215 = vmatpush1.msra.mxu0 0.0
    %7216 = vmatprep.subr.mxu0 0.0
    %7217 = vmatpush1.msra.mxu0 0.0
    %7218 = vmatprep.mubr.f32.mxu0 0.0
    %7219 = vmatmul.mubr.f32.gmra.mrb[0].mxu0 %v6738
    %v7220 = vpop.f32.mrb[0].mxu0
    %v7221 = vadd.f32 0.0, %v7220
    %v7222 = vpop.f32.mrb[0].mxu0
    %7223 = vdwg.mxu0
    %v7224 = vadd.f32 %v6807, %v7150
    %v7225 = vxor.u32 %v7224, 2147483648
    %v7226 = vmul.f32 %v7225, 1.442695
    %v7227 = vpow.pop %v7226
    %v7228 = vadd.f32 %v7227, 1.0
    %v7229 = vrcp.pop %v7228
    %v7230 = vmul.f32 1.0, %v7229
    %v7231 = vadd.f32 %v6809, %v7152
    %v7232 = vxor.u32 %v7231, 2147483648
    %v7233 = vmul.f32 %v7232, 1.442695
    %v7234 = vpow.pop %v7233
    %v7235 = vadd.f32 %v7234, 1.0
    %v7236 = vrcp.pop %v7235
    %v7237 = vmul.f32 1.0, %v7236
    %v7238 = vadd.f32 %v7221, %v372
    %v7239 = vmul.f32 %v7230, %v7238
    %v7240 = vadd.f32 %v6878, %v7239
    %v7241 = vtanh.pop %v7240
    %v7242 = vsub.f32 1.0, %v7237
    %v7243 = vmul.f32 %v7242, %v7241
    %v7244 = vmul.f32 %v7237, %v6738
    %v7245 = vadd.f32 %v7243, %v7244
    %7246 = vst [vmem:[%s15 + $0x14] sm:$0x3] %v7245
    %7247 = vmatprep.subr.mxu0 %v265
    %7248 = vmatpush1.msra.mxu0 %v264
    %7249 = vmatprep.subr.mxu0 %v268
    %7250 = vmatpush1.msra.mxu0 %v267
    %7251 = vmatprep.subr.mxu0 %v271
    %7252 = vmatpush1.msra.mxu0 %v270
    %7253 = vmatprep.subr.mxu0 %v274
    %7254 = vmatpush1.msra.mxu0 %v273
    %7255 = vmatprep.subr.mxu0 %v277
    %7256 = vmatpush1.msra.mxu0 %v276
    %7257 = vmatprep.subr.mxu0 %v280
    %7258 = vmatpush1.msra.mxu0 %v279
    %7259 = vmatprep.subr.mxu0 %v283
    %7260 = vmatpush1.msra.mxu0 %v282
    %7261 = vmatprep.subr.mxu0 %v286
    %7262 = vmatpush1.msra.mxu0 %v285
    %7263 = vmatprep.subr.mxu0 %v289
    %7264 = vmatpush1.msra.mxu0 %v288
    %7265 = vmatprep.subr.mxu0 %v292
    %7266 = vmatpush1.msra.mxu0 %v291
    %7267 = vmatprep.subr.mxu0 %v295
    %7268 = vmatpush1.msra.mxu0 %v294
    %7269 = vmatprep.subr.mxu0 %v298
    %7270 = vmatpush1.msra.mxu0 %v297
    %7271 = vmatprep.subr.mxu0 %v301
    %7272 = vmatpush1.msra.mxu0 %v300
    %7273 = vmatprep.subr.mxu0 %v304
    %7274 = vmatpush1.msra.mxu0 %v303
    %7275 = vmatprep.subr.mxu0 %v307
    %7276 = vmatpush1.msra.mxu0 %v306
    %7277 = vmatprep.subr.mxu0 %v310
    %7278 = vmatpush1.msra.mxu0 %v309
    %7279 = vmatprep.subr.mxu0 0.0
    %7280 = vmatpush1.msra.mxu0 0.0
    %7281 = vmatprep.subr.mxu0 0.0
    %7282 = vmatpush1.msra.mxu0 0.0
    %7283 = vmatprep.subr.mxu0 0.0
    %7284 = vmatpush1.msra.mxu0 0.0
    %7285 = vmatprep.subr.mxu0 0.0
    %7286 = vmatpush1.msra.mxu0 0.0
    %7287 = vmatprep.subr.mxu0 0.0
    %7288 = vmatpush1.msra.mxu0 0.0
    %7289 = vmatprep.subr.mxu0 0.0
    %7290 = vmatpush1.msra.mxu0 0.0
    %7291 = vmatprep.subr.mxu0 0.0
    %7292 = vmatpush1.msra.mxu0 0.0
    %7293 = vmatprep.subr.mxu0 0.0
    %7294 = vmatpush1.msra.mxu0 0.0
    %7295 = vmatprep.subr.mxu0 0.0
    %7296 = vmatpush1.msra.mxu0 0.0
    %7297 = vmatprep.subr.mxu0 0.0
    %7298 = vmatpush1.msra.mxu0 0.0
    %7299 = vmatprep.subr.mxu0 0.0
    %7300 = vmatpush1.msra.mxu0 0.0
    %7301 = vmatprep.subr.mxu0 0.0
    %7302 = vmatpush1.msra.mxu0 0.0
    %7303 = vmatprep.subr.mxu0 0.0
    %7304 = vmatpush1.msra.mxu0 0.0
    %7305 = vmatprep.subr.mxu0 0.0
    %7306 = vmatpush1.msra.mxu0 0.0
    %7307 = vmatprep.subr.mxu0 0.0
    %7308 = vmatpush1.msra.mxu0 0.0
    %7309 = vmatprep.subr.mxu0 0.0
    %7310 = vmatpush1.msra.mxu0 0.0
    %7311 = vmatprep.mubr.f32.mxu0 0.0
    %7312 = vmatmul.mubr.f32.gmra.mrb[0].mxu0 %v7082
    %v7313 = vpop.f32.mrb[0].mxu0
    %v7314 = vadd.f32 %v379, %v7313
    %v7315 = vpop.f32.mrb[0].mxu0
    %v7316 = vadd.f32 %v383, %v7315
    %7317 = vdwg.mxu0
    %7318 = vmatprep.subr.mxu0 0.0
    %7319 = vmatpush1.msra.mxu0 %v266
    %7320 = vmatprep.subr.mxu0 0.0
    %7321 = vmatpush1.msra.mxu0 %v269
    %7322 = vmatprep.subr.mxu0 0.0
    %7323 = vmatpush1.msra.mxu0 %v272
    %7324 = vmatprep.subr.mxu0 0.0
    %7325 = vmatpush1.msra.mxu0 %v275
    %7326 = vmatprep.subr.mxu0 0.0
    %7327 = vmatpush1.msra.mxu0 %v278
    %7328 = vmatprep.subr.mxu0 0.0
    %7329 = vmatpush1.msra.mxu0 %v281
    %7330 = vmatprep.subr.mxu0 0.0
    %7331 = vmatpush1.msra.mxu0 %v284
    %7332 = vmatprep.subr.mxu0 0.0
    %7333 = vmatpush1.msra.mxu0 %v287
    %7334 = vmatprep.subr.mxu0 0.0
    %7335 = vmatpush1.msra.mxu0 %v290
    %7336 = vmatprep.subr.mxu0 0.0
    %7337 = vmatpush1.msra.mxu0 %v293
    %7338 = vmatprep.subr.mxu0 0.0
    %7339 = vmatpush1.msra.mxu0 %v296
    %7340 = vmatprep.subr.mxu0 0.0
    %7341 = vmatpush1.msra.mxu0 %v299
    %7342 = vmatprep.subr.mxu0 0.0
    %7343 = vmatpush1.msra.mxu0 %v302
    %7344 = vmatprep.subr.mxu0 0.0
    %7345 = vmatpush1.msra.mxu0 %v305
    %7346 = vmatprep.subr.mxu0 0.0
    %7347 = vmatpush1.msra.mxu0 %v308
    %7348 = vmatprep.subr.mxu0 0.0
    %7349 = vmatpush1.msra.mxu0 %v311
    %7350 = vmatprep.subr.mxu0 0.0
    %7351 = vmatpush1.msra.mxu0 0.0
    %7352 = vmatprep.subr.mxu0 0.0
    %7353 = vmatpush1.msra.mxu0 0.0
    %7354 = vmatprep.subr.mxu0 0.0
    %7355 = vmatpush1.msra.mxu0 0.0
    %7356 = vmatprep.subr.mxu0 0.0
    %7357 = vmatpush1.msra.mxu0 0.0
    %7358 = vmatprep.subr.mxu0 0.0
    %7359 = vmatpush1.msra.mxu0 0.0
    %7360 = vmatprep.subr.mxu0 0.0
    %7361 = vmatpush1.msra.mxu0 0.0
    %7362 = vmatprep.subr.mxu0 0.0
    %7363 = vmatpush1.msra.mxu0 0.0
    %7364 = vmatprep.subr.mxu0 0.0
    %7365 = vmatpush1.msra.mxu0 0.0
    %7366 = vmatprep.subr.mxu0 0.0
    %7367 = vmatpush1.msra.mxu0 0.0
    %7368 = vmatprep.subr.mxu0 0.0
    %7369 = vmatpush1.msra.mxu0 0.0
    %7370 = vmatprep.subr.mxu0 0.0
    %7371 = vmatpush1.msra.mxu0 0.0
    %7372 = vmatprep.subr.mxu0 0.0
    %7373 = vmatpush1.msra.mxu0 0.0
    %7374 = vmatprep.subr.mxu0 0.0
    %7375 = vmatpush1.msra.mxu0 0.0
    %7376 = vmatprep.subr.mxu0 0.0
    %7377 = vmatpush1.msra.mxu0 0.0
    %7378 = vmatprep.subr.mxu0 0.0
    %7379 = vmatpush1.msra.mxu0 0.0
    %7380 = vmatprep.subr.mxu0 0.0
    %7381 = vmatpush1.msra.mxu0 0.0
    %7382 = vmatprep.mubr.f32.mxu0 0.0
    %7383 = vmatmul.mubr.f32.gmra.mrb[0].mxu0 %v7082
    %v7384 = vpop.f32.mrb[0].mxu0
    %v7385 = vadd.f32 %v387, %v7384
    %v7386 = vpop.f32.mrb[0].mxu0
    %7387 = vdwg.mxu0
    %s7388 = scalar_lea.vmem [#allocation2], 28
    %v7389 = vld [vmem:[%s7388] ss:$8 sm:$0x7]
    %s7390 = scalar_lea.vmem %s1462, 28 [#allocation2]
    %v7391 = vld [vmem:[%s7390] ss:$8 sm:$0x7]
    %v7393 = vlaneseq
    %v7394 = vshrl.u32 %v7393, 7
    %v7395 = vsub.s32 0, %v7394
    %v7396 = vrot.slane %v7389, %v7395
    %v7397 = vlaneseq
    %v7398 = vshrl.u32 %v7397, 7
    %v7399 = vsub.s32 1, %v7398
    %v7400 = vrot.slane %v7389, %v7399
    %v7401 = vlaneseq
    %v7402 = vshrl.u32 %v7401, 7
    %v7403 = vsub.s32 2, %v7402
    %v7404 = vrot.slane %v7389, %v7403
    %v7409 = vlaneseq
    %v7410 = vshrl.u32 %v7409, 7
    %v7411 = vsub.s32 0, %v7410
    %v7412 = vrot.slane %v7391, %v7411
    %v7413 = vlaneseq
    %v7414 = vshrl.u32 %v7413, 7
    %v7415 = vsub.s32 1, %v7414
    %v7416 = vrot.slane %v7391, %v7415
    %v7417 = vlaneseq
    %v7418 = vshrl.u32 %v7417, 7
    %v7419 = vsub.s32 2, %v7418
    %v7420 = vrot.slane %v7391, %v7419
    %v7424 = vsel %vm1503, %v7396, %v7412
    %v7425 = vsel %vm1503, %v7400, %v7416
    %v7426 = vsel %vm1503, %v7404, %v7420
    %7427 = vmatprep.subr.mxu0 %v217
    %7428 = vmatpush1.msra.mxu0 %v216
    %7429 = vmatprep.subr.mxu0 %v220
    %7430 = vmatpush1.msra.mxu0 %v219
    %7431 = vmatprep.subr.mxu0 %v223
    %7432 = vmatpush1.msra.mxu0 %v222
    %7433 = vmatprep.subr.mxu0 %v226
    %7434 = vmatpush1.msra.mxu0 %v225
    %7435 = vmatprep.subr.mxu0 %v229
    %7436 = vmatpush1.msra.mxu0 %v228
    %7437 = vmatprep.subr.mxu0 %v232
    %7438 = vmatpush1.msra.mxu0 %v231
    %7439 = vmatprep.subr.mxu0 %v235
    %7440 = vmatpush1.msra.mxu0 %v234
    %7441 = vmatprep.subr.mxu0 %v238
    %7442 = vmatpush1.msra.mxu0 %v237
    %7443 = vmatprep.subr.mxu0 %v241
    %7444 = vmatpush1.msra.mxu0 %v240
    %7445 = vmatprep.subr.mxu0 %v244
    %7446 = vmatpush1.msra.mxu0 %v243
    %7447 = vmatprep.subr.mxu0 %v247
    %7448 = vmatpush1.msra.mxu0 %v246
    %7449 = vmatprep.subr.mxu0 %v250
    %7450 = vmatpush1.msra.mxu0 %v249
    %7451 = vmatprep.subr.mxu0 %v253
    %7452 = vmatpush1.msra.mxu0 %v252
    %7453 = vmatprep.subr.mxu0 %v256
    %7454 = vmatpush1.msra.mxu0 %v255
    %7455 = vmatprep.subr.mxu0 %v259
    %7456 = vmatpush1.msra.mxu0 %v258
    %7457 = vmatprep.subr.mxu0 %v262
    %7458 = vmatpush1.msra.mxu0 %v261
    %7459 = vmatprep.subr.mxu0 0.0
    %7460 = vmatpush1.msra.mxu0 0.0
    %7461 = vmatprep.subr.mxu0 0.0
    %7462 = vmatpush1.msra.mxu0 0.0
    %7463 = vmatprep.subr.mxu0 0.0
    %7464 = vmatpush1.msra.mxu0 0.0
    %7465 = vmatprep.subr.mxu0 0.0
    %7466 = vmatpush1.msra.mxu0 0.0
    %7467 = vmatprep.subr.mxu0 0.0
    %7468 = vmatpush1.msra.mxu0 0.0
    %7469 = vmatprep.subr.mxu0 0.0
    %7470 = vmatpush1.msra.mxu0 0.0
    %7471 = vmatprep.subr.mxu0 0.0
    %7472 = vmatpush1.msra.mxu0 0.0
    %7473 = vmatprep.subr.mxu0 0.0
    %7474 = vmatpush1.msra.mxu0 0.0
    %7475 = vmatprep.subr.mxu0 0.0
    %7476 = vmatpush1.msra.mxu0 0.0
    %7477 = vmatprep.subr.mxu0 0.0
    %7478 = vmatpush1.msra.mxu0 0.0
    %7479 = vmatprep.subr.mxu0 0.0
    %7480 = vmatpush1.msra.mxu0 0.0
    %7481 = vmatprep.subr.mxu0 0.0
    %7482 = vmatpush1.msra.mxu0 0.0
    %7483 = vmatprep.subr.mxu0 0.0
    %7484 = vmatpush1.msra.mxu0 0.0
    %7485 = vmatprep.subr.mxu0 0.0
    %7486 = vmatpush1.msra.mxu0 0.0
    %7487 = vmatprep.subr.mxu0 0.0
    %7488 = vmatpush1.msra.mxu0 0.0
    %7489 = vmatprep.subr.mxu0 0.0
    %7490 = vmatpush1.msra.mxu0 0.0
    %7491 = vmatprep.mubr.f32.mxu0 0.0
    %7492 = vmatmul.mubr.f32.gmra.mrb[0].mxu0 %v7082
    %v7493 = vpop.f32.mrb[0].mxu0
    %v7494 = vadd.f32 0.0, %v7493
    %v7495 = vpop.f32.mrb[0].mxu0
    %v7496 = vadd.f32 0.0, %v7495
    %7497 = vdwg.mxu0
    %7498 = vmatprep.subr.mxu0 0.0
    %7499 = vmatpush1.msra.mxu0 %v218
    %7500 = vmatprep.subr.mxu0 0.0
    %7501 = vmatpush1.msra.mxu0 %v221
    %7502 = vmatprep.subr.mxu0 0.0
    %7503 = vmatpush1.msra.mxu0 %v224
    %7504 = vmatprep.subr.mxu0 0.0
    %7505 = vmatpush1.msra.mxu0 %v227
    %7506 = vmatprep.subr.mxu0 0.0
    %7507 = vmatpush1.msra.mxu0 %v230
    %7508 = vmatprep.subr.mxu0 0.0
    %7509 = vmatpush1.msra.mxu0 %v233
    %7510 = vmatprep.subr.mxu0 0.0
    %7511 = vmatpush1.msra.mxu0 %v236
    %7512 = vmatprep.subr.mxu0 0.0
    %7513 = vmatpush1.msra.mxu0 %v239
    %7514 = vmatprep.subr.mxu0 0.0
    %7515 = vmatpush1.msra.mxu0 %v242
    %7516 = vmatprep.subr.mxu0 0.0
    %7517 = vmatpush1.msra.mxu0 %v245
    %7518 = vmatprep.subr.mxu0 0.0
    %7519 = vmatpush1.msra.mxu0 %v248
    %7520 = vmatprep.subr.mxu0 0.0
    %7521 = vmatpush1.msra.mxu0 %v251
    %7522 = vmatprep.subr.mxu0 0.0
    %7523 = vmatpush1.msra.mxu0 %v254
    %7524 = vmatprep.subr.mxu0 0.0
    %7525 = vmatpush1.msra.mxu0 %v257
    %7526 = vmatprep.subr.mxu0 0.0
    %7527 = vmatpush1.msra.mxu0 %v260
    %7528 = vmatprep.subr.mxu0 0.0
    %7529 = vmatpush1.msra.mxu0 %v263
    %7530 = vmatprep.subr.mxu0 0.0
    %7531 = vmatpush1.msra.mxu0 0.0
    %7532 = vmatprep.subr.mxu0 0.0
    %7533 = vmatpush1.msra.mxu0 0.0
    %7534 = vmatprep.subr.mxu0 0.0
    %7535 = vmatpush1.msra.mxu0 0.0
    %7536 = vmatprep.subr.mxu0 0.0
    %7537 = vmatpush1.msra.mxu0 0.0
    %7538 = vmatprep.subr.mxu0 0.0
    %7539 = vmatpush1.msra.mxu0 0.0
    %7540 = vmatprep.subr.mxu0 0.0
    %7541 = vmatpush1.msra.mxu0 0.0
    %7542 = vmatprep.subr.mxu0 0.0
    %7543 = vmatpush1.msra.mxu0 0.0
    %7544 = vmatprep.subr.mxu0 0.0
    %7545 = vmatpush1.msra.mxu0 0.0
    %7546 = vmatprep.subr.mxu0 0.0
    %7547 = vmatpush1.msra.mxu0 0.0
    %7548 = vmatprep.subr.mxu0 0.0
    %7549 = vmatpush1.msra.mxu0 0.0
    %7550 = vmatprep.subr.mxu0 0.0
    %7551 = vmatpush1.msra.mxu0 0.0
    %7552 = vmatprep.subr.mxu0 0.0
    %7553 = vmatpush1.msra.mxu0 0.0
    %7554 = vmatprep.subr.mxu0 0.0
    %7555 = vmatpush1.msra.mxu0 0.0
    %7556 = vmatprep.subr.mxu0 0.0
    %7557 = vmatpush1.msra.mxu0 0.0
    %7558 = vmatprep.subr.mxu0 0.0
    %7559 = vmatpush1.msra.mxu0 0.0
    %7560 = vmatprep.subr.mxu0 0.0
    %7561 = vmatpush1.msra.mxu0 0.0
    %7562 = vmatprep.mubr.f32.mxu0 0.0
    %7563 = vmatmul.mubr.f32.gmra.mrb[0].mxu0 %v7082
    %v7564 = vpop.f32.mrb[0].mxu0
    %v7565 = vadd.f32 0.0, %v7564
    %v7566 = vpop.f32.mrb[0].mxu0
    %7567 = vdwg.mxu0
    %v7568 = vadd.f32 %v7424, %v7494
    %v7569 = vxor.u32 %v7568, 2147483648
    %v7570 = vmul.f32 %v7569, 1.442695
    %v7571 = vpow.pop %v7570
    %v7572 = vadd.f32 %v7571, 1.0
    %v7573 = vrcp.pop %v7572
    %v7574 = vmul.f32 1.0, %v7573
    %v7575 = vadd.f32 %v7425, %v7496
    %v7576 = vxor.u32 %v7575, 2147483648
    %v7577 = vmul.f32 %v7576, 1.442695
    %v7578 = vpow.pop %v7577
    %v7579 = vadd.f32 %v7578, 1.0
    %v7580 = vrcp.pop %v7579
    %v7581 = vmul.f32 1.0, %v7580
    %v7582 = vadd.f32 %v7565, %v365
    %v7583 = vmul.f32 %v7574, %v7582
    %v7584 = vadd.f32 %v7426, %v7583
    %v7585 = vtanh.pop %v7584
    %v7586 = vsub.f32 1.0, %v7581
    %v7587 = vmul.f32 %v7586, %v7585
    %v7588 = vmul.f32 %v7581, %v7082
    %v7589 = vadd.f32 %v7587, %v7588
    %7590 = vmatprep.subr.mxu0 %v313
    %7591 = vmatpush1.msra.mxu0 %v312
    %7592 = vmatprep.subr.mxu0 %v316
    %7593 = vmatpush1.msra.mxu0 %v315
    %7594 = vmatprep.subr.mxu0 %v319
    %7595 = vmatpush1.msra.mxu0 %v318
    %7596 = vmatprep.subr.mxu0 %v322
    %7597 = vmatpush1.msra.mxu0 %v321
    %7598 = vmatprep.subr.mxu0 %v325
    %7599 = vmatpush1.msra.mxu0 %v324
    %7600 = vmatprep.subr.mxu0 %v328
    %7601 = vmatpush1.msra.mxu0 %v327
    %7602 = vmatprep.subr.mxu0 %v331
    %7603 = vmatpush1.msra.mxu0 %v330
    %7604 = vmatprep.subr.mxu0 %v334
    %7605 = vmatpush1.msra.mxu0 %v333
    %7606 = vmatprep.subr.mxu0 %v337
    %7607 = vmatpush1.msra.mxu0 %v336
    %7608 = vmatprep.subr.mxu0 %v340
    %7609 = vmatpush1.msra.mxu0 %v339
    %7610 = vmatprep.subr.mxu0 %v343
    %7611 = vmatpush1.msra.mxu0 %v342
    %7612 = vmatprep.subr.mxu0 %v346
    %7613 = vmatpush1.msra.mxu0 %v345
    %7614 = vmatprep.subr.mxu0 %v349
    %7615 = vmatpush1.msra.mxu0 %v348
    %7616 = vmatprep.subr.mxu0 %v352
    %7617 = vmatpush1.msra.mxu0 %v351
    %7618 = vmatprep.subr.mxu0 %v355
    %7619 = vmatpush1.msra.mxu0 %v354
    %7620 = vmatprep.subr.mxu0 %v358
    %7621 = vmatpush1.msra.mxu0 %v357
    %7622 = vmatprep.subr.mxu0 0.0
    %7623 = vmatpush1.msra.mxu0 0.0
    %7624 = vmatprep.subr.mxu0 0.0
    %7625 = vmatpush1.msra.mxu0 0.0
    %7626 = vmatprep.subr.mxu0 0.0
    %7627 = vmatpush1.msra.mxu0 0.0
    %7628 = vmatprep.subr.mxu0 0.0
    %7629 = vmatpush1.msra.mxu0 0.0
    %7630 = vmatprep.subr.mxu0 0.0
    %7631 = vmatpush1.msra.mxu0 0.0
    %7632 = vmatprep.subr.mxu0 0.0
    %7633 = vmatpush1.msra.mxu0 0.0
    %7634 = vmatprep.subr.mxu0 0.0
    %7635 = vmatpush1.msra.mxu0 0.0
    %7636 = vmatprep.subr.mxu0 0.0
    %7637 = vmatpush1.msra.mxu0 0.0
    %7638 = vmatprep.subr.mxu0 0.0
    %7639 = vmatpush1.msra.mxu0 0.0
    %7640 = vmatprep.subr.mxu0 0.0
    %7641 = vmatpush1.msra.mxu0 0.0
    %7642 = vmatprep.subr.mxu0 0.0
    %7643 = vmatpush1.msra.mxu0 0.0
    %7644 = vmatprep.subr.mxu0 0.0
    %7645 = vmatpush1.msra.mxu0 0.0
    %7646 = vmatprep.subr.mxu0 0.0
    %7647 = vmatpush1.msra.mxu0 0.0
    %7648 = vmatprep.subr.mxu0 0.0
    %7649 = vmatpush1.msra.mxu0 0.0
    %7650 = vmatprep.subr.mxu0 0.0
    %7651 = vmatpush1.msra.mxu0 0.0
    %7652 = vmatprep.subr.mxu0 0.0
    %7653 = vmatpush1.msra.mxu0 0.0
    %7654 = vmatprep.mubr.f32.mxu0 0.0
    %7655 = vmatmul.mubr.f32.gmra.mrb[0].mxu0 %v7245
    %v7656 = vpop.f32.mrb[0].mxu0
    %v7657 = vadd.f32 0.0, %v7656
    %v7658 = vpop.f32.mrb[0].mxu0
    %v7659 = vadd.f32 0.0, %v7658
    %7660 = vdwg.mxu0
    %7661 = vmatprep.subr.mxu0 0.0
    %7662 = vmatpush1.msra.mxu0 %v314
    %7663 = vmatprep.subr.mxu0 0.0
    %7664 = vmatpush1.msra.mxu0 %v317
    %7665 = vmatprep.subr.mxu0 0.0
    %7666 = vmatpush1.msra.mxu0 %v320
    %7667 = vmatprep.subr.mxu0 0.0
    %7668 = vmatpush1.msra.mxu0 %v323
    %7669 = vmatprep.subr.mxu0 0.0
    %7670 = vmatpush1.msra.mxu0 %v326
    %7671 = vmatprep.subr.mxu0 0.0
    %7672 = vmatpush1.msra.mxu0 %v329
    %7673 = vmatprep.subr.mxu0 0.0
    %7674 = vmatpush1.msra.mxu0 %v332
    %7675 = vmatprep.subr.mxu0 0.0
    %7676 = vmatpush1.msra.mxu0 %v335
    %7677 = vmatprep.subr.mxu0 0.0
    %7678 = vmatpush1.msra.mxu0 %v338
    %7679 = vmatprep.subr.mxu0 0.0
    %7680 = vmatpush1.msra.mxu0 %v341
    %7681 = vmatprep.subr.mxu0 0.0
    %7682 = vmatpush1.msra.mxu0 %v344
    %7683 = vmatprep.subr.mxu0 0.0
    %7684 = vmatpush1.msra.mxu0 %v347
    %7685 = vmatprep.subr.mxu0 0.0
    %7686 = vmatpush1.msra.mxu0 %v350
    %7687 = vmatprep.subr.mxu0 0.0
    %7688 = vmatpush1.msra.mxu0 %v353
    %7689 = vmatprep.subr.mxu0 0.0
    %7690 = vmatpush1.msra.mxu0 %v356
    %7691 = vmatprep.subr.mxu0 0.0
    %7692 = vmatpush1.msra.mxu0 %v359
    %7693 = vmatprep.subr.mxu0 0.0
    %7694 = vmatpush1.msra.mxu0 0.0
    %7695 = vmatprep.subr.mxu0 0.0
    %7696 = vmatpush1.msra.mxu0 0.0
    %7697 = vmatprep.subr.mxu0 0.0
    %7698 = vmatpush1.msra.mxu0 0.0
    %7699 = vmatprep.subr.mxu0 0.0
    %7700 = vmatpush1.msra.mxu0 0.0
    %7701 = vmatprep.subr.mxu0 0.0
    %7702 = vmatpush1.msra.mxu0 0.0
    %7703 = vmatprep.subr.mxu0 0.0
    %7704 = vmatpush1.msra.mxu0 0.0
    %7705 = vmatprep.subr.mxu0 0.0
    %7706 = vmatpush1.msra.mxu0 0.0
    %7707 = vmatprep.subr.mxu0 0.0
    %7708 = vmatpush1.msra.mxu0 0.0
    %7709 = vmatprep.subr.mxu0 0.0
    %7710 = vmatpush1.msra.mxu0 0.0
    %7711 = vmatprep.subr.mxu0 0.0
    %7712 = vmatpush1.msra.mxu0 0.0
    %7713 = vmatprep.subr.mxu0 0.0
    %7714 = vmatpush1.msra.mxu0 0.0
    %7715 = vmatprep.subr.mxu0 0.0
    %7716 = vmatpush1.msra.mxu0 0.0
    %7717 = vmatprep.subr.mxu0 0.0
    %7718 = vmatpush1.msra.mxu0 0.0
    %7719 = vmatprep.subr.mxu0 0.0
    %7720 = vmatpush1.msra.mxu0 0.0
    %7721 = vmatprep.subr.mxu0 0.0
    %7722 = vmatpush1.msra.mxu0 0.0
    %7723 = vmatprep.subr.mxu0 0.0
    %7724 = vmatpush1.msra.mxu0 0.0
    %7725 = vmatprep.mubr.f32.mxu0 0.0
    %7726 = vmatmul.mubr.f32.gmra.mrb[0].mxu0 %v7245
    %v7727 = vpop.f32.mrb[0].mxu0
    %v7728 = vadd.f32 0.0, %v7727
    %v7729 = vpop.f32.mrb[0].mxu0
    %7730 = vdwg.mxu0
    %v7731 = vadd.f32 %v7314, %v7657
    %v7732 = vxor.u32 %v7731, 2147483648
    %v7733 = vmul.f32 %v7732, 1.442695
    %v7734 = vpow.pop %v7733
    %v7735 = vadd.f32 %v7734, 1.0
    %v7736 = vrcp.pop %v7735
    %v7737 = vmul.f32 1.0, %v7736
    %v7738 = vadd.f32 %v7316, %v7659
    %v7739 = vxor.u32 %v7738, 2147483648
    %v7740 = vmul.f32 %v7739, 1.442695
    %v7741 = vpow.pop %v7740
    %v7742 = vadd.f32 %v7741, 1.0
    %v7743 = vrcp.pop %v7742
    %v7744 = vmul.f32 1.0, %v7743
    %v7745 = vadd.f32 %v7728, %v372
    %v7746 = vmul.f32 %v7737, %v7745
    %v7747 = vadd.f32 %v7385, %v7746
    %v7748 = vtanh.pop %v7747
    %v7749 = vsub.f32 1.0, %v7744
    %v7750 = vmul.f32 %v7749, %v7748
    %v7751 = vmul.f32 %v7744, %v7245
    %v7752 = vadd.f32 %v7750, %v7751
    %7753 = vst [vmem:[%s15 + $0x16] sm:$0x3] %v7752
    %7754 = vmatprep.subr.mxu0 %v265
    %7755 = vmatpush1.msra.mxu0 %v264
    %7756 = vmatprep.subr.mxu0 %v268
    %7757 = vmatpush1.msra.mxu0 %v267
    %7758 = vmatprep.subr.mxu0 %v271
    %7759 = vmatpush1.msra.mxu0 %v270
    %7760 = vmatprep.subr.mxu0 %v274
    %7761 = vmatpush1.msra.mxu0 %v273
    %7762 = vmatprep.subr.mxu0 %v277
    %7763 = vmatpush1.msra.mxu0 %v276
    %7764 = vmatprep.subr.mxu0 %v280
    %7765 = vmatpush1.msra.mxu0 %v279
    %7766 = vmatprep.subr.mxu0 %v283
    %7767 = vmatpush1.msra.mxu0 %v282
    %7768 = vmatprep.subr.mxu0 %v286
    %7769 = vmatpush1.msra.mxu0 %v285
    %7770 = vmatprep.subr.mxu0 %v289
    %7771 = vmatpush1.msra.mxu0 %v288
    %7772 = vmatprep.subr.mxu0 %v292
    %7773 = vmatpush1.msra.mxu0 %v291
    %7774 = vmatprep.subr.mxu0 %v295
    %7775 = vmatpush1.msra.mxu0 %v294
    %7776 = vmatprep.subr.mxu0 %v298
    %7777 = vmatpush1.msra.mxu0 %v297
    %7778 = vmatprep.subr.mxu0 %v301
    %7779 = vmatpush1.msra.mxu0 %v300
    %7780 = vmatprep.subr.mxu0 %v304
    %7781 = vmatpush1.msra.mxu0 %v303
    %7782 = vmatprep.subr.mxu0 %v307
    %7783 = vmatpush1.msra.mxu0 %v306
    %7784 = vmatprep.subr.mxu0 %v310
    %7785 = vmatpush1.msra.mxu0 %v309
    %7786 = vmatprep.subr.mxu0 0.0
    %7787 = vmatpush1.msra.mxu0 0.0
    %7788 = vmatprep.subr.mxu0 0.0
    %7789 = vmatpush1.msra.mxu0 0.0
    %7790 = vmatprep.subr.mxu0 0.0
    %7791 = vmatpush1.msra.mxu0 0.0
    %7792 = vmatprep.subr.mxu0 0.0
    %7793 = vmatpush1.msra.mxu0 0.0
    %7794 = vmatprep.subr.mxu0 0.0
    %7795 = vmatpush1.msra.mxu0 0.0
    %7796 = vmatprep.subr.mxu0 0.0
    %7797 = vmatpush1.msra.mxu0 0.0
    %7798 = vmatprep.subr.mxu0 0.0
    %7799 = vmatpush1.msra.mxu0 0.0
    %7800 = vmatprep.subr.mxu0 0.0
    %7801 = vmatpush1.msra.mxu0 0.0
    %7802 = vmatprep.subr.mxu0 0.0
    %7803 = vmatpush1.msra.mxu0 0.0
    %7804 = vmatprep.subr.mxu0 0.0
    %7805 = vmatpush1.msra.mxu0 0.0
    %7806 = vmatprep.subr.mxu0 0.0
    %7807 = vmatpush1.msra.mxu0 0.0
    %7808 = vmatprep.subr.mxu0 0.0
    %7809 = vmatpush1.msra.mxu0 0.0
    %7810 = vmatprep.subr.mxu0 0.0
    %7811 = vmatpush1.msra.mxu0 0.0
    %7812 = vmatprep.subr.mxu0 0.0
    %7813 = vmatpush1.msra.mxu0 0.0
    %7814 = vmatprep.subr.mxu0 0.0
    %7815 = vmatpush1.msra.mxu0 0.0
    %7816 = vmatprep.subr.mxu0 0.0
    %7817 = vmatpush1.msra.mxu0 0.0
    %7818 = vmatprep.mubr.f32.mxu0 0.0
    %7819 = vmatmul.mubr.f32.gmra.mrb[0].mxu0 %v7589
    %v7820 = vpop.f32.mrb[0].mxu0
    %v7821 = vadd.f32 %v379, %v7820
    %v7822 = vpop.f32.mrb[0].mxu0
    %v7823 = vadd.f32 %v383, %v7822
    %7824 = vdwg.mxu0
    %7825 = vmatprep.subr.mxu0 0.0
    %7826 = vmatpush1.msra.mxu0 %v266
    %7827 = vmatprep.subr.mxu0 0.0
    %7828 = vmatpush1.msra.mxu0 %v269
    %7829 = vmatprep.subr.mxu0 0.0
    %7830 = vmatpush1.msra.mxu0 %v272
    %7831 = vmatprep.subr.mxu0 0.0
    %7832 = vmatpush1.msra.mxu0 %v275
    %7833 = vmatprep.subr.mxu0 0.0
    %7834 = vmatpush1.msra.mxu0 %v278
    %7835 = vmatprep.subr.mxu0 0.0
    %7836 = vmatpush1.msra.mxu0 %v281
    %7837 = vmatprep.subr.mxu0 0.0
    %7838 = vmatpush1.msra.mxu0 %v284
    %7839 = vmatprep.subr.mxu0 0.0
    %7840 = vmatpush1.msra.mxu0 %v287
    %7841 = vmatprep.subr.mxu0 0.0
    %7842 = vmatpush1.msra.mxu0 %v290
    %7843 = vmatprep.subr.mxu0 0.0
    %7844 = vmatpush1.msra.mxu0 %v293
    %7845 = vmatprep.subr.mxu0 0.0
    %7846 = vmatpush1.msra.mxu0 %v296
    %7847 = vmatprep.subr.mxu0 0.0
    %7848 = vmatpush1.msra.mxu0 %v299
    %7849 = vmatprep.subr.mxu0 0.0
    %7850 = vmatpush1.msra.mxu0 %v302
    %7851 = vmatprep.subr.mxu0 0.0
    %7852 = vmatpush1.msra.mxu0 %v305
    %7853 = vmatprep.subr.mxu0 0.0
    %7854 = vmatpush1.msra.mxu0 %v308
    %7855 = vmatprep.subr.mxu0 0.0
    %7856 = vmatpush1.msra.mxu0 %v311
    %7857 = vmatprep.subr.mxu0 0.0
    %7858 = vmatpush1.msra.mxu0 0.0
    %7859 = vmatprep.subr.mxu0 0.0
    %7860 = vmatpush1.msra.mxu0 0.0
    %7861 = vmatprep.subr.mxu0 0.0
    %7862 = vmatpush1.msra.mxu0 0.0
    %7863 = vmatprep.subr.mxu0 0.0
    %7864 = vmatpush1.msra.mxu0 0.0
    %7865 = vmatprep.subr.mxu0 0.0
    %7866 = vmatpush1.msra.mxu0 0.0
    %7867 = vmatprep.subr.mxu0 0.0
    %7868 = vmatpush1.msra.mxu0 0.0
    %7869 = vmatprep.subr.mxu0 0.0
    %7870 = vmatpush1.msra.mxu0 0.0
    %7871 = vmatprep.subr.mxu0 0.0
    %7872 = vmatpush1.msra.mxu0 0.0
    %7873 = vmatprep.subr.mxu0 0.0
    %7874 = vmatpush1.msra.mxu0 0.0
    %7875 = vmatprep.subr.mxu0 0.0
    %7876 = vmatpush1.msra.mxu0 0.0
    %7877 = vmatprep.subr.mxu0 0.0
    %7878 = vmatpush1.msra.mxu0 0.0
    %7879 = vmatprep.subr.mxu0 0.0
    %7880 = vmatpush1.msra.mxu0 0.0
    %7881 = vmatprep.subr.mxu0 0.0
    %7882 = vmatpush1.msra.mxu0 0.0
    %7883 = vmatprep.subr.mxu0 0.0
    %7884 = vmatpush1.msra.mxu0 0.0
    %7885 = vmatprep.subr.mxu0 0.0
    %7886 = vmatpush1.msra.mxu0 0.0
    %7887 = vmatprep.subr.mxu0 0.0
    %7888 = vmatpush1.msra.mxu0 0.0
    %7889 = vmatprep.mubr.f32.mxu0 0.0
    %7890 = vmatmul.mubr.f32.gmra.mrb[0].mxu0 %v7589
    %v7891 = vpop.f32.mrb[0].mxu0
    %v7892 = vadd.f32 %v387, %v7891
    %v7893 = vpop.f32.mrb[0].mxu0
    %7894 = vdwg.mxu0
    %s7895 = scalar_lea.vmem [#allocation2], 29
    %v7896 = vld [vmem:[%s7895] ss:$8 sm:$0x7]
    %s7897 = scalar_lea.vmem %s1462, 29 [#allocation2]
    %v7898 = vld [vmem:[%s7897] ss:$8 sm:$0x7]
    %v7900 = vlaneseq
    %v7901 = vshrl.u32 %v7900, 7
    %v7902 = vsub.s32 0, %v7901
    %v7903 = vrot.slane %v7896, %v7902
    %v7904 = vlaneseq
    %v7905 = vshrl.u32 %v7904, 7
    %v7906 = vsub.s32 1, %v7905
    %v7907 = vrot.slane %v7896, %v7906
    %v7908 = vlaneseq
    %v7909 = vshrl.u32 %v7908, 7
    %v7910 = vsub.s32 2, %v7909
    %v7911 = vrot.slane %v7896, %v7910
    %v7916 = vlaneseq
    %v7917 = vshrl.u32 %v7916, 7
    %v7918 = vsub.s32 0, %v7917
    %v7919 = vrot.slane %v7898, %v7918
    %v7920 = vlaneseq
    %v7921 = vshrl.u32 %v7920, 7
    %v7922 = vsub.s32 1, %v7921
    %v7923 = vrot.slane %v7898, %v7922
    %v7924 = vlaneseq
    %v7925 = vshrl.u32 %v7924, 7
    %v7926 = vsub.s32 2, %v7925
    %v7927 = vrot.slane %v7898, %v7926
    %v7931 = vsel %vm1503, %v7903, %v7919
    %v7932 = vsel %vm1503, %v7907, %v7923
    %v7933 = vsel %vm1503, %v7911, %v7927
    %7934 = vmatprep.subr.mxu0 %v217
    %7935 = vmatpush1.msra.mxu0 %v216
    %7936 = vmatprep.subr.mxu0 %v220
    %7937 = vmatpush1.msra.mxu0 %v219
    %7938 = vmatprep.subr.mxu0 %v223
    %7939 = vmatpush1.msra.mxu0 %v222
    %7940 = vmatprep.subr.mxu0 %v226
    %7941 = vmatpush1.msra.mxu0 %v225
    %7942 = vmatprep.subr.mxu0 %v229
    %7943 = vmatpush1.msra.mxu0 %v228
    %7944 = vmatprep.subr.mxu0 %v232
    %7945 = vmatpush1.msra.mxu0 %v231
    %7946 = vmatprep.subr.mxu0 %v235
    %7947 = vmatpush1.msra.mxu0 %v234
    %7948 = vmatprep.subr.mxu0 %v238
    %7949 = vmatpush1.msra.mxu0 %v237
    %7950 = vmatprep.subr.mxu0 %v241
    %7951 = vmatpush1.msra.mxu0 %v240
    %7952 = vmatprep.subr.mxu0 %v244
    %7953 = vmatpush1.msra.mxu0 %v243
    %7954 = vmatprep.subr.mxu0 %v247
    %7955 = vmatpush1.msra.mxu0 %v246
    %7956 = vmatprep.subr.mxu0 %v250
    %7957 = vmatpush1.msra.mxu0 %v249
    %7958 = vmatprep.subr.mxu0 %v253
    %7959 = vmatpush1.msra.mxu0 %v252
    %7960 = vmatprep.subr.mxu0 %v256
    %7961 = vmatpush1.msra.mxu0 %v255
    %7962 = vmatprep.subr.mxu0 %v259
    %7963 = vmatpush1.msra.mxu0 %v258
    %7964 = vmatprep.subr.mxu0 %v262
    %7965 = vmatpush1.msra.mxu0 %v261
    %7966 = vmatprep.subr.mxu0 0.0
    %7967 = vmatpush1.msra.mxu0 0.0
    %7968 = vmatprep.subr.mxu0 0.0
    %7969 = vmatpush1.msra.mxu0 0.0
    %7970 = vmatprep.subr.mxu0 0.0
    %7971 = vmatpush1.msra.mxu0 0.0
    %7972 = vmatprep.subr.mxu0 0.0
    %7973 = vmatpush1.msra.mxu0 0.0
    %7974 = vmatprep.subr.mxu0 0.0
    %7975 = vmatpush1.msra.mxu0 0.0
    %7976 = vmatprep.subr.mxu0 0.0
    %7977 = vmatpush1.msra.mxu0 0.0
    %7978 = vmatprep.subr.mxu0 0.0
    %7979 = vmatpush1.msra.mxu0 0.0
    %7980 = vmatprep.subr.mxu0 0.0
    %7981 = vmatpush1.msra.mxu0 0.0
    %7982 = vmatprep.subr.mxu0 0.0
    %7983 = vmatpush1.msra.mxu0 0.0
    %7984 = vmatprep.subr.mxu0 0.0
    %7985 = vmatpush1.msra.mxu0 0.0
    %7986 = vmatprep.subr.mxu0 0.0
    %7987 = vmatpush1.msra.mxu0 0.0
    %7988 = vmatprep.subr.mxu0 0.0
    %7989 = vmatpush1.msra.mxu0 0.0
    %7990 = vmatprep.subr.mxu0 0.0
    %7991 = vmatpush1.msra.mxu0 0.0
    %7992 = vmatprep.subr.mxu0 0.0
    %7993 = vmatpush1.msra.mxu0 0.0
    %7994 = vmatprep.subr.mxu0 0.0
    %7995 = vmatpush1.msra.mxu0 0.0
    %7996 = vmatprep.subr.mxu0 0.0
    %7997 = vmatpush1.msra.mxu0 0.0
    %7998 = vmatprep.mubr.f32.mxu0 0.0
    %7999 = vmatmul.mubr.f32.gmra.mrb[0].mxu0 %v7589
    %v8000 = vpop.f32.mrb[0].mxu0
    %v8001 = vadd.f32 0.0, %v8000
    %v8002 = vpop.f32.mrb[0].mxu0
    %v8003 = vadd.f32 0.0, %v8002
    %8004 = vdwg.mxu0
    %8005 = vmatprep.subr.mxu0 0.0
    %8006 = vmatpush1.msra.mxu0 %v218
    %8007 = vmatprep.subr.mxu0 0.0
    %8008 = vmatpush1.msra.mxu0 %v221
    %8009 = vmatprep.subr.mxu0 0.0
    %8010 = vmatpush1.msra.mxu0 %v224
    %8011 = vmatprep.subr.mxu0 0.0
    %8012 = vmatpush1.msra.mxu0 %v227
    %8013 = vmatprep.subr.mxu0 0.0
    %8014 = vmatpush1.msra.mxu0 %v230
    %8015 = vmatprep.subr.mxu0 0.0
    %8016 = vmatpush1.msra.mxu0 %v233
    %8017 = vmatprep.subr.mxu0 0.0
    %8018 = vmatpush1.msra.mxu0 %v236
    %8019 = vmatprep.subr.mxu0 0.0
    %8020 = vmatpush1.msra.mxu0 %v239
    %8021 = vmatprep.subr.mxu0 0.0
    %8022 = vmatpush1.msra.mxu0 %v242
    %8023 = vmatprep.subr.mxu0 0.0
    %8024 = vmatpush1.msra.mxu0 %v245
    %8025 = vmatprep.subr.mxu0 0.0
    %8026 = vmatpush1.msra.mxu0 %v248
    %8027 = vmatprep.subr.mxu0 0.0
    %8028 = vmatpush1.msra.mxu0 %v251
    %8029 = vmatprep.subr.mxu0 0.0
    %8030 = vmatpush1.msra.mxu0 %v254
    %8031 = vmatprep.subr.mxu0 0.0
    %8032 = vmatpush1.msra.mxu0 %v257
    %8033 = vmatprep.subr.mxu0 0.0
    %8034 = vmatpush1.msra.mxu0 %v260
    %8035 = vmatprep.subr.mxu0 0.0
    %8036 = vmatpush1.msra.mxu0 %v263
    %8037 = vmatprep.subr.mxu0 0.0
    %8038 = vmatpush1.msra.mxu0 0.0
    %8039 = vmatprep.subr.mxu0 0.0
    %8040 = vmatpush1.msra.mxu0 0.0
    %8041 = vmatprep.subr.mxu0 0.0
    %8042 = vmatpush1.msra.mxu0 0.0
    %8043 = vmatprep.subr.mxu0 0.0
    %8044 = vmatpush1.msra.mxu0 0.0
    %8045 = vmatprep.subr.mxu0 0.0
    %8046 = vmatpush1.msra.mxu0 0.0
    %8047 = vmatprep.subr.mxu0 0.0
    %8048 = vmatpush1.msra.mxu0 0.0
    %8049 = vmatprep.subr.mxu0 0.0
    %8050 = vmatpush1.msra.mxu0 0.0
    %8051 = vmatprep.subr.mxu0 0.0
    %8052 = vmatpush1.msra.mxu0 0.0
    %8053 = vmatprep.subr.mxu0 0.0
    %8054 = vmatpush1.msra.mxu0 0.0
    %8055 = vmatprep.subr.mxu0 0.0
    %8056 = vmatpush1.msra.mxu0 0.0
    %8057 = vmatprep.subr.mxu0 0.0
    %8058 = vmatpush1.msra.mxu0 0.0
    %8059 = vmatprep.subr.mxu0 0.0
    %8060 = vmatpush1.msra.mxu0 0.0
    %8061 = vmatprep.subr.mxu0 0.0
    %8062 = vmatpush1.msra.mxu0 0.0
    %8063 = vmatprep.subr.mxu0 0.0
    %8064 = vmatpush1.msra.mxu0 0.0
    %8065 = vmatprep.subr.mxu0 0.0
    %8066 = vmatpush1.msra.mxu0 0.0
    %8067 = vmatprep.subr.mxu0 0.0
    %8068 = vmatpush1.msra.mxu0 0.0
    %8069 = vmatprep.mubr.f32.mxu0 0.0
    %8070 = vmatmul.mubr.f32.gmra.mrb[0].mxu0 %v7589
    %v8071 = vpop.f32.mrb[0].mxu0
    %v8072 = vadd.f32 0.0, %v8071
    %v8073 = vpop.f32.mrb[0].mxu0
    %8074 = vdwg.mxu0
    %v8075 = vadd.f32 %v7931, %v8001
    %v8076 = vxor.u32 %v8075, 2147483648
    %v8077 = vmul.f32 %v8076, 1.442695
    %v8078 = vpow.pop %v8077
    %v8079 = vadd.f32 %v8078, 1.0
    %v8080 = vrcp.pop %v8079
    %v8081 = vmul.f32 1.0, %v8080
    %v8082 = vadd.f32 %v7932, %v8003
    %v8083 = vxor.u32 %v8082, 2147483648
    %v8084 = vmul.f32 %v8083, 1.442695
    %v8085 = vpow.pop %v8084
    %v8086 = vadd.f32 %v8085, 1.0
    %v8087 = vrcp.pop %v8086
    %v8088 = vmul.f32 1.0, %v8087
    %v8089 = vadd.f32 %v8072, %v365
    %v8090 = vmul.f32 %v8081, %v8089
    %v8091 = vadd.f32 %v7933, %v8090
    %v8092 = vtanh.pop %v8091
    %v8093 = vsub.f32 1.0, %v8088
    %v8094 = vmul.f32 %v8093, %v8092
    %v8095 = vmul.f32 %v8088, %v7589
    %v8096 = vadd.f32 %v8094, %v8095
    %8097 = vmatprep.subr.mxu0 %v313
    %8098 = vmatpush1.msra.mxu0 %v312
    %8099 = vmatprep.subr.mxu0 %v316
    %8100 = vmatpush1.msra.mxu0 %v315
    %8101 = vmatprep.subr.mxu0 %v319
    %8102 = vmatpush1.msra.mxu0 %v318
    %8103 = vmatprep.subr.mxu0 %v322
    %8104 = vmatpush1.msra.mxu0 %v321
    %8105 = vmatprep.subr.mxu0 %v325
    %8106 = vmatpush1.msra.mxu0 %v324
    %8107 = vmatprep.subr.mxu0 %v328
    %8108 = vmatpush1.msra.mxu0 %v327
    %8109 = vmatprep.subr.mxu0 %v331
    %8110 = vmatpush1.msra.mxu0 %v330
    %8111 = vmatprep.subr.mxu0 %v334
    %8112 = vmatpush1.msra.mxu0 %v333
    %8113 = vmatprep.subr.mxu0 %v337
    %8114 = vmatpush1.msra.mxu0 %v336
    %8115 = vmatprep.subr.mxu0 %v340
    %8116 = vmatpush1.msra.mxu0 %v339
    %8117 = vmatprep.subr.mxu0 %v343
    %8118 = vmatpush1.msra.mxu0 %v342
    %8119 = vmatprep.subr.mxu0 %v346
    %8120 = vmatpush1.msra.mxu0 %v345
    %8121 = vmatprep.subr.mxu0 %v349
    %8122 = vmatpush1.msra.mxu0 %v348
    %8123 = vmatprep.subr.mxu0 %v352
    %8124 = vmatpush1.msra.mxu0 %v351
    %8125 = vmatprep.subr.mxu0 %v355
    %8126 = vmatpush1.msra.mxu0 %v354
    %8127 = vmatprep.subr.mxu0 %v358
    %8128 = vmatpush1.msra.mxu0 %v357
    %8129 = vmatprep.subr.mxu0 0.0
    %8130 = vmatpush1.msra.mxu0 0.0
    %8131 = vmatprep.subr.mxu0 0.0
    %8132 = vmatpush1.msra.mxu0 0.0
    %8133 = vmatprep.subr.mxu0 0.0
    %8134 = vmatpush1.msra.mxu0 0.0
    %8135 = vmatprep.subr.mxu0 0.0
    %8136 = vmatpush1.msra.mxu0 0.0
    %8137 = vmatprep.subr.mxu0 0.0
    %8138 = vmatpush1.msra.mxu0 0.0
    %8139 = vmatprep.subr.mxu0 0.0
    %8140 = vmatpush1.msra.mxu0 0.0
    %8141 = vmatprep.subr.mxu0 0.0
    %8142 = vmatpush1.msra.mxu0 0.0
    %8143 = vmatprep.subr.mxu0 0.0
    %8144 = vmatpush1.msra.mxu0 0.0
    %8145 = vmatprep.subr.mxu0 0.0
    %8146 = vmatpush1.msra.mxu0 0.0
    %8147 = vmatprep.subr.mxu0 0.0
    %8148 = vmatpush1.msra.mxu0 0.0
    %8149 = vmatprep.subr.mxu0 0.0
    %8150 = vmatpush1.msra.mxu0 0.0
    %8151 = vmatprep.subr.mxu0 0.0
    %8152 = vmatpush1.msra.mxu0 0.0
    %8153 = vmatprep.subr.mxu0 0.0
    %8154 = vmatpush1.msra.mxu0 0.0
    %8155 = vmatprep.subr.mxu0 0.0
    %8156 = vmatpush1.msra.mxu0 0.0
    %8157 = vmatprep.subr.mxu0 0.0
    %8158 = vmatpush1.msra.mxu0 0.0
    %8159 = vmatprep.subr.mxu0 0.0
    %8160 = vmatpush1.msra.mxu0 0.0
    %8161 = vmatprep.mubr.f32.mxu0 0.0
    %8162 = vmatmul.mubr.f32.gmra.mrb[0].mxu0 %v7752
    %v8163 = vpop.f32.mrb[0].mxu0
    %v8164 = vadd.f32 0.0, %v8163
    %v8165 = vpop.f32.mrb[0].mxu0
    %v8166 = vadd.f32 0.0, %v8165
    %8167 = vdwg.mxu0
    %8168 = vmatprep.subr.mxu0 0.0
    %8169 = vmatpush1.msra.mxu0 %v314
    %8170 = vmatprep.subr.mxu0 0.0
    %8171 = vmatpush1.msra.mxu0 %v317
    %8172 = vmatprep.subr.mxu0 0.0
    %8173 = vmatpush1.msra.mxu0 %v320
    %8174 = vmatprep.subr.mxu0 0.0
    %8175 = vmatpush1.msra.mxu0 %v323
    %8176 = vmatprep.subr.mxu0 0.0
    %8177 = vmatpush1.msra.mxu0 %v326
    %8178 = vmatprep.subr.mxu0 0.0
    %8179 = vmatpush1.msra.mxu0 %v329
    %8180 = vmatprep.subr.mxu0 0.0
    %8181 = vmatpush1.msra.mxu0 %v332
    %8182 = vmatprep.subr.mxu0 0.0
    %8183 = vmatpush1.msra.mxu0 %v335
    %8184 = vmatprep.subr.mxu0 0.0
    %8185 = vmatpush1.msra.mxu0 %v338
    %8186 = vmatprep.subr.mxu0 0.0
    %8187 = vmatpush1.msra.mxu0 %v341
    %8188 = vmatprep.subr.mxu0 0.0
    %8189 = vmatpush1.msra.mxu0 %v344
    %8190 = vmatprep.subr.mxu0 0.0
    %8191 = vmatpush1.msra.mxu0 %v347
    %8192 = vmatprep.subr.mxu0 0.0
    %8193 = vmatpush1.msra.mxu0 %v350
    %8194 = vmatprep.subr.mxu0 0.0
    %8195 = vmatpush1.msra.mxu0 %v353
    %8196 = vmatprep.subr.mxu0 0.0
    %8197 = vmatpush1.msra.mxu0 %v356
    %8198 = vmatprep.subr.mxu0 0.0
    %8199 = vmatpush1.msra.mxu0 %v359
    %8200 = vmatprep.subr.mxu0 0.0
    %8201 = vmatpush1.msra.mxu0 0.0
    %8202 = vmatprep.subr.mxu0 0.0
    %8203 = vmatpush1.msra.mxu0 0.0
    %8204 = vmatprep.subr.mxu0 0.0
    %8205 = vmatpush1.msra.mxu0 0.0
    %8206 = vmatprep.subr.mxu0 0.0
    %8207 = vmatpush1.msra.mxu0 0.0
    %8208 = vmatprep.subr.mxu0 0.0
    %8209 = vmatpush1.msra.mxu0 0.0
    %8210 = vmatprep.subr.mxu0 0.0
    %8211 = vmatpush1.msra.mxu0 0.0
    %8212 = vmatprep.subr.mxu0 0.0
    %8213 = vmatpush1.msra.mxu0 0.0
    %8214 = vmatprep.subr.mxu0 0.0
    %8215 = vmatpush1.msra.mxu0 0.0
    %8216 = vmatprep.subr.mxu0 0.0
    %8217 = vmatpush1.msra.mxu0 0.0
    %8218 = vmatprep.subr.mxu0 0.0
    %8219 = vmatpush1.msra.mxu0 0.0
    %8220 = vmatprep.subr.mxu0 0.0
    %8221 = vmatpush1.msra.mxu0 0.0
    %8222 = vmatprep.subr.mxu0 0.0
    %8223 = vmatpush1.msra.mxu0 0.0
    %8224 = vmatprep.subr.mxu0 0.0
    %8225 = vmatpush1.msra.mxu0 0.0
    %8226 = vmatprep.subr.mxu0 0.0
    %8227 = vmatpush1.msra.mxu0 0.0
    %8228 = vmatprep.subr.mxu0 0.0
    %8229 = vmatpush1.msra.mxu0 0.0
    %8230 = vmatprep.subr.mxu0 0.0
    %8231 = vmatpush1.msra.mxu0 0.0
    %8232 = vmatprep.mubr.f32.mxu0 0.0
    %8233 = vmatmul.mubr.f32.gmra.mrb[0].mxu0 %v7752
    %v8234 = vpop.f32.mrb[0].mxu0
    %v8235 = vadd.f32 0.0, %v8234
    %v8236 = vpop.f32.mrb[0].mxu0
    %8237 = vdwg.mxu0
    %v8238 = vadd.f32 %v7821, %v8164
    %v8239 = vxor.u32 %v8238, 2147483648
    %v8240 = vmul.f32 %v8239, 1.442695
    %v8241 = vpow.pop %v8240
    %v8242 = vadd.f32 %v8241, 1.0
    %v8243 = vrcp.pop %v8242
    %v8244 = vmul.f32 1.0, %v8243
    %v8245 = vadd.f32 %v7823, %v8166
    %v8246 = vxor.u32 %v8245, 2147483648
    %v8247 = vmul.f32 %v8246, 1.442695
    %v8248 = vpow.pop %v8247
    %v8249 = vadd.f32 %v8248, 1.0
    %v8250 = vrcp.pop %v8249
    %v8251 = vmul.f32 1.0, %v8250
    %v8252 = vadd.f32 %v8235, %v372
    %v8253 = vmul.f32 %v8244, %v8252
    %v8254 = vadd.f32 %v7892, %v8253
    %v8255 = vtanh.pop %v8254
    %v8256 = vsub.f32 1.0, %v8251
    %v8257 = vmul.f32 %v8256, %v8255
    %v8258 = vmul.f32 %v8251, %v7752
    %v8259 = vadd.f32 %v8257, %v8258
    %8260 = vst [vmem:[%s15 + $0x18] sm:$0x3] %v8259
    %8261 = vmatprep.subr.mxu0 %v265
    %8262 = vmatpush1.msra.mxu0 %v264
    %8263 = vmatprep.subr.mxu0 %v268
    %8264 = vmatpush1.msra.mxu0 %v267
    %8265 = vmatprep.subr.mxu0 %v271
    %8266 = vmatpush1.msra.mxu0 %v270
    %8267 = vmatprep.subr.mxu0 %v274
    %8268 = vmatpush1.msra.mxu0 %v273
    %8269 = vmatprep.subr.mxu0 %v277
    %8270 = vmatpush1.msra.mxu0 %v276
    %8271 = vmatprep.subr.mxu0 %v280
    %8272 = vmatpush1.msra.mxu0 %v279
    %8273 = vmatprep.subr.mxu0 %v283
    %8274 = vmatpush1.msra.mxu0 %v282
    %8275 = vmatprep.subr.mxu0 %v286
    %8276 = vmatpush1.msra.mxu0 %v285
    %8277 = vmatprep.subr.mxu0 %v289
    %8278 = vmatpush1.msra.mxu0 %v288
    %8279 = vmatprep.subr.mxu0 %v292
    %8280 = vmatpush1.msra.mxu0 %v291
    %8281 = vmatprep.subr.mxu0 %v295
    %8282 = vmatpush1.msra.mxu0 %v294
    %8283 = vmatprep.subr.mxu0 %v298
    %8284 = vmatpush1.msra.mxu0 %v297
    %8285 = vmatprep.subr.mxu0 %v301
    %8286 = vmatpush1.msra.mxu0 %v300
    %8287 = vmatprep.subr.mxu0 %v304
    %8288 = vmatpush1.msra.mxu0 %v303
    %8289 = vmatprep.subr.mxu0 %v307
    %8290 = vmatpush1.msra.mxu0 %v306
    %8291 = vmatprep.subr.mxu0 %v310
    %8292 = vmatpush1.msra.mxu0 %v309
    %8293 = vmatprep.subr.mxu0 0.0
    %8294 = vmatpush1.msra.mxu0 0.0
    %8295 = vmatprep.subr.mxu0 0.0
    %8296 = vmatpush1.msra.mxu0 0.0
    %8297 = vmatprep.subr.mxu0 0.0
    %8298 = vmatpush1.msra.mxu0 0.0
    %8299 = vmatprep.subr.mxu0 0.0
    %8300 = vmatpush1.msra.mxu0 0.0
    %8301 = vmatprep.subr.mxu0 0.0
    %8302 = vmatpush1.msra.mxu0 0.0
    %8303 = vmatprep.subr.mxu0 0.0
    %8304 = vmatpush1.msra.mxu0 0.0
    %8305 = vmatprep.subr.mxu0 0.0
    %8306 = vmatpush1.msra.mxu0 0.0
    %8307 = vmatprep.subr.mxu0 0.0
    %8308 = vmatpush1.msra.mxu0 0.0
    %8309 = vmatprep.subr.mxu0 0.0
    %8310 = vmatpush1.msra.mxu0 0.0
    %8311 = vmatprep.subr.mxu0 0.0
    %8312 = vmatpush1.msra.mxu0 0.0
    %8313 = vmatprep.subr.mxu0 0.0
    %8314 = vmatpush1.msra.mxu0 0.0
    %8315 = vmatprep.subr.mxu0 0.0
    %8316 = vmatpush1.msra.mxu0 0.0
    %8317 = vmatprep.subr.mxu0 0.0
    %8318 = vmatpush1.msra.mxu0 0.0
    %8319 = vmatprep.subr.mxu0 0.0
    %8320 = vmatpush1.msra.mxu0 0.0
    %8321 = vmatprep.subr.mxu0 0.0
    %8322 = vmatpush1.msra.mxu0 0.0
    %8323 = vmatprep.subr.mxu0 0.0
    %8324 = vmatpush1.msra.mxu0 0.0
    %8325 = vmatprep.mubr.f32.mxu0 0.0
    %8326 = vmatmul.mubr.f32.gmra.mrb[0].mxu0 %v8096
    %v8327 = vpop.f32.mrb[0].mxu0
    %v8328 = vadd.f32 %v379, %v8327
    %v8329 = vpop.f32.mrb[0].mxu0
    %v8330 = vadd.f32 %v383, %v8329
    %8331 = vdwg.mxu0
    %8332 = vmatprep.subr.mxu0 0.0
    %8333 = vmatpush1.msra.mxu0 %v266
    %8334 = vmatprep.subr.mxu0 0.0
    %8335 = vmatpush1.msra.mxu0 %v269
    %8336 = vmatprep.subr.mxu0 0.0
    %8337 = vmatpush1.msra.mxu0 %v272
    %8338 = vmatprep.subr.mxu0 0.0
    %8339 = vmatpush1.msra.mxu0 %v275
    %8340 = vmatprep.subr.mxu0 0.0
    %8341 = vmatpush1.msra.mxu0 %v278
    %8342 = vmatprep.subr.mxu0 0.0
    %8343 = vmatpush1.msra.mxu0 %v281
    %8344 = vmatprep.subr.mxu0 0.0
    %8345 = vmatpush1.msra.mxu0 %v284
    %8346 = vmatprep.subr.mxu0 0.0
    %8347 = vmatpush1.msra.mxu0 %v287
    %8348 = vmatprep.subr.mxu0 0.0
    %8349 = vmatpush1.msra.mxu0 %v290
    %8350 = vmatprep.subr.mxu0 0.0
    %8351 = vmatpush1.msra.mxu0 %v293
    %8352 = vmatprep.subr.mxu0 0.0
    %8353 = vmatpush1.msra.mxu0 %v296
    %8354 = vmatprep.subr.mxu0 0.0
    %8355 = vmatpush1.msra.mxu0 %v299
    %8356 = vmatprep.subr.mxu0 0.0
    %8357 = vmatpush1.msra.mxu0 %v302
    %8358 = vmatprep.subr.mxu0 0.0
    %8359 = vmatpush1.msra.mxu0 %v305
    %8360 = vmatprep.subr.mxu0 0.0
    %8361 = vmatpush1.msra.mxu0 %v308
    %8362 = vmatprep.subr.mxu0 0.0
    %8363 = vmatpush1.msra.mxu0 %v311
    %8364 = vmatprep.subr.mxu0 0.0
    %8365 = vmatpush1.msra.mxu0 0.0
    %8366 = vmatprep.subr.mxu0 0.0
    %8367 = vmatpush1.msra.mxu0 0.0
    %8368 = vmatprep.subr.mxu0 0.0
    %8369 = vmatpush1.msra.mxu0 0.0
    %8370 = vmatprep.subr.mxu0 0.0
    %8371 = vmatpush1.msra.mxu0 0.0
    %8372 = vmatprep.subr.mxu0 0.0
    %8373 = vmatpush1.msra.mxu0 0.0
    %8374 = vmatprep.subr.mxu0 0.0
    %8375 = vmatpush1.msra.mxu0 0.0
    %8376 = vmatprep.subr.mxu0 0.0
    %8377 = vmatpush1.msra.mxu0 0.0
    %8378 = vmatprep.subr.mxu0 0.0
    %8379 = vmatpush1.msra.mxu0 0.0
    %8380 = vmatprep.subr.mxu0 0.0
    %8381 = vmatpush1.msra.mxu0 0.0
    %8382 = vmatprep.subr.mxu0 0.0
    %8383 = vmatpush1.msra.mxu0 0.0
    %8384 = vmatprep.subr.mxu0 0.0
    %8385 = vmatpush1.msra.mxu0 0.0
    %8386 = vmatprep.subr.mxu0 0.0
    %8387 = vmatpush1.msra.mxu0 0.0
    %8388 = vmatprep.subr.mxu0 0.0
    %8389 = vmatpush1.msra.mxu0 0.0
    %8390 = vmatprep.subr.mxu0 0.0
    %8391 = vmatpush1.msra.mxu0 0.0
    %8392 = vmatprep.subr.mxu0 0.0
    %8393 = vmatpush1.msra.mxu0 0.0
    %8394 = vmatprep.subr.mxu0 0.0
    %8395 = vmatpush1.msra.mxu0 0.0
    %8396 = vmatprep.mubr.f32.mxu0 0.0
    %8397 = vmatmul.mubr.f32.gmra.mrb[0].mxu0 %v8096
    %v8398 = vpop.f32.mrb[0].mxu0
    %v8399 = vadd.f32 %v387, %v8398
    %v8400 = vpop.f32.mrb[0].mxu0
    %8401 = vdwg.mxu0
    %s8402 = scalar_lea.vmem [#allocation2], 30
    %v8403 = vld [vmem:[%s8402] ss:$8 sm:$0x7]
    %s8404 = scalar_lea.vmem %s1462, 30 [#allocation2]
    %v8405 = vld [vmem:[%s8404] ss:$8 sm:$0x7]
    %v8407 = vlaneseq
    %v8408 = vshrl.u32 %v8407, 7
    %v8409 = vsub.s32 0, %v8408
    %v8410 = vrot.slane %v8403, %v8409
    %v8411 = vlaneseq
    %v8412 = vshrl.u32 %v8411, 7
    %v8413 = vsub.s32 1, %v8412
    %v8414 = vrot.slane %v8403, %v8413
    %v8415 = vlaneseq
    %v8416 = vshrl.u32 %v8415, 7
    %v8417 = vsub.s32 2, %v8416
    %v8418 = vrot.slane %v8403, %v8417
    %v8423 = vlaneseq
    %v8424 = vshrl.u32 %v8423, 7
    %v8425 = vsub.s32 0, %v8424
    %v8426 = vrot.slane %v8405, %v8425
    %v8427 = vlaneseq
    %v8428 = vshrl.u32 %v8427, 7
    %v8429 = vsub.s32 1, %v8428
    %v8430 = vrot.slane %v8405, %v8429
    %v8431 = vlaneseq
    %v8432 = vshrl.u32 %v8431, 7
    %v8433 = vsub.s32 2, %v8432
    %v8434 = vrot.slane %v8405, %v8433
    %v8438 = vsel %vm1503, %v8410, %v8426
    %v8439 = vsel %vm1503, %v8414, %v8430
    %v8440 = vsel %vm1503, %v8418, %v8434
    %8441 = vmatprep.subr.mxu0 %v217
    %8442 = vmatpush1.msra.mxu0 %v216
    %8443 = vmatprep.subr.mxu0 %v220
    %8444 = vmatpush1.msra.mxu0 %v219
    %8445 = vmatprep.subr.mxu0 %v223
    %8446 = vmatpush1.msra.mxu0 %v222
    %8447 = vmatprep.subr.mxu0 %v226
    %8448 = vmatpush1.msra.mxu0 %v225
    %8449 = vmatprep.subr.mxu0 %v229
    %8450 = vmatpush1.msra.mxu0 %v228
    %8451 = vmatprep.subr.mxu0 %v232
    %8452 = vmatpush1.msra.mxu0 %v231
    %8453 = vmatprep.subr.mxu0 %v235
    %8454 = vmatpush1.msra.mxu0 %v234
    %8455 = vmatprep.subr.mxu0 %v238
    %8456 = vmatpush1.msra.mxu0 %v237
    %8457 = vmatprep.subr.mxu0 %v241
    %8458 = vmatpush1.msra.mxu0 %v240
    %8459 = vmatprep.subr.mxu0 %v244
    %8460 = vmatpush1.msra.mxu0 %v243
    %8461 = vmatprep.subr.mxu0 %v247
    %8462 = vmatpush1.msra.mxu0 %v246
    %8463 = vmatprep.subr.mxu0 %v250
    %8464 = vmatpush1.msra.mxu0 %v249
    %8465 = vmatprep.subr.mxu0 %v253
    %8466 = vmatpush1.msra.mxu0 %v252
    %8467 = vmatprep.subr.mxu0 %v256
    %8468 = vmatpush1.msra.mxu0 %v255
    %8469 = vmatprep.subr.mxu0 %v259
    %8470 = vmatpush1.msra.mxu0 %v258
    %8471 = vmatprep.subr.mxu0 %v262
    %8472 = vmatpush1.msra.mxu0 %v261
    %8473 = vmatprep.subr.mxu0 0.0
    %8474 = vmatpush1.msra.mxu0 0.0
    %8475 = vmatprep.subr.mxu0 0.0
    %8476 = vmatpush1.msra.mxu0 0.0
    %8477 = vmatprep.subr.mxu0 0.0
    %8478 = vmatpush1.msra.mxu0 0.0
    %8479 = vmatprep.subr.mxu0 0.0
    %8480 = vmatpush1.msra.mxu0 0.0
    %8481 = vmatprep.subr.mxu0 0.0
    %8482 = vmatpush1.msra.mxu0 0.0
    %8483 = vmatprep.subr.mxu0 0.0
    %8484 = vmatpush1.msra.mxu0 0.0
    %8485 = vmatprep.subr.mxu0 0.0
    %8486 = vmatpush1.msra.mxu0 0.0
    %8487 = vmatprep.subr.mxu0 0.0
    %8488 = vmatpush1.msra.mxu0 0.0
    %8489 = vmatprep.subr.mxu0 0.0
    %8490 = vmatpush1.msra.mxu0 0.0
    %8491 = vmatprep.subr.mxu0 0.0
    %8492 = vmatpush1.msra.mxu0 0.0
    %8493 = vmatprep.subr.mxu0 0.0
    %8494 = vmatpush1.msra.mxu0 0.0
    %8495 = vmatprep.subr.mxu0 0.0
    %8496 = vmatpush1.msra.mxu0 0.0
    %8497 = vmatprep.subr.mxu0 0.0
    %8498 = vmatpush1.msra.mxu0 0.0
    %8499 = vmatprep.subr.mxu0 0.0
    %8500 = vmatpush1.msra.mxu0 0.0
    %8501 = vmatprep.subr.mxu0 0.0
    %8502 = vmatpush1.msra.mxu0 0.0
    %8503 = vmatprep.subr.mxu0 0.0
    %8504 = vmatpush1.msra.mxu0 0.0
    %8505 = vmatprep.mubr.f32.mxu0 0.0
    %8506 = vmatmul.mubr.f32.gmra.mrb[0].mxu0 %v8096
    %v8507 = vpop.f32.mrb[0].mxu0
    %v8508 = vadd.f32 0.0, %v8507
    %v8509 = vpop.f32.mrb[0].mxu0
    %v8510 = vadd.f32 0.0, %v8509
    %8511 = vdwg.mxu0
    %8512 = vmatprep.subr.mxu0 0.0
    %8513 = vmatpush1.msra.mxu0 %v218
    %8514 = vmatprep.subr.mxu0 0.0
    %8515 = vmatpush1.msra.mxu0 %v221
    %8516 = vmatprep.subr.mxu0 0.0
    %8517 = vmatpush1.msra.mxu0 %v224
    %8518 = vmatprep.subr.mxu0 0.0
    %8519 = vmatpush1.msra.mxu0 %v227
    %8520 = vmatprep.subr.mxu0 0.0
    %8521 = vmatpush1.msra.mxu0 %v230
    %8522 = vmatprep.subr.mxu0 0.0
    %8523 = vmatpush1.msra.mxu0 %v233
    %8524 = vmatprep.subr.mxu0 0.0
    %8525 = vmatpush1.msra.mxu0 %v236
    %8526 = vmatprep.subr.mxu0 0.0
    %8527 = vmatpush1.msra.mxu0 %v239
    %8528 = vmatprep.subr.mxu0 0.0
    %8529 = vmatpush1.msra.mxu0 %v242
    %8530 = vmatprep.subr.mxu0 0.0
    %8531 = vmatpush1.msra.mxu0 %v245
    %8532 = vmatprep.subr.mxu0 0.0
    %8533 = vmatpush1.msra.mxu0 %v248
    %8534 = vmatprep.subr.mxu0 0.0
    %8535 = vmatpush1.msra.mxu0 %v251
    %8536 = vmatprep.subr.mxu0 0.0
    %8537 = vmatpush1.msra.mxu0 %v254
    %8538 = vmatprep.subr.mxu0 0.0
    %8539 = vmatpush1.msra.mxu0 %v257
    %8540 = vmatprep.subr.mxu0 0.0
    %8541 = vmatpush1.msra.mxu0 %v260
    %8542 = vmatprep.subr.mxu0 0.0
    %8543 = vmatpush1.msra.mxu0 %v263
    %8544 = vmatprep.subr.mxu0 0.0
    %8545 = vmatpush1.msra.mxu0 0.0
    %8546 = vmatprep.subr.mxu0 0.0
    %8547 = vmatpush1.msra.mxu0 0.0
    %8548 = vmatprep.subr.mxu0 0.0
    %8549 = vmatpush1.msra.mxu0 0.0
    %8550 = vmatprep.subr.mxu0 0.0
    %8551 = vmatpush1.msra.mxu0 0.0
    %8552 = vmatprep.subr.mxu0 0.0
    %8553 = vmatpush1.msra.mxu0 0.0
    %8554 = vmatprep.subr.mxu0 0.0
    %8555 = vmatpush1.msra.mxu0 0.0
    %8556 = vmatprep.subr.mxu0 0.0
    %8557 = vmatpush1.msra.mxu0 0.0
    %8558 = vmatprep.subr.mxu0 0.0
    %8559 = vmatpush1.msra.mxu0 0.0
    %8560 = vmatprep.subr.mxu0 0.0
    %8561 = vmatpush1.msra.mxu0 0.0
    %8562 = vmatprep.subr.mxu0 0.0
    %8563 = vmatpush1.msra.mxu0 0.0
    %8564 = vmatprep.subr.mxu0 0.0
    %8565 = vmatpush1.msra.mxu0 0.0
    %8566 = vmatprep.subr.mxu0 0.0
    %8567 = vmatpush1.msra.mxu0 0.0
    %8568 = vmatprep.subr.mxu0 0.0
    %8569 = vmatpush1.msra.mxu0 0.0
    %8570 = vmatprep.subr.mxu0 0.0
    %8571 = vmatpush1.msra.mxu0 0.0
    %8572 = vmatprep.subr.mxu0 0.0
    %8573 = vmatpush1.msra.mxu0 0.0
    %8574 = vmatprep.subr.mxu0 0.0
    %8575 = vmatpush1.msra.mxu0 0.0
    %8576 = vmatprep.mubr.f32.mxu0 0.0
    %8577 = vmatmul.mubr.f32.gmra.mrb[0].mxu0 %v8096
    %v8578 = vpop.f32.mrb[0].mxu0
    %v8579 = vadd.f32 0.0, %v8578
    %v8580 = vpop.f32.mrb[0].mxu0
    %8581 = vdwg.mxu0
    %v8582 = vadd.f32 %v8438, %v8508
    %v8583 = vxor.u32 %v8582, 2147483648
    %v8584 = vmul.f32 %v8583, 1.442695
    %v8585 = vpow.pop %v8584
    %v8586 = vadd.f32 %v8585, 1.0
    %v8587 = vrcp.pop %v8586
    %v8588 = vmul.f32 1.0, %v8587
    %v8589 = vadd.f32 %v8439, %v8510
    %v8590 = vxor.u32 %v8589, 2147483648
    %v8591 = vmul.f32 %v8590, 1.442695
    %v8592 = vpow.pop %v8591
    %v8593 = vadd.f32 %v8592, 1.0
    %v8594 = vrcp.pop %v8593
    %v8595 = vmul.f32 1.0, %v8594
    %v8596 = vadd.f32 %v8579, %v365
    %v8597 = vmul.f32 %v8588, %v8596
    %v8598 = vadd.f32 %v8440, %v8597
    %v8599 = vtanh.pop %v8598
    %v8600 = vsub.f32 1.0, %v8595
    %v8601 = vmul.f32 %v8600, %v8599
    %v8602 = vmul.f32 %v8595, %v8096
    %v8603 = vadd.f32 %v8601, %v8602
    %8604 = vmatprep.subr.mxu0 %v313
    %8605 = vmatpush1.msra.mxu0 %v312
    %8606 = vmatprep.subr.mxu0 %v316
    %8607 = vmatpush1.msra.mxu0 %v315
    %8608 = vmatprep.subr.mxu0 %v319
    %8609 = vmatpush1.msra.mxu0 %v318
    %8610 = vmatprep.subr.mxu0 %v322
    %8611 = vmatpush1.msra.mxu0 %v321
    %8612 = vmatprep.subr.mxu0 %v325
    %8613 = vmatpush1.msra.mxu0 %v324
    %8614 = vmatprep.subr.mxu0 %v328
    %8615 = vmatpush1.msra.mxu0 %v327
    %8616 = vmatprep.subr.mxu0 %v331
    %8617 = vmatpush1.msra.mxu0 %v330
    %8618 = vmatprep.subr.mxu0 %v334
    %8619 = vmatpush1.msra.mxu0 %v333
    %8620 = vmatprep.subr.mxu0 %v337
    %8621 = vmatpush1.msra.mxu0 %v336
    %8622 = vmatprep.subr.mxu0 %v340
    %8623 = vmatpush1.msra.mxu0 %v339
    %8624 = vmatprep.subr.mxu0 %v343
    %8625 = vmatpush1.msra.mxu0 %v342
    %8626 = vmatprep.subr.mxu0 %v346
    %8627 = vmatpush1.msra.mxu0 %v345
    %8628 = vmatprep.subr.mxu0 %v349
    %8629 = vmatpush1.msra.mxu0 %v348
    %8630 = vmatprep.subr.mxu0 %v352
    %8631 = vmatpush1.msra.mxu0 %v351
    %8632 = vmatprep.subr.mxu0 %v355
    %8633 = vmatpush1.msra.mxu0 %v354
    %8634 = vmatprep.subr.mxu0 %v358
    %8635 = vmatpush1.msra.mxu0 %v357
    %8636 = vmatprep.subr.mxu0 0.0
    %8637 = vmatpush1.msra.mxu0 0.0
    %8638 = vmatprep.subr.mxu0 0.0
    %8639 = vmatpush1.msra.mxu0 0.0
    %8640 = vmatprep.subr.mxu0 0.0
    %8641 = vmatpush1.msra.mxu0 0.0
    %8642 = vmatprep.subr.mxu0 0.0
    %8643 = vmatpush1.msra.mxu0 0.0
    %8644 = vmatprep.subr.mxu0 0.0
    %8645 = vmatpush1.msra.mxu0 0.0
    %8646 = vmatprep.subr.mxu0 0.0
    %8647 = vmatpush1.msra.mxu0 0.0
    %8648 = vmatprep.subr.mxu0 0.0
    %8649 = vmatpush1.msra.mxu0 0.0
    %8650 = vmatprep.subr.mxu0 0.0
    %8651 = vmatpush1.msra.mxu0 0.0
    %8652 = vmatprep.subr.mxu0 0.0
    %8653 = vmatpush1.msra.mxu0 0.0
    %8654 = vmatprep.subr.mxu0 0.0
    %8655 = vmatpush1.msra.mxu0 0.0
    %8656 = vmatprep.subr.mxu0 0.0
    %8657 = vmatpush1.msra.mxu0 0.0
    %8658 = vmatprep.subr.mxu0 0.0
    %8659 = vmatpush1.msra.mxu0 0.0
    %8660 = vmatprep.subr.mxu0 0.0
    %8661 = vmatpush1.msra.mxu0 0.0
    %8662 = vmatprep.subr.mxu0 0.0
    %8663 = vmatpush1.msra.mxu0 0.0
    %8664 = vmatprep.subr.mxu0 0.0
    %8665 = vmatpush1.msra.mxu0 0.0
    %8666 = vmatprep.subr.mxu0 0.0
    %8667 = vmatpush1.msra.mxu0 0.0
    %8668 = vmatprep.mubr.f32.mxu0 0.0
    %8669 = vmatmul.mubr.f32.gmra.mrb[0].mxu0 %v8259
    %v8670 = vpop.f32.mrb[0].mxu0
    %v8671 = vadd.f32 0.0, %v8670
    %v8672 = vpop.f32.mrb[0].mxu0
    %v8673 = vadd.f32 0.0, %v8672
    %8674 = vdwg.mxu0
    %8675 = vmatprep.subr.mxu0 0.0
    %8676 = vmatpush1.msra.mxu0 %v314
    %8677 = vmatprep.subr.mxu0 0.0
    %8678 = vmatpush1.msra.mxu0 %v317
    %8679 = vmatprep.subr.mxu0 0.0
    %8680 = vmatpush1.msra.mxu0 %v320
    %8681 = vmatprep.subr.mxu0 0.0
    %8682 = vmatpush1.msra.mxu0 %v323
    %8683 = vmatprep.subr.mxu0 0.0
    %8684 = vmatpush1.msra.mxu0 %v326
    %8685 = vmatprep.subr.mxu0 0.0
    %8686 = vmatpush1.msra.mxu0 %v329
    %8687 = vmatprep.subr.mxu0 0.0
    %8688 = vmatpush1.msra.mxu0 %v332
    %8689 = vmatprep.subr.mxu0 0.0
    %8690 = vmatpush1.msra.mxu0 %v335
    %8691 = vmatprep.subr.mxu0 0.0
    %8692 = vmatpush1.msra.mxu0 %v338
    %8693 = vmatprep.subr.mxu0 0.0
    %8694 = vmatpush1.msra.mxu0 %v341
    %8695 = vmatprep.subr.mxu0 0.0
    %8696 = vmatpush1.msra.mxu0 %v344
    %8697 = vmatprep.subr.mxu0 0.0
    %8698 = vmatpush1.msra.mxu0 %v347
    %8699 = vmatprep.subr.mxu0 0.0
    %8700 = vmatpush1.msra.mxu0 %v350
    %8701 = vmatprep.subr.mxu0 0.0
    %8702 = vmatpush1.msra.mxu0 %v353
    %8703 = vmatprep.subr.mxu0 0.0
    %8704 = vmatpush1.msra.mxu0 %v356
    %8705 = vmatprep.subr.mxu0 0.0
    %8706 = vmatpush1.msra.mxu0 %v359
    %8707 = vmatprep.subr.mxu0 0.0
    %8708 = vmatpush1.msra.mxu0 0.0
    %8709 = vmatprep.subr.mxu0 0.0
    %8710 = vmatpush1.msra.mxu0 0.0
    %8711 = vmatprep.subr.mxu0 0.0
    %8712 = vmatpush1.msra.mxu0 0.0
    %8713 = vmatprep.subr.mxu0 0.0
    %8714 = vmatpush1.msra.mxu0 0.0
    %8715 = vmatprep.subr.mxu0 0.0
    %8716 = vmatpush1.msra.mxu0 0.0
    %8717 = vmatprep.subr.mxu0 0.0
    %8718 = vmatpush1.msra.mxu0 0.0
    %8719 = vmatprep.subr.mxu0 0.0
    %8720 = vmatpush1.msra.mxu0 0.0
    %8721 = vmatprep.subr.mxu0 0.0
    %8722 = vmatpush1.msra.mxu0 0.0
    %8723 = vmatprep.subr.mxu0 0.0
    %8724 = vmatpush1.msra.mxu0 0.0
    %8725 = vmatprep.subr.mxu0 0.0
    %8726 = vmatpush1.msra.mxu0 0.0
    %8727 = vmatprep.subr.mxu0 0.0
    %8728 = vmatpush1.msra.mxu0 0.0
    %8729 = vmatprep.subr.mxu0 0.0
    %8730 = vmatpush1.msra.mxu0 0.0
    %8731 = vmatprep.subr.mxu0 0.0
    %8732 = vmatpush1.msra.mxu0 0.0
    %8733 = vmatprep.subr.mxu0 0.0
    %8734 = vmatpush1.msra.mxu0 0.0
    %8735 = vmatprep.subr.mxu0 0.0
    %8736 = vmatpush1.msra.mxu0 0.0
    %8737 = vmatprep.subr.mxu0 0.0
    %8738 = vmatpush1.msra.mxu0 0.0
    %8739 = vmatprep.mubr.f32.mxu0 0.0
    %8740 = vmatmul.mubr.f32.gmra.mrb[0].mxu0 %v8259
    %v8741 = vpop.f32.mrb[0].mxu0
    %v8742 = vadd.f32 0.0, %v8741
    %v8743 = vpop.f32.mrb[0].mxu0
    %8744 = vdwg.mxu0
    %v8745 = vadd.f32 %v8328, %v8671
    %v8746 = vxor.u32 %v8745, 2147483648
    %v8747 = vmul.f32 %v8746, 1.442695
    %v8748 = vpow.pop %v8747
    %v8749 = vadd.f32 %v8748, 1.0
    %v8750 = vrcp.pop %v8749
    %v8751 = vmul.f32 1.0, %v8750
    %v8752 = vadd.f32 %v8330, %v8673
    %v8753 = vxor.u32 %v8752, 2147483648
    %v8754 = vmul.f32 %v8753, 1.442695
    %v8755 = vpow.pop %v8754
    %v8756 = vadd.f32 %v8755, 1.0
    %v8757 = vrcp.pop %v8756
    %v8758 = vmul.f32 1.0, %v8757
    %v8759 = vadd.f32 %v8742, %v372
    %v8760 = vmul.f32 %v8751, %v8759
    %v8761 = vadd.f32 %v8399, %v8760
    %v8762 = vtanh.pop %v8761
    %v8763 = vsub.f32 1.0, %v8758
    %v8764 = vmul.f32 %v8763, %v8762
    %v8765 = vmul.f32 %v8758, %v8259
    %v8766 = vadd.f32 %v8764, %v8765
    %8767 = vst [vmem:[%s15 + $0x1a] sm:$0x3] %v8766
    %8768 = vmatprep.subr.mxu0 %v265
    %8769 = vmatpush1.msra.mxu0 %v264
    %8770 = vmatprep.subr.mxu0 %v268
    %8771 = vmatpush1.msra.mxu0 %v267
    %8772 = vmatprep.subr.mxu0 %v271
    %8773 = vmatpush1.msra.mxu0 %v270
    %8774 = vmatprep.subr.mxu0 %v274
    %8775 = vmatpush1.msra.mxu0 %v273
    %8776 = vmatprep.subr.mxu0 %v277
    %8777 = vmatpush1.msra.mxu0 %v276
    %8778 = vmatprep.subr.mxu0 %v280
    %8779 = vmatpush1.msra.mxu0 %v279
    %8780 = vmatprep.subr.mxu0 %v283
    %8781 = vmatpush1.msra.mxu0 %v282
    %8782 = vmatprep.subr.mxu0 %v286
    %8783 = vmatpush1.msra.mxu0 %v285
    %8784 = vmatprep.subr.mxu0 %v289
    %8785 = vmatpush1.msra.mxu0 %v288
    %8786 = vmatprep.subr.mxu0 %v292
    %8787 = vmatpush1.msra.mxu0 %v291
    %8788 = vmatprep.subr.mxu0 %v295
    %8789 = vmatpush1.msra.mxu0 %v294
    %8790 = vmatprep.subr.mxu0 %v298
    %8791 = vmatpush1.msra.mxu0 %v297
    %8792 = vmatprep.subr.mxu0 %v301
    %8793 = vmatpush1.msra.mxu0 %v300
    %8794 = vmatprep.subr.mxu0 %v304
    %8795 = vmatpush1.msra.mxu0 %v303
    %8796 = vmatprep.subr.mxu0 %v307
    %8797 = vmatpush1.msra.mxu0 %v306
    %8798 = vmatprep.subr.mxu0 %v310
    %8799 = vmatpush1.msra.mxu0 %v309
    %8800 = vmatprep.subr.mxu0 0.0
    %8801 = vmatpush1.msra.mxu0 0.0
    %8802 = vmatprep.subr.mxu0 0.0
    %8803 = vmatpush1.msra.mxu0 0.0
    %8804 = vmatprep.subr.mxu0 0.0
    %8805 = vmatpush1.msra.mxu0 0.0
    %8806 = vmatprep.subr.mxu0 0.0
    %8807 = vmatpush1.msra.mxu0 0.0
    %8808 = vmatprep.subr.mxu0 0.0
    %8809 = vmatpush1.msra.mxu0 0.0
    %8810 = vmatprep.subr.mxu0 0.0
    %8811 = vmatpush1.msra.mxu0 0.0
    %8812 = vmatprep.subr.mxu0 0.0
    %8813 = vmatpush1.msra.mxu0 0.0
    %8814 = vmatprep.subr.mxu0 0.0
    %8815 = vmatpush1.msra.mxu0 0.0
    %8816 = vmatprep.subr.mxu0 0.0
    %8817 = vmatpush1.msra.mxu0 0.0
    %8818 = vmatprep.subr.mxu0 0.0
    %8819 = vmatpush1.msra.mxu0 0.0
    %8820 = vmatprep.subr.mxu0 0.0
    %8821 = vmatpush1.msra.mxu0 0.0
    %8822 = vmatprep.subr.mxu0 0.0
    %8823 = vmatpush1.msra.mxu0 0.0
    %8824 = vmatprep.subr.mxu0 0.0
    %8825 = vmatpush1.msra.mxu0 0.0
    %8826 = vmatprep.subr.mxu0 0.0
    %8827 = vmatpush1.msra.mxu0 0.0
    %8828 = vmatprep.subr.mxu0 0.0
    %8829 = vmatpush1.msra.mxu0 0.0
    %8830 = vmatprep.subr.mxu0 0.0
    %8831 = vmatpush1.msra.mxu0 0.0
    %8832 = vmatprep.mubr.f32.mxu0 0.0
    %8833 = vmatmul.mubr.f32.gmra.mrb[0].mxu0 %v8603
    %v8834 = vpop.f32.mrb[0].mxu0
    %v8835 = vadd.f32 %v379, %v8834
    %v8836 = vpop.f32.mrb[0].mxu0
    %v8837 = vadd.f32 %v383, %v8836
    %8838 = vdwg.mxu0
    %8839 = vmatprep.subr.mxu0 0.0
    %8840 = vmatpush1.msra.mxu0 %v266
    %8841 = vmatprep.subr.mxu0 0.0
    %8842 = vmatpush1.msra.mxu0 %v269
    %8843 = vmatprep.subr.mxu0 0.0
    %8844 = vmatpush1.msra.mxu0 %v272
    %8845 = vmatprep.subr.mxu0 0.0
    %8846 = vmatpush1.msra.mxu0 %v275
    %8847 = vmatprep.subr.mxu0 0.0
    %8848 = vmatpush1.msra.mxu0 %v278
    %8849 = vmatprep.subr.mxu0 0.0
    %8850 = vmatpush1.msra.mxu0 %v281
    %8851 = vmatprep.subr.mxu0 0.0
    %8852 = vmatpush1.msra.mxu0 %v284
    %8853 = vmatprep.subr.mxu0 0.0
    %8854 = vmatpush1.msra.mxu0 %v287
    %8855 = vmatprep.subr.mxu0 0.0
    %8856 = vmatpush1.msra.mxu0 %v290
    %8857 = vmatprep.subr.mxu0 0.0
    %8858 = vmatpush1.msra.mxu0 %v293
    %8859 = vmatprep.subr.mxu0 0.0
    %8860 = vmatpush1.msra.mxu0 %v296
    %8861 = vmatprep.subr.mxu0 0.0
    %8862 = vmatpush1.msra.mxu0 %v299
    %8863 = vmatprep.subr.mxu0 0.0
    %8864 = vmatpush1.msra.mxu0 %v302
    %8865 = vmatprep.subr.mxu0 0.0
    %8866 = vmatpush1.msra.mxu0 %v305
    %8867 = vmatprep.subr.mxu0 0.0
    %8868 = vmatpush1.msra.mxu0 %v308
    %8869 = vmatprep.subr.mxu0 0.0
    %8870 = vmatpush1.msra.mxu0 %v311
    %8871 = vmatprep.subr.mxu0 0.0
    %8872 = vmatpush1.msra.mxu0 0.0
    %8873 = vmatprep.subr.mxu0 0.0
    %8874 = vmatpush1.msra.mxu0 0.0
    %8875 = vmatprep.subr.mxu0 0.0
    %8876 = vmatpush1.msra.mxu0 0.0
    %8877 = vmatprep.subr.mxu0 0.0
    %8878 = vmatpush1.msra.mxu0 0.0
    %8879 = vmatprep.subr.mxu0 0.0
    %8880 = vmatpush1.msra.mxu0 0.0
    %8881 = vmatprep.subr.mxu0 0.0
    %8882 = vmatpush1.msra.mxu0 0.0
    %8883 = vmatprep.subr.mxu0 0.0
    %8884 = vmatpush1.msra.mxu0 0.0
    %8885 = vmatprep.subr.mxu0 0.0
    %8886 = vmatpush1.msra.mxu0 0.0
    %8887 = vmatprep.subr.mxu0 0.0
    %8888 = vmatpush1.msra.mxu0 0.0
    %8889 = vmatprep.subr.mxu0 0.0
    %8890 = vmatpush1.msra.mxu0 0.0
    %8891 = vmatprep.subr.mxu0 0.0
    %8892 = vmatpush1.msra.mxu0 0.0
    %8893 = vmatprep.subr.mxu0 0.0
    %8894 = vmatpush1.msra.mxu0 0.0
    %8895 = vmatprep.subr.mxu0 0.0
    %8896 = vmatpush1.msra.mxu0 0.0
    %8897 = vmatprep.subr.mxu0 0.0
    %8898 = vmatpush1.msra.mxu0 0.0
    %8899 = vmatprep.subr.mxu0 0.0
    %8900 = vmatpush1.msra.mxu0 0.0
    %8901 = vmatprep.subr.mxu0 0.0
    %8902 = vmatpush1.msra.mxu0 0.0
    %8903 = vmatprep.mubr.f32.mxu0 0.0
    %8904 = vmatmul.mubr.f32.gmra.mrb[0].mxu0 %v8603
    %v8905 = vpop.f32.mrb[0].mxu0
    %v8906 = vadd.f32 %v387, %v8905
    %v8907 = vpop.f32.mrb[0].mxu0
    %8908 = vdwg.mxu0
    %s8909 = scalar_lea.vmem [#allocation2], 31
    %v8910 = vld [vmem:[%s8909] ss:$8 sm:$0x7]
    %s8911 = scalar_lea.vmem %s1462, 31 [#allocation2]
    %v8912 = vld [vmem:[%s8911] ss:$8 sm:$0x7]
    %v8914 = vlaneseq
    %v8915 = vshrl.u32 %v8914, 7
    %v8916 = vsub.s32 0, %v8915
    %v8917 = vrot.slane %v8910, %v8916
    %v8918 = vlaneseq
    %v8919 = vshrl.u32 %v8918, 7
    %v8920 = vsub.s32 1, %v8919
    %v8921 = vrot.slane %v8910, %v8920
    %v8922 = vlaneseq
    %v8923 = vshrl.u32 %v8922, 7
    %v8924 = vsub.s32 2, %v8923
    %v8925 = vrot.slane %v8910, %v8924
    %v8930 = vlaneseq
    %v8931 = vshrl.u32 %v8930, 7
    %v8932 = vsub.s32 0, %v8931
    %v8933 = vrot.slane %v8912, %v8932
    %v8934 = vlaneseq
    %v8935 = vshrl.u32 %v8934, 7
    %v8936 = vsub.s32 1, %v8935
    %v8937 = vrot.slane %v8912, %v8936
    %v8938 = vlaneseq
    %v8939 = vshrl.u32 %v8938, 7
    %v8940 = vsub.s32 2, %v8939
    %v8941 = vrot.slane %v8912, %v8940
    %v8945 = vsel %vm1503, %v8917, %v8933
    %v8946 = vsel %vm1503, %v8921, %v8937
    %v8947 = vsel %vm1503, %v8925, %v8941
    %8948 = vmatprep.subr.mxu0 %v217
    %8949 = vmatpush1.msra.mxu0 %v216
    %8950 = vmatprep.subr.mxu0 %v220
    %8951 = vmatpush1.msra.mxu0 %v219
    %8952 = vmatprep.subr.mxu0 %v223
    %8953 = vmatpush1.msra.mxu0 %v222
    %8954 = vmatprep.subr.mxu0 %v226
    %8955 = vmatpush1.msra.mxu0 %v225
    %8956 = vmatprep.subr.mxu0 %v229
    %8957 = vmatpush1.msra.mxu0 %v228
    %8958 = vmatprep.subr.mxu0 %v232
    %8959 = vmatpush1.msra.mxu0 %v231
    %8960 = vmatprep.subr.mxu0 %v235
    %8961 = vmatpush1.msra.mxu0 %v234
    %8962 = vmatprep.subr.mxu0 %v238
    %8963 = vmatpush1.msra.mxu0 %v237
    %8964 = vmatprep.subr.mxu0 %v241
    %8965 = vmatpush1.msra.mxu0 %v240
    %8966 = vmatprep.subr.mxu0 %v244
    %8967 = vmatpush1.msra.mxu0 %v243
    %8968 = vmatprep.subr.mxu0 %v247
    %8969 = vmatpush1.msra.mxu0 %v246
    %8970 = vmatprep.subr.mxu0 %v250
    %8971 = vmatpush1.msra.mxu0 %v249
    %8972 = vmatprep.subr.mxu0 %v253
    %8973 = vmatpush1.msra.mxu0 %v252
    %8974 = vmatprep.subr.mxu0 %v256
    %8975 = vmatpush1.msra.mxu0 %v255
    %8976 = vmatprep.subr.mxu0 %v259
    %8977 = vmatpush1.msra.mxu0 %v258
    %8978 = vmatprep.subr.mxu0 %v262
    %8979 = vmatpush1.msra.mxu0 %v261
    %8980 = vmatprep.subr.mxu0 0.0
    %8981 = vmatpush1.msra.mxu0 0.0
    %8982 = vmatprep.subr.mxu0 0.0
    %8983 = vmatpush1.msra.mxu0 0.0
    %8984 = vmatprep.subr.mxu0 0.0
    %8985 = vmatpush1.msra.mxu0 0.0
    %8986 = vmatprep.subr.mxu0 0.0
    %8987 = vmatpush1.msra.mxu0 0.0
    %8988 = vmatprep.subr.mxu0 0.0
    %8989 = vmatpush1.msra.mxu0 0.0
    %8990 = vmatprep.subr.mxu0 0.0
    %8991 = vmatpush1.msra.mxu0 0.0
    %8992 = vmatprep.subr.mxu0 0.0
    %8993 = vmatpush1.msra.mxu0 0.0
    %8994 = vmatprep.subr.mxu0 0.0
    %8995 = vmatpush1.msra.mxu0 0.0
    %8996 = vmatprep.subr.mxu0 0.0
    %8997 = vmatpush1.msra.mxu0 0.0
    %8998 = vmatprep.subr.mxu0 0.0
    %8999 = vmatpush1.msra.mxu0 0.0
    %9000 = vmatprep.subr.mxu0 0.0
    %9001 = vmatpush1.msra.mxu0 0.0
    %9002 = vmatprep.subr.mxu0 0.0
    %9003 = vmatpush1.msra.mxu0 0.0
    %9004 = vmatprep.subr.mxu0 0.0
    %9005 = vmatpush1.msra.mxu0 0.0
    %9006 = vmatprep.subr.mxu0 0.0
    %9007 = vmatpush1.msra.mxu0 0.0
    %9008 = vmatprep.subr.mxu0 0.0
    %9009 = vmatpush1.msra.mxu0 0.0
    %9010 = vmatprep.subr.mxu0 0.0
    %9011 = vmatpush1.msra.mxu0 0.0
    %9012 = vmatprep.mubr.f32.mxu0 0.0
    %9013 = vmatmul.mubr.f32.gmra.mrb[0].mxu0 %v8603
    %v9014 = vpop.f32.mrb[0].mxu0
    %v9015 = vadd.f32 0.0, %v9014
    %v9016 = vpop.f32.mrb[0].mxu0
    %v9017 = vadd.f32 0.0, %v9016
    %9018 = vdwg.mxu0
    %9019 = vmatprep.subr.mxu0 0.0
    %9020 = vmatpush1.msra.mxu0 %v218
    %9021 = vmatprep.subr.mxu0 0.0
    %9022 = vmatpush1.msra.mxu0 %v221
    %9023 = vmatprep.subr.mxu0 0.0
    %9024 = vmatpush1.msra.mxu0 %v224
    %9025 = vmatprep.subr.mxu0 0.0
    %9026 = vmatpush1.msra.mxu0 %v227
    %9027 = vmatprep.subr.mxu0 0.0
    %9028 = vmatpush1.msra.mxu0 %v230
    %9029 = vmatprep.subr.mxu0 0.0
    %9030 = vmatpush1.msra.mxu0 %v233
    %9031 = vmatprep.subr.mxu0 0.0
    %9032 = vmatpush1.msra.mxu0 %v236
    %9033 = vmatprep.subr.mxu0 0.0
    %9034 = vmatpush1.msra.mxu0 %v239
    %9035 = vmatprep.subr.mxu0 0.0
    %9036 = vmatpush1.msra.mxu0 %v242
    %9037 = vmatprep.subr.mxu0 0.0
    %9038 = vmatpush1.msra.mxu0 %v245
    %9039 = vmatprep.subr.mxu0 0.0
    %9040 = vmatpush1.msra.mxu0 %v248
    %9041 = vmatprep.subr.mxu0 0.0
    %9042 = vmatpush1.msra.mxu0 %v251
    %9043 = vmatprep.subr.mxu0 0.0
    %9044 = vmatpush1.msra.mxu0 %v254
    %9045 = vmatprep.subr.mxu0 0.0
    %9046 = vmatpush1.msra.mxu0 %v257
    %9047 = vmatprep.subr.mxu0 0.0
    %9048 = vmatpush1.msra.mxu0 %v260
    %9049 = vmatprep.subr.mxu0 0.0
    %9050 = vmatpush1.msra.mxu0 %v263
    %9051 = vmatprep.subr.mxu0 0.0
    %9052 = vmatpush1.msra.mxu0 0.0
    %9053 = vmatprep.subr.mxu0 0.0
    %9054 = vmatpush1.msra.mxu0 0.0
    %9055 = vmatprep.subr.mxu0 0.0
    %9056 = vmatpush1.msra.mxu0 0.0
    %9057 = vmatprep.subr.mxu0 0.0
    %9058 = vmatpush1.msra.mxu0 0.0
    %9059 = vmatprep.subr.mxu0 0.0
    %9060 = vmatpush1.msra.mxu0 0.0
    %9061 = vmatprep.subr.mxu0 0.0
    %9062 = vmatpush1.msra.mxu0 0.0
    %9063 = vmatprep.subr.mxu0 0.0
    %9064 = vmatpush1.msra.mxu0 0.0
    %9065 = vmatprep.subr.mxu0 0.0
    %9066 = vmatpush1.msra.mxu0 0.0
    %9067 = vmatprep.subr.mxu0 0.0
    %9068 = vmatpush1.msra.mxu0 0.0
    %9069 = vmatprep.subr.mxu0 0.0
    %9070 = vmatpush1.msra.mxu0 0.0
    %9071 = vmatprep.subr.mxu0 0.0
    %9072 = vmatpush1.msra.mxu0 0.0
    %9073 = vmatprep.subr.mxu0 0.0
    %9074 = vmatpush1.msra.mxu0 0.0
    %9075 = vmatprep.subr.mxu0 0.0
    %9076 = vmatpush1.msra.mxu0 0.0
    %9077 = vmatprep.subr.mxu0 0.0
    %9078 = vmatpush1.msra.mxu0 0.0
    %9079 = vmatprep.subr.mxu0 0.0
    %9080 = vmatpush1.msra.mxu0 0.0
    %9081 = vmatprep.subr.mxu0 0.0
    %9082 = vmatpush1.msra.mxu0 0.0
    %9083 = vmatprep.mubr.f32.mxu0 0.0
    %9084 = vmatmul.mubr.f32.gmra.mrb[0].mxu0 %v8603
    %v9085 = vpop.f32.mrb[0].mxu0
    %v9086 = vadd.f32 0.0, %v9085
    %v9087 = vpop.f32.mrb[0].mxu0
    %9088 = vdwg.mxu0
    %v9089 = vadd.f32 %v8945, %v9015
    %v9090 = vxor.u32 %v9089, 2147483648
    %v9091 = vmul.f32 %v9090, 1.442695
    %v9092 = vpow.pop %v9091
    %v9093 = vadd.f32 %v9092, 1.0
    %v9094 = vrcp.pop %v9093
    %v9095 = vmul.f32 1.0, %v9094
    %v9096 = vadd.f32 %v8946, %v9017
    %v9097 = vxor.u32 %v9096, 2147483648
    %v9098 = vmul.f32 %v9097, 1.442695
    %v9099 = vpow.pop %v9098
    %v9100 = vadd.f32 %v9099, 1.0
    %v9101 = vrcp.pop %v9100
    %v9102 = vmul.f32 1.0, %v9101
    %v9103 = vadd.f32 %v9086, %v365
    %v9104 = vmul.f32 %v9095, %v9103
    %v9105 = vadd.f32 %v8947, %v9104
    %v9106 = vtanh.pop %v9105
    %v9107 = vsub.f32 1.0, %v9102
    %v9108 = vmul.f32 %v9107, %v9106
    %v9109 = vmul.f32 %v9102, %v8603
    %v9110 = vadd.f32 %v9108, %v9109
    %9111 = vmatprep.subr.mxu0 %v313
    %9112 = vmatpush1.msra.mxu0 %v312
    %9113 = vmatprep.subr.mxu0 %v316
    %9114 = vmatpush1.msra.mxu0 %v315
    %9115 = vmatprep.subr.mxu0 %v319
    %9116 = vmatpush1.msra.mxu0 %v318
    %9117 = vmatprep.subr.mxu0 %v322
    %9118 = vmatpush1.msra.mxu0 %v321
    %9119 = vmatprep.subr.mxu0 %v325
    %9120 = vmatpush1.msra.mxu0 %v324
    %9121 = vmatprep.subr.mxu0 %v328
    %9122 = vmatpush1.msra.mxu0 %v327
    %9123 = vmatprep.subr.mxu0 %v331
    %9124 = vmatpush1.msra.mxu0 %v330
    %9125 = vmatprep.subr.mxu0 %v334
    %9126 = vmatpush1.msra.mxu0 %v333
    %9127 = vmatprep.subr.mxu0 %v337
    %9128 = vmatpush1.msra.mxu0 %v336
    %9129 = vmatprep.subr.mxu0 %v340
    %9130 = vmatpush1.msra.mxu0 %v339
    %9131 = vmatprep.subr.mxu0 %v343
    %9132 = vmatpush1.msra.mxu0 %v342
    %9133 = vmatprep.subr.mxu0 %v346
    %9134 = vmatpush1.msra.mxu0 %v345
    %9135 = vmatprep.subr.mxu0 %v349
    %9136 = vmatpush1.msra.mxu0 %v348
    %9137 = vmatprep.subr.mxu0 %v352
    %9138 = vmatpush1.msra.mxu0 %v351
    %9139 = vmatprep.subr.mxu0 %v355
    %9140 = vmatpush1.msra.mxu0 %v354
    %9141 = vmatprep.subr.mxu0 %v358
    %9142 = vmatpush1.msra.mxu0 %v357
    %9143 = vmatprep.subr.mxu0 0.0
    %9144 = vmatpush1.msra.mxu0 0.0
    %9145 = vmatprep.subr.mxu0 0.0
    %9146 = vmatpush1.msra.mxu0 0.0
    %9147 = vmatprep.subr.mxu0 0.0
    %9148 = vmatpush1.msra.mxu0 0.0
    %9149 = vmatprep.subr.mxu0 0.0
    %9150 = vmatpush1.msra.mxu0 0.0
    %9151 = vmatprep.subr.mxu0 0.0
    %9152 = vmatpush1.msra.mxu0 0.0
    %9153 = vmatprep.subr.mxu0 0.0
    %9154 = vmatpush1.msra.mxu0 0.0
    %9155 = vmatprep.subr.mxu0 0.0
    %9156 = vmatpush1.msra.mxu0 0.0
    %9157 = vmatprep.subr.mxu0 0.0
    %9158 = vmatpush1.msra.mxu0 0.0
    %9159 = vmatprep.subr.mxu0 0.0
    %9160 = vmatpush1.msra.mxu0 0.0
    %9161 = vmatprep.subr.mxu0 0.0
    %9162 = vmatpush1.msra.mxu0 0.0
    %9163 = vmatprep.subr.mxu0 0.0
    %9164 = vmatpush1.msra.mxu0 0.0
    %9165 = vmatprep.subr.mxu0 0.0
    %9166 = vmatpush1.msra.mxu0 0.0
    %9167 = vmatprep.subr.mxu0 0.0
    %9168 = vmatpush1.msra.mxu0 0.0
    %9169 = vmatprep.subr.mxu0 0.0
    %9170 = vmatpush1.msra.mxu0 0.0
    %9171 = vmatprep.subr.mxu0 0.0
    %9172 = vmatpush1.msra.mxu0 0.0
    %9173 = vmatprep.subr.mxu0 0.0
    %9174 = vmatpush1.msra.mxu0 0.0
    %9175 = vmatprep.mubr.f32.mxu0 0.0
    %9176 = vmatmul.mubr.f32.gmra.mrb[0].mxu0 %v8766
    %v9177 = vpop.f32.mrb[0].mxu0
    %v9178 = vadd.f32 0.0, %v9177
    %v9179 = vpop.f32.mrb[0].mxu0
    %v9180 = vadd.f32 0.0, %v9179
    %9181 = vdwg.mxu0
    %9182 = vmatprep.subr.mxu0 0.0
    %9183 = vmatpush1.msra.mxu0 %v314
    %9184 = vmatprep.subr.mxu0 0.0
    %9185 = vmatpush1.msra.mxu0 %v317
    %9186 = vmatprep.subr.mxu0 0.0
    %9187 = vmatpush1.msra.mxu0 %v320
    %9188 = vmatprep.subr.mxu0 0.0
    %9189 = vmatpush1.msra.mxu0 %v323
    %9190 = vmatprep.subr.mxu0 0.0
    %9191 = vmatpush1.msra.mxu0 %v326
    %9192 = vmatprep.subr.mxu0 0.0
    %9193 = vmatpush1.msra.mxu0 %v329
    %9194 = vmatprep.subr.mxu0 0.0
    %9195 = vmatpush1.msra.mxu0 %v332
    %9196 = vmatprep.subr.mxu0 0.0
    %9197 = vmatpush1.msra.mxu0 %v335
    %9198 = vmatprep.subr.mxu0 0.0
    %9199 = vmatpush1.msra.mxu0 %v338
    %9200 = vmatprep.subr.mxu0 0.0
    %9201 = vmatpush1.msra.mxu0 %v341
    %9202 = vmatprep.subr.mxu0 0.0
    %9203 = vmatpush1.msra.mxu0 %v344
    %9204 = vmatprep.subr.mxu0 0.0
    %9205 = vmatpush1.msra.mxu0 %v347
    %9206 = vmatprep.subr.mxu0 0.0
    %9207 = vmatpush1.msra.mxu0 %v350
    %9208 = vmatprep.subr.mxu0 0.0
    %9209 = vmatpush1.msra.mxu0 %v353
    %9210 = vmatprep.subr.mxu0 0.0
    %9211 = vmatpush1.msra.mxu0 %v356
    %9212 = vmatprep.subr.mxu0 0.0
    %9213 = vmatpush1.msra.mxu0 %v359
    %9214 = vmatprep.subr.mxu0 0.0
    %9215 = vmatpush1.msra.mxu0 0.0
    %9216 = vmatprep.subr.mxu0 0.0
    %9217 = vmatpush1.msra.mxu0 0.0
    %9218 = vmatprep.subr.mxu0 0.0
    %9219 = vmatpush1.msra.mxu0 0.0
    %9220 = vmatprep.subr.mxu0 0.0
    %9221 = vmatpush1.msra.mxu0 0.0
    %9222 = vmatprep.subr.mxu0 0.0
    %9223 = vmatpush1.msra.mxu0 0.0
    %9224 = vmatprep.subr.mxu0 0.0
    %9225 = vmatpush1.msra.mxu0 0.0
    %9226 = vmatprep.subr.mxu0 0.0
    %9227 = vmatpush1.msra.mxu0 0.0
    %9228 = vmatprep.subr.mxu0 0.0
    %9229 = vmatpush1.msra.mxu0 0.0
    %9230 = vmatprep.subr.mxu0 0.0
    %9231 = vmatpush1.msra.mxu0 0.0
    %9232 = vmatprep.subr.mxu0 0.0
    %9233 = vmatpush1.msra.mxu0 0.0
    %9234 = vmatprep.subr.mxu0 0.0
    %9235 = vmatpush1.msra.mxu0 0.0
    %9236 = vmatprep.subr.mxu0 0.0
    %9237 = vmatpush1.msra.mxu0 0.0
    %9238 = vmatprep.subr.mxu0 0.0
    %9239 = vmatpush1.msra.mxu0 0.0
    %9240 = vmatprep.subr.mxu0 0.0
    %9241 = vmatpush1.msra.mxu0 0.0
    %9242 = vmatprep.subr.mxu0 0.0
    %9243 = vmatpush1.msra.mxu0 0.0
    %9244 = vmatprep.subr.mxu0 0.0
    %9245 = vmatpush1.msra.mxu0 0.0
    %9246 = vmatprep.mubr.f32.mxu0 0.0
    %9247 = vmatmul.mubr.f32.gmra.mrb[0].mxu0 %v8766
    %v9248 = vpop.f32.mrb[0].mxu0
    %v9249 = vadd.f32 0.0, %v9248
    %v9250 = vpop.f32.mrb[0].mxu0
    %9251 = vdwg.mxu0
    %v9252 = vadd.f32 %v8835, %v9178
    %v9253 = vxor.u32 %v9252, 2147483648
    %v9254 = vmul.f32 %v9253, 1.442695
    %v9255 = vpow.pop %v9254
    %v9256 = vadd.f32 %v9255, 1.0
    %v9257 = vrcp.pop %v9256
    %v9258 = vmul.f32 1.0, %v9257
    %v9259 = vadd.f32 %v8837, %v9180
    %v9260 = vxor.u32 %v9259, 2147483648
    %v9261 = vmul.f32 %v9260, 1.442695
    %v9262 = vpow.pop %v9261
    %v9263 = vadd.f32 %v9262, 1.0
    %v9264 = vrcp.pop %v9263
    %v9265 = vmul.f32 1.0, %v9264
    %v9266 = vadd.f32 %v9249, %v372
    %v9267 = vmul.f32 %v9258, %v9266
    %v9268 = vadd.f32 %v8906, %v9267
    %v9269 = vtanh.pop %v9268
    %v9270 = vsub.f32 1.0, %v9265
    %v9271 = vmul.f32 %v9270, %v9269
    %v9272 = vmul.f32 %v9265, %v8766
    %v9273 = vadd.f32 %v9271, %v9272
    %9274 = vst [vmem:[%s15 + $0x1c] sm:$0x3] %v9273
    %9275 = vmatprep.subr.mxu0 %v265
    %9276 = vmatpush1.msra.mxu0 %v264
    %9277 = vmatprep.subr.mxu0 %v268
    %9278 = vmatpush1.msra.mxu0 %v267
    %9279 = vmatprep.subr.mxu0 %v271
    %9280 = vmatpush1.msra.mxu0 %v270
    %9281 = vmatprep.subr.mxu0 %v274
    %9282 = vmatpush1.msra.mxu0 %v273
    %9283 = vmatprep.subr.mxu0 %v277
    %9284 = vmatpush1.msra.mxu0 %v276
    %9285 = vmatprep.subr.mxu0 %v280
    %9286 = vmatpush1.msra.mxu0 %v279
    %9287 = vmatprep.subr.mxu0 %v283
    %9288 = vmatpush1.msra.mxu0 %v282
    %9289 = vmatprep.subr.mxu0 %v286
    %9290 = vmatpush1.msra.mxu0 %v285
    %9291 = vmatprep.subr.mxu0 %v289
    %9292 = vmatpush1.msra.mxu0 %v288
    %9293 = vmatprep.subr.mxu0 %v292
    %9294 = vmatpush1.msra.mxu0 %v291
    %9295 = vmatprep.subr.mxu0 %v295
    %9296 = vmatpush1.msra.mxu0 %v294
    %9297 = vmatprep.subr.mxu0 %v298
    %9298 = vmatpush1.msra.mxu0 %v297
    %9299 = vmatprep.subr.mxu0 %v301
    %9300 = vmatpush1.msra.mxu0 %v300
    %9301 = vmatprep.subr.mxu0 %v304
    %9302 = vmatpush1.msra.mxu0 %v303
    %9303 = vmatprep.subr.mxu0 %v307
    %9304 = vmatpush1.msra.mxu0 %v306
    %9305 = vmatprep.subr.mxu0 %v310
    %9306 = vmatpush1.msra.mxu0 %v309
    %9307 = vmatprep.subr.mxu0 0.0
    %9308 = vmatpush1.msra.mxu0 0.0
    %9309 = vmatprep.subr.mxu0 0.0
    %9310 = vmatpush1.msra.mxu0 0.0
    %9311 = vmatprep.subr.mxu0 0.0
    %9312 = vmatpush1.msra.mxu0 0.0
    %9313 = vmatprep.subr.mxu0 0.0
    %9314 = vmatpush1.msra.mxu0 0.0
    %9315 = vmatprep.subr.mxu0 0.0
    %9316 = vmatpush1.msra.mxu0 0.0
    %9317 = vmatprep.subr.mxu0 0.0
    %9318 = vmatpush1.msra.mxu0 0.0
    %9319 = vmatprep.subr.mxu0 0.0
    %9320 = vmatpush1.msra.mxu0 0.0
    %9321 = vmatprep.subr.mxu0 0.0
    %9322 = vmatpush1.msra.mxu0 0.0
    %9323 = vmatprep.subr.mxu0 0.0
    %9324 = vmatpush1.msra.mxu0 0.0
    %9325 = vmatprep.subr.mxu0 0.0
    %9326 = vmatpush1.msra.mxu0 0.0
    %9327 = vmatprep.subr.mxu0 0.0
    %9328 = vmatpush1.msra.mxu0 0.0
    %9329 = vmatprep.subr.mxu0 0.0
    %9330 = vmatpush1.msra.mxu0 0.0
    %9331 = vmatprep.subr.mxu0 0.0
    %9332 = vmatpush1.msra.mxu0 0.0
    %9333 = vmatprep.subr.mxu0 0.0
    %9334 = vmatpush1.msra.mxu0 0.0
    %9335 = vmatprep.subr.mxu0 0.0
    %9336 = vmatpush1.msra.mxu0 0.0
    %9337 = vmatprep.subr.mxu0 0.0
    %9338 = vmatpush1.msra.mxu0 0.0
    %9339 = vmatprep.mubr.f32.mxu0 0.0
    %9340 = vmatmul.mubr.f32.gmra.mrb[0].mxu0 %v9110
    %v9341 = vpop.f32.mrb[0].mxu0
    %v9342 = vadd.f32 %v379, %v9341
    %v9343 = vpop.f32.mrb[0].mxu0
    %v9344 = vadd.f32 %v383, %v9343
    %9345 = vdwg.mxu0
    %9346 = vmatprep.subr.mxu0 0.0
    %9347 = vmatpush1.msra.mxu0 %v266
    %9348 = vmatprep.subr.mxu0 0.0
    %9349 = vmatpush1.msra.mxu0 %v269
    %9350 = vmatprep.subr.mxu0 0.0
    %9351 = vmatpush1.msra.mxu0 %v272
    %9352 = vmatprep.subr.mxu0 0.0
    %9353 = vmatpush1.msra.mxu0 %v275
    %9354 = vmatprep.subr.mxu0 0.0
    %9355 = vmatpush1.msra.mxu0 %v278
    %9356 = vmatprep.subr.mxu0 0.0
    %9357 = vmatpush1.msra.mxu0 %v281
    %9358 = vmatprep.subr.mxu0 0.0
    %9359 = vmatpush1.msra.mxu0 %v284
    %9360 = vmatprep.subr.mxu0 0.0
    %9361 = vmatpush1.msra.mxu0 %v287
    %9362 = vmatprep.subr.mxu0 0.0
    %9363 = vmatpush1.msra.mxu0 %v290
    %9364 = vmatprep.subr.mxu0 0.0
    %9365 = vmatpush1.msra.mxu0 %v293
    %9366 = vmatprep.subr.mxu0 0.0
    %9367 = vmatpush1.msra.mxu0 %v296
    %9368 = vmatprep.subr.mxu0 0.0
    %9369 = vmatpush1.msra.mxu0 %v299
    %9370 = vmatprep.subr.mxu0 0.0
    %9371 = vmatpush1.msra.mxu0 %v302
    %9372 = vmatprep.subr.mxu0 0.0
    %9373 = vmatpush1.msra.mxu0 %v305
    %9374 = vmatprep.subr.mxu0 0.0
    %9375 = vmatpush1.msra.mxu0 %v308
    %9376 = vmatprep.subr.mxu0 0.0
    %9377 = vmatpush1.msra.mxu0 %v311
    %9378 = vmatprep.subr.mxu0 0.0
    %9379 = vmatpush1.msra.mxu0 0.0
    %9380 = vmatprep.subr.mxu0 0.0
    %9381 = vmatpush1.msra.mxu0 0.0
    %9382 = vmatprep.subr.mxu0 0.0
    %9383 = vmatpush1.msra.mxu0 0.0
    %9384 = vmatprep.subr.mxu0 0.0
    %9385 = vmatpush1.msra.mxu0 0.0
    %9386 = vmatprep.subr.mxu0 0.0
    %9387 = vmatpush1.msra.mxu0 0.0
    %9388 = vmatprep.subr.mxu0 0.0
    %9389 = vmatpush1.msra.mxu0 0.0
    %9390 = vmatprep.subr.mxu0 0.0
    %9391 = vmatpush1.msra.mxu0 0.0
    %9392 = vmatprep.subr.mxu0 0.0
    %9393 = vmatpush1.msra.mxu0 0.0
    %9394 = vmatprep.subr.mxu0 0.0
    %9395 = vmatpush1.msra.mxu0 0.0
    %9396 = vmatprep.subr.mxu0 0.0
    %9397 = vmatpush1.msra.mxu0 0.0
    %9398 = vmatprep.subr.mxu0 0.0
    %9399 = vmatpush1.msra.mxu0 0.0
    %9400 = vmatprep.subr.mxu0 0.0
    %9401 = vmatpush1.msra.mxu0 0.0
    %9402 = vmatprep.subr.mxu0 0.0
    %9403 = vmatpush1.msra.mxu0 0.0
    %9404 = vmatprep.subr.mxu0 0.0
    %9405 = vmatpush1.msra.mxu0 0.0
    %9406 = vmatprep.subr.mxu0 0.0
    %9407 = vmatpush1.msra.mxu0 0.0
    %9408 = vmatprep.subr.mxu0 0.0
    %9409 = vmatpush1.msra.mxu0 0.0
    %9410 = vmatprep.mubr.f32.mxu0 0.0
    %9411 = vmatmul.mubr.f32.gmra.mrb[0].mxu0 %v9110
    %v9412 = vpop.f32.mrb[0].mxu0
    %v9413 = vadd.f32 %v387, %v9412
    %v9414 = vpop.f32.mrb[0].mxu0
    %9415 = vdwg.mxu0
    %9416 = vmatprep.subr.mxu0 %v313
    %9417 = vmatpush1.msra.mxu0 %v312
    %9418 = vmatprep.subr.mxu0 %v316
    %9419 = vmatpush1.msra.mxu0 %v315
    %9420 = vmatprep.subr.mxu0 %v319
    %9421 = vmatpush1.msra.mxu0 %v318
    %9422 = vmatprep.subr.mxu0 %v322
    %9423 = vmatpush1.msra.mxu0 %v321
    %9424 = vmatprep.subr.mxu0 %v325
    %9425 = vmatpush1.msra.mxu0 %v324
    %9426 = vmatprep.subr.mxu0 %v328
    %9427 = vmatpush1.msra.mxu0 %v327
    %9428 = vmatprep.subr.mxu0 %v331
    %9429 = vmatpush1.msra.mxu0 %v330
    %9430 = vmatprep.subr.mxu0 %v334
    %9431 = vmatpush1.msra.mxu0 %v333
    %9432 = vmatprep.subr.mxu0 %v337
    %9433 = vmatpush1.msra.mxu0 %v336
    %9434 = vmatprep.subr.mxu0 %v340
    %9435 = vmatpush1.msra.mxu0 %v339
    %9436 = vmatprep.subr.mxu0 %v343
    %9437 = vmatpush1.msra.mxu0 %v342
    %9438 = vmatprep.subr.mxu0 %v346
    %9439 = vmatpush1.msra.mxu0 %v345
    %9440 = vmatprep.subr.mxu0 %v349
    %9441 = vmatpush1.msra.mxu0 %v348
    %9442 = vmatprep.subr.mxu0 %v352
    %9443 = vmatpush1.msra.mxu0 %v351
    %9444 = vmatprep.subr.mxu0 %v355
    %9445 = vmatpush1.msra.mxu0 %v354
    %9446 = vmatprep.subr.mxu0 %v358
    %9447 = vmatpush1.msra.mxu0 %v357
    %9448 = vmatprep.subr.mxu0 0.0
    %9449 = vmatpush1.msra.mxu0 0.0
    %9450 = vmatprep.subr.mxu0 0.0
    %9451 = vmatpush1.msra.mxu0 0.0
    %9452 = vmatprep.subr.mxu0 0.0
    %9453 = vmatpush1.msra.mxu0 0.0
    %9454 = vmatprep.subr.mxu0 0.0
    %9455 = vmatpush1.msra.mxu0 0.0
    %9456 = vmatprep.subr.mxu0 0.0
    %9457 = vmatpush1.msra.mxu0 0.0
    %9458 = vmatprep.subr.mxu0 0.0
    %9459 = vmatpush1.msra.mxu0 0.0
    %9460 = vmatprep.subr.mxu0 0.0
    %9461 = vmatpush1.msra.mxu0 0.0
    %9462 = vmatprep.subr.mxu0 0.0
    %9463 = vmatpush1.msra.mxu0 0.0
    %9464 = vmatprep.subr.mxu0 0.0
    %9465 = vmatpush1.msra.mxu0 0.0
    %9466 = vmatprep.subr.mxu0 0.0
    %9467 = vmatpush1.msra.mxu0 0.0
    %9468 = vmatprep.subr.mxu0 0.0
    %9469 = vmatpush1.msra.mxu0 0.0
    %9470 = vmatprep.subr.mxu0 0.0
    %9471 = vmatpush1.msra.mxu0 0.0
    %9472 = vmatprep.subr.mxu0 0.0
    %9473 = vmatpush1.msra.mxu0 0.0
    %9474 = vmatprep.subr.mxu0 0.0
    %9475 = vmatpush1.msra.mxu0 0.0
    %9476 = vmatprep.subr.mxu0 0.0
    %9477 = vmatpush1.msra.mxu0 0.0
    %9478 = vmatprep.subr.mxu0 0.0
    %9479 = vmatpush1.msra.mxu0 0.0
    %9480 = vmatprep.mubr.f32.mxu0 0.0
    %9481 = vmatmul.mubr.f32.gmra.mrb[0].mxu0 %v9273
    %v9482 = vpop.f32.mrb[0].mxu0
    %v9483 = vadd.f32 0.0, %v9482
    %v9484 = vpop.f32.mrb[0].mxu0
    %v9485 = vadd.f32 0.0, %v9484
    %9486 = vdwg.mxu0
    %9487 = vmatprep.subr.mxu0 0.0
    %9488 = vmatpush1.msra.mxu0 %v314
    %9489 = vmatprep.subr.mxu0 0.0
    %9490 = vmatpush1.msra.mxu0 %v317
    %9491 = vmatprep.subr.mxu0 0.0
    %9492 = vmatpush1.msra.mxu0 %v320
    %9493 = vmatprep.subr.mxu0 0.0
    %9494 = vmatpush1.msra.mxu0 %v323
    %9495 = vmatprep.subr.mxu0 0.0
    %9496 = vmatpush1.msra.mxu0 %v326
    %9497 = vmatprep.subr.mxu0 0.0
    %9498 = vmatpush1.msra.mxu0 %v329
    %9499 = vmatprep.subr.mxu0 0.0
    %9500 = vmatpush1.msra.mxu0 %v332
    %9501 = vmatprep.subr.mxu0 0.0
    %9502 = vmatpush1.msra.mxu0 %v335
    %9503 = vmatprep.subr.mxu0 0.0
    %9504 = vmatpush1.msra.mxu0 %v338
    %9505 = vmatprep.subr.mxu0 0.0
    %9506 = vmatpush1.msra.mxu0 %v341
    %9507 = vmatprep.subr.mxu0 0.0
    %9508 = vmatpush1.msra.mxu0 %v344
    %9509 = vmatprep.subr.mxu0 0.0
    %9510 = vmatpush1.msra.mxu0 %v347
    %9511 = vmatprep.subr.mxu0 0.0
    %9512 = vmatpush1.msra.mxu0 %v350
    %9513 = vmatprep.subr.mxu0 0.0
    %9514 = vmatpush1.msra.mxu0 %v353
    %9515 = vmatprep.subr.mxu0 0.0
    %9516 = vmatpush1.msra.mxu0 %v356
    %9517 = vmatprep.subr.mxu0 0.0
    %9518 = vmatpush1.msra.mxu0 %v359
    %9519 = vmatprep.subr.mxu0 0.0
    %9520 = vmatpush1.msra.mxu0 0.0
    %9521 = vmatprep.subr.mxu0 0.0
    %9522 = vmatpush1.msra.mxu0 0.0
    %9523 = vmatprep.subr.mxu0 0.0
    %9524 = vmatpush1.msra.mxu0 0.0
    %9525 = vmatprep.subr.mxu0 0.0
    %9526 = vmatpush1.msra.mxu0 0.0
    %9527 = vmatprep.subr.mxu0 0.0
    %9528 = vmatpush1.msra.mxu0 0.0
    %9529 = vmatprep.subr.mxu0 0.0
    %9530 = vmatpush1.msra.mxu0 0.0
    %9531 = vmatprep.subr.mxu0 0.0
    %9532 = vmatpush1.msra.mxu0 0.0
    %9533 = vmatprep.subr.mxu0 0.0
    %9534 = vmatpush1.msra.mxu0 0.0
    %9535 = vmatprep.subr.mxu0 0.0
    %9536 = vmatpush1.msra.mxu0 0.0
    %9537 = vmatprep.subr.mxu0 0.0
    %9538 = vmatpush1.msra.mxu0 0.0
    %9539 = vmatprep.subr.mxu0 0.0
    %9540 = vmatpush1.msra.mxu0 0.0
    %9541 = vmatprep.subr.mxu0 0.0
    %9542 = vmatpush1.msra.mxu0 0.0
    %9543 = vmatprep.subr.mxu0 0.0
    %9544 = vmatpush1.msra.mxu0 0.0
    %9545 = vmatprep.subr.mxu0 0.0
    %9546 = vmatpush1.msra.mxu0 0.0
    %9547 = vmatprep.subr.mxu0 0.0
    %9548 = vmatpush1.msra.mxu0 0.0
    %9549 = vmatprep.subr.mxu0 0.0
    %9550 = vmatpush1.msra.mxu0 0.0
    %9551 = vmatprep.mubr.f32.mxu0 0.0
    %9552 = vmatmul.mubr.f32.gmra.mrb[0].mxu0 %v9273
    %v9553 = vpop.f32.mrb[0].mxu0
    %v9554 = vadd.f32 0.0, %v9553
    %v9555 = vpop.f32.mrb[0].mxu0
    %9556 = vdwg.mxu0
    %v9557 = vadd.f32 %v9342, %v9483
    %v9558 = vxor.u32 %v9557, 2147483648
    %v9559 = vmul.f32 %v9558, 1.442695
    %v9560 = vpow.pop %v9559
    %v9561 = vadd.f32 %v9560, 1.0
    %v9562 = vrcp.pop %v9561
    %v9563 = vmul.f32 1.0, %v9562
    %v9564 = vadd.f32 %v9344, %v9485
    %v9565 = vxor.u32 %v9564, 2147483648
    %v9566 = vmul.f32 %v9565, 1.442695
    %v9567 = vpow.pop %v9566
    %v9568 = vadd.f32 %v9567, 1.0
    %v9569 = vrcp.pop %v9568
    %v9570 = vmul.f32 1.0, %v9569
    %v9571 = vadd.f32 %v9554, %v372
    %v9572 = vmul.f32 %v9563, %v9571
    %v9573 = vadd.f32 %v9413, %v9572
    %v9574 = vtanh.pop %v9573
    %v9575 = vsub.f32 1.0, %v9570
    %v9576 = vmul.f32 %v9575, %v9574
    %v9577 = vmul.f32 %v9570, %v9273
    %v9578 = vadd.f32 %v9576, %v9577
    %9579 = vst [vmem:[%s15 + $0x1e] sm:$0x3] %v9578
    // Predicated region
    $region74: #{gyro_encoder_forward.1} parent=1 // pred_check
      _
    $region75: #{gyro_encoder_forward.1} parent=1 // pred_check_branch
      %9581 = sbr.rel (0) target = $region77
    $region76: #{gyro_encoder_forward.1} parent=1 // pred_region
      _
    $region77: #{gyro_encoder_forward.1} parent=1 // pred_fallthru
      _
    // Predicated region
    $region78: #{gyro_encoder_forward.1} parent=1 // pred_check
      _
    $region79: #{gyro_encoder_forward.1} parent=1 // pred_check_branch
      %9583 = sbr.rel (0) target = $region81
    $region80: #{gyro_encoder_forward.1} parent=1 // pred_region
      _
    $region81: #{gyro_encoder_forward.1} parent=1 // pred_fallthru
      _
    %9584 = vsyncpa [#allocation4], 1
    %9585 = vsyncpa [#allocation6], 1

</llo_original>
